<compile_context>
chip_gen: v7x
topology: tpu7x:2x2x1
jax: 0.10.0
libtpu: 0.0.40
codegen_flags: <defaults>
</compile_context>

<pallas_src>
import functools

import numpy as np
import jax
import jax.numpy as jnp
from jax.experimental import pallas as pl
from jax.experimental.pallas import tpu as pltpu

NUM_HEADS = 8
HIDDEN = 64           # stand-in for hidden_size=768 at small test scale
EPS = 1e-5
NEG_INF = -1e30


def _sigmoid(x):
    return 1.0 / (1.0 + jnp.exp(-x))


# ---------------------------------------------------------------------------
# Kernel 1: fused multi-head attention (all 5 combos in one gridded call)
# ---------------------------------------------------------------------------

def fused_mha_kernel(qsel_ref, ksel_ref, wsel_ref,            # scalar prefetch
                     q_ref, kv_ref, kmask_ref, qw_ref,
                     wq_ref, bq_ref, wk_ref, bk_ref, wv_ref, bv_ref,
                     wo_ref, bo_ref,
                     mha_ref, qmean_ref, *, num_heads):
    del qsel_ref, ksel_ref, wsel_ref   # only used by the index_maps
    q = q_ref[0]                  # (B, S, H)  zero-padded to Smax
    kv = kv_ref[0]                # (B, S, H)  key == value for every combo
    B, S, H = q.shape
    d_k = H // num_heads
    scale = 1.0 / float(np.sqrt(d_k))

    kmask = kmask_ref[0]          # (1, S)  additive: 0 valid, -1e30 padded key
    qw = qw_ref[0]                # (S, 1)  1/Sq for valid query rows else 0

    # Raw q-mean (== mean(background) for combo 1, mean(issues) for combo 3);
    # emitted so the heads kernel never re-reads the (B, S, H) tensors.
    qmean_ref[0] = jnp.sum(q * qw, axis=1)                        # (B, H)

    # Projections as full-width 2-D matmuls (K and V kept separate at H=64:
    # a fused (H, 2H) weight would force a lane-64 slice every step).
    q2 = q.reshape(B * S, H)
    kv2 = kv.reshape(B * S, H)
    qp = (jnp.dot(q2, wq_ref[0], preferred_element_type=jnp.float32)
          + bq_ref[0]).reshape(B, S, H)
    kp = (jnp.dot(kv2, wk_ref[0], preferred_element_type=jnp.float32)
          + bk_ref[0]).reshape(B, S, H)
    vp = (jnp.dot(kv2, wv_ref[0], preferred_element_type=jnp.float32)
          + bv_ref[0]).reshape(B, S, H)

    # Per-head attention with the sequence-mean folded into the attention
    # weights:  ctx_mean_h = (sum_q qw[q] * softmax_k(s[q,:])) @ v_h.
    ctx_cols = []
    for h in range(num_heads):
        lo = h * d_k
        qh = qp[:, :, lo:lo + d_k]
        kh = kp[:, :, lo:lo + d_k]
        vh = vp[:, :, lo:lo + d_k]
        s = jnp.einsum('bqd,bkd->bqk', qh, kh,
                       preferred_element_type=jnp.float32) * scale
        s = s + kmask                                   # mask padded keys
        s = s - jnp.max(s, axis=-1, keepdims=True)
        e = jnp.exp(s)
        p = e * pl.reciprocal(jnp.sum(e, axis=-1, keepdims=True), approx=True)
        pbar = jnp.sum(p * qw, axis=1, keepdims=True)              # (B, 1, Sk)
        ctx_cols.append(jnp.einsum('bqk,bkd->bqd', pbar, vh,
                                   preferred_element_type=jnp.float32))  # (B,1,dk)
    ctx_mean = jnp.sum(jnp.concatenate(ctx_cols, axis=-1), axis=1)  # (B, H)

    mha_ref[0] = (jnp.dot(ctx_mean, wo_ref[0], preferred_element_type=jnp.float32)
                  + bo_ref[0])


def fused_mha_pallas(qsel, ksel, wsel, src_stack, kmask, qweight,
                     wq_s, bq_s, wk_s, bk_s, wv_s, bv_s, wo_s, bo_s,
                     *, num_heads):
    _, B, Smax, H = src_stack.shape
    C = kmask.shape[0]
    kern = functools.partial(fused_mha_kernel, num_heads=num_heads)

    grid_spec = pltpu.PrefetchScalarGridSpec(
        num_scalar_prefetch=3,
        grid=(C,),
        in_specs=[
            # q / kv selected out of the single (3, B, Smax, H) source stack
            pl.BlockSpec((1, B, Smax, H), lambda c, qs, ks, ws: (qs[c], 0, 0, 0)),
            pl.BlockSpec((1, B, Smax, H), lambda c, qs, ks, ws: (ks[c], 0, 0, 0)),
            pl.BlockSpec((1, 1, Smax), lambda c, qs, ks, ws: (c, 0, 0)),
            pl.BlockSpec((1, Smax, 1), lambda c, qs, ks, ws: (c, 0, 0)),
            pl.BlockSpec((1, H, H), lambda c, qs, ks, ws: (ws[c], 0, 0)),
            pl.BlockSpec((1, 1, H), lambda c, qs, ks, ws: (ws[c], 0, 0)),
            pl.BlockSpec((1, H, H), lambda c, qs, ks, ws: (ws[c], 0, 0)),
            pl.BlockSpec((1, 1, H), lambda c, qs, ks, ws: (ws[c], 0, 0)),
            pl.BlockSpec((1, H, H), lambda c, qs, ks, ws: (ws[c], 0, 0)),
            pl.BlockSpec((1, 1, H), lambda c, qs, ks, ws: (ws[c], 0, 0)),
            pl.BlockSpec((1, H, H), lambda c, qs, ks, ws: (ws[c], 0, 0)),
            pl.BlockSpec((1, 1, H), lambda c, qs, ks, ws: (ws[c], 0, 0)),
        ],
        out_specs=[
            pl.BlockSpec((1, B, H), lambda c, qs, ks, ws: (c, 0, 0)),   # MHA means
            pl.BlockSpec((1, B, H), lambda c, qs, ks, ws: (c, 0, 0)),   # raw q-means
        ],
    )

    # Advisory cost estimate so XLA can overlap surrounding ops with this call.
    flops = C * int(3 * 2 * B * Smax * H * H        # q/k/v projections
                    + 2 * B * Smax * Smax * H       # QK^T (all heads)
                    + 2 * B * Smax * H              # pbar @ V
                    + 2 * B * H * H)                # output projection
    transcendentals = C * int(B * num_heads * Smax * Smax)
    bytes_accessed = 4 * int(2 * C * B * Smax * H + 3 * (4 * H * H + 4 * H)
                             + 2 * C * B * H + 2 * C * Smax)

    return pl.pallas_call(
        kern,
        out_shape=(jax.ShapeDtypeStruct((C, B, H), jnp.float32),
                   jax.ShapeDtypeStruct((C, B, H), jnp.float32)),
        grid_spec=grid_spec,
        compiler_params=pltpu.CompilerParams(
            dimension_semantics=("parallel",),
            vmem_limit_bytes=64 * 1024 * 1024),
        cost_estimate=pl.CostEstimate(flops=flops,
                                      transcendentals=transcendentals,
                                      bytes_accessed=bytes_accessed),
    )(qsel, ksel, wsel, src_stack, src_stack, kmask, qweight,
      wq_s, bq_s, wk_s, bk_s, wv_s, bv_s, wo_s, bo_s)


# ---------------------------------------------------------------------------
# Kernel 2: fused post-attention heads (preds, score mapper, aggregator,
#           classifier) with one lane-dense packed output
# ---------------------------------------------------------------------------

def heads_kernel(mha_ref, qmean_ref,
                 bp_w1, bp_b1, bp_w2r, bp_b2,
                 ip_w1, ip_b1, ip_w2r, ip_b2,
                 sm_w1a, sm_w1b, sm_b1, sm_s1, sm_t1,
                 sm_w2, sm_b2, sm_s2, sm_t2, sm_w3r, sm_b3,
                 agg_w, agg_b,
                 cl_w1, cl_b1, cl_s1, cl_t1, cl_w2r, cl_b2,
                 o_ref):
    # Means produced by the MHA kernel (no (B,S,H) re-read from HBM):
    bg_mean = qmean_ref[1]       # q-mean of combo 1 == mean(background, dim=1)
    iss_mean = qmean_ref[3]      # q-mean of combo 3 == mean(issues, dim=1)

    def head_1col(x, w1, b1, w2r, b2):
        h = jnp.maximum(
            jnp.dot(x, w1[...], preferred_element_type=jnp.float32) + b1[...], 0.0)
        # N=1 output column: VPU multiply + lane reduction, not a (.,1) matmul.
        return _sigmoid(jnp.sum(h * w2r[...], axis=1, keepdims=True) + b2[...])

    bg_pred = head_1col(bg_mean, bp_w1, bp_b1, bp_w2r, bp_b2)       # (B, 1)
    iss_pred = head_1col(iss_mean, ip_w1, ip_b1, ip_w2r, ip_b2)     # (B, 1)

    ft = mha_ref[0]
    ftb = mha_ref[1]
    fbt = mha_ref[2]
    fti = mha_ref[3]
    fit = mha_ref[4]

    # bg_score_mapper(cat([fbt, fit])) with the concat folded into split W1.
    h = (jnp.dot(fbt, sm_w1a[...], preferred_element_type=jnp.float32)
         + jnp.dot(fit, sm_w1b[...], preferred_element_type=jnp.float32)
         + sm_b1[...])
    h = jnp.maximum(h * sm_s1[...] + sm_t1[...], 0.0)
    h = jnp.dot(h, sm_w2[...], preferred_element_type=jnp.float32) + sm_b2[...]
    h = jnp.maximum(h * sm_s2[...] + sm_t2[...], 0.0)
    fbt_score = _sigmoid(jnp.sum(h * sm_w3r[...], axis=1, keepdims=True) + sm_b3[...])
    # NOTE: fbt_score*fbt and the whole iss_score_mapper branch never reach the
    # module outputs (dead in the torch forward as well) -> second mapper dropped.

    # MaskAttention aggregator over [ft, ftb, fti], batch-vectorized.
    aw = agg_w[...]                               # (1, H)
    ab = agg_b[...]                               # (1, 1)
    s0 = jnp.sum(ft * aw, axis=1, keepdims=True) + ab
    s1 = jnp.sum(ftb * aw, axis=1, keepdims=True) + ab
    s2 = jnp.sum(fti * aw, axis=1, keepdims=True) + ab
    m = jnp.maximum(jnp.maximum(s0, s1), s2)
    e0 = jnp.exp(s0 - m)
    e1 = jnp.exp(s1 - m)
    e2 = jnp.exp(s2 - m)
    inv = pl.reciprocal(e0 + e1 + e2, approx=True)
    fusion = (e0 * ft + e1 * ftb + e2 * fti) * inv                # (B, H)

    # classifier: Linear + BN(eval) + ReLU -> Linear -> Sigmoid
    h = jnp.dot(fusion, cl_w1[...], preferred_element_type=jnp.float32) + cl_b1[...]
    h = jnp.maximum(h * cl_s1[...] + cl_t1[...], 0.0)
    out_pred = _sigmoid(jnp.sum(h * cl_w2r[...], axis=1, keepdims=True) + cl_b2[...])

    # Lane-dense packed output: lane0=bg_pred, lane1=iss_pred, lane2=classifier,
    # lane3=fbt_score (kept observable; ignored by the wrapper).
    lanes = jax.lax.broadcasted_iota(jnp.int32, o_ref.shape, 1)
    res = jnp.where(lanes == 0, bg_pred, 0.0)
    res = jnp.where(lanes == 1, iss_pred, res)
    res = jnp.where(lanes == 2, out_pred, res)
    res = jnp.where(lanes == 3, fbt_score, res)
    o_ref[...] = res


def heads_pallas(mha_means, qmeans, params):
    _, B, H = mha_means.shape
    bp_w1, bp_b1, bp_w2, bp_b2 = params['bg_pred']
    ip_w1, ip_b1, ip_w2, ip_b2 = params['iss_pred']
    sm_w1, sm_b1, sm_s1, sm_t1, sm_w2, sm_b2, sm_s2, sm_t2, sm_w3, sm_b3 = \
        params['bg_score_mapper']
    sm_w1a, sm_w1b = sm_w1[:H], sm_w1[H:]
    agg_w, agg_b = params['aggregator']
    cl_w1, cl_b1, cl_s1, cl_t1, cl_w2, cl_b2 = params['classifier']

    packed = pl.pallas_call(
        heads_kernel,
        out_shape=jax.ShapeDtypeStruct((B, 128), jnp.float32),
        compiler_params=pltpu.CompilerParams(vmem_limit_bytes=32 * 1024 * 1024),
    )(mha_means, qmeans,
      bp_w1, bp_b1, bp_w2.T, bp_b2,
      ip_w1, ip_b1, ip_w2.T, ip_b2,
      sm_w1a, sm_w1b, sm_b1, sm_s1, sm_t1,
      sm_w2, sm_b2, sm_s2, sm_t2, sm_w3.T, sm_b3,
      agg_w, agg_b,
      cl_w1, cl_b1, cl_s1, cl_t1, cl_w2.T, cl_b2)
    return packed[:, 0:1], packed[:, 1:2], packed[:, 2:3]


# ---------------------------------------------------------------------------
# Full forward pass (matches FakeNewDetecter.forward given BERT hidden states)
# ---------------------------------------------------------------------------

def forward_pallas(params, text, background, issues):
    B, St, H = text.shape
    Sb = background.shape[1]
    Si = issues.shape[1]
    Smax = max(St, Sb, Si)

    def pad_s(x):
        S = x.shape[1]
        return x if S == Smax else jnp.pad(x, ((0, 0), (0, Smax - S), (0, 0)))

    # ONE (3, B, Smax, H) source stack; q/kv per combo are picked via qsel/ksel
    # scalar-prefetch vectors inside the index_maps (no 5x input duplication).
    src_stack = jnp.stack([pad_s(text), pad_s(background), pad_s(issues)], axis=0)

    # 5 (q, kv) combinations -> ft, ftb, fbt, fti, fit  (key == value in all).
    # sources: 0=text, 1=background, 2=issues
    qsel = jnp.asarray(np.array([0, 1, 0, 2, 0], np.int32))
    ksel = jnp.asarray(np.array([0, 0, 1, 0, 2], np.int32))
    # weight set: 0=attention, 1=bg_cross_att, 2=iss_cross_att
    wsel = jnp.asarray(np.array([0, 1, 1, 2, 2], np.int32))
    sq = [St, Sb, St, Si, St]
    sk = [St, St, Sb, St, Si]

    kmask_np = np.zeros((5, 1, Smax), np.float32)
    qweight_np = np.zeros((5, Smax, 1), np.float32)
    for c in range(5):
        kmask_np[c, 0, sk[c]:] = NEG_INF
        qweight_np[c, :sq[c], 0] = 1.0 / sq[c]
    kmask = jnp.asarray(kmask_np)
    qweight = jnp.asarray(qweight_np)

    sets = [params['attention'], params['bg_cross_att'], params['iss_cross_att']]
    wq_s = jnp.stack([s[0] for s in sets])          # (3, H, H)
    bq_s = jnp.stack([s[1] for s in sets])          # (3, 1, H)
    wk_s = jnp.stack([s[2] for s in sets])
    bk_s = jnp.stack([s[3] for s in sets])
    wv_s = jnp.stack([s[4] for s in sets])
    bv_s = jnp.stack([s[5] for s in sets])
    wo_s = jnp.stack([s[6] for s in sets])
    bo_s = jnp.stack([s[7] for s in sets])

    mha_means, qmeans = fused_mha_pallas(
        qsel, ksel, wsel, src_stack, kmask, qweight,
        wq_s, bq_s, wk_s, bk_s, wv_s, bv_s, wo_s, bo_s,
        num_heads=NUM_HEADS)                         # (5, B, H) each
    return heads_pallas(mha_means, qmeans, params)


# ---------------------------------------------------------------------------
# Pure-JAX reference (for correctness check)
# ---------------------------------------------------------------------------

def mha_ref(q, k, v, p, num_heads=NUM_HEADS):
    wq, bq, wk, bk, wv, bv, wo, bo = p
    B, Sq, H = q.shape
    d_k = H // num_heads
    qp = (q @ wq + bq).reshape(B, -1, num_heads, d_k).transpose(0, 2, 1, 3)
    kp = (k @ wk + bk).reshape(B, -1, num_heads, d_k).transpose(0, 2, 1, 3)
    vp = (v @ wv + bv).reshape(B, -1, num_heads, d_k).transpose(0, 2, 1, 3)
    s = jnp.einsum('bhqd,bhkd->bhqk', qp, kp) / float(np.sqrt(d_k))
    a = jax.nn.softmax(s, axis=-1)
    ctx = jnp.einsum('bhqk,bhkd->bhqd', a, vp).transpose(0, 2, 1, 3).reshape(B, Sq, H)
    return ctx @ wo + bo


def pred_head_ref(x, p):
    w1, b1, w2, b2 = p
    h = jnp.maximum(x @ w1 + b1, 0.0)
    return jax.nn.sigmoid(h @ w2 + b2)


def score_mapper_ref(x, p):
    w1, b1, s1, t1, w2, b2, s2, t2, w3, b3 = p
    h = jnp.maximum((x @ w1 + b1) * s1 + t1, 0.0)
    h = jnp.maximum((h @ w2 + b2) * s2 + t2, 0.0)
    return jax.nn.sigmoid(h @ w3 + b3)


def classifier_ref(x, p):
    w1, b1, s1, t1, w2, b2 = p
    h = jnp.maximum((x @ w1 + b1) * s1 + t1, 0.0)
    return jax.nn.sigmoid(h @ w2 + b2)


def aggregator_ref(x, p):
    w, b = p   # (1, H), (1, 1)
    s = jnp.einsum('bsh,h->bs', x, w[0]) + b[0, 0]
    pr = jax.nn.softmax(s, axis=-1)
    return jnp.einsum('bs,bsh->bh', pr, x)


def forward_ref(params, text, background, issues):
    bg_pred = pred_head_ref(jnp.mean(background, axis=1), params['bg_pred'])
    iss_pred = pred_head_ref(jnp.mean(issues, axis=1), params['iss_pred'])
    ft = jnp.mean(mha_ref(text, text, text, params['attention']), axis=1)
    ftb = jnp.mean(mha_ref(background, text, text, params['bg_cross_att']), axis=1)
    fbt = jnp.mean(mha_ref(text, background, background, params['bg_cross_att']), axis=1)
    fti = jnp.mean(mha_ref(issues, text, text, params['iss_cross_att']), axis=1)
    fit = jnp.mean(mha_ref(text, issues, issues, params['iss_cross_att']), axis=1)
    fbt_score = score_mapper_ref(jnp.concatenate([fbt, fit], axis=1),
                                 params['bg_score_mapper'])
    fbt = fbt_score * fbt
    fit_score = score_mapper_ref(jnp.concatenate([fit, fbt], axis=1),
                                 params['iss_score_mapper'])
    fit = fit_score * fit   # dead w.r.t. returned outputs (as in the torch code)
    x = jnp.stack([ft, ftb, fti], axis=1)
    fusion = aggregator_ref(x, params['aggregator'])
    output = classifier_ref(fusion, params['classifier'])
    return bg_pred, iss_pred, output


# ---------------------------------------------------------------------------
# Deterministic parameter init (PyTorch Linear-style uniform bounds)
# ---------------------------------------------------------------------------

def init_params(key):
    keys = iter(jax.random.split(key, 128))

    def lin(fan_in, fan_out):
        bound = 1.0 / float(np.sqrt(fan_in))
        w = jax.random.uniform(next(keys), (fan_in, fan_out), jnp.float32, -bound, bound)
        b = jax.random.uniform(next(keys), (1, fan_out), jnp.float32, -bound, bound)
        return w, b

    def bn(n):
        # Eval-mode BatchNorm1d with default running stats folded to scale/shift.
        gamma = jnp.ones((1, n), jnp.float32)
        beta = jnp.zeros((1, n), jnp.float32)
        mean = jnp.zeros((1, n), jnp.float32)
        var = jnp.ones((1, n), jnp.float32)
        scale = gamma / jnp.sqrt(var + EPS)
        shift = beta - mean * scale
        return scale, shift

    def mha_params():
        wq, bq = lin(HIDDEN, HIDDEN)
        wk, bk = lin(HIDDEN, HIDDEN)
        wv, bv = lin(HIDDEN, HIDDEN)
        wo, bo = lin(HIDDEN, HIDDEN)
        return (wq, bq, wk, bk, wv, bv, wo, bo)

    def pred_params():
        w1, b1 = lin(HIDDEN, 256)
        w2, b2 = lin(256, 1)
        return (w1, b1, w2, b2)

    def mapper_params():
        w1, b1 = lin(2 * HIDDEN, 256)
        s1, t1 = bn(256)
        w2, b2 = lin(256, 64)
        s2, t2 = bn(64)
        w3, b3 = lin(64, 1)
        return (w1, b1, s1, t1, w2, b2, s2, t2, w3, b3)

    def classifier_params():
        w1, b1 = lin(HIDDEN, 256)
        s1, t1 = bn(256)
        w2, b2 = lin(256, 1)
        return (w1, b1, s1, t1, w2, b2)

    agg_w, agg_b = lin(HIDDEN, 1)          # torch Linear(hidden, 1)
    aggregator = (agg_w.T, agg_b)          # stored as (1, H), (1, 1)

    return dict(
        bg_pred=pred_params(),
        iss_pred=pred_params(),
        attention=mha_params(),
        bg_cross_att=mha_params(),
        iss_cross_att=mha_params(),
        bg_score_mapper=mapper_params(),
        iss_score_mapper=mapper_params(),   # kept for module parity (unused: dead branch)
        aggregator=aggregator,
        classifier=classifier_params(),
    )


# ---------------------------------------------------------------------------

if __name__ == "__main__":
    key = jax.random.PRNGKey(0)
    k_p, k_t, k_b, k_i = jax.random.split(key, 4)
    params = init_params(k_p)

    B, S_TXT, S_BG, S_ISS = 2, 8, 16, 8
    # These stand in for bert(...).last_hidden_state outputs.
    text = jax.random.normal(k_t, (B, S_TXT, HIDDEN), jnp.float32)
    background = jax.random.normal(k_b, (B, S_BG, HIDDEN), jnp.float32)
    issues = jax.random.normal(k_i, (B, S_ISS, HIDDEN), jnp.float32)

    bg_pred, iss_pred, output = jax.block_until_ready(
        jax.jit(forward_pallas)(params, text, background, issues))

    rbg, riss, rout = forward_ref(params, text, background, issues)
    np.testing.assert_allclose(np.asarray(bg_pred), np.asarray(rbg), rtol=2e-3, atol=2e-3)
    np.testing.assert_allclose(np.asarray(iss_pred), np.asarray(riss), rtol=2e-3, atol=2e-3)
    np.testing.assert_allclose(np.asarray(output), np.asarray(rout), rtol=2e-3, atol=2e-3)

    assert bg_pred.shape == (B, 1) and iss_pred.shape == (B, 1) and output.shape == (B, 1)
    print("KERNEL_OK")
</pallas_src>

<mosaic_0001>
module attributes {stable_mosaic.version = 11 : i64} {
  func.func @heads_kernel(%arg0: memref<5x2x64xf32, #tpu.memory_space<vmem>>, %arg1: memref<5x2x64xf32, #tpu.memory_space<vmem>>, %arg2: memref<64x256xf32, #tpu.memory_space<vmem>>, %arg3: memref<1x256xf32, #tpu.memory_space<vmem>>, %arg4: memref<1x256xf32, #tpu.memory_space<vmem>>, %arg5: memref<1x1xf32, #tpu.memory_space<vmem>>, %arg6: memref<64x256xf32, #tpu.memory_space<vmem>>, %arg7: memref<1x256xf32, #tpu.memory_space<vmem>>, %arg8: memref<1x256xf32, #tpu.memory_space<vmem>>, %arg9: memref<1x1xf32, #tpu.memory_space<vmem>>, %arg10: memref<64x256xf32, #tpu.memory_space<vmem>>, %arg11: memref<64x256xf32, #tpu.memory_space<vmem>>, %arg12: memref<1x256xf32, #tpu.memory_space<vmem>>, %arg13: memref<1x256xf32, #tpu.memory_space<vmem>>, %arg14: memref<1x256xf32, #tpu.memory_space<vmem>>, %arg15: memref<256x64xf32, #tpu.memory_space<vmem>>, %arg16: memref<1x64xf32, #tpu.memory_space<vmem>>, %arg17: memref<1x64xf32, #tpu.memory_space<vmem>>, %arg18: memref<1x64xf32, #tpu.memory_space<vmem>>, %arg19: memref<1x64xf32, #tpu.memory_space<vmem>>, %arg20: memref<1x1xf32, #tpu.memory_space<vmem>>, %arg21: memref<1x64xf32, #tpu.memory_space<vmem>>, %arg22: memref<1x1xf32, #tpu.memory_space<vmem>>, %arg23: memref<64x256xf32, #tpu.memory_space<vmem>>, %arg24: memref<1x256xf32, #tpu.memory_space<vmem>>, %arg25: memref<1x256xf32, #tpu.memory_space<vmem>>, %arg26: memref<1x256xf32, #tpu.memory_space<vmem>>, %arg27: memref<1x256xf32, #tpu.memory_space<vmem>>, %arg28: memref<1x1xf32, #tpu.memory_space<vmem>>, %arg29: memref<2x128xf32, #tpu.memory_space<vmem>>) attributes {dimension_semantics = [], scalar_prefetch = 0 : i64, scratch_operands = 0 : i64, tpu.core_type = #tpu.core_type<tc>} {
    %c1 = arith.constant 1 : index
    %c0 = arith.constant 0 : index
    %c0_0 = arith.constant 0 : index
    %0 = vector.load %arg1[%c1, %c0, %c0_0] : memref<5x2x64xf32, #tpu.memory_space<vmem>>, vector<1x2x64xf32>
    %1 = vector.shape_cast %0 : vector<1x2x64xf32> to vector<2x64xf32>
    %c3 = arith.constant 3 : index
    %c0_1 = arith.constant 0 : index
    %c0_2 = arith.constant 0 : index
    %2 = vector.load %arg1[%c3, %c0_1, %c0_2] : memref<5x2x64xf32, #tpu.memory_space<vmem>>, vector<1x2x64xf32>
    %3 = vector.shape_cast %2 : vector<1x2x64xf32> to vector<2x64xf32>
    %c0_3 = arith.constant 0 : index
    %c0_4 = arith.constant 0 : index
    %4 = vector.load %arg2[%c0_3, %c0_4] : memref<64x256xf32, #tpu.memory_space<vmem>>, vector<64x256xf32>
    %cst = arith.constant dense<0.000000e+00> : vector<2x256xf32>
    %5 = tpu.matmul %1, %4, %cst {dimension_numbers = #tpu.dot_dimension_numbers<[1], [0], [0], [1], [0, 0, 1, 1], [], []>} : vector<2x64xf32>, vector<64x256xf32>, vector<2x256xf32> -> vector<2x256xf32>
    %c0_5 = arith.constant 0 : index
    %c0_6 = arith.constant 0 : index
    %6 = vector.load %arg3[%c0_5, %c0_6] : memref<1x256xf32, #tpu.memory_space<vmem>>, vector<1x256xf32>
    %7 = vector.broadcast %6 : vector<1x256xf32> to vector<2x256xf32>
    %8 = arith.addf %5, %7 : vector<2x256xf32>
    %cst_7 = arith.constant 0.000000e+00 : f32
    %9 = vector.broadcast %cst_7 : f32 to vector<2x256xf32>
    %10 = arith.maximumf %8, %9 : vector<2x256xf32>
    %c0_8 = arith.constant 0 : index
    %c0_9 = arith.constant 0 : index
    %11 = vector.load %arg4[%c0_8, %c0_9] : memref<1x256xf32, #tpu.memory_space<vmem>>, vector<1x256xf32>
    %12 = vector.broadcast %11 : vector<1x256xf32> to vector<2x256xf32>
    %13 = arith.mulf %10, %12 : vector<2x256xf32>
    %cst_10 = arith.constant dense<0.000000e+00> : vector<2xf32>
    %14 = vector.multi_reduction <add>, %13, %cst_10 [1] : vector<2x256xf32> to vector<2xf32>
    %15 = vector.shape_cast %14 : vector<2xf32> to vector<2x1xf32>
    %c0_11 = arith.constant 0 : index
    %c0_12 = arith.constant 0 : index
    %16 = vector.load %arg5[%c0_11, %c0_12] : memref<1x1xf32, #tpu.memory_space<vmem>>, vector<1x1xf32>
    %17 = vector.broadcast %16 : vector<1x1xf32> to vector<2x1xf32>
    %18 = arith.addf %15, %17 : vector<2x1xf32>
    %cst_13 = arith.constant 0.000000e+00 : f32
    %19 = vector.broadcast %cst_13 : f32 to vector<2x1xf32>
    %20 = arith.subf %19, %18 : vector<2x1xf32>
    %21 = math.exp %20 : vector<2x1xf32>
    %cst_14 = arith.constant 1.000000e+00 : f32
    %22 = vector.broadcast %cst_14 : f32 to vector<2x1xf32>
    %23 = arith.addf %22, %21 : vector<2x1xf32>
    %cst_15 = arith.constant 1.000000e+00 : f32
    %24 = vector.broadcast %cst_15 : f32 to vector<2x1xf32>
    %25 = arith.divf %24, %23 : vector<2x1xf32>
    %c0_16 = arith.constant 0 : index
    %c0_17 = arith.constant 0 : index
    %26 = vector.load %arg6[%c0_16, %c0_17] : memref<64x256xf32, #tpu.memory_space<vmem>>, vector<64x256xf32>
    %cst_18 = arith.constant dense<0.000000e+00> : vector<2x256xf32>
    %27 = tpu.matmul %3, %26, %cst_18 {dimension_numbers = #tpu.dot_dimension_numbers<[1], [0], [0], [1], [0, 0, 1, 1], [], []>} : vector<2x64xf32>, vector<64x256xf32>, vector<2x256xf32> -> vector<2x256xf32>
    %c0_19 = arith.constant 0 : index
    %c0_20 = arith.constant 0 : index
    %28 = vector.load %arg7[%c0_19, %c0_20] : memref<1x256xf32, #tpu.memory_space<vmem>>, vector<1x256xf32>
    %29 = vector.broadcast %28 : vector<1x256xf32> to vector<2x256xf32>
    %30 = arith.addf %27, %29 : vector<2x256xf32>
    %cst_21 = arith.constant 0.000000e+00 : f32
    %31 = vector.broadcast %cst_21 : f32 to vector<2x256xf32>
    %32 = arith.maximumf %30, %31 : vector<2x256xf32>
    %c0_22 = arith.constant 0 : index
    %c0_23 = arith.constant 0 : index
    %33 = vector.load %arg8[%c0_22, %c0_23] : memref<1x256xf32, #tpu.memory_space<vmem>>, vector<1x256xf32>
    %34 = vector.broadcast %33 : vector<1x256xf32> to vector<2x256xf32>
    %35 = arith.mulf %32, %34 : vector<2x256xf32>
    %cst_24 = arith.constant dense<0.000000e+00> : vector<2xf32>
    %36 = vector.multi_reduction <add>, %35, %cst_24 [1] : vector<2x256xf32> to vector<2xf32>
    %37 = vector.shape_cast %36 : vector<2xf32> to vector<2x1xf32>
    %c0_25 = arith.constant 0 : index
    %c0_26 = arith.constant 0 : index
    %38 = vector.load %arg9[%c0_25, %c0_26] : memref<1x1xf32, #tpu.memory_space<vmem>>, vector<1x1xf32>
    %39 = vector.broadcast %38 : vector<1x1xf32> to vector<2x1xf32>
    %40 = arith.addf %37, %39 : vector<2x1xf32>
    %cst_27 = arith.constant 0.000000e+00 : f32
    %41 = vector.broadcast %cst_27 : f32 to vector<2x1xf32>
    %42 = arith.subf %41, %40 : vector<2x1xf32>
    %43 = math.exp %42 : vector<2x1xf32>
    %cst_28 = arith.constant 1.000000e+00 : f32
    %44 = vector.broadcast %cst_28 : f32 to vector<2x1xf32>
    %45 = arith.addf %44, %43 : vector<2x1xf32>
    %cst_29 = arith.constant 1.000000e+00 : f32
    %46 = vector.broadcast %cst_29 : f32 to vector<2x1xf32>
    %47 = arith.divf %46, %45 : vector<2x1xf32>
    %c0_30 = arith.constant 0 : index
    %c0_31 = arith.constant 0 : index
    %c0_32 = arith.constant 0 : index
    %48 = vector.load %arg0[%c0_30, %c0_31, %c0_32] : memref<5x2x64xf32, #tpu.memory_space<vmem>>, vector<1x2x64xf32>
    %49 = vector.shape_cast %48 : vector<1x2x64xf32> to vector<2x64xf32>
    %c1_33 = arith.constant 1 : index
    %c0_34 = arith.constant 0 : index
    %c0_35 = arith.constant 0 : index
    %50 = vector.load %arg0[%c1_33, %c0_34, %c0_35] : memref<5x2x64xf32, #tpu.memory_space<vmem>>, vector<1x2x64xf32>
    %51 = vector.shape_cast %50 : vector<1x2x64xf32> to vector<2x64xf32>
    %c2 = arith.constant 2 : index
    %c0_36 = arith.constant 0 : index
    %c0_37 = arith.constant 0 : index
    %52 = vector.load %arg0[%c2, %c0_36, %c0_37] : memref<5x2x64xf32, #tpu.memory_space<vmem>>, vector<1x2x64xf32>
    %53 = vector.shape_cast %52 : vector<1x2x64xf32> to vector<2x64xf32>
    %c3_38 = arith.constant 3 : index
    %c0_39 = arith.constant 0 : index
    %c0_40 = arith.constant 0 : index
    %54 = vector.load %arg0[%c3_38, %c0_39, %c0_40] : memref<5x2x64xf32, #tpu.memory_space<vmem>>, vector<1x2x64xf32>
    %55 = vector.shape_cast %54 : vector<1x2x64xf32> to vector<2x64xf32>
    %c4 = arith.constant 4 : index
    %c0_41 = arith.constant 0 : index
    %c0_42 = arith.constant 0 : index
    %56 = vector.load %arg0[%c4, %c0_41, %c0_42] : memref<5x2x64xf32, #tpu.memory_space<vmem>>, vector<1x2x64xf32>
    %57 = vector.shape_cast %56 : vector<1x2x64xf32> to vector<2x64xf32>
    %c0_43 = arith.constant 0 : index
    %c0_44 = arith.constant 0 : index
    %58 = vector.load %arg10[%c0_43, %c0_44] : memref<64x256xf32, #tpu.memory_space<vmem>>, vector<64x256xf32>
    %cst_45 = arith.constant dense<0.000000e+00> : vector<2x256xf32>
    %59 = tpu.matmul %53, %58, %cst_45 {dimension_numbers = #tpu.dot_dimension_numbers<[1], [0], [0], [1], [0, 0, 1, 1], [], []>} : vector<2x64xf32>, vector<64x256xf32>, vector<2x256xf32> -> vector<2x256xf32>
    %c0_46 = arith.constant 0 : index
    %c0_47 = arith.constant 0 : index
    %60 = vector.load %arg11[%c0_46, %c0_47] : memref<64x256xf32, #tpu.memory_space<vmem>>, vector<64x256xf32>
    %cst_48 = arith.constant dense<0.000000e+00> : vector<2x256xf32>
    %61 = tpu.matmul %57, %60, %cst_48 {dimension_numbers = #tpu.dot_dimension_numbers<[1], [0], [0], [1], [0, 0, 1, 1], [], []>} : vector<2x64xf32>, vector<64x256xf32>, vector<2x256xf32> -> vector<2x256xf32>
    %62 = arith.addf %59, %61 : vector<2x256xf32>
    %c0_49 = arith.constant 0 : index
    %c0_50 = arith.constant 0 : index
    %63 = vector.load %arg12[%c0_49, %c0_50] : memref<1x256xf32, #tpu.memory_space<vmem>>, vector<1x256xf32>
    %64 = vector.broadcast %63 : vector<1x256xf32> to vector<2x256xf32>
    %65 = arith.addf %62, %64 : vector<2x256xf32>
    %c0_51 = arith.constant 0 : index
    %c0_52 = arith.constant 0 : index
    %66 = vector.load %arg13[%c0_51, %c0_52] : memref<1x256xf32, #tpu.memory_space<vmem>>, vector<1x256xf32>
    %67 = vector.broadcast %66 : vector<1x256xf32> to vector<2x256xf32>
    %68 = arith.mulf %65, %67 : vector<2x256xf32>
    %c0_53 = arith.constant 0 : index
    %c0_54 = arith.constant 0 : index
    %69 = vector.load %arg14[%c0_53, %c0_54] : memref<1x256xf32, #tpu.memory_space<vmem>>, vector<1x256xf32>
    %70 = vector.broadcast %69 : vector<1x256xf32> to vector<2x256xf32>
    %71 = arith.addf %68, %70 : vector<2x256xf32>
    %cst_55 = arith.constant 0.000000e+00 : f32
    %72 = vector.broadcast %cst_55 : f32 to vector<2x256xf32>
    %73 = arith.maximumf %71, %72 : vector<2x256xf32>
    %c0_56 = arith.constant 0 : index
    %c0_57 = arith.constant 0 : index
    %74 = vector.load %arg15[%c0_56, %c0_57] : memref<256x64xf32, #tpu.memory_space<vmem>>, vector<256x64xf32>
    %cst_58 = arith.constant dense<0.000000e+00> : vector<2x64xf32>
    %75 = tpu.matmul %73, %74, %cst_58 {dimension_numbers = #tpu.dot_dimension_numbers<[1], [0], [0], [1], [0, 0, 1, 1], [], []>} : vector<2x256xf32>, vector<256x64xf32>, vector<2x64xf32> -> vector<2x64xf32>
    %c0_59 = arith.constant 0 : index
    %c0_60 = arith.constant 0 : index
    %76 = vector.load %arg16[%c0_59, %c0_60] : memref<1x64xf32, #tpu.memory_space<vmem>>, vector<1x64xf32>
    %77 = vector.broadcast %76 : vector<1x64xf32> to vector<2x64xf32>
    %78 = arith.addf %75, %77 : vector<2x64xf32>
    %c0_61 = arith.constant 0 : index
    %c0_62 = arith.constant 0 : index
    %79 = vector.load %arg17[%c0_61, %c0_62] : memref<1x64xf32, #tpu.memory_space<vmem>>, vector<1x64xf32>
    %80 = vector.broadcast %79 : vector<1x64xf32> to vector<2x64xf32>
    %81 = arith.mulf %78, %80 : vector<2x64xf32>
    %c0_63 = arith.constant 0 : index
    %c0_64 = arith.constant 0 : index
    %82 = vector.load %arg18[%c0_63, %c0_64] : memref<1x64xf32, #tpu.memory_space<vmem>>, vector<1x64xf32>
    %83 = vector.broadcast %82 : vector<1x64xf32> to vector<2x64xf32>
    %84 = arith.addf %81, %83 : vector<2x64xf32>
    %cst_65 = arith.constant 0.000000e+00 : f32
    %85 = vector.broadcast %cst_65 : f32 to vector<2x64xf32>
    %86 = arith.maximumf %84, %85 : vector<2x64xf32>
    %c0_66 = arith.constant 0 : index
    %c0_67 = arith.constant 0 : index
    %87 = vector.load %arg19[%c0_66, %c0_67] : memref<1x64xf32, #tpu.memory_space<vmem>>, vector<1x64xf32>
    %88 = vector.broadcast %87 : vector<1x64xf32> to vector<2x64xf32>
    %89 = arith.mulf %86, %88 : vector<2x64xf32>
    %cst_68 = arith.constant dense<0.000000e+00> : vector<2xf32>
    %90 = vector.multi_reduction <add>, %89, %cst_68 [1] : vector<2x64xf32> to vector<2xf32>
    %91 = vector.shape_cast %90 : vector<2xf32> to vector<2x1xf32>
    %c0_69 = arith.constant 0 : index
    %c0_70 = arith.constant 0 : index
    %92 = vector.load %arg20[%c0_69, %c0_70] : memref<1x1xf32, #tpu.memory_space<vmem>>, vector<1x1xf32>
    %93 = vector.broadcast %92 : vector<1x1xf32> to vector<2x1xf32>
    %94 = arith.addf %91, %93 : vector<2x1xf32>
    %cst_71 = arith.constant 0.000000e+00 : f32
    %95 = vector.broadcast %cst_71 : f32 to vector<2x1xf32>
    %96 = arith.subf %95, %94 : vector<2x1xf32>
    %97 = math.exp %96 : vector<2x1xf32>
    %cst_72 = arith.constant 1.000000e+00 : f32
    %98 = vector.broadcast %cst_72 : f32 to vector<2x1xf32>
    %99 = arith.addf %98, %97 : vector<2x1xf32>
    %cst_73 = arith.constant 1.000000e+00 : f32
    %100 = vector.broadcast %cst_73 : f32 to vector<2x1xf32>
    %101 = arith.divf %100, %99 : vector<2x1xf32>
    %c0_74 = arith.constant 0 : index
    %c0_75 = arith.constant 0 : index
    %102 = vector.load %arg21[%c0_74, %c0_75] : memref<1x64xf32, #tpu.memory_space<vmem>>, vector<1x64xf32>
    %c0_76 = arith.constant 0 : index
    %c0_77 = arith.constant 0 : index
    %103 = vector.load %arg22[%c0_76, %c0_77] : memref<1x1xf32, #tpu.memory_space<vmem>>, vector<1x1xf32>
    %104 = vector.broadcast %102 : vector<1x64xf32> to vector<2x64xf32>
    %105 = arith.mulf %49, %104 : vector<2x64xf32>
    %cst_78 = arith.constant dense<0.000000e+00> : vector<2xf32>
    %106 = vector.multi_reduction <add>, %105, %cst_78 [1] : vector<2x64xf32> to vector<2xf32>
    %107 = vector.shape_cast %106 : vector<2xf32> to vector<2x1xf32>
    %108 = vector.broadcast %103 : vector<1x1xf32> to vector<2x1xf32>
    %109 = arith.addf %107, %108 : vector<2x1xf32>
    %110 = vector.broadcast %102 : vector<1x64xf32> to vector<2x64xf32>
    %111 = arith.mulf %51, %110 : vector<2x64xf32>
    %cst_79 = arith.constant dense<0.000000e+00> : vector<2xf32>
    %112 = vector.multi_reduction <add>, %111, %cst_79 [1] : vector<2x64xf32> to vector<2xf32>
    %113 = vector.shape_cast %112 : vector<2xf32> to vector<2x1xf32>
    %114 = vector.broadcast %103 : vector<1x1xf32> to vector<2x1xf32>
    %115 = arith.addf %113, %114 : vector<2x1xf32>
    %116 = vector.broadcast %102 : vector<1x64xf32> to vector<2x64xf32>
    %117 = arith.mulf %55, %116 : vector<2x64xf32>
    %cst_80 = arith.constant dense<0.000000e+00> : vector<2xf32>
    %118 = vector.multi_reduction <add>, %117, %cst_80 [1] : vector<2x64xf32> to vector<2xf32>
    %119 = vector.shape_cast %118 : vector<2xf32> to vector<2x1xf32>
    %120 = vector.broadcast %103 : vector<1x1xf32> to vector<2x1xf32>
    %121 = arith.addf %119, %120 : vector<2x1xf32>
    %122 = arith.maximumf %109, %115 : vector<2x1xf32>
    %123 = arith.maximumf %122, %121 : vector<2x1xf32>
    %124 = arith.subf %109, %123 : vector<2x1xf32>
    %125 = math.exp %124 : vector<2x1xf32>
    %126 = arith.subf %115, %123 : vector<2x1xf32>
    %127 = math.exp %126 : vector<2x1xf32>
    %128 = arith.subf %121, %123 : vector<2x1xf32>
    %129 = math.exp %128 : vector<2x1xf32>
    %130 = arith.addf %125, %127 : vector<2x1xf32>
    %131 = arith.addf %130, %129 : vector<2x1xf32>
    %132 = tpu.reciprocal %131 {approx = true} : vector<2x1xf32> -> vector<2x1xf32>
    %133 = vector.broadcast %125 : vector<2x1xf32> to vector<2x64xf32>
    %134 = arith.mulf %133, %49 : vector<2x64xf32>
    %135 = vector.broadcast %127 : vector<2x1xf32> to vector<2x64xf32>
    %136 = arith.mulf %135, %51 : vector<2x64xf32>
    %137 = arith.addf %134, %136 : vector<2x64xf32>
    %138 = vector.broadcast %129 : vector<2x1xf32> to vector<2x64xf32>
    %139 = arith.mulf %138, %55 : vector<2x64xf32>
    %140 = arith.addf %137, %139 : vector<2x64xf32>
    %141 = vector.broadcast %132 : vector<2x1xf32> to vector<2x64xf32>
    %142 = arith.mulf %140, %141 : vector<2x64xf32>
    %c0_81 = arith.constant 0 : index
    %c0_82 = arith.constant 0 : index
    %143 = vector.load %arg23[%c0_81, %c0_82] : memref<64x256xf32, #tpu.memory_space<vmem>>, vector<64x256xf32>
    %cst_83 = arith.constant dense<0.000000e+00> : vector<2x256xf32>
    %144 = tpu.matmul %142, %143, %cst_83 {dimension_numbers = #tpu.dot_dimension_numbers<[1], [0], [0], [1], [0, 0, 1, 1], [], []>} : vector<2x64xf32>, vector<64x256xf32>, vector<2x256xf32> -> vector<2x256xf32>
    %c0_84 = arith.constant 0 : index
    %c0_85 = arith.constant 0 : index
    %145 = vector.load %arg24[%c0_84, %c0_85] : memref<1x256xf32, #tpu.memory_space<vmem>>, vector<1x256xf32>
    %146 = vector.broadcast %145 : vector<1x256xf32> to vector<2x256xf32>
    %147 = arith.addf %144, %146 : vector<2x256xf32>
    %c0_86 = arith.constant 0 : index
    %c0_87 = arith.constant 0 : index
    %148 = vector.load %arg25[%c0_86, %c0_87] : memref<1x256xf32, #tpu.memory_space<vmem>>, vector<1x256xf32>
    %149 = vector.broadcast %148 : vector<1x256xf32> to vector<2x256xf32>
    %150 = arith.mulf %147, %149 : vector<2x256xf32>
    %c0_88 = arith.constant 0 : index
    %c0_89 = arith.constant 0 : index
    %151 = vector.load %arg26[%c0_88, %c0_89] : memref<1x256xf32, #tpu.memory_space<vmem>>, vector<1x256xf32>
    %152 = vector.broadcast %151 : vector<1x256xf32> to vector<2x256xf32>
    %153 = arith.addf %150, %152 : vector<2x256xf32>
    %cst_90 = arith.constant 0.000000e+00 : f32
    %154 = vector.broadcast %cst_90 : f32 to vector<2x256xf32>
    %155 = arith.maximumf %153, %154 : vector<2x256xf32>
    %c0_91 = arith.constant 0 : index
    %c0_92 = arith.constant 0 : index
    %156 = vector.load %arg27[%c0_91, %c0_92] : memref<1x256xf32, #tpu.memory_space<vmem>>, vector<1x256xf32>
    %157 = vector.broadcast %156 : vector<1x256xf32> to vector<2x256xf32>
    %158 = arith.mulf %155, %157 : vector<2x256xf32>
    %cst_93 = arith.constant dense<0.000000e+00> : vector<2xf32>
    %159 = vector.multi_reduction <add>, %158, %cst_93 [1] : vector<2x256xf32> to vector<2xf32>
    %160 = vector.shape_cast %159 : vector<2xf32> to vector<2x1xf32>
    %c0_94 = arith.constant 0 : index
    %c0_95 = arith.constant 0 : index
    %161 = vector.load %arg28[%c0_94, %c0_95] : memref<1x1xf32, #tpu.memory_space<vmem>>, vector<1x1xf32>
    %162 = vector.broadcast %161 : vector<1x1xf32> to vector<2x1xf32>
    %163 = arith.addf %160, %162 : vector<2x1xf32>
    %cst_96 = arith.constant 0.000000e+00 : f32
    %164 = vector.broadcast %cst_96 : f32 to vector<2x1xf32>
    %165 = arith.subf %164, %163 : vector<2x1xf32>
    %166 = math.exp %165 : vector<2x1xf32>
    %cst_97 = arith.constant 1.000000e+00 : f32
    %167 = vector.broadcast %cst_97 : f32 to vector<2x1xf32>
    %168 = arith.addf %167, %166 : vector<2x1xf32>
    %cst_98 = arith.constant 1.000000e+00 : f32
    %169 = vector.broadcast %cst_98 : f32 to vector<2x1xf32>
    %170 = arith.divf %169, %168 : vector<2x1xf32>
    %171 = tpu.iota {dimensions = array<i32: 1>} : vector<2x128xi32>
    %c0_i32 = arith.constant 0 : i32
    %172 = vector.broadcast %c0_i32 : i32 to vector<2x128xi32>
    %173 = arith.cmpi eq, %171, %172 : vector<2x128xi32>
    %cst_99 = arith.constant 0.000000e+00 : f32
    %174 = vector.shape_cast %25 : vector<2x1xf32> to vector<2x1xf32>
    %175 = vector.broadcast %174 : vector<2x1xf32> to vector<2x128xf32>
    %176 = vector.broadcast %cst_99 : f32 to vector<2x128xf32>
    %177 = arith.select %173, %175, %176 : vector<2x128xi1>, vector<2x128xf32>
    %c1_i32 = arith.constant 1 : i32
    %178 = vector.broadcast %c1_i32 : i32 to vector<2x128xi32>
    %179 = arith.cmpi eq, %171, %178 : vector<2x128xi32>
    %180 = vector.shape_cast %47 : vector<2x1xf32> to vector<2x1xf32>
    %181 = vector.broadcast %180 : vector<2x1xf32> to vector<2x128xf32>
    %182 = arith.select %179, %181, %177 : vector<2x128xi1>, vector<2x128xf32>
    %c2_i32 = arith.constant 2 : i32
    %183 = vector.broadcast %c2_i32 : i32 to vector<2x128xi32>
    %184 = arith.cmpi eq, %171, %183 : vector<2x128xi32>
    %185 = vector.shape_cast %170 : vector<2x1xf32> to vector<2x1xf32>
    %186 = vector.broadcast %185 : vector<2x1xf32> to vector<2x128xf32>
    %187 = arith.select %184, %186, %182 : vector<2x128xi1>, vector<2x128xf32>
    %c3_i32 = arith.constant 3 : i32
    %188 = vector.broadcast %c3_i32 : i32 to vector<2x128xi32>
    %189 = arith.cmpi eq, %171, %188 : vector<2x128xi32>
    %190 = vector.shape_cast %101 : vector<2x1xf32> to vector<2x1xf32>
    %191 = vector.broadcast %190 : vector<2x1xf32> to vector<2x128xf32>
    %192 = arith.select %189, %191, %187 : vector<2x128xi1>, vector<2x128xf32>
    %c0_100 = arith.constant 0 : index
    %c0_101 = arith.constant 0 : index
    %193 = vector.load %arg29[%c0_100, %c0_101] : memref<2x128xf32, #tpu.memory_space<vmem>>, vector<2x128xf32>
    tpu.vector_store %arg29[%c0_100, %c0_101], %192 {strides = array<i32>} : memref<2x128xf32, #tpu.memory_space<vmem>>, vector<2x128xf32>,
    return
  }
}

module attributes {stable_mosaic.version = 11 : i64} {
  func.func @fused_mha_kernel(%arg0: i32, %arg1: memref<5xi32, #tpu.memory_space<smem>>, %arg2: memref<5xi32, #tpu.memory_space<smem>>, %arg3: memref<5xi32, #tpu.memory_space<smem>>, %arg4: memref<1x2x16x64xf32, #tpu.memory_space<vmem>>, %arg5: memref<1x2x16x64xf32, #tpu.memory_space<vmem>>, %arg6: memref<1x1x16xf32, #tpu.memory_space<vmem>>, %arg7: memref<1x16x1xf32, #tpu.memory_space<vmem>>, %arg8: memref<1x64x64xf32, #tpu.memory_space<vmem>>, %arg9: memref<1x1x64xf32, #tpu.memory_space<vmem>>, %arg10: memref<1x64x64xf32, #tpu.memory_space<vmem>>, %arg11: memref<1x1x64xf32, #tpu.memory_space<vmem>>, %arg12: memref<1x64x64xf32, #tpu.memory_space<vmem>>, %arg13: memref<1x1x64xf32, #tpu.memory_space<vmem>>, %arg14: memref<1x64x64xf32, #tpu.memory_space<vmem>>, %arg15: memref<1x1x64xf32, #tpu.memory_space<vmem>>, %arg16: memref<1x2x64xf32, #tpu.memory_space<vmem>>, %arg17: memref<1x2x64xf32, #tpu.memory_space<vmem>>) attributes {dimension_semantics = [#tpu.dimension_semantics<parallel>], iteration_bounds = array<i64: 5>, scalar_prefetch = 3 : i64, scratch_operands = 0 : i64, tpu.core_type = #tpu.core_type<tc>, window_params = [{transform_indices = @transform_0, window_bounds = array<i64: 1, 2, 16, 64>}, {transform_indices = @transform_1, window_bounds = array<i64: 1, 2, 16, 64>}, {transform_indices = @transform_2, window_bounds = array<i64: 1, 1, 16>}, {transform_indices = @transform_3, window_bounds = array<i64: 1, 16, 1>}, {transform_indices = @transform_4, window_bounds = array<i64: 1, 64, 64>}, {transform_indices = @transform_5, window_bounds = array<i64: 1, 1, 64>}, {transform_indices = @transform_6, window_bounds = array<i64: 1, 64, 64>}, {transform_indices = @transform_7, window_bounds = array<i64: 1, 1, 64>}, {transform_indices = @transform_8, window_bounds = array<i64: 1, 64, 64>}, {transform_indices = @transform_9, window_bounds = array<i64: 1, 1, 64>}, {transform_indices = @transform_10, window_bounds = array<i64: 1, 64, 64>}, {transform_indices = @transform_11, window_bounds = array<i64: 1, 1, 64>}, {transform_indices = @transform_12, window_bounds = array<i64: 1, 2, 64>}, {transform_indices = @transform_13, window_bounds = array<i64: 1, 2, 64>}]} {
    %c0 = arith.constant 0 : index
    %c0_0 = arith.constant 0 : index
    %c0_1 = arith.constant 0 : index
    %c0_2 = arith.constant 0 : index
    %0 = vector.load %arg4[%c0, %c0_0, %c0_1, %c0_2] : memref<1x2x16x64xf32, #tpu.memory_space<vmem>>, vector<1x2x16x64xf32>
    %1 = vector.shape_cast %0 : vector<1x2x16x64xf32> to vector<2x16x64xf32>
    %c0_3 = arith.constant 0 : index
    %c0_4 = arith.constant 0 : index
    %c0_5 = arith.constant 0 : index
    %c0_6 = arith.constant 0 : index
    %2 = vector.load %arg5[%c0_3, %c0_4, %c0_5, %c0_6] : memref<1x2x16x64xf32, #tpu.memory_space<vmem>>, vector<1x2x16x64xf32>
    %3 = vector.shape_cast %2 : vector<1x2x16x64xf32> to vector<2x16x64xf32>
    %c0_7 = arith.constant 0 : index
    %c0_8 = arith.constant 0 : index
    %c0_9 = arith.constant 0 : index
    %4 = vector.load %arg6[%c0_7, %c0_8, %c0_9] : memref<1x1x16xf32, #tpu.memory_space<vmem>>, vector<1x1x16xf32>
    %5 = vector.shape_cast %4 : vector<1x1x16xf32> to vector<1x16xf32>
    %c0_10 = arith.constant 0 : index
    %c0_11 = arith.constant 0 : index
    %c0_12 = arith.constant 0 : index
    %6 = vector.load %arg7[%c0_10, %c0_11, %c0_12] : memref<1x16x1xf32, #tpu.memory_space<vmem>>, vector<1x16x1xf32>
    %7 = vector.shape_cast %6 : vector<1x16x1xf32> to vector<16x1xf32>
    %8 = vector.shape_cast %7 : vector<16x1xf32> to vector<1x16x1xf32>
    %9 = vector.broadcast %8 : vector<1x16x1xf32> to vector<2x16x64xf32>
    %10 = arith.mulf %1, %9 : vector<2x16x64xf32>
    %cst = arith.constant dense<0.000000e+00> : vector<2x64xf32>
    %11 = vector.multi_reduction <add>, %10, %cst [1] : vector<2x16x64xf32> to vector<2x64xf32>
    %c0_13 = arith.constant 0 : index
    %c0_14 = arith.constant 0 : index
    %c0_15 = arith.constant 0 : index
    %12 = vector.load %arg17[%c0_13, %c0_14, %c0_15] : memref<1x2x64xf32, #tpu.memory_space<vmem>>, vector<1x2x64xf32>
    %13 = vector.shape_cast %12 : vector<1x2x64xf32> to vector<2x64xf32>
    %14 = vector.shape_cast %11 : vector<2x64xf32> to vector<1x2x64xf32>
    tpu.vector_store %arg17[%c0_13, %c0_14, %c0_15], %14 {strides = array<i32>} : memref<1x2x64xf32, #tpu.memory_space<vmem>>, vector<1x2x64xf32>,
    %15 = vector.shape_cast %1 : vector<2x16x64xf32> to vector<32x64xf32>
    %16 = vector.shape_cast %3 : vector<2x16x64xf32> to vector<32x64xf32>
    %c0_16 = arith.constant 0 : index
    %c0_17 = arith.constant 0 : index
    %c0_18 = arith.constant 0 : index
    %17 = vector.load %arg8[%c0_16, %c0_17, %c0_18] : memref<1x64x64xf32, #tpu.memory_space<vmem>>, vector<1x64x64xf32>
    %18 = vector.shape_cast %17 : vector<1x64x64xf32> to vector<64x64xf32>
    %cst_19 = arith.constant dense<0.000000e+00> : vector<32x64xf32>
    %19 = tpu.matmul %15, %18, %cst_19 {dimension_numbers = #tpu.dot_dimension_numbers<[1], [0], [0], [1], [0, 0, 1, 1], [], []>} : vector<32x64xf32>, vector<64x64xf32>, vector<32x64xf32> -> vector<32x64xf32>
    %c0_20 = arith.constant 0 : index
    %c0_21 = arith.constant 0 : index
    %c0_22 = arith.constant 0 : index
    %20 = vector.load %arg9[%c0_20, %c0_21, %c0_22] : memref<1x1x64xf32, #tpu.memory_space<vmem>>, vector<1x1x64xf32>
    %21 = vector.shape_cast %20 : vector<1x1x64xf32> to vector<1x64xf32>
    %22 = vector.broadcast %21 : vector<1x64xf32> to vector<32x64xf32>
    %23 = arith.addf %19, %22 : vector<32x64xf32>
    %24 = vector.shape_cast %23 : vector<32x64xf32> to vector<2x16x64xf32>
    %c0_23 = arith.constant 0 : index
    %c0_24 = arith.constant 0 : index
    %c0_25 = arith.constant 0 : index
    %25 = vector.load %arg10[%c0_23, %c0_24, %c0_25] : memref<1x64x64xf32, #tpu.memory_space<vmem>>, vector<1x64x64xf32>
    %26 = vector.shape_cast %25 : vector<1x64x64xf32> to vector<64x64xf32>
    %cst_26 = arith.constant dense<0.000000e+00> : vector<32x64xf32>
    %27 = tpu.matmul %16, %26, %cst_26 {dimension_numbers = #tpu.dot_dimension_numbers<[1], [0], [0], [1], [0, 0, 1, 1], [], []>} : vector<32x64xf32>, vector<64x64xf32>, vector<32x64xf32> -> vector<32x64xf32>
    %c0_27 = arith.constant 0 : index
    %c0_28 = arith.constant 0 : index
    %c0_29 = arith.constant 0 : index
    %28 = vector.load %arg11[%c0_27, %c0_28, %c0_29] : memref<1x1x64xf32, #tpu.memory_space<vmem>>, vector<1x1x64xf32>
    %29 = vector.shape_cast %28 : vector<1x1x64xf32> to vector<1x64xf32>
    %30 = vector.broadcast %29 : vector<1x64xf32> to vector<32x64xf32>
    %31 = arith.addf %27, %30 : vector<32x64xf32>
    %32 = vector.shape_cast %31 : vector<32x64xf32> to vector<2x16x64xf32>
    %c0_30 = arith.constant 0 : index
    %c0_31 = arith.constant 0 : index
    %c0_32 = arith.constant 0 : index
    %33 = vector.load %arg12[%c0_30, %c0_31, %c0_32] : memref<1x64x64xf32, #tpu.memory_space<vmem>>, vector<1x64x64xf32>
    %34 = vector.shape_cast %33 : vector<1x64x64xf32> to vector<64x64xf32>
    %cst_33 = arith.constant dense<0.000000e+00> : vector<32x64xf32>
    %35 = tpu.matmul %16, %34, %cst_33 {dimension_numbers = #tpu.dot_dimension_numbers<[1], [0], [0], [1], [0, 0, 1, 1], [], []>} : vector<32x64xf32>, vector<64x64xf32>, vector<32x64xf32> -> vector<32x64xf32>
    %c0_34 = arith.constant 0 : index
    %c0_35 = arith.constant 0 : index
    %c0_36 = arith.constant 0 : index
    %36 = vector.load %arg13[%c0_34, %c0_35, %c0_36] : memref<1x1x64xf32, #tpu.memory_space<vmem>>, vector<1x1x64xf32>
    %37 = vector.shape_cast %36 : vector<1x1x64xf32> to vector<1x64xf32>
    %38 = vector.broadcast %37 : vector<1x64xf32> to vector<32x64xf32>
    %39 = arith.addf %35, %38 : vector<32x64xf32>
    %40 = vector.shape_cast %39 : vector<32x64xf32> to vector<2x16x64xf32>
    %41 = vector.extract_strided_slice %24 {offsets = [0, 0, 0], sizes = [2, 16, 8], strides = [1, 1, 1]} : vector<2x16x64xf32> to vector<2x16x8xf32>
    %42 = vector.extract_strided_slice %32 {offsets = [0, 0, 0], sizes = [2, 16, 8], strides = [1, 1, 1]} : vector<2x16x64xf32> to vector<2x16x8xf32>
    %43 = vector.extract_strided_slice %40 {offsets = [0, 0, 0], sizes = [2, 16, 8], strides = [1, 1, 1]} : vector<2x16x64xf32> to vector<2x16x8xf32>
    "tpu.trace_start"() <{level = 10 : i32, message = "bqd,bkd->bqk"}> : () -> ()
    %cst_37 = arith.constant dense<0.000000e+00> : vector<2x16x16xf32>
    %44 = tpu.matmul %41, %42, %cst_37 {dimension_numbers = #tpu.dot_dimension_numbers<[2], [2], [1], [1], [0, 0, 0, 1, 1, 1], [0], [0]>} : vector<2x16x8xf32>, vector<2x16x8xf32>, vector<2x16x16xf32> -> vector<2x16x16xf32>
    "tpu.trace_stop"() : () -> ()
    %cst_38 = arith.constant 0.353553385 : f32
    %45 = vector.broadcast %cst_38 : f32 to vector<2x16x16xf32>
    %46 = arith.mulf %44, %45 : vector<2x16x16xf32>
    %47 = vector.shape_cast %5 : vector<1x16xf32> to vector<1x1x16xf32>
    %48 = vector.broadcast %47 : vector<1x1x16xf32> to vector<2x16x16xf32>
    %49 = arith.addf %46, %48 : vector<2x16x16xf32>
    %cst_39 = arith.constant dense<0xFF800000> : vector<2x16xf32>
    %50 = vector.multi_reduction <maximumf>, %49, %cst_39 [2] : vector<2x16x16xf32> to vector<2x16xf32>
    %51 = vector.shape_cast %50 : vector<2x16xf32> to vector<2x16x1xf32>
    %52 = vector.broadcast %51 : vector<2x16x1xf32> to vector<2x16x16xf32>
    %53 = arith.subf %49, %52 : vector<2x16x16xf32>
    %54 = math.exp %53 : vector<2x16x16xf32>
    %cst_40 = arith.constant dense<0.000000e+00> : vector<2x16xf32>
    %55 = vector.multi_reduction <add>, %54, %cst_40 [2] : vector<2x16x16xf32> to vector<2x16xf32>
    %56 = vector.shape_cast %55 : vector<2x16xf32> to vector<2x16x1xf32>
    %57 = tpu.reciprocal %56 {approx = true} : vector<2x16x1xf32> -> vector<2x16x1xf32>
    %58 = vector.broadcast %57 : vector<2x16x1xf32> to vector<2x16x16xf32>
    %59 = arith.mulf %54, %58 : vector<2x16x16xf32>
    %60 = vector.shape_cast %7 : vector<16x1xf32> to vector<1x16x1xf32>
    %61 = vector.broadcast %60 : vector<1x16x1xf32> to vector<2x16x16xf32>
    %62 = arith.mulf %59, %61 : vector<2x16x16xf32>
    %cst_41 = arith.constant dense<0.000000e+00> : vector<2x16xf32>
    %63 = vector.multi_reduction <add>, %62, %cst_41 [1] : vector<2x16x16xf32> to vector<2x16xf32>
    %64 = vector.shape_cast %63 : vector<2x16xf32> to vector<2x1x16xf32>
    "tpu.trace_start"() <{level = 10 : i32, message = "bqk,bkd->bqd"}> : () -> ()
    %cst_42 = arith.constant dense<0.000000e+00> : vector<2x1x8xf32>
    %65 = tpu.matmul %64, %43, %cst_42 {dimension_numbers = #tpu.dot_dimension_numbers<[2], [1], [1], [2], [0, 0, 0, 1, 1, 2], [0], [0]>} : vector<2x1x16xf32>, vector<2x16x8xf32>, vector<2x1x8xf32> -> vector<2x1x8xf32>
    "tpu.trace_stop"() : () -> ()
    %66 = vector.extract_strided_slice %24 {offsets = [0, 0, 8], sizes = [2, 16, 8], strides = [1, 1, 1]} : vector<2x16x64xf32> to vector<2x16x8xf32>
    %67 = vector.extract_strided_slice %32 {offsets = [0, 0, 8], sizes = [2, 16, 8], strides = [1, 1, 1]} : vector<2x16x64xf32> to vector<2x16x8xf32>
    %68 = vector.extract_strided_slice %40 {offsets = [0, 0, 8], sizes = [2, 16, 8], strides = [1, 1, 1]} : vector<2x16x64xf32> to vector<2x16x8xf32>
    "tpu.trace_start"() <{level = 10 : i32, message = "bqd,bkd->bqk"}> : () -> ()
    %cst_43 = arith.constant dense<0.000000e+00> : vector<2x16x16xf32>
    %69 = tpu.matmul %66, %67, %cst_43 {dimension_numbers = #tpu.dot_dimension_numbers<[2], [2], [1], [1], [0, 0, 0, 1, 1, 1], [0], [0]>} : vector<2x16x8xf32>, vector<2x16x8xf32>, vector<2x16x16xf32> -> vector<2x16x16xf32>
    "tpu.trace_stop"() : () -> ()
    %cst_44 = arith.constant 0.353553385 : f32
    %70 = vector.broadcast %cst_44 : f32 to vector<2x16x16xf32>
    %71 = arith.mulf %69, %70 : vector<2x16x16xf32>
    %72 = vector.shape_cast %5 : vector<1x16xf32> to vector<1x1x16xf32>
    %73 = vector.broadcast %72 : vector<1x1x16xf32> to vector<2x16x16xf32>
    %74 = arith.addf %71, %73 : vector<2x16x16xf32>
    %cst_45 = arith.constant dense<0xFF800000> : vector<2x16xf32>
    %75 = vector.multi_reduction <maximumf>, %74, %cst_45 [2] : vector<2x16x16xf32> to vector<2x16xf32>
    %76 = vector.shape_cast %75 : vector<2x16xf32> to vector<2x16x1xf32>
    %77 = vector.broadcast %76 : vector<2x16x1xf32> to vector<2x16x16xf32>
    %78 = arith.subf %74, %77 : vector<2x16x16xf32>
    %79 = math.exp %78 : vector<2x16x16xf32>
    %cst_46 = arith.constant dense<0.000000e+00> : vector<2x16xf32>
    %80 = vector.multi_reduction <add>, %79, %cst_46 [2] : vector<2x16x16xf32> to vector<2x16xf32>
    %81 = vector.shape_cast %80 : vector<2x16xf32> to vector<2x16x1xf32>
    %82 = tpu.reciprocal %81 {approx = true} : vector<2x16x1xf32> -> vector<2x16x1xf32>
    %83 = vector.broadcast %82 : vector<2x16x1xf32> to vector<2x16x16xf32>
    %84 = arith.mulf %79, %83 : vector<2x16x16xf32>
    %85 = vector.shape_cast %7 : vector<16x1xf32> to vector<1x16x1xf32>
    %86 = vector.broadcast %85 : vector<1x16x1xf32> to vector<2x16x16xf32>
    %87 = arith.mulf %84, %86 : vector<2x16x16xf32>
    %cst_47 = arith.constant dense<0.000000e+00> : vector<2x16xf32>
    %88 = vector.multi_reduction <add>, %87, %cst_47 [1] : vector<2x16x16xf32> to vector<2x16xf32>
    %89 = vector.shape_cast %88 : vector<2x16xf32> to vector<2x1x16xf32>
    "tpu.trace_start"() <{level = 10 : i32, message = "bqk,bkd->bqd"}> : () -> ()
    %cst_48 = arith.constant dense<0.000000e+00> : vector<2x1x8xf32>
    %90 = tpu.matmul %89, %68, %cst_48 {dimension_numbers = #tpu.dot_dimension_numbers<[2], [1], [1], [2], [0, 0, 0, 1, 1, 2], [0], [0]>} : vector<2x1x16xf32>, vector<2x16x8xf32>, vector<2x1x8xf32> -> vector<2x1x8xf32>
    "tpu.trace_stop"() : () -> ()
    %91 = vector.extract_strided_slice %24 {offsets = [0, 0, 16], sizes = [2, 16, 8], strides = [1, 1, 1]} : vector<2x16x64xf32> to vector<2x16x8xf32>
    %92 = vector.extract_strided_slice %32 {offsets = [0, 0, 16], sizes = [2, 16, 8], strides = [1, 1, 1]} : vector<2x16x64xf32> to vector<2x16x8xf32>
    %93 = vector.extract_strided_slice %40 {offsets = [0, 0, 16], sizes = [2, 16, 8], strides = [1, 1, 1]} : vector<2x16x64xf32> to vector<2x16x8xf32>
    "tpu.trace_start"() <{level = 10 : i32, message = "bqd,bkd->bqk"}> : () -> ()
    %cst_49 = arith.constant dense<0.000000e+00> : vector<2x16x16xf32>
    %94 = tpu.matmul %91, %92, %cst_49 {dimension_numbers = #tpu.dot_dimension_numbers<[2], [2], [1], [1], [0, 0, 0, 1, 1, 1], [0], [0]>} : vector<2x16x8xf32>, vector<2x16x8xf32>, vector<2x16x16xf32> -> vector<2x16x16xf32>
    "tpu.trace_stop"() : () -> ()
    %cst_50 = arith.constant 0.353553385 : f32
    %95 = vector.broadcast %cst_50 : f32 to vector<2x16x16xf32>
    %96 = arith.mulf %94, %95 : vector<2x16x16xf32>
    %97 = vector.shape_cast %5 : vector<1x16xf32> to vector<1x1x16xf32>
    %98 = vector.broadcast %97 : vector<1x1x16xf32> to vector<2x16x16xf32>
    %99 = arith.addf %96, %98 : vector<2x16x16xf32>
    %cst_51 = arith.constant dense<0xFF800000> : vector<2x16xf32>
    %100 = vector.multi_reduction <maximumf>, %99, %cst_51 [2] : vector<2x16x16xf32> to vector<2x16xf32>
    %101 = vector.shape_cast %100 : vector<2x16xf32> to vector<2x16x1xf32>
    %102 = vector.broadcast %101 : vector<2x16x1xf32> to vector<2x16x16xf32>
    %103 = arith.subf %99, %102 : vector<2x16x16xf32>
    %104 = math.exp %103 : vector<2x16x16xf32>
    %cst_52 = arith.constant dense<0.000000e+00> : vector<2x16xf32>
    %105 = vector.multi_reduction <add>, %104, %cst_52 [2] : vector<2x16x16xf32> to vector<2x16xf32>
    %106 = vector.shape_cast %105 : vector<2x16xf32> to vector<2x16x1xf32>
    %107 = tpu.reciprocal %106 {approx = true} : vector<2x16x1xf32> -> vector<2x16x1xf32>
    %108 = vector.broadcast %107 : vector<2x16x1xf32> to vector<2x16x16xf32>
    %109 = arith.mulf %104, %108 : vector<2x16x16xf32>
    %110 = vector.shape_cast %7 : vector<16x1xf32> to vector<1x16x1xf32>
    %111 = vector.broadcast %110 : vector<1x16x1xf32> to vector<2x16x16xf32>
    %112 = arith.mulf %109, %111 : vector<2x16x16xf32>
    %cst_53 = arith.constant dense<0.000000e+00> : vector<2x16xf32>
    %113 = vector.multi_reduction <add>, %112, %cst_53 [1] : vector<2x16x16xf32> to vector<2x16xf32>
    %114 = vector.shape_cast %113 : vector<2x16xf32> to vector<2x1x16xf32>
    "tpu.trace_start"() <{level = 10 : i32, message = "bqk,bkd->bqd"}> : () -> ()
    %cst_54 = arith.constant dense<0.000000e+00> : vector<2x1x8xf32>
    %115 = tpu.matmul %114, %93, %cst_54 {dimension_numbers = #tpu.dot_dimension_numbers<[2], [1], [1], [2], [0, 0, 0, 1, 1, 2], [0], [0]>} : vector<2x1x16xf32>, vector<2x16x8xf32>, vector<2x1x8xf32> -> vector<2x1x8xf32>
    "tpu.trace_stop"() : () -> ()
    %116 = vector.extract_strided_slice %24 {offsets = [0, 0, 24], sizes = [2, 16, 8], strides = [1, 1, 1]} : vector<2x16x64xf32> to vector<2x16x8xf32>
    %117 = vector.extract_strided_slice %32 {offsets = [0, 0, 24], sizes = [2, 16, 8], strides = [1, 1, 1]} : vector<2x16x64xf32> to vector<2x16x8xf32>
    %118 = vector.extract_strided_slice %40 {offsets = [0, 0, 24], sizes = [2, 16, 8], strides = [1, 1, 1]} : vector<2x16x64xf32> to vector<2x16x8xf32>
    "tpu.trace_start"() <{level = 10 : i32, message = "bqd,bkd->bqk"}> : () -> ()
    %cst_55 = arith.constant dense<0.000000e+00> : vector<2x16x16xf32>
    %119 = tpu.matmul %116, %117, %cst_55 {dimension_numbers = #tpu.dot_dimension_numbers<[2], [2], [1], [1], [0, 0, 0, 1, 1, 1], [0], [0]>} : vector<2x16x8xf32>, vector<2x16x8xf32>, vector<2x16x16xf32> -> vector<2x16x16xf32>
    "tpu.trace_stop"() : () -> ()
    %cst_56 = arith.constant 0.353553385 : f32
    %120 = vector.broadcast %cst_56 : f32 to vector<2x16x16xf32>
    %121 = arith.mulf %119, %120 : vector<2x16x16xf32>
    %122 = vector.shape_cast %5 : vector<1x16xf32> to vector<1x1x16xf32>
    %123 = vector.broadcast %122 : vector<1x1x16xf32> to vector<2x16x16xf32>
    %124 = arith.addf %121, %123 : vector<2x16x16xf32>
    %cst_57 = arith.constant dense<0xFF800000> : vector<2x16xf32>
    %125 = vector.multi_reduction <maximumf>, %124, %cst_57 [2] : vector<2x16x16xf32> to vector<2x16xf32>
    %126 = vector.shape_cast %125 : vector<2x16xf32> to vector<2x16x1xf32>
    %127 = vector.broadcast %126 : vector<2x16x1xf32> to vector<2x16x16xf32>
    %128 = arith.subf %124, %127 : vector<2x16x16xf32>
    %129 = math.exp %128 : vector<2x16x16xf32>
    %cst_58 = arith.constant dense<0.000000e+00> : vector<2x16xf32>
    %130 = vector.multi_reduction <add>, %129, %cst_58 [2] : vector<2x16x16xf32> to vector<2x16xf32>
    %131 = vector.shape_cast %130 : vector<2x16xf32> to vector<2x16x1xf32>
    %132 = tpu.reciprocal %131 {approx = true} : vector<2x16x1xf32> -> vector<2x16x1xf32>
    %133 = vector.broadcast %132 : vector<2x16x1xf32> to vector<2x16x16xf32>
    %134 = arith.mulf %129, %133 : vector<2x16x16xf32>
    %135 = vector.shape_cast %7 : vector<16x1xf32> to vector<1x16x1xf32>
    %136 = vector.broadcast %135 : vector<1x16x1xf32> to vector<2x16x16xf32>
    %137 = arith.mulf %134, %136 : vector<2x16x16xf32>
    %cst_59 = arith.constant dense<0.000000e+00> : vector<2x16xf32>
    %138 = vector.multi_reduction <add>, %137, %cst_59 [1] : vector<2x16x16xf32> to vector<2x16xf32>
    %139 = vector.shape_cast %138 : vector<2x16xf32> to vector<2x1x16xf32>
    "tpu.trace_start"() <{level = 10 : i32, message = "bqk,bkd->bqd"}> : () -> ()
    %cst_60 = arith.constant dense<0.000000e+00> : vector<2x1x8xf32>
    %140 = tpu.matmul %139, %118, %cst_60 {dimension_numbers = #tpu.dot_dimension_numbers<[2], [1], [1], [2], [0, 0, 0, 1, 1, 2], [0], [0]>} : vector<2x1x16xf32>, vector<2x16x8xf32>, vector<2x1x8xf32> -> vector<2x1x8xf32>
    "tpu.trace_stop"() : () -> ()
    %141 = vector.extract_strided_slice %24 {offsets = [0, 0, 32], sizes = [2, 16, 8], strides = [1, 1, 1]} : vector<2x16x64xf32> to vector<2x16x8xf32>
    %142 = vector.extract_strided_slice %32 {offsets = [0, 0, 32], sizes = [2, 16, 8], strides = [1, 1, 1]} : vector<2x16x64xf32> to vector<2x16x8xf32>
    %143 = vector.extract_strided_slice %40 {offsets = [0, 0, 32], sizes = [2, 16, 8], strides = [1, 1, 1]} : vector<2x16x64xf32> to vector<2x16x8xf32>
    "tpu.trace_start"() <{level = 10 : i32, message = "bqd,bkd->bqk"}> : () -> ()
    %cst_61 = arith.constant dense<0.000000e+00> : vector<2x16x16xf32>
    %144 = tpu.matmul %141, %142, %cst_61 {dimension_numbers = #tpu.dot_dimension_numbers<[2], [2], [1], [1], [0, 0, 0, 1, 1, 1], [0], [0]>} : vector<2x16x8xf32>, vector<2x16x8xf32>, vector<2x16x16xf32> -> vector<2x16x16xf32>
    "tpu.trace_stop"() : () -> ()
    %cst_62 = arith.constant 0.353553385 : f32
    %145 = vector.broadcast %cst_62 : f32 to vector<2x16x16xf32>
    %146 = arith.mulf %144, %145 : vector<2x16x16xf32>
    %147 = vector.shape_cast %5 : vector<1x16xf32> to vector<1x1x16xf32>
    %148 = vector.broadcast %147 : vector<1x1x16xf32> to vector<2x16x16xf32>
    %149 = arith.addf %146, %148 : vector<2x16x16xf32>
    %cst_63 = arith.constant dense<0xFF800000> : vector<2x16xf32>
    %150 = vector.multi_reduction <maximumf>, %149, %cst_63 [2] : vector<2x16x16xf32> to vector<2x16xf32>
    %151 = vector.shape_cast %150 : vector<2x16xf32> to vector<2x16x1xf32>
    %152 = vector.broadcast %151 : vector<2x16x1xf32> to vector<2x16x16xf32>
    %153 = arith.subf %149, %152 : vector<2x16x16xf32>
    %154 = math.exp %153 : vector<2x16x16xf32>
    %cst_64 = arith.constant dense<0.000000e+00> : vector<2x16xf32>
    %155 = vector.multi_reduction <add>, %154, %cst_64 [2] : vector<2x16x16xf32> to vector<2x16xf32>
    %156 = vector.shape_cast %155 : vector<2x16xf32> to vector<2x16x1xf32>
    %157 = tpu.reciprocal %156 {approx = true} : vector<2x16x1xf32> -> vector<2x16x1xf32>
    %158 = vector.broadcast %157 : vector<2x16x1xf32> to vector<2x16x16xf32>
    %159 = arith.mulf %154, %158 : vector<2x16x16xf32>
    %160 = vector.shape_cast %7 : vector<16x1xf32> to vector<1x16x1xf32>
    %161 = vector.broadcast %160 : vector<1x16x1xf32> to vector<2x16x16xf32>
    %162 = arith.mulf %159, %161 : vector<2x16x16xf32>
    %cst_65 = arith.constant dense<0.000000e+00> : vector<2x16xf32>
    %163 = vector.multi_reduction <add>, %162, %cst_65 [1] : vector<2x16x16xf32> to vector<2x16xf32>
    %164 = vector.shape_cast %163 : vector<2x16xf32> to vector<2x1x16xf32>
    "tpu.trace_start"() <{level = 10 : i32, message = "bqk,bkd->bqd"}> : () -> ()
    %cst_66 = arith.constant dense<0.000000e+00> : vector<2x1x8xf32>
    %165 = tpu.matmul %164, %143, %cst_66 {dimension_numbers = #tpu.dot_dimension_numbers<[2], [1], [1], [2], [0, 0, 0, 1, 1, 2], [0], [0]>} : vector<2x1x16xf32>, vector<2x16x8xf32>, vector<2x1x8xf32> -> vector<2x1x8xf32>
    "tpu.trace_stop"() : () -> ()
    %166 = vector.extract_strided_slice %24 {offsets = [0, 0, 40], sizes = [2, 16, 8], strides = [1, 1, 1]} : vector<2x16x64xf32> to vector<2x16x8xf32>
    %167 = vector.extract_strided_slice %32 {offsets = [0, 0, 40], sizes = [2, 16, 8], strides = [1, 1, 1]} : vector<2x16x64xf32> to vector<2x16x8xf32>
    %168 = vector.extract_strided_slice %40 {offsets = [0, 0, 40], sizes = [2, 16, 8], strides = [1, 1, 1]} : vector<2x16x64xf32> to vector<2x16x8xf32>
    "tpu.trace_start"() <{level = 10 : i32, message = "bqd,bkd->bqk"}> : () -> ()
    %cst_67 = arith.constant dense<0.000000e+00> : vector<2x16x16xf32>
    %169 = tpu.matmul %166, %167, %cst_67 {dimension_numbers = #tpu.dot_dimension_numbers<[2], [2], [1], [1], [0, 0, 0, 1, 1, 1], [0], [0]>} : vector<2x16x8xf32>, vector<2x16x8xf32>, vector<2x16x16xf32> -> vector<2x16x16xf32>
    "tpu.trace_stop"() : () -> ()
    %cst_68 = arith.constant 0.353553385 : f32
    %170 = vector.broadcast %cst_68 : f32 to vector<2x16x16xf32>
    %171 = arith.mulf %169, %170 : vector<2x16x16xf32>
    %172 = vector.shape_cast %5 : vector<1x16xf32> to vector<1x1x16xf32>
    %173 = vector.broadcast %172 : vector<1x1x16xf32> to vector<2x16x16xf32>
    %174 = arith.addf %171, %173 : vector<2x16x16xf32>
    %cst_69 = arith.constant dense<0xFF800000> : vector<2x16xf32>
    %175 = vector.multi_reduction <maximumf>, %174, %cst_69 [2] : vector<2x16x16xf32> to vector<2x16xf32>
    %176 = vector.shape_cast %175 : vector<2x16xf32> to vector<2x16x1xf32>
    %177 = vector.broadcast %176 : vector<2x16x1xf32> to vector<2x16x16xf32>
    %178 = arith.subf %174, %177 : vector<2x16x16xf32>
    %179 = math.exp %178 : vector<2x16x16xf32>
    %cst_70 = arith.constant dense<0.000000e+00> : vector<2x16xf32>
    %180 = vector.multi_reduction <add>, %179, %cst_70 [2] : vector<2x16x16xf32> to vector<2x16xf32>
    %181 = vector.shape_cast %180 : vector<2x16xf32> to vector<2x16x1xf32>
    %182 = tpu.reciprocal %181 {approx = true} : vector<2x16x1xf32> -> vector<2x16x1xf32>
    %183 = vector.broadcast %182 : vector<2x16x1xf32> to vector<2x16x16xf32>
    %184 = arith.mulf %179, %183 : vector<2x16x16xf32>
    %185 = vector.shape_cast %7 : vector<16x1xf32> to vector<1x16x1xf32>
    %186 = vector.broadcast %185 : vector<1x16x1xf32> to vector<2x16x16xf32>
    %187 = arith.mulf %184, %186 : vector<2x16x16xf32>
    %cst_71 = arith.constant dense<0.000000e+00> : vector<2x16xf32>
    %188 = vector.multi_reduction <add>, %187, %cst_71 [1] : vector<2x16x16xf32> to vector<2x16xf32>
    %189 = vector.shape_cast %188 : vector<2x16xf32> to vector<2x1x16xf32>
    "tpu.trace_start"() <{level = 10 : i32, message = "bqk,bkd->bqd"}> : () -> ()
    %cst_72 = arith.constant dense<0.000000e+00> : vector<2x1x8xf32>
    %190 = tpu.matmul %189, %168, %cst_72 {dimension_numbers = #tpu.dot_dimension_numbers<[2], [1], [1], [2], [0, 0, 0, 1, 1, 2], [0], [0]>} : vector<2x1x16xf32>, vector<2x16x8xf32>, vector<2x1x8xf32> -> vector<2x1x8xf32>
    "tpu.trace_stop"() : () -> ()
    %191 = vector.extract_strided_slice %24 {offsets = [0, 0, 48], sizes = [2, 16, 8], strides = [1, 1, 1]} : vector<2x16x64xf32> to vector<2x16x8xf32>
    %192 = vector.extract_strided_slice %32 {offsets = [0, 0, 48], sizes = [2, 16, 8], strides = [1, 1, 1]} : vector<2x16x64xf32> to vector<2x16x8xf32>
    %193 = vector.extract_strided_slice %40 {offsets = [0, 0, 48], sizes = [2, 16, 8], strides = [1, 1, 1]} : vector<2x16x64xf32> to vector<2x16x8xf32>
    "tpu.trace_start"() <{level = 10 : i32, message = "bqd,bkd->bqk"}> : () -> ()
    %cst_73 = arith.constant dense<0.000000e+00> : vector<2x16x16xf32>
    %194 = tpu.matmul %191, %192, %cst_73 {dimension_numbers = #tpu.dot_dimension_numbers<[2], [2], [1], [1], [0, 0, 0, 1, 1, 1], [0], [0]>} : vector<2x16x8xf32>, vector<2x16x8xf32>, vector<2x16x16xf32> -> vector<2x16x16xf32>
    "tpu.trace_stop"() : () -> ()
    %cst_74 = arith.constant 0.353553385 : f32
    %195 = vector.broadcast %cst_74 : f32 to vector<2x16x16xf32>
    %196 = arith.mulf %194, %195 : vector<2x16x16xf32>
    %197 = vector.shape_cast %5 : vector<1x16xf32> to vector<1x1x16xf32>
    %198 = vector.broadcast %197 : vector<1x1x16xf32> to vector<2x16x16xf32>
    %199 = arith.addf %196, %198 : vector<2x16x16xf32>
    %cst_75 = arith.constant dense<0xFF800000> : vector<2x16xf32>
    %200 = vector.multi_reduction <maximumf>, %199, %cst_75 [2] : vector<2x16x16xf32> to vector<2x16xf32>
    %201 = vector.shape_cast %200 : vector<2x16xf32> to vector<2x16x1xf32>
    %202 = vector.broadcast %201 : vector<2x16x1xf32> to vector<2x16x16xf32>
    %203 = arith.subf %199, %202 : vector<2x16x16xf32>
    %204 = math.exp %203 : vector<2x16x16xf32>
    %cst_76 = arith.constant dense<0.000000e+00> : vector<2x16xf32>
    %205 = vector.multi_reduction <add>, %204, %cst_76 [2] : vector<2x16x16xf32> to vector<2x16xf32>
    %206 = vector.shape_cast %205 : vector<2x16xf32> to vector<2x16x1xf32>
    %207 = tpu.reciprocal %206 {approx = true} : vector<2x16x1xf32> -> vector<2x16x1xf32>
    %208 = vector.broadcast %207 : vector<2x16x1xf32> to vector<2x16x16xf32>
    %209 = arith.mulf %204, %208 : vector<2x16x16xf32>
    %210 = vector.shape_cast %7 : vector<16x1xf32> to vector<1x16x1xf32>
    %211 = vector.broadcast %210 : vector<1x16x1xf32> to vector<2x16x16xf32>
    %212 = arith.mulf %209, %211 : vector<2x16x16xf32>
    %cst_77 = arith.constant dense<0.000000e+00> : vector<2x16xf32>
    %213 = vector.multi_reduction <add>, %212, %cst_77 [1] : vector<2x16x16xf32> to vector<2x16xf32>
    %214 = vector.shape_cast %213 : vector<2x16xf32> to vector<2x1x16xf32>
    "tpu.trace_start"() <{level = 10 : i32, message = "bqk,bkd->bqd"}> : () -> ()
    %cst_78 = arith.constant dense<0.000000e+00> : vector<2x1x8xf32>
    %215 = tpu.matmul %214, %193, %cst_78 {dimension_numbers = #tpu.dot_dimension_numbers<[2], [1], [1], [2], [0, 0, 0, 1, 1, 2], [0], [0]>} : vector<2x1x16xf32>, vector<2x16x8xf32>, vector<2x1x8xf32> -> vector<2x1x8xf32>
    "tpu.trace_stop"() : () -> ()
    %216 = vector.extract_strided_slice %24 {offsets = [0, 0, 56], sizes = [2, 16, 8], strides = [1, 1, 1]} : vector<2x16x64xf32> to vector<2x16x8xf32>
    %217 = vector.extract_strided_slice %32 {offsets = [0, 0, 56], sizes = [2, 16, 8], strides = [1, 1, 1]} : vector<2x16x64xf32> to vector<2x16x8xf32>
    %218 = vector.extract_strided_slice %40 {offsets = [0, 0, 56], sizes = [2, 16, 8], strides = [1, 1, 1]} : vector<2x16x64xf32> to vector<2x16x8xf32>
    "tpu.trace_start"() <{level = 10 : i32, message = "bqd,bkd->bqk"}> : () -> ()
    %cst_79 = arith.constant dense<0.000000e+00> : vector<2x16x16xf32>
    %219 = tpu.matmul %216, %217, %cst_79 {dimension_numbers = #tpu.dot_dimension_numbers<[2], [2], [1], [1], [0, 0, 0, 1, 1, 1], [0], [0]>} : vector<2x16x8xf32>, vector<2x16x8xf32>, vector<2x16x16xf32> -> vector<2x16x16xf32>
    "tpu.trace_stop"() : () -> ()
    %cst_80 = arith.constant 0.353553385 : f32
    %220 = vector.broadcast %cst_80 : f32 to vector<2x16x16xf32>
    %221 = arith.mulf %219, %220 : vector<2x16x16xf32>
    %222 = vector.shape_cast %5 : vector<1x16xf32> to vector<1x1x16xf32>
    %223 = vector.broadcast %222 : vector<1x1x16xf32> to vector<2x16x16xf32>
    %224 = arith.addf %221, %223 : vector<2x16x16xf32>
    %cst_81 = arith.constant dense<0xFF800000> : vector<2x16xf32>
    %225 = vector.multi_reduction <maximumf>, %224, %cst_81 [2] : vector<2x16x16xf32> to vector<2x16xf32>
    %226 = vector.shape_cast %225 : vector<2x16xf32> to vector<2x16x1xf32>
    %227 = vector.broadcast %226 : vector<2x16x1xf32> to vector<2x16x16xf32>
    %228 = arith.subf %224, %227 : vector<2x16x16xf32>
    %229 = math.exp %228 : vector<2x16x16xf32>
    %cst_82 = arith.constant dense<0.000000e+00> : vector<2x16xf32>
    %230 = vector.multi_reduction <add>, %229, %cst_82 [2] : vector<2x16x16xf32> to vector<2x16xf32>
    %231 = vector.shape_cast %230 : vector<2x16xf32> to vector<2x16x1xf32>
    %232 = tpu.reciprocal %231 {approx = true} : vector<2x16x1xf32> -> vector<2x16x1xf32>
    %233 = vector.broadcast %232 : vector<2x16x1xf32> to vector<2x16x16xf32>
    %234 = arith.mulf %229, %233 : vector<2x16x16xf32>
    %235 = vector.shape_cast %7 : vector<16x1xf32> to vector<1x16x1xf32>
    %236 = vector.broadcast %235 : vector<1x16x1xf32> to vector<2x16x16xf32>
    %237 = arith.mulf %234, %236 : vector<2x16x16xf32>
    %cst_83 = arith.constant dense<0.000000e+00> : vector<2x16xf32>
    %238 = vector.multi_reduction <add>, %237, %cst_83 [1] : vector<2x16x16xf32> to vector<2x16xf32>
    %239 = vector.shape_cast %238 : vector<2x16xf32> to vector<2x1x16xf32>
    "tpu.trace_start"() <{level = 10 : i32, message = "bqk,bkd->bqd"}> : () -> ()
    %cst_84 = arith.constant dense<0.000000e+00> : vector<2x1x8xf32>
    %240 = tpu.matmul %239, %218, %cst_84 {dimension_numbers = #tpu.dot_dimension_numbers<[2], [1], [1], [2], [0, 0, 0, 1, 1, 2], [0], [0]>} : vector<2x1x16xf32>, vector<2x16x8xf32>, vector<2x1x8xf32> -> vector<2x1x8xf32>
    "tpu.trace_stop"() : () -> ()
    %241 = tpu.concatenate %65, %90, %115, %140, %165, %190, %215, %240 in 2 : vector<2x1x8xf32>, vector<2x1x8xf32>, vector<2x1x8xf32>, vector<2x1x8xf32>, vector<2x1x8xf32>, vector<2x1x8xf32>, vector<2x1x8xf32>, vector<2x1x8xf32> -> vector<2x1x64xf32>
    %cst_85 = arith.constant dense<0.000000e+00> : vector<2x64xf32>
    %242 = vector.multi_reduction <add>, %241, %cst_85 [1] : vector<2x1x64xf32> to vector<2x64xf32>
    %c0_86 = arith.constant 0 : index
    %c0_87 = arith.constant 0 : index
    %c0_88 = arith.constant 0 : index
    %243 = vector.load %arg14[%c0_86, %c0_87, %c0_88] : memref<1x64x64xf32, #tpu.memory_space<vmem>>, vector<1x64x64xf32>
    %244 = vector.shape_cast %243 : vector<1x64x64xf32> to vector<64x64xf32>
    %cst_89 = arith.constant dense<0.000000e+00> : vector<2x64xf32>
    %245 = tpu.matmul %242, %244, %cst_89 {dimension_numbers = #tpu.dot_dimension_numbers<[1], [0], [0], [1], [0, 0, 1, 1], [], []>} : vector<2x64xf32>, vector<64x64xf32>, vector<2x64xf32> -> vector<2x64xf32>
    %c0_90 = arith.constant 0 : index
    %c0_91 = arith.constant 0 : index
    %c0_92 = arith.constant 0 : index
    %246 = vector.load %arg15[%c0_90, %c0_91, %c0_92] : memref<1x1x64xf32, #tpu.memory_space<vmem>>, vector<1x1x64xf32>
    %247 = vector.shape_cast %246 : vector<1x1x64xf32> to vector<1x64xf32>
    %248 = vector.broadcast %247 : vector<1x64xf32> to vector<2x64xf32>
    %249 = arith.addf %245, %248 : vector<2x64xf32>
    %c0_93 = arith.constant 0 : index
    %c0_94 = arith.constant 0 : index
    %c0_95 = arith.constant 0 : index
    %250 = vector.load %arg16[%c0_93, %c0_94, %c0_95] : memref<1x2x64xf32, #tpu.memory_space<vmem>>, vector<1x2x64xf32>
    %251 = vector.shape_cast %250 : vector<1x2x64xf32> to vector<2x64xf32>
    %252 = vector.shape_cast %249 : vector<2x64xf32> to vector<1x2x64xf32>
    tpu.vector_store %arg16[%c0_93, %c0_94, %c0_95], %252 {strides = array<i32>} : memref<1x2x64xf32, #tpu.memory_space<vmem>>, vector<1x2x64xf32>,
    return
  }
  func.func @transform_0(%arg0: i32, %arg1: memref<5xi32, #tpu.memory_space<smem>>, %arg2: memref<5xi32, #tpu.memory_space<smem>>, %arg3: memref<5xi32, #tpu.memory_space<smem>>) -> (i32, i32, i32, i32) {
    %0 = arith.index_cast %arg0 : i32 to index
    %1 = memref.load %arg1[%0] : memref<5xi32, #tpu.memory_space<smem>>
    %c0_i32 = arith.constant 0 : i32
    %c0_i32_0 = arith.constant 0 : i32
    %c0_i32_1 = arith.constant 0 : i32
    %c0_i32_2 = arith.constant 0 : i32
    return %1, %c0_i32, %c0_i32_0, %c0_i32_1 : i32, i32, i32, i32
  }
  func.func @transform_1(%arg0: i32, %arg1: memref<5xi32, #tpu.memory_space<smem>>, %arg2: memref<5xi32, #tpu.memory_space<smem>>, %arg3: memref<5xi32, #tpu.memory_space<smem>>) -> (i32, i32, i32, i32) {
    %0 = arith.index_cast %arg0 : i32 to index
    %1 = memref.load %arg2[%0] : memref<5xi32, #tpu.memory_space<smem>>
    %c0_i32 = arith.constant 0 : i32
    %c0_i32_0 = arith.constant 0 : i32
    %c0_i32_1 = arith.constant 0 : i32
    %c0_i32_2 = arith.constant 0 : i32
    return %1, %c0_i32, %c0_i32_0, %c0_i32_1 : i32, i32, i32, i32
  }
  func.func @transform_2(%arg0: i32, %arg1: memref<5xi32, #tpu.memory_space<smem>>, %arg2: memref<5xi32, #tpu.memory_space<smem>>, %arg3: memref<5xi32, #tpu.memory_space<smem>>) -> (i32, i32, i32) {
    %c0_i32 = arith.constant 0 : i32
    %c0_i32_0 = arith.constant 0 : i32
    %c0_i32_1 = arith.constant 0 : i32
    return %arg0, %c0_i32, %c0_i32_0 : i32, i32, i32
  }
  func.func @transform_3(%arg0: i32, %arg1: memref<5xi32, #tpu.memory_space<smem>>, %arg2: memref<5xi32, #tpu.memory_space<smem>>, %arg3: memref<5xi32, #tpu.memory_space<smem>>) -> (i32, i32, i32) {
    %c0_i32 = arith.constant 0 : i32
    %c0_i32_0 = arith.constant 0 : i32
    %c0_i32_1 = arith.constant 0 : i32
    return %arg0, %c0_i32, %c0_i32_0 : i32, i32, i32
  }
  func.func @transform_4(%arg0: i32, %arg1: memref<5xi32, #tpu.memory_space<smem>>, %arg2: memref<5xi32, #tpu.memory_space<smem>>, %arg3: memref<5xi32, #tpu.memory_space<smem>>) -> (i32, i32, i32) {
    %0 = arith.index_cast %arg0 : i32 to index
    %1 = memref.load %arg3[%0] : memref<5xi32, #tpu.memory_space<smem>>
    %c0_i32 = arith.constant 0 : i32
    %c0_i32_0 = arith.constant 0 : i32
    %c0_i32_1 = arith.constant 0 : i32
    return %1, %c0_i32, %c0_i32_0 : i32, i32, i32
  }
  func.func @transform_5(%arg0: i32, %arg1: memref<5xi32, #tpu.memory_space<smem>>, %arg2: memref<5xi32, #tpu.memory_space<smem>>, %arg3: memref<5xi32, #tpu.memory_space<smem>>) -> (i32, i32, i32) {
    %0 = arith.index_cast %arg0 : i32 to index
    %1 = memref.load %arg3[%0] : memref<5xi32, #tpu.memory_space<smem>>
    %c0_i32 = arith.constant 0 : i32
    %c0_i32_0 = arith.constant 0 : i32
    %c0_i32_1 = arith.constant 0 : i32
    return %1, %c0_i32, %c0_i32_0 : i32, i32, i32
  }
  func.func @transform_6(%arg0: i32, %arg1: memref<5xi32, #tpu.memory_space<smem>>, %arg2: memref<5xi32, #tpu.memory_space<smem>>, %arg3: memref<5xi32, #tpu.memory_space<smem>>) -> (i32, i32, i32) {
    %0 = arith.index_cast %arg0 : i32 to index
    %1 = memref.load %arg3[%0] : memref<5xi32, #tpu.memory_space<smem>>
    %c0_i32 = arith.constant 0 : i32
    %c0_i32_0 = arith.constant 0 : i32
    %c0_i32_1 = arith.constant 0 : i32
    return %1, %c0_i32, %c0_i32_0 : i32, i32, i32
  }
  func.func @transform_7(%arg0: i32, %arg1: memref<5xi32, #tpu.memory_space<smem>>, %arg2: memref<5xi32, #tpu.memory_space<smem>>, %arg3: memref<5xi32, #tpu.memory_space<smem>>) -> (i32, i32, i32) {
    %0 = arith.index_cast %arg0 : i32 to index
    %1 = memref.load %arg3[%0] : memref<5xi32, #tpu.memory_space<smem>>
    %c0_i32 = arith.constant 0 : i32
    %c0_i32_0 = arith.constant 0 : i32
    %c0_i32_1 = arith.constant 0 : i32
    return %1, %c0_i32, %c0_i32_0 : i32, i32, i32
  }
  func.func @transform_8(%arg0: i32, %arg1: memref<5xi32, #tpu.memory_space<smem>>, %arg2: memref<5xi32, #tpu.memory_space<smem>>, %arg3: memref<5xi32, #tpu.memory_space<smem>>) -> (i32, i32, i32) {
    %0 = arith.index_cast %arg0 : i32 to index
    %1 = memref.load %arg3[%0] : memref<5xi32, #tpu.memory_space<smem>>
    %c0_i32 = arith.constant 0 : i32
    %c0_i32_0 = arith.constant 0 : i32
    %c0_i32_1 = arith.constant 0 : i32
    return %1, %c0_i32, %c0_i32_0 : i32, i32, i32
  }
  func.func @transform_9(%arg0: i32, %arg1: memref<5xi32, #tpu.memory_space<smem>>, %arg2: memref<5xi32, #tpu.memory_space<smem>>, %arg3: memref<5xi32, #tpu.memory_space<smem>>) -> (i32, i32, i32) {
    %0 = arith.index_cast %arg0 : i32 to index
    %1 = memref.load %arg3[%0] : memref<5xi32, #tpu.memory_space<smem>>
    %c0_i32 = arith.constant 0 : i32
    %c0_i32_0 = arith.constant 0 : i32
    %c0_i32_1 = arith.constant 0 : i32
    return %1, %c0_i32, %c0_i32_0 : i32, i32, i32
  }
  func.func @transform_10(%arg0: i32, %arg1: memref<5xi32, #tpu.memory_space<smem>>, %arg2: memref<5xi32, #tpu.memory_space<smem>>, %arg3: memref<5xi32, #tpu.memory_space<smem>>) -> (i32, i32, i32) {
    %0 = arith.index_cast %arg0 : i32 to index
    %1 = memref.load %arg3[%0] : memref<5xi32, #tpu.memory_space<smem>>
    %c0_i32 = arith.constant 0 : i32
    %c0_i32_0 = arith.constant 0 : i32
    %c0_i32_1 = arith.constant 0 : i32
    return %1, %c0_i32, %c0_i32_0 : i32, i32, i32
  }
  func.func @transform_11(%arg0: i32, %arg1: memref<5xi32, #tpu.memory_space<smem>>, %arg2: memref<5xi32, #tpu.memory_space<smem>>, %arg3: memref<5xi32, #tpu.memory_space<smem>>) -> (i32, i32, i32) {
    %0 = arith.index_cast %arg0 : i32 to index
    %1 = memref.load %arg3[%0] : memref<5xi32, #tpu.memory_space<smem>>
    %c0_i32 = arith.constant 0 : i32
    %c0_i32_0 = arith.constant 0 : i32
    %c0_i32_1 = arith.constant 0 : i32
    return %1, %c0_i32, %c0_i32_0 : i32, i32, i32
  }
  func.func @transform_12(%arg0: i32, %arg1: memref<5xi32, #tpu.memory_space<smem>>, %arg2: memref<5xi32, #tpu.memory_space<smem>>, %arg3: memref<5xi32, #tpu.memory_space<smem>>) -> (i32, i32, i32) {
    %c0_i32 = arith.constant 0 : i32
    %c0_i32_0 = arith.constant 0 : i32
    %c0_i32_1 = arith.constant 0 : i32
    return %arg0, %c0_i32, %c0_i32_0 : i32, i32, i32
  }
  func.func @transform_13(%arg0: i32, %arg1: memref<5xi32, #tpu.memory_space<smem>>, %arg2: memref<5xi32, #tpu.memory_space<smem>>, %arg3: memref<5xi32, #tpu.memory_space<smem>>) -> (i32, i32, i32) {
    %c0_i32 = arith.constant 0 : i32
    %c0_i32_0 = arith.constant 0 : i32
    %c0_i32_1 = arith.constant 0 : i32
    return %arg0, %c0_i32, %c0_i32_0 : i32, i32, i32
  }
}

</mosaic_0001>

<llo_original>
// kernel: forward_pallas.3
$region0: #{forward_pallas.3}
  #allocation0 [shape = 'u32[]', space=smem, size = 0x4, offset = 0x4, fixed_abs, tag = 'smem constant byte address 0x4 - core index']
  #allocation1 [shape = 'u32[144,128]{1,0:T(1,128)}', space=vmem, size = 0x12000, scoped, tag = 'internal scratch']
  #allocation2 [shape = 'f32[1,1]{1,0:T(1,128)S(1)}', space=vmem, size = 0x200, scoped, tag = 'scoped memory for forward_pallas.3']
  #allocation3 [shape = 'f32[1,1]{1,0:T(1,128)S(1)}', space=vmem, size = 0x200, scoped, tag = 'scoped memory for forward_pallas.3']
  #allocation4 [shape = 'f32[1,1]{1,0:T(1,128)S(1)}', space=vmem, size = 0x200, scoped, tag = 'scoped memory for forward_pallas.3']
  #allocation5 [shape = 'f32[1,1]{1,0:T(1,128)S(1)}', space=vmem, size = 0x200, scoped, tag = 'scoped memory for forward_pallas.3']
  #allocation6 [shape = 'f32[1,1]{1,0:T(1,128)S(1)}', space=vmem, size = 0x200, scoped, tag = 'scoped memory for forward_pallas.3']
  %s0 = inlined_call_operand.smem [shape: u32[30], index: -1, kind: input, shape index: {}]
  %s1 = sld [smem:[%s0]]
  %s2 = scalar_lea.smem %s0, 1
  %s3 = sld [smem:[%s2]]
  %s4 = scalar_lea.smem %s0, 2
  %s5 = sld [smem:[%s4]]
  %s6 = scalar_lea.smem %s0, 3
  %s7 = sld [smem:[%s6]]
  %s8 = scalar_lea.smem %s0, 4
  %s9 = sld [smem:[%s8]]
  %s10 = scalar_lea.smem %s0, 5
  %s11 = sld [smem:[%s10]]
  %s12 = scalar_lea.smem %s0, 6
  %s13 = sld [smem:[%s12]]
  %s14 = scalar_lea.smem %s0, 7
  %s15 = sld [smem:[%s14]]
  %s16 = scalar_lea.smem %s0, 8
  %s17 = sld [smem:[%s16]]
  %s18 = scalar_lea.smem %s0, 9
  %s19 = sld [smem:[%s18]]
  %s20 = scalar_lea.smem %s0, 10
  %s21 = sld [smem:[%s20]]
  %s22 = scalar_lea.smem %s0, 11
  %s23 = sld [smem:[%s22]]
  %s24 = scalar_lea.smem %s0, 12
  %s25 = sld [smem:[%s24]]
  %s26 = scalar_lea.smem %s0, 13
  %s27 = sld [smem:[%s26]]
  %s28 = scalar_lea.smem %s0, 14
  %s29 = sld [smem:[%s28]]
  %s30 = scalar_lea.smem %s0, 15
  %s31 = sld [smem:[%s30]]
  %s32 = scalar_lea.smem %s0, 16
  %s33 = sld [smem:[%s32]]
  %s34 = scalar_lea.smem %s0, 17
  %s35 = sld [smem:[%s34]]
  %s36 = scalar_lea.smem %s0, 18
  %s37 = sld [smem:[%s36]]
  %s38 = scalar_lea.smem %s0, 19
  %s39 = sld [smem:[%s38]]
  %s40 = scalar_lea.smem %s0, 20
  %s41 = sld [smem:[%s40]]
  %s42 = scalar_lea.smem %s0, 21
  %s43 = sld [smem:[%s42]]
  %s44 = scalar_lea.smem %s0, 22
  %s45 = sld [smem:[%s44]]
  %s46 = scalar_lea.smem %s0, 23
  %s47 = sld [smem:[%s46]]
  %s48 = scalar_lea.smem %s0, 24
  %s49 = sld [smem:[%s48]]
  %s50 = scalar_lea.smem %s0, 25
  %s51 = sld [smem:[%s50]]
  %s52 = scalar_lea.smem %s0, 26
  %s53 = sld [smem:[%s52]]
  %s54 = scalar_lea.smem %s0, 27
  %s55 = sld [smem:[%s54]]
  %s56 = scalar_lea.smem %s0, 28
  %s57 = sld [smem:[%s56]]
  %s58 = scalar_lea.smem %s0, 29
  %s59 = sld [smem:[%s58]]
  %s60 = sld [smem:[#allocation0]]
  $region126: #{forward_pallas.3} parent=0
    _
  %s62 = ssub.s32 1, %s60
  %s63 = scalar_select 0, %s62, %s60
  %v64 = vstv %s11
  %65 = vst [vmem:[#allocation2] sm:$0x1] %v64
  %v66 = vstv %s19
  %67 = vst [vmem:[#allocation3] sm:$0x1] %v66
  %v68 = vstv %s41
  %69 = vst [vmem:[#allocation4] sm:$0x1] %v68
  %v70 = vstv %s45
  %71 = vst [vmem:[#allocation5] sm:$0x1] %v70
  %v72 = vstv %s57
  %73 = vst [vmem:[#allocation6] sm:$0x1] %v72
  // Predicated region
  $region2: #{forward_pallas.3} parent=0 // pred_check
    _
  $region3: #{forward_pallas.3} parent=0 // pred_check_branch
    %75 = sbr.rel (0) target = $region5
  $region4: #{forward_pallas.3} parent=0 // pred_region
    _
  $region5: #{forward_pallas.3} parent=0 // pred_fallthru
    _
  // Predicated region
  $region6: #{forward_pallas.3} parent=0 // pred_check
    _
  $region7: #{forward_pallas.3} parent=0 // pred_check_branch
    %77 = sbr.rel (0) target = $region9
  $region8: #{forward_pallas.3} parent=0 // pred_region
    _
  $region9: #{forward_pallas.3} parent=0 // pred_fallthru
    _
  // Predicated region
  $region10: #{forward_pallas.3} parent=0 // pred_check
    _
  $region11: #{forward_pallas.3} parent=0 // pred_check_branch
    %79 = sbr.rel (0) target = $region13
  $region12: #{forward_pallas.3} parent=0 // pred_region
    _
  $region13: #{forward_pallas.3} parent=0 // pred_fallthru
    _
  // Predicated region
  $region14: #{forward_pallas.3} parent=0 // pred_check
    _
  $region15: #{forward_pallas.3} parent=0 // pred_check_branch
    %81 = sbr.rel (0) target = $region17
  $region16: #{forward_pallas.3} parent=0 // pred_region
    _
  $region17: #{forward_pallas.3} parent=0 // pred_fallthru
    _
  // Predicated region
  $region18: #{forward_pallas.3} parent=0 // pred_check
    _
  $region19: #{forward_pallas.3} parent=0 // pred_check_branch
    %83 = sbr.rel (0) target = $region21
  $region20: #{forward_pallas.3} parent=0 // pred_region
    _
  $region21: #{forward_pallas.3} parent=0 // pred_fallthru
    _
  // Predicated region
  $region22: #{forward_pallas.3} parent=0 // pred_check
    _
  $region23: #{forward_pallas.3} parent=0 // pred_check_branch
    %85 = sbr.rel (0) target = $region25
  $region24: #{forward_pallas.3} parent=0 // pred_region
    _
  $region25: #{forward_pallas.3} parent=0 // pred_fallthru
    _
  // Predicated region
  $region26: #{forward_pallas.3} parent=0 // pred_check
    _
  $region27: #{forward_pallas.3} parent=0 // pred_check_branch
    %87 = sbr.rel (0) target = $region29
  $region28: #{forward_pallas.3} parent=0 // pred_region
    _
  $region29: #{forward_pallas.3} parent=0 // pred_fallthru
    _
  // Predicated region
  $region30: #{forward_pallas.3} parent=0 // pred_check
    _
  $region31: #{forward_pallas.3} parent=0 // pred_check_branch
    %89 = sbr.rel (0) target = $region33
  $region32: #{forward_pallas.3} parent=0 // pred_region
    _
  $region33: #{forward_pallas.3} parent=0 // pred_fallthru
    _
  // Predicated region
  $region34: #{forward_pallas.3} parent=0 // pred_check
    _
  $region35: #{forward_pallas.3} parent=0 // pred_check_branch
    %91 = sbr.rel (0) target = $region37
  $region36: #{forward_pallas.3} parent=0 // pred_region
    _
  $region37: #{forward_pallas.3} parent=0 // pred_fallthru
    _
  // Predicated region
  $region38: #{forward_pallas.3} parent=0 // pred_check
    _
  $region39: #{forward_pallas.3} parent=0 // pred_check_branch
    %93 = sbr.rel (0) target = $region41
  $region40: #{forward_pallas.3} parent=0 // pred_region
    _
  $region41: #{forward_pallas.3} parent=0 // pred_fallthru
    _
  // Predicated region
  $region42: #{forward_pallas.3} parent=0 // pred_check
    _
  $region43: #{forward_pallas.3} parent=0 // pred_check_branch
    %95 = sbr.rel (0) target = $region45
  $region44: #{forward_pallas.3} parent=0 // pred_region
    _
  $region45: #{forward_pallas.3} parent=0 // pred_fallthru
    _
  // Predicated region
  $region46: #{forward_pallas.3} parent=0 // pred_check
    _
  $region47: #{forward_pallas.3} parent=0 // pred_check_branch
    %97 = sbr.rel (0) target = $region49
  $region48: #{forward_pallas.3} parent=0 // pred_region
    _
  $region49: #{forward_pallas.3} parent=0 // pred_fallthru
    _
  // Predicated region
  $region50: #{forward_pallas.3} parent=0 // pred_check
    _
  $region51: #{forward_pallas.3} parent=0 // pred_check_branch
    %99 = sbr.rel (0) target = $region53
  $region52: #{forward_pallas.3} parent=0 // pred_region
    _
  $region53: #{forward_pallas.3} parent=0 // pred_fallthru
    _
  // Predicated region
  $region54: #{forward_pallas.3} parent=0 // pred_check
    _
  $region55: #{forward_pallas.3} parent=0 // pred_check_branch
    %101 = sbr.rel (0) target = $region57
  $region56: #{forward_pallas.3} parent=0 // pred_region
    _
  $region57: #{forward_pallas.3} parent=0 // pred_fallthru
    _
  // Predicated region
  $region58: #{forward_pallas.3} parent=0 // pred_check
    _
  $region59: #{forward_pallas.3} parent=0 // pred_check_branch
    %103 = sbr.rel (0) target = $region61
  $region60: #{forward_pallas.3} parent=0 // pred_region
    _
  $region61: #{forward_pallas.3} parent=0 // pred_fallthru
    _
  // Predicated region
  $region62: #{forward_pallas.3} parent=0 // pred_check
    _
  $region63: #{forward_pallas.3} parent=0 // pred_check_branch
    %105 = sbr.rel (0) target = $region65
  $region64: #{forward_pallas.3} parent=0 // pred_region
    _
  $region65: #{forward_pallas.3} parent=0 // pred_fallthru
    _
  // Predicated region
  $region66: #{forward_pallas.3} parent=0 // pred_check
    _
  $region67: #{forward_pallas.3} parent=0 // pred_check_branch
    %107 = sbr.rel (0) target = $region69
  $region68: #{forward_pallas.3} parent=0 // pred_region
    _
  $region69: #{forward_pallas.3} parent=0 // pred_fallthru
    _
  // Predicated region
  $region70: #{forward_pallas.3} parent=0 // pred_check
    _
  $region71: #{forward_pallas.3} parent=0 // pred_check_branch
    %109 = sbr.rel (0) target = $region73
  $region72: #{forward_pallas.3} parent=0 // pred_region
    _
  $region73: #{forward_pallas.3} parent=0 // pred_fallthru
    _
  // Predicated region
  $region74: #{forward_pallas.3} parent=0 // pred_check
    _
  $region75: #{forward_pallas.3} parent=0 // pred_check_branch
    %111 = sbr.rel (0) target = $region77
  $region76: #{forward_pallas.3} parent=0 // pred_region
    _
  $region77: #{forward_pallas.3} parent=0 // pred_fallthru
    _
  // Predicated region
  $region78: #{forward_pallas.3} parent=0 // pred_check
    _
  $region79: #{forward_pallas.3} parent=0 // pred_check_branch
    %113 = sbr.rel (0) target = $region81
  $region80: #{forward_pallas.3} parent=0 // pred_region
    _
  $region81: #{forward_pallas.3} parent=0 // pred_fallthru
    _
  // Predicated region
  $region82: #{forward_pallas.3} parent=0 // pred_check
    _
  $region83: #{forward_pallas.3} parent=0 // pred_check_branch
    %115 = sbr.rel (0) target = $region85
  $region84: #{forward_pallas.3} parent=0 // pred_region
    _
  $region85: #{forward_pallas.3} parent=0 // pred_fallthru
    _
  // Predicated region
  $region86: #{forward_pallas.3} parent=0 // pred_check
    _
  $region87: #{forward_pallas.3} parent=0 // pred_check_branch
    %117 = sbr.rel (0) target = $region89
  $region88: #{forward_pallas.3} parent=0 // pred_region
    _
  $region89: #{forward_pallas.3} parent=0 // pred_fallthru
    _
  // Predicated region
  $region90: #{forward_pallas.3} parent=0 // pred_check
    _
  $region91: #{forward_pallas.3} parent=0 // pred_check_branch
    %119 = sbr.rel (0) target = $region93
  $region92: #{forward_pallas.3} parent=0 // pred_region
    _
  $region93: #{forward_pallas.3} parent=0 // pred_fallthru
    _
  // Predicated region
  $region94: #{forward_pallas.3} parent=0 // pred_check
    _
  $region95: #{forward_pallas.3} parent=0 // pred_check_branch
    %121 = sbr.rel (0) target = $region97
  $region96: #{forward_pallas.3} parent=0 // pred_region
    _
  $region97: #{forward_pallas.3} parent=0 // pred_fallthru
    _
  // Predicated region
  $region98: #{forward_pallas.3} parent=0 // pred_check
    _
  $region99: #{forward_pallas.3} parent=0 // pred_check_branch
    %123 = sbr.rel (0) target = $region101
  $region100: #{forward_pallas.3} parent=0 // pred_region
    _
  $region101: #{forward_pallas.3} parent=0 // pred_fallthru
    _
  // Predicated region
  $region102: #{forward_pallas.3} parent=0 // pred_check
    _
  $region103: #{forward_pallas.3} parent=0 // pred_check_branch
    %125 = sbr.rel (0) target = $region105
  $region104: #{forward_pallas.3} parent=0 // pred_region
    _
  $region105: #{forward_pallas.3} parent=0 // pred_fallthru
    _
  // Predicated region
  $region106: #{forward_pallas.3} parent=0 // pred_check
    _
  $region107: #{forward_pallas.3} parent=0 // pred_check_branch
    %127 = sbr.rel (0) target = $region109
  $region108: #{forward_pallas.3} parent=0 // pred_region
    _
  $region109: #{forward_pallas.3} parent=0 // pred_fallthru
    _
  // Predicated region
  $region110: #{forward_pallas.3} parent=0 // pred_check
    _
  $region111: #{forward_pallas.3} parent=0 // pred_check_branch
    %129 = sbr.rel (0) target = $region113
  $region112: #{forward_pallas.3} parent=0 // pred_region
    _
  $region113: #{forward_pallas.3} parent=0 // pred_fallthru
    _
  // Predicated region
  $region114: #{forward_pallas.3} parent=0 // pred_check
    _
  $region115: #{forward_pallas.3} parent=0 // pred_check_branch
    %131 = sbr.rel (0) target = $region117
  $region116: #{forward_pallas.3} parent=0 // pred_region
    _
  $region117: #{forward_pallas.3} parent=0 // pred_fallthru
    _
  %s132 = scalar_lea.vmem %s3, 2
  %v133 = vld [vmem:[%s132] sm:$0x3]
  %s134 = scalar_lea.vmem %s3, 6
  %v135 = vld [vmem:[%s134] sm:$0x3]
  %v136 = vld [vmem:[%s5] sm:$0xff]
  %v137 = vld [vmem:[%s5 + $0x8] sm:$0xff]
  %v138 = vld [vmem:[%s5 + $0x10] sm:$0xff]
  %v139 = vld [vmem:[%s5 + $0x18] sm:$0xff]
  %v140 = vld [vmem:[%s5 + $0x20] sm:$0xff]
  %v141 = vld [vmem:[%s5 + $0x28] sm:$0xff]
  %v142 = vld [vmem:[%s5 + $0x30] sm:$0xff]
  %v143 = vld [vmem:[%s5 + $0x38] sm:$0xff]
  %v144 = vld [vmem:[%s5 + $0x40] sm:$0xff]
  %v145 = vld [vmem:[%s5 + $0x48] sm:$0xff]
  %v146 = vld [vmem:[%s5 + $0x50] sm:$0xff]
  %v147 = vld [vmem:[%s5 + $0x58] sm:$0xff]
  %v148 = vld [vmem:[%s5 + $0x60] sm:$0xff]
  %v149 = vld [vmem:[%s5 + $0x68] sm:$0xff]
  %v150 = vld [vmem:[%s5 + $0x70] sm:$0xff]
  %v151 = vld [vmem:[%s5 + $0x78] sm:$0xff]
  %v152 = vld [vmem:[%s7] sm:$0x3]
  %v154 = vlaneseq
  %v155 = vshrl.u32 %v154, 7
  %v156 = vsub.s32 0, %v155
  %v157 = vrot.slane %v152, %v156
  %v158 = vlaneseq
  %v159 = vshrl.u32 %v158, 7
  %v160 = vsub.s32 1, %v159
  %v161 = vrot.slane %v152, %v160
  %vm164 = vcmask 523264
  %v166 = vsel %vm164, %v133, 0
  %168 = vmatprep.subr.mxu0 %v137
  %169 = vmatpush1.msra.mxu0 %v136
  %170 = vmatprep.subr.mxu0 %v139
  %171 = vmatpush1.msra.mxu0 %v138
  %172 = vmatprep.subr.mxu0 %v141
  %173 = vmatpush1.msra.mxu0 %v140
  %174 = vmatprep.subr.mxu0 %v143
  %175 = vmatpush1.msra.mxu0 %v142
  %176 = vmatprep.subr.mxu0 %v145
  %177 = vmatpush1.msra.mxu0 %v144
  %178 = vmatprep.subr.mxu0 %v147
  %179 = vmatpush1.msra.mxu0 %v146
  %180 = vmatprep.subr.mxu0 %v149
  %181 = vmatpush1.msra.mxu0 %v148
  %182 = vmatprep.subr.mxu0 %v151
  %183 = vmatpush1.msra.mxu0 %v150
  %184 = vmatprep.subr.mxu0 0.0
  %185 = vmatpush1.msra.mxu0 0.0
  %186 = vmatprep.subr.mxu0 0.0
  %187 = vmatpush1.msra.mxu0 0.0
  %188 = vmatprep.subr.mxu0 0.0
  %189 = vmatpush1.msra.mxu0 0.0
  %190 = vmatprep.subr.mxu0 0.0
  %191 = vmatpush1.msra.mxu0 0.0
  %192 = vmatprep.subr.mxu0 0.0
  %193 = vmatpush1.msra.mxu0 0.0
  %194 = vmatprep.subr.mxu0 0.0
  %195 = vmatpush1.msra.mxu0 0.0
  %196 = vmatprep.subr.mxu0 0.0
  %197 = vmatpush1.msra.mxu0 0.0
  %198 = vmatprep.subr.mxu0 0.0
  %199 = vmatpush1.msra.mxu0 0.0
  %200 = vmatprep.subr.mxu0 0.0
  %201 = vmatpush1.msra.mxu0 0.0
  %202 = vmatprep.subr.mxu0 0.0
  %203 = vmatpush1.msra.mxu0 0.0
  %204 = vmatprep.subr.mxu0 0.0
  %205 = vmatpush1.msra.mxu0 0.0
  %206 = vmatprep.subr.mxu0 0.0
  %207 = vmatpush1.msra.mxu0 0.0
  %208 = vmatprep.subr.mxu0 0.0
  %209 = vmatpush1.msra.mxu0 0.0
  %210 = vmatprep.subr.mxu0 0.0
  %211 = vmatpush1.msra.mxu0 0.0
  %212 = vmatprep.subr.mxu0 0.0
  %213 = vmatpush1.msra.mxu0 0.0
  %214 = vmatprep.subr.mxu0 0.0
  %215 = vmatpush1.msra.mxu0 0.0
  %216 = vmatprep.subr.mxu0 0.0
  %217 = vmatpush1.msra.mxu0 0.0
  %218 = vmatprep.subr.mxu0 0.0
  %219 = vmatpush1.msra.mxu0 0.0
  %220 = vmatprep.subr.mxu0 0.0
  %221 = vmatpush1.msra.mxu0 0.0
  %222 = vmatprep.subr.mxu0 0.0
  %223 = vmatpush1.msra.mxu0 0.0
  %224 = vmatprep.subr.mxu0 0.0
  %225 = vmatpush1.msra.mxu0 0.0
  %226 = vmatprep.subr.mxu0 0.0
  %227 = vmatpush1.msra.mxu0 0.0
  %228 = vmatprep.subr.mxu0 0.0
  %229 = vmatpush1.msra.mxu0 0.0
  %230 = vmatprep.subr.mxu0 0.0
  %231 = vmatpush1.msra.mxu0 0.0
  %232 = vmatprep.mubr.f32.mxu0 0.0
  %233 = vmatmul.mubr.f32.gmra.mrb[0].mxu0 %v166
  %v234 = vpop.f32.mrb[0].mxu0
  %v235 = vadd.f32 %v157, %v234
  %v236 = vpop.f32.mrb[0].mxu0
  %v237 = vadd.f32 %v161, %v236
  %238 = vdwg.mxu0
  %v239 = vmax.f32 %v235, 0.0
  %v240 = vmax.f32 %v237, 0.0
  %v241 = vld [vmem:[%s9] sm:$0x3]
  %v243 = vlaneseq
  %v244 = vshrl.u32 %v243, 7
  %v245 = vsub.s32 0, %v244
  %v246 = vrot.slane %v241, %v245
  %v247 = vlaneseq
  %v248 = vshrl.u32 %v247, 7
  %v249 = vsub.s32 1, %v248
  %v250 = vrot.slane %v241, %v249
  %v253 = vmul.f32 %v239, %v246
  %v254 = vmul.f32 %v240, %v250
  %vm255 = vcmask 1041408
  %v256 = vsel %vm255, %v253, 0.0
  %v257 = vsel %vm255, %v254, 0.0
  %v258 = vadd.f32 %v256, %v257
  %259 = vadd.xlane.f32.xlu0 %v258
  %v260 = vpop.xlane.xlu0 %259
  %v261 = vld [vmem:[#allocation2] sm:$0x1]
  %v263 = vlaneseq
  %v264 = vshrl.u32 %v263, 7
  %v265 = vsub.s32 0, %v264
  %v266 = vrot.slane %v261, %v265
  %v268 = vadd.f32 %v260, %v266
  %v269 = vsub.f32 0.0, %v268
  %v270 = vmul.f32 %v269, 1.442695
  %v271 = vpow.pop %v270
  %v272 = vadd.f32 %v271, 1.0
  %v273 = vrcp.pop %v272
  %v274 = vmul.f32 1.0, %v273
  %v275 = vld [vmem:[%s13] sm:$0xff]
  %v276 = vld [vmem:[%s13 + $0x8] sm:$0xff]
  %v277 = vld [vmem:[%s13 + $0x10] sm:$0xff]
  %v278 = vld [vmem:[%s13 + $0x18] sm:$0xff]
  %v279 = vld [vmem:[%s13 + $0x20] sm:$0xff]
  %v280 = vld [vmem:[%s13 + $0x28] sm:$0xff]
  %v281 = vld [vmem:[%s13 + $0x30] sm:$0xff]
  %v282 = vld [vmem:[%s13 + $0x38] sm:$0xff]
  %v283 = vld [vmem:[%s13 + $0x40] sm:$0xff]
  %v284 = vld [vmem:[%s13 + $0x48] sm:$0xff]
  %v285 = vld [vmem:[%s13 + $0x50] sm:$0xff]
  %v286 = vld [vmem:[%s13 + $0x58] sm:$0xff]
  %v287 = vld [vmem:[%s13 + $0x60] sm:$0xff]
  %v288 = vld [vmem:[%s13 + $0x68] sm:$0xff]
  %v289 = vld [vmem:[%s13 + $0x70] sm:$0xff]
  %v290 = vld [vmem:[%s13 + $0x78] sm:$0xff]
  %v291 = vld [vmem:[%s15] sm:$0x3]
  %v293 = vlaneseq
  %v294 = vshrl.u32 %v293, 7
  %v295 = vsub.s32 0, %v294
  %v296 = vrot.slane %v291, %v295
  %v297 = vlaneseq
  %v298 = vshrl.u32 %v297, 7
  %v299 = vsub.s32 1, %v298
  %v300 = vrot.slane %v291, %v299
  %v304 = vsel %vm164, %v135, 0
  %306 = vmatprep.subr.mxu0 %v276
  %307 = vmatpush1.msra.mxu0 %v275
  %308 = vmatprep.subr.mxu0 %v278
  %309 = vmatpush1.msra.mxu0 %v277
  %310 = vmatprep.subr.mxu0 %v280
  %311 = vmatpush1.msra.mxu0 %v279
  %312 = vmatprep.subr.mxu0 %v282
  %313 = vmatpush1.msra.mxu0 %v281
  %314 = vmatprep.subr.mxu0 %v284
  %315 = vmatpush1.msra.mxu0 %v283
  %316 = vmatprep.subr.mxu0 %v286
  %317 = vmatpush1.msra.mxu0 %v285
  %318 = vmatprep.subr.mxu0 %v288
  %319 = vmatpush1.msra.mxu0 %v287
  %320 = vmatprep.subr.mxu0 %v290
  %321 = vmatpush1.msra.mxu0 %v289
  %322 = vmatprep.subr.mxu0 0.0
  %323 = vmatpush1.msra.mxu0 0.0
  %324 = vmatprep.subr.mxu0 0.0
  %325 = vmatpush1.msra.mxu0 0.0
  %326 = vmatprep.subr.mxu0 0.0
  %327 = vmatpush1.msra.mxu0 0.0
  %328 = vmatprep.subr.mxu0 0.0
  %329 = vmatpush1.msra.mxu0 0.0
  %330 = vmatprep.subr.mxu0 0.0
  %331 = vmatpush1.msra.mxu0 0.0
  %332 = vmatprep.subr.mxu0 0.0
  %333 = vmatpush1.msra.mxu0 0.0
  %334 = vmatprep.subr.mxu0 0.0
  %335 = vmatpush1.msra.mxu0 0.0
  %336 = vmatprep.subr.mxu0 0.0
  %337 = vmatpush1.msra.mxu0 0.0
  %338 = vmatprep.subr.mxu0 0.0
  %339 = vmatpush1.msra.mxu0 0.0
  %340 = vmatprep.subr.mxu0 0.0
  %341 = vmatpush1.msra.mxu0 0.0
  %342 = vmatprep.subr.mxu0 0.0
  %343 = vmatpush1.msra.mxu0 0.0
  %344 = vmatprep.subr.mxu0 0.0
  %345 = vmatpush1.msra.mxu0 0.0
  %346 = vmatprep.subr.mxu0 0.0
  %347 = vmatpush1.msra.mxu0 0.0
  %348 = vmatprep.subr.mxu0 0.0
  %349 = vmatpush1.msra.mxu0 0.0
  %350 = vmatprep.subr.mxu0 0.0
  %351 = vmatpush1.msra.mxu0 0.0
  %352 = vmatprep.subr.mxu0 0.0
  %353 = vmatpush1.msra.mxu0 0.0
  %354 = vmatprep.subr.mxu0 0.0
  %355 = vmatpush1.msra.mxu0 0.0
  %356 = vmatprep.subr.mxu0 0.0
  %357 = vmatpush1.msra.mxu0 0.0
  %358 = vmatprep.subr.mxu0 0.0
  %359 = vmatpush1.msra.mxu0 0.0
  %360 = vmatprep.subr.mxu0 0.0
  %361 = vmatpush1.msra.mxu0 0.0
  %362 = vmatprep.subr.mxu0 0.0
  %363 = vmatpush1.msra.mxu0 0.0
  %364 = vmatprep.subr.mxu0 0.0
  %365 = vmatpush1.msra.mxu0 0.0
  %366 = vmatprep.subr.mxu0 0.0
  %367 = vmatpush1.msra.mxu0 0.0
  %368 = vmatprep.subr.mxu0 0.0
  %369 = vmatpush1.msra.mxu0 0.0
  %370 = vmatprep.mubr.f32.mxu0 0.0
  %371 = vmatmul.mubr.f32.gmra.mrb[0].mxu0 %v304
  %v372 = vpop.f32.mrb[0].mxu0
  %v373 = vadd.f32 %v296, %v372
  %v374 = vpop.f32.mrb[0].mxu0
  %v375 = vadd.f32 %v300, %v374
  %376 = vdwg.mxu0
  %v377 = vmax.f32 %v373, 0.0
  %v378 = vmax.f32 %v375, 0.0
  %v379 = vld [vmem:[%s17] sm:$0x3]
  %v381 = vlaneseq
  %v382 = vshrl.u32 %v381, 7
  %v383 = vsub.s32 0, %v382
  %v384 = vrot.slane %v379, %v383
  %v385 = vlaneseq
  %v386 = vshrl.u32 %v385, 7
  %v387 = vsub.s32 1, %v386
  %v388 = vrot.slane %v379, %v387
  %v391 = vmul.f32 %v377, %v384
  %v392 = vmul.f32 %v378, %v388
  %v393 = vsel %vm255, %v391, 0.0
  %v394 = vsel %vm255, %v392, 0.0
  %v395 = vadd.f32 %v393, %v394
  %396 = vadd.xlane.f32.xlu0 %v395
  %v397 = vpop.xlane.xlu0 %396
  %v398 = vld [vmem:[#allocation3] sm:$0x1]
  %v400 = vlaneseq
  %v401 = vshrl.u32 %v400, 7
  %v402 = vsub.s32 0, %v401
  %v403 = vrot.slane %v398, %v402
  %v405 = vadd.f32 %v397, %v403
  %v406 = vsub.f32 0.0, %v405
  %v407 = vmul.f32 %v406, 1.442695
  %v408 = vpow.pop %v407
  %v409 = vadd.f32 %v408, 1.0
  %v410 = vrcp.pop %v409
  %v411 = vmul.f32 1.0, %v410
  %v412 = vld [vmem:[%s1] sm:$0x3]
  %s413 = scalar_lea.vmem %s1, 2
  %v414 = vld [vmem:[%s413] sm:$0x3]
  %s415 = scalar_lea.vmem %s1, 4
  %v416 = vld [vmem:[%s415] sm:$0x3]
  %s417 = scalar_lea.vmem %s1, 6
  %v418 = vld [vmem:[%s417] sm:$0x3]
  %s419 = scalar_lea.vmem %s1, 8
  %v420 = vld [vmem:[%s419] sm:$0x3]
  %v421 = vld [vmem:[%s21] sm:$0xff]
  %v422 = vld [vmem:[%s21 + $0x8] sm:$0xff]
  %v423 = vld [vmem:[%s21 + $0x10] sm:$0xff]
  %v424 = vld [vmem:[%s21 + $0x18] sm:$0xff]
  %v425 = vld [vmem:[%s21 + $0x20] sm:$0xff]
  %v426 = vld [vmem:[%s21 + $0x28] sm:$0xff]
  %v427 = vld [vmem:[%s21 + $0x30] sm:$0xff]
  %v428 = vld [vmem:[%s21 + $0x38] sm:$0xff]
  %v429 = vld [vmem:[%s21 + $0x40] sm:$0xff]
  %v430 = vld [vmem:[%s21 + $0x48] sm:$0xff]
  %v431 = vld [vmem:[%s21 + $0x50] sm:$0xff]
  %v432 = vld [vmem:[%s21 + $0x58] sm:$0xff]
  %v433 = vld [vmem:[%s21 + $0x60] sm:$0xff]
  %v434 = vld [vmem:[%s21 + $0x68] sm:$0xff]
  %v435 = vld [vmem:[%s21 + $0x70] sm:$0xff]
  %v436 = vld [vmem:[%s21 + $0x78] sm:$0xff]
  %v437 = vld [vmem:[%s23] sm:$0xff]
  %v438 = vld [vmem:[%s23 + $0x8] sm:$0xff]
  %v439 = vld [vmem:[%s23 + $0x10] sm:$0xff]
  %v440 = vld [vmem:[%s23 + $0x18] sm:$0xff]
  %v441 = vld [vmem:[%s23 + $0x20] sm:$0xff]
  %v442 = vld [vmem:[%s23 + $0x28] sm:$0xff]
  %v443 = vld [vmem:[%s23 + $0x30] sm:$0xff]
  %v444 = vld [vmem:[%s23 + $0x38] sm:$0xff]
  %v445 = vld [vmem:[%s23 + $0x40] sm:$0xff]
  %v446 = vld [vmem:[%s23 + $0x48] sm:$0xff]
  %v447 = vld [vmem:[%s23 + $0x50] sm:$0xff]
  %v448 = vld [vmem:[%s23 + $0x58] sm:$0xff]
  %v449 = vld [vmem:[%s23 + $0x60] sm:$0xff]
  %v450 = vld [vmem:[%s23 + $0x68] sm:$0xff]
  %v451 = vld [vmem:[%s23 + $0x70] sm:$0xff]
  %v452 = vld [vmem:[%s23 + $0x78] sm:$0xff]
  %v454 = vsel %vm164, %v420, 0
  %456 = vmatprep.subr.mxu0 %v438
  %457 = vmatpush1.msra.mxu0 %v437
  %458 = vmatprep.subr.mxu0 %v440
  %459 = vmatpush1.msra.mxu0 %v439
  %460 = vmatprep.subr.mxu0 %v442
  %461 = vmatpush1.msra.mxu0 %v441
  %462 = vmatprep.subr.mxu0 %v444
  %463 = vmatpush1.msra.mxu0 %v443
  %464 = vmatprep.subr.mxu0 %v446
  %465 = vmatpush1.msra.mxu0 %v445
  %466 = vmatprep.subr.mxu0 %v448
  %467 = vmatpush1.msra.mxu0 %v447
  %468 = vmatprep.subr.mxu0 %v450
  %469 = vmatpush1.msra.mxu0 %v449
  %470 = vmatprep.subr.mxu0 %v452
  %471 = vmatpush1.msra.mxu0 %v451
  %472 = vmatprep.subr.mxu0 0.0
  %473 = vmatpush1.msra.mxu0 0.0
  %474 = vmatprep.subr.mxu0 0.0
  %475 = vmatpush1.msra.mxu0 0.0
  %476 = vmatprep.subr.mxu0 0.0
  %477 = vmatpush1.msra.mxu0 0.0
  %478 = vmatprep.subr.mxu0 0.0
  %479 = vmatpush1.msra.mxu0 0.0
  %480 = vmatprep.subr.mxu0 0.0
  %481 = vmatpush1.msra.mxu0 0.0
  %482 = vmatprep.subr.mxu0 0.0
  %483 = vmatpush1.msra.mxu0 0.0
  %484 = vmatprep.subr.mxu0 0.0
  %485 = vmatpush1.msra.mxu0 0.0
  %486 = vmatprep.subr.mxu0 0.0
  %487 = vmatpush1.msra.mxu0 0.0
  %488 = vmatprep.subr.mxu0 0.0
  %489 = vmatpush1.msra.mxu0 0.0
  %490 = vmatprep.subr.mxu0 0.0
  %491 = vmatpush1.msra.mxu0 0.0
  %492 = vmatprep.subr.mxu0 0.0
  %493 = vmatpush1.msra.mxu0 0.0
  %494 = vmatprep.subr.mxu0 0.0
  %495 = vmatpush1.msra.mxu0 0.0
  %496 = vmatprep.subr.mxu0 0.0
  %497 = vmatpush1.msra.mxu0 0.0
  %498 = vmatprep.subr.mxu0 0.0
  %499 = vmatpush1.msra.mxu0 0.0
  %500 = vmatprep.subr.mxu0 0.0
  %501 = vmatpush1.msra.mxu0 0.0
  %502 = vmatprep.subr.mxu0 0.0
  %503 = vmatpush1.msra.mxu0 0.0
  %504 = vmatprep.subr.mxu0 0.0
  %505 = vmatpush1.msra.mxu0 0.0
  %506 = vmatprep.subr.mxu0 0.0
  %507 = vmatpush1.msra.mxu0 0.0
  %508 = vmatprep.subr.mxu0 0.0
  %509 = vmatpush1.msra.mxu0 0.0
  %510 = vmatprep.subr.mxu0 0.0
  %511 = vmatpush1.msra.mxu0 0.0
  %512 = vmatprep.subr.mxu0 0.0
  %513 = vmatpush1.msra.mxu0 0.0
  %514 = vmatprep.subr.mxu0 0.0
  %515 = vmatpush1.msra.mxu0 0.0
  %516 = vmatprep.subr.mxu0 0.0
  %517 = vmatpush1.msra.mxu0 0.0
  %518 = vmatprep.subr.mxu0 0.0
  %519 = vmatpush1.msra.mxu0 0.0
  %520 = vmatprep.mubr.f32.mxu0 0.0
  %521 = vmatmul.mubr.f32.gmra.mrb[0].mxu0 %v454
  %v522 = vpop.f32.mrb[0].mxu0
  %v523 = vadd.f32 0.0, %v522
  %v524 = vpop.f32.mrb[0].mxu0
  %v525 = vadd.f32 0.0, %v524
  %526 = vdwg.mxu0
  %v528 = vsel %vm164, %v416, 0
  %530 = vmatprep.subr.mxu0 %v422
  %531 = vmatpush1.msra.mxu0 %v421
  %532 = vmatprep.subr.mxu0 %v424
  %533 = vmatpush1.msra.mxu0 %v423
  %534 = vmatprep.subr.mxu0 %v426
  %535 = vmatpush1.msra.mxu0 %v425
  %536 = vmatprep.subr.mxu0 %v428
  %537 = vmatpush1.msra.mxu0 %v427
  %538 = vmatprep.subr.mxu0 %v430
  %539 = vmatpush1.msra.mxu0 %v429
  %540 = vmatprep.subr.mxu0 %v432
  %541 = vmatpush1.msra.mxu0 %v431
  %542 = vmatprep.subr.mxu0 %v434
  %543 = vmatpush1.msra.mxu0 %v433
  %544 = vmatprep.subr.mxu0 %v436
  %545 = vmatpush1.msra.mxu0 %v435
  %546 = vmatprep.subr.mxu0 0.0
  %547 = vmatpush1.msra.mxu0 0.0
  %548 = vmatprep.subr.mxu0 0.0
  %549 = vmatpush1.msra.mxu0 0.0
  %550 = vmatprep.subr.mxu0 0.0
  %551 = vmatpush1.msra.mxu0 0.0
  %552 = vmatprep.subr.mxu0 0.0
  %553 = vmatpush1.msra.mxu0 0.0
  %554 = vmatprep.subr.mxu0 0.0
  %555 = vmatpush1.msra.mxu0 0.0
  %556 = vmatprep.subr.mxu0 0.0
  %557 = vmatpush1.msra.mxu0 0.0
  %558 = vmatprep.subr.mxu0 0.0
  %559 = vmatpush1.msra.mxu0 0.0
  %560 = vmatprep.subr.mxu0 0.0
  %561 = vmatpush1.msra.mxu0 0.0
  %562 = vmatprep.subr.mxu0 0.0
  %563 = vmatpush1.msra.mxu0 0.0
  %564 = vmatprep.subr.mxu0 0.0
  %565 = vmatpush1.msra.mxu0 0.0
  %566 = vmatprep.subr.mxu0 0.0
  %567 = vmatpush1.msra.mxu0 0.0
  %568 = vmatprep.subr.mxu0 0.0
  %569 = vmatpush1.msra.mxu0 0.0
  %570 = vmatprep.subr.mxu0 0.0
  %571 = vmatpush1.msra.mxu0 0.0
  %572 = vmatprep.subr.mxu0 0.0
  %573 = vmatpush1.msra.mxu0 0.0
  %574 = vmatprep.subr.mxu0 0.0
  %575 = vmatpush1.msra.mxu0 0.0
  %576 = vmatprep.subr.mxu0 0.0
  %577 = vmatpush1.msra.mxu0 0.0
  %578 = vmatprep.subr.mxu0 0.0
  %579 = vmatpush1.msra.mxu0 0.0
  %580 = vmatprep.subr.mxu0 0.0
  %581 = vmatpush1.msra.mxu0 0.0
  %582 = vmatprep.subr.mxu0 0.0
  %583 = vmatpush1.msra.mxu0 0.0
  %584 = vmatprep.subr.mxu0 0.0
  %585 = vmatpush1.msra.mxu0 0.0
  %586 = vmatprep.subr.mxu0 0.0
  %587 = vmatpush1.msra.mxu0 0.0
  %588 = vmatprep.subr.mxu0 0.0
  %589 = vmatpush1.msra.mxu0 0.0
  %590 = vmatprep.subr.mxu0 0.0
  %591 = vmatpush1.msra.mxu0 0.0
  %592 = vmatprep.subr.mxu0 0.0
  %593 = vmatpush1.msra.mxu0 0.0
  %594 = vmatprep.mubr.f32.mxu0 0.0
  %595 = vmatmul.mubr.f32.gmra.mrb[0].mxu0 %v528
  %v596 = vpop.f32.mrb[0].mxu0
  %v597 = vadd.f32 %v523, %v596
  %v598 = vpop.f32.mrb[0].mxu0
  %v599 = vadd.f32 %v525, %v598
  %600 = vdwg.mxu0
  %v601 = vld [vmem:[%s25] sm:$0x3]
  %v603 = vlaneseq
  %v604 = vshrl.u32 %v603, 7
  %v605 = vsub.s32 0, %v604
  %v606 = vrot.slane %v601, %v605
  %v607 = vlaneseq
  %v608 = vshrl.u32 %v607, 7
  %v609 = vsub.s32 1, %v608
  %v610 = vrot.slane %v601, %v609
  %v613 = vadd.f32 %v597, %v606
  %v614 = vadd.f32 %v599, %v610
  %v615 = vld [vmem:[%s27] sm:$0x3]
  %v617 = vlaneseq
  %v618 = vshrl.u32 %v617, 7
  %v619 = vsub.s32 0, %v618
  %v620 = vrot.slane %v615, %v619
  %v621 = vlaneseq
  %v622 = vshrl.u32 %v621, 7
  %v623 = vsub.s32 1, %v622
  %v624 = vrot.slane %v615, %v623
  %v627 = vmul.f32 %v613, %v620
  %v628 = vmul.f32 %v614, %v624
  %v629 = vld [vmem:[%s29] sm:$0x3]
  %v631 = vlaneseq
  %v632 = vshrl.u32 %v631, 7
  %v633 = vsub.s32 0, %v632
  %v634 = vrot.slane %v629, %v633
  %v635 = vlaneseq
  %v636 = vshrl.u32 %v635, 7
  %v637 = vsub.s32 1, %v636
  %v638 = vrot.slane %v629, %v637
  %v641 = vadd.f32 %v627, %v634
  %v642 = vadd.f32 %v628, %v638
  %v643 = vmax.f32 %v641, 0.0
  %v644 = vmax.f32 %v642, 0.0
  %v645 = vld [vmem:[%s31] sm:$0xff]
  %v646 = vld [vmem:[%s31 + $0x8] sm:$0xff]
  %v647 = vld [vmem:[%s31 + $0x10] sm:$0xff]
  %v648 = vld [vmem:[%s31 + $0x18] sm:$0xff]
  %v649 = vld [vmem:[%s31 + $0x20] sm:$0xff]
  %v650 = vld [vmem:[%s31 + $0x28] sm:$0xff]
  %v651 = vld [vmem:[%s31 + $0x30] sm:$0xff]
  %v652 = vld [vmem:[%s31 + $0x38] sm:$0xff]
  %v653 = vld [vmem:[%s31 + $0x40] sm:$0xff]
  %v654 = vld [vmem:[%s31 + $0x48] sm:$0xff]
  %v655 = vld [vmem:[%s31 + $0x50] sm:$0xff]
  %v656 = vld [vmem:[%s31 + $0x58] sm:$0xff]
  %v657 = vld [vmem:[%s31 + $0x60] sm:$0xff]
  %v658 = vld [vmem:[%s31 + $0x68] sm:$0xff]
  %v659 = vld [vmem:[%s31 + $0x70] sm:$0xff]
  %v660 = vld [vmem:[%s31 + $0x78] sm:$0xff]
  %v661 = vld [vmem:[%s31 + $0x80] sm:$0xff]
  %v662 = vld [vmem:[%s31 + $0x88] sm:$0xff]
  %v663 = vld [vmem:[%s31 + $0x90] sm:$0xff]
  %v664 = vld [vmem:[%s31 + $0x98] sm:$0xff]
  %v665 = vld [vmem:[%s31 + $0xa0] sm:$0xff]
  %v666 = vld [vmem:[%s31 + $0xa8] sm:$0xff]
  %v667 = vld [vmem:[%s31 + $0xb0] sm:$0xff]
  %v668 = vld [vmem:[%s31 + $0xb8] sm:$0xff]
  %v669 = vld [vmem:[%s31 + $0xc0] sm:$0xff]
  %v670 = vld [vmem:[%s31 + $0xc8] sm:$0xff]
  %v671 = vld [vmem:[%s31 + $0xd0] sm:$0xff]
  %v672 = vld [vmem:[%s31 + $0xd8] sm:$0xff]
  %v673 = vld [vmem:[%s31 + $0xe0] sm:$0xff]
  %v674 = vld [vmem:[%s31 + $0xe8] sm:$0xff]
  %v675 = vld [vmem:[%s31 + $0xf0] sm:$0xff]
  %v676 = vld [vmem:[%s31 + $0xf8] sm:$0xff]
  %v677 = vld [vmem:[%s33] sm:$0x1]
  %v679 = vlaneseq
  %v680 = vshrl.u32 %v679, 7
  %v681 = vsub.s32 0, %v680
  %v682 = vrot.slane %v677, %v681
  %684 = vmatprep.subr.mxu0 0.0
  %685 = vmatpush1.msra.mxu0 %v645
  %686 = vmatprep.subr.mxu0 0.0
  %687 = vmatpush1.msra.mxu0 %v646
  %688 = vmatprep.subr.mxu0 0.0
  %689 = vmatpush1.msra.mxu0 %v647
  %690 = vmatprep.subr.mxu0 0.0
  %691 = vmatpush1.msra.mxu0 %v648
  %692 = vmatprep.subr.mxu0 0.0
  %693 = vmatpush1.msra.mxu0 %v649
  %694 = vmatprep.subr.mxu0 0.0
  %695 = vmatpush1.msra.mxu0 %v650
  %696 = vmatprep.subr.mxu0 0.0
  %697 = vmatpush1.msra.mxu0 %v651
  %698 = vmatprep.subr.mxu0 0.0
  %699 = vmatpush1.msra.mxu0 %v652
  %700 = vmatprep.subr.mxu0 0.0
  %701 = vmatpush1.msra.mxu0 %v653
  %702 = vmatprep.subr.mxu0 0.0
  %703 = vmatpush1.msra.mxu0 %v654
  %704 = vmatprep.subr.mxu0 0.0
  %705 = vmatpush1.msra.mxu0 %v655
  %706 = vmatprep.subr.mxu0 0.0
  %707 = vmatpush1.msra.mxu0 %v656
  %708 = vmatprep.subr.mxu0 0.0
  %709 = vmatpush1.msra.mxu0 %v657
  %710 = vmatprep.subr.mxu0 0.0
  %711 = vmatpush1.msra.mxu0 %v658
  %712 = vmatprep.subr.mxu0 0.0
  %713 = vmatpush1.msra.mxu0 %v659
  %714 = vmatprep.subr.mxu0 0.0
  %715 = vmatpush1.msra.mxu0 %v660
  %716 = vmatprep.subr.mxu0 0.0
  %717 = vmatpush1.msra.mxu0 %v661
  %718 = vmatprep.subr.mxu0 0.0
  %719 = vmatpush1.msra.mxu0 %v662
  %720 = vmatprep.subr.mxu0 0.0
  %721 = vmatpush1.msra.mxu0 %v663
  %722 = vmatprep.subr.mxu0 0.0
  %723 = vmatpush1.msra.mxu0 %v664
  %724 = vmatprep.subr.mxu0 0.0
  %725 = vmatpush1.msra.mxu0 %v665
  %726 = vmatprep.subr.mxu0 0.0
  %727 = vmatpush1.msra.mxu0 %v666
  %728 = vmatprep.subr.mxu0 0.0
  %729 = vmatpush1.msra.mxu0 %v667
  %730 = vmatprep.subr.mxu0 0.0
  %731 = vmatpush1.msra.mxu0 %v668
  %732 = vmatprep.subr.mxu0 0.0
  %733 = vmatpush1.msra.mxu0 %v669
  %734 = vmatprep.subr.mxu0 0.0
  %735 = vmatpush1.msra.mxu0 %v670
  %736 = vmatprep.subr.mxu0 0.0
  %737 = vmatpush1.msra.mxu0 %v671
  %738 = vmatprep.subr.mxu0 0.0
  %739 = vmatpush1.msra.mxu0 %v672
  %740 = vmatprep.subr.mxu0 0.0
  %741 = vmatpush1.msra.mxu0 %v673
  %742 = vmatprep.subr.mxu0 0.0
  %743 = vmatpush1.msra.mxu0 %v674
  %744 = vmatprep.subr.mxu0 0.0
  %745 = vmatpush1.msra.mxu0 %v675
  %746 = vmatprep.subr.mxu0 0.0
  %747 = vmatpush1.msra.mxu0 %v676
  %748 = vmatprep.mubr.f32.mxu0 %v644
  %749 = vmatmul.mubr.f32.gmra.mrb[0].mxu0 %v643
  %v750 = vpop.f32.mrb[0].mxu0
  %v751 = vadd.f32 %v682, %v750
  %v752 = vpop.f32.mrb[0].mxu0
  %753 = vdwg.mxu0
  %v754 = vld [vmem:[%s35] sm:$0x1]
  %v756 = vlaneseq
  %v757 = vshrl.u32 %v756, 7
  %v758 = vsub.s32 0, %v757
  %v759 = vrot.slane %v754, %v758
  %v761 = vmul.f32 %v751, %v759
  %v762 = vld [vmem:[%s37] sm:$0x1]
  %v764 = vlaneseq
  %v765 = vshrl.u32 %v764, 7
  %v766 = vsub.s32 0, %v765
  %v767 = vrot.slane %v762, %v766
  %v769 = vadd.f32 %v761, %v767
  %v770 = vmax.f32 %v769, 0.0
  %v771 = vld [vmem:[%s39] sm:$0x1]
  %v773 = vlaneseq
  %v774 = vshrl.u32 %v773, 7
  %v775 = vsub.s32 0, %v774
  %v776 = vrot.slane %v771, %v775
  %v778 = vmul.f32 %v770, %v776
  %vm779 = vcmask 517120
  %v780 = vsel %vm779, %v778, 0.0
  %781 = vadd.xlane.f32.xlu0 %v780
  %v782 = vpop.xlane.xlu0 %781
  %v783 = vld [vmem:[#allocation4] sm:$0x1]
  %v785 = vlaneseq
  %v786 = vshrl.u32 %v785, 7
  %v787 = vsub.s32 0, %v786
  %v788 = vrot.slane %v783, %v787
  %v790 = vadd.f32 %v782, %v788
  %v791 = vsub.f32 0.0, %v790
  %v792 = vmul.f32 %v791, 1.442695
  %v793 = vpow.pop %v792
  %v794 = vadd.f32 %v793, 1.0
  %v795 = vrcp.pop %v794
  %v796 = vmul.f32 1.0, %v795
  %v797 = vld [vmem:[%s43] sm:$0x1]
  %v798 = vld [vmem:[#allocation5] sm:$0x1]
  %v800 = vlaneseq
  %v801 = vshrl.u32 %v800, 7
  %v802 = vsub.s32 0, %v801
  %v803 = vrot.slane %v797, %v802
  %v805 = vmul.f32 %v412, %v803
  %v806 = vsel %vm779, %v805, 0.0
  %807 = vadd.xlane.f32.xlu0 %v806
  %v808 = vpop.xlane.xlu0 %807
  %v810 = vlaneseq
  %v811 = vshrl.u32 %v810, 7
  %v812 = vsub.s32 0, %v811
  %v813 = vrot.slane %v798, %v812
  %v815 = vadd.f32 %v808, %v813
  %v816 = vmul.f32 %v414, %v803
  %v817 = vsel %vm779, %v816, 0.0
  %818 = vadd.xlane.f32.xlu0 %v817
  %v819 = vpop.xlane.xlu0 %818
  %v820 = vadd.f32 %v819, %v813
  %v821 = vmul.f32 %v418, %v803
  %v822 = vsel %vm779, %v821, 0.0
  %823 = vadd.xlane.f32.xlu0 %v822
  %v824 = vpop.xlane.xlu0 %823
  %v825 = vadd.f32 %v824, %v813
  %v826 = vmax.f32 %v815, %v820
  %v827 = vmax.f32 %v826, %v825
  %v828 = vsub.f32 %v815, %v827
  %v829 = vmul.f32 %v828, 1.442695
  %v830 = vpow.pop %v829
  %v831 = vsub.f32 %v820, %v827
  %v832 = vmul.f32 %v831, 1.442695
  %v833 = vpow.pop %v832
  %v834 = vsub.f32 %v825, %v827
  %v835 = vmul.f32 %v834, 1.442695
  %v836 = vpow.pop %v835
  %v837 = vadd.f32 %v830, %v833
  %v838 = vadd.f32 %v837, %v836
  %v839 = vrcp.pop %v838
  %841 = vset.pattern.permute.xlu0 0
  %842 = vperm.xlu0 %841, %v830
  %v843 = vpop.permute.xlu0 %842
  %v845 = vmul.f32 %v843, %v412
  %847 = vset.pattern.permute.xlu0 0
  %848 = vperm.xlu0 %847, %v833
  %v849 = vpop.permute.xlu0 %848
  %v851 = vmul.f32 %v849, %v414
  %v852 = vadd.f32 %v845, %v851
  %854 = vset.pattern.permute.xlu0 0
  %855 = vperm.xlu0 %854, %v836
  %v856 = vpop.permute.xlu0 %855
  %v858 = vmul.f32 %v856, %v418
  %v859 = vadd.f32 %v852, %v858
  %861 = vset.pattern.permute.xlu0 0
  %862 = vperm.xlu0 %861, %v839
  %v863 = vpop.permute.xlu0 %862
  %v865 = vmul.f32 %v859, %v863
  %v866 = vld [vmem:[%s47] sm:$0xff]
  %v867 = vld [vmem:[%s47 + $0x8] sm:$0xff]
  %v868 = vld [vmem:[%s47 + $0x10] sm:$0xff]
  %v869 = vld [vmem:[%s47 + $0x18] sm:$0xff]
  %v870 = vld [vmem:[%s47 + $0x20] sm:$0xff]
  %v871 = vld [vmem:[%s47 + $0x28] sm:$0xff]
  %v872 = vld [vmem:[%s47 + $0x30] sm:$0xff]
  %v873 = vld [vmem:[%s47 + $0x38] sm:$0xff]
  %v874 = vld [vmem:[%s47 + $0x40] sm:$0xff]
  %v875 = vld [vmem:[%s47 + $0x48] sm:$0xff]
  %v876 = vld [vmem:[%s47 + $0x50] sm:$0xff]
  %v877 = vld [vmem:[%s47 + $0x58] sm:$0xff]
  %v878 = vld [vmem:[%s47 + $0x60] sm:$0xff]
  %v879 = vld [vmem:[%s47 + $0x68] sm:$0xff]
  %v880 = vld [vmem:[%s47 + $0x70] sm:$0xff]
  %v881 = vld [vmem:[%s47 + $0x78] sm:$0xff]
  %v882 = vld [vmem:[%s49] sm:$0x3]
  %v884 = vlaneseq
  %v885 = vshrl.u32 %v884, 7
  %v886 = vsub.s32 0, %v885
  %v887 = vrot.slane %v882, %v886
  %v888 = vlaneseq
  %v889 = vshrl.u32 %v888, 7
  %v890 = vsub.s32 1, %v889
  %v891 = vrot.slane %v882, %v890
  %v895 = vsel %vm164, %v865, 0
  %897 = vmatprep.subr.mxu0 %v867
  %898 = vmatpush1.msra.mxu0 %v866
  %899 = vmatprep.subr.mxu0 %v869
  %900 = vmatpush1.msra.mxu0 %v868
  %901 = vmatprep.subr.mxu0 %v871
  %902 = vmatpush1.msra.mxu0 %v870
  %903 = vmatprep.subr.mxu0 %v873
  %904 = vmatpush1.msra.mxu0 %v872
  %905 = vmatprep.subr.mxu0 %v875
  %906 = vmatpush1.msra.mxu0 %v874
  %907 = vmatprep.subr.mxu0 %v877
  %908 = vmatpush1.msra.mxu0 %v876
  %909 = vmatprep.subr.mxu0 %v879
  %910 = vmatpush1.msra.mxu0 %v878
  %911 = vmatprep.subr.mxu0 %v881
  %912 = vmatpush1.msra.mxu0 %v880
  %913 = vmatprep.subr.mxu0 0.0
  %914 = vmatpush1.msra.mxu0 0.0
  %915 = vmatprep.subr.mxu0 0.0
  %916 = vmatpush1.msra.mxu0 0.0
  %917 = vmatprep.subr.mxu0 0.0
  %918 = vmatpush1.msra.mxu0 0.0
  %919 = vmatprep.subr.mxu0 0.0
  %920 = vmatpush1.msra.mxu0 0.0
  %921 = vmatprep.subr.mxu0 0.0
  %922 = vmatpush1.msra.mxu0 0.0
  %923 = vmatprep.subr.mxu0 0.0
  %924 = vmatpush1.msra.mxu0 0.0
  %925 = vmatprep.subr.mxu0 0.0
  %926 = vmatpush1.msra.mxu0 0.0
  %927 = vmatprep.subr.mxu0 0.0
  %928 = vmatpush1.msra.mxu0 0.0
  %929 = vmatprep.subr.mxu0 0.0
  %930 = vmatpush1.msra.mxu0 0.0
  %931 = vmatprep.subr.mxu0 0.0
  %932 = vmatpush1.msra.mxu0 0.0
  %933 = vmatprep.subr.mxu0 0.0
  %934 = vmatpush1.msra.mxu0 0.0
  %935 = vmatprep.subr.mxu0 0.0
  %936 = vmatpush1.msra.mxu0 0.0
  %937 = vmatprep.subr.mxu0 0.0
  %938 = vmatpush1.msra.mxu0 0.0
  %939 = vmatprep.subr.mxu0 0.0
  %940 = vmatpush1.msra.mxu0 0.0
  %941 = vmatprep.subr.mxu0 0.0
  %942 = vmatpush1.msra.mxu0 0.0
  %943 = vmatprep.subr.mxu0 0.0
  %944 = vmatpush1.msra.mxu0 0.0
  %945 = vmatprep.subr.mxu0 0.0
  %946 = vmatpush1.msra.mxu0 0.0
  %947 = vmatprep.subr.mxu0 0.0
  %948 = vmatpush1.msra.mxu0 0.0
  %949 = vmatprep.subr.mxu0 0.0
  %950 = vmatpush1.msra.mxu0 0.0
  %951 = vmatprep.subr.mxu0 0.0
  %952 = vmatpush1.msra.mxu0 0.0
  %953 = vmatprep.subr.mxu0 0.0
  %954 = vmatpush1.msra.mxu0 0.0
  %955 = vmatprep.subr.mxu0 0.0
  %956 = vmatpush1.msra.mxu0 0.0
  %957 = vmatprep.subr.mxu0 0.0
  %958 = vmatpush1.msra.mxu0 0.0
  %959 = vmatprep.subr.mxu0 0.0
  %960 = vmatpush1.msra.mxu0 0.0
  %961 = vmatprep.mubr.f32.mxu0 0.0
  %962 = vmatmul.mubr.f32.gmra.mrb[0].mxu0 %v895
  %v963 = vpop.f32.mrb[0].mxu0
  %v964 = vadd.f32 %v887, %v963
  %v965 = vpop.f32.mrb[0].mxu0
  %v966 = vadd.f32 %v891, %v965
  %967 = vdwg.mxu0
  %v968 = vld [vmem:[%s51] sm:$0x3]
  %v970 = vlaneseq
  %v971 = vshrl.u32 %v970, 7
  %v972 = vsub.s32 0, %v971
  %v973 = vrot.slane %v968, %v972
  %v974 = vlaneseq
  %v975 = vshrl.u32 %v974, 7
  %v976 = vsub.s32 1, %v975
  %v977 = vrot.slane %v968, %v976
  %v980 = vmul.f32 %v964, %v973
  %v981 = vmul.f32 %v966, %v977
  %v982 = vld [vmem:[%s53] sm:$0x3]
  %v984 = vlaneseq
  %v985 = vshrl.u32 %v984, 7
  %v986 = vsub.s32 0, %v985
  %v987 = vrot.slane %v982, %v986
  %v988 = vlaneseq
  %v989 = vshrl.u32 %v988, 7
  %v990 = vsub.s32 1, %v989
  %v991 = vrot.slane %v982, %v990
  %v994 = vadd.f32 %v980, %v987
  %v995 = vadd.f32 %v981, %v991
  %v996 = vmax.f32 %v994, 0.0
  %v997 = vmax.f32 %v995, 0.0
  %v998 = vld [vmem:[%s55] sm:$0x3]
  %v1000 = vlaneseq
  %v1001 = vshrl.u32 %v1000, 7
  %v1002 = vsub.s32 0, %v1001
  %v1003 = vrot.slane %v998, %v1002
  %v1004 = vlaneseq
  %v1005 = vshrl.u32 %v1004, 7
  %v1006 = vsub.s32 1, %v1005
  %v1007 = vrot.slane %v998, %v1006
  %v1010 = vmul.f32 %v996, %v1003
  %v1011 = vmul.f32 %v997, %v1007
  %v1012 = vsel %vm255, %v1010, 0.0
  %v1013 = vsel %vm255, %v1011, 0.0
  %v1014 = vadd.f32 %v1012, %v1013
  %1015 = vadd.xlane.f32.xlu0 %v1014
  %v1016 = vpop.xlane.xlu0 %1015
  %v1017 = vld [vmem:[#allocation6] sm:$0x1]
  %v1019 = vlaneseq
  %v1020 = vshrl.u32 %v1019, 7
  %v1021 = vsub.s32 0, %v1020
  %v1022 = vrot.slane %v1017, %v1021
  %v1024 = vadd.f32 %v1016, %v1022
  %v1025 = vsub.f32 0.0, %v1024
  %v1026 = vmul.f32 %v1025, 1.442695
  %v1027 = vpow.pop %v1026
  %v1028 = vadd.f32 %v1027, 1.0
  %v1029 = vrcp.pop %v1028
  %v1030 = vmul.f32 1.0, %v1029
  %v1031 = vlaneseq
  %v1032 = vand.u32 %v1031, 127
  %vm1033 = vcmp.eq.s32.totalorder %v1032, 0
  %1035 = vset.pattern.permute.xlu0 0
  %1036 = vperm.xlu0 %1035, %v274
  %v1037 = vpop.permute.xlu0 %1036
  %v1039 = vsel %vm1033, %v1037, 0.0
  %vm1040 = vcmp.eq.s32.totalorder %v1032, 1
  %1042 = vset.pattern.permute.xlu0 0
  %1043 = vperm.xlu0 %1042, %v411
  %v1044 = vpop.permute.xlu0 %1043
  %v1046 = vsel %vm1040, %v1044, %v1039
  %vm1047 = vcmp.eq.s32.totalorder %v1032, 2
  %1049 = vset.pattern.permute.xlu0 0
  %1050 = vperm.xlu0 %1049, %v1030
  %v1051 = vpop.permute.xlu0 %1050
  %v1053 = vsel %vm1047, %v1051, %v1046
  %vm1054 = vcmp.eq.s32.totalorder %v1032, 3
  %1056 = vset.pattern.permute.xlu0 0
  %1057 = vperm.xlu0 %1056, %v796
  %v1058 = vpop.permute.xlu0 %1057
  %v1060 = vsel %vm1054, %v1058, %v1053
  %1061 = vst [vmem:[%s59] sm:$0x3] %v1060
  // Predicated region
  $region118: #{forward_pallas.3} parent=0 // pred_check
    _
  $region119: #{forward_pallas.3} parent=0 // pred_check_branch
    %1063 = sbr.rel (0) target = $region121
  $region120: #{forward_pallas.3} parent=0 // pred_region
    _
  $region121: #{forward_pallas.3} parent=0 // pred_fallthru
    _
  // Predicated region
  $region122: #{forward_pallas.3} parent=0 // pred_check
    _
  $region123: #{forward_pallas.3} parent=0 // pred_check_branch
    %1065 = sbr.rel (0) target = $region125
  $region124: #{forward_pallas.3} parent=0 // pred_region
    _
  $region125: #{forward_pallas.3} parent=0 // pred_fallthru
    _

// kernel: forward_pallas.2
$region0: #{forward_pallas.2}
  #allocation0 [shape = 'u32[]', space=smem, size = 0x4, offset = 0x4, fixed_abs, tag = 'smem constant byte address 0x4 - core index']
  #allocation1 [shape = 'u32[144,128]{1,0:T(1,128)}', space=vmem, size = 0x12000, scoped, tag = 'internal scratch']
  #allocation2 [shape = 's32[1]{0}', space=sflag, size = 0x4, scoped, tag = 'scoped memory for forward_pallas.2']
  #allocation3 [shape = 'u8[512]{0}', space=smem, size = 0x200, scoped, tag = 'prefetched SMEM operand 0']
  #allocation4 [shape = 'u8[512]{0}', space=smem, size = 0x200, scoped, tag = 'prefetched SMEM operand 1']
  #allocation5 [shape = 'u8[512]{0}', space=smem, size = 0x200, scoped, tag = 'prefetched SMEM operand 2']
  %s0 = inlined_call_operand.hbm [shape: s32[5], index: 0, kind: input, shape index: {}]
  %s1 = inlined_call_operand.hbm [shape: s32[5], index: 1, kind: input, shape index: {}]
  %s2 = inlined_call_operand.hbm [shape: s32[5], index: 2, kind: input, shape index: {}]
  %s3 = inlined_call_operand.hbm [shape: f32[3,2,16,64], index: 3, kind: input, shape index: {}, may-alias: {3,4}]
  %s4 = inlined_call_operand.hbm [shape: f32[3,2,16,64], index: 4, kind: input, shape index: {}, may-alias: {3,4}]
  %s5 = inlined_call_operand.hbm [shape: f32[5,1,16], index: 5, kind: input, shape index: {}]
  %s6 = inlined_call_operand.hbm [shape: f32[5,16,1], index: 6, kind: input, shape index: {}]
  %s7 = inlined_call_operand.hbm [shape: f32[3,64,64], index: 7, kind: input, shape index: {}]
  %s8 = inlined_call_operand.hbm [shape: f32[3,1,64], index: 8, kind: input, shape index: {}]
  %s9 = inlined_call_operand.hbm [shape: f32[3,64,64], index: 9, kind: input, shape index: {}]
  %s10 = inlined_call_operand.hbm [shape: f32[3,1,64], index: 10, kind: input, shape index: {}]
  %s11 = inlined_call_operand.hbm [shape: f32[3,64,64], index: 11, kind: input, shape index: {}]
  %s12 = inlined_call_operand.hbm [shape: f32[3,1,64], index: 12, kind: input, shape index: {}]
  %s13 = inlined_call_operand.hbm [shape: f32[3,64,64], index: 13, kind: input, shape index: {}]
  %s14 = inlined_call_operand.hbm [shape: f32[3,1,64], index: 14, kind: input, shape index: {}]
  %s15 = inlined_call_operand.hbm [shape: f32[5,2,64], index: 15, kind: output, shape index: {0}]
  %s16 = inlined_call_operand.hbm [shape: f32[5,2,64], index: 16, kind: output, shape index: {1}]
  %17 = xla_tuple %s15, %s16
  %s18 = sld [smem:[#allocation0]]
  $region137: #{forward_pallas.2} parent=0
    _
  %s20 = ssub.s32 1, %s18
  %s21 = scalar_select 0, %s20, %s18
  %23 = dma.hbm_to_smem %s0, 16, [#allocation3], [#allocation2]
  %25 = dma.hbm_to_smem %s1, 16, [#allocation4], [#allocation2]
  %27 = dma.hbm_to_smem %s2, 16, [#allocation5], [#allocation2]
  %28 = dma.done [#allocation2], 48
  %29 = sfence
  $region1: #{forward_pallas.2} parent=0
    #allocation6 [shape = 'u8[32768]{0}', space=vmem, size = 0x8000, scoped, tag = 'input window, operand 3']
    #allocation7 [shape = 's32[2]{0}', space=sflag, size = 0x8, scoped, tag = 'scoped memory for forward_pallas.2']
    #allocation8 [shape = 's32[2]{0}', space=sflag, size = 0x8, scoped, tag = 'scoped memory for forward_pallas.2']
    #allocation9 [shape = 'u8[32768]{0}', space=vmem, size = 0x8000, scoped, tag = 'input window, operand 4']
    #allocation10 [shape = 's32[2]{0}', space=sflag, size = 0x8, scoped, tag = 'scoped memory for forward_pallas.2']
    #allocation11 [shape = 'u8[1024]{0}', space=vmem, size = 0x400, scoped, tag = 'input window, operand 5']
    #allocation12 [shape = 'u8[16384]{0}', space=vmem, size = 0x4000, scoped, tag = 'input window, operand 6']
    #allocation13 [shape = 's32[2]{0}', space=sflag, size = 0x8, scoped, tag = 'scoped memory for forward_pallas.2']
    #allocation14 [shape = 'u8[65536]{0}', space=vmem, size = 0x10000, scoped, tag = 'input window, operand 7']
    #allocation15 [shape = 'u8[1024]{0}', space=vmem, size = 0x400, scoped, tag = 'input window, operand 8']
    #allocation16 [shape = 's32[2]{0}', space=sflag, size = 0x8, scoped, tag = 'scoped memory for forward_pallas.2']
    #allocation17 [shape = 'u8[65536]{0}', space=vmem, size = 0x10000, scoped, tag = 'input window, operand 9']
    #allocation18 [shape = 'u8[1024]{0}', space=vmem, size = 0x400, scoped, tag = 'input window, operand 10']
    #allocation19 [shape = 's32[2]{0}', space=sflag, size = 0x8, scoped, tag = 'scoped memory for forward_pallas.2']
    #allocation20 [shape = 'u8[65536]{0}', space=vmem, size = 0x10000, scoped, tag = 'input window, operand 11']
    #allocation21 [shape = 'u8[1024]{0}', space=vmem, size = 0x400, scoped, tag = 'input window, operand 12']
    #allocation22 [shape = 's32[2]{0}', space=sflag, size = 0x8, scoped, tag = 'scoped memory for forward_pallas.2']
    #allocation23 [shape = 'u8[65536]{0}', space=vmem, size = 0x10000, scoped, tag = 'input window, operand 13']
    #allocation24 [shape = 'u8[1024]{0}', space=vmem, size = 0x400, scoped, tag = 'input window, operand 14']
    #allocation25 [shape = 's32[2]{0}', space=sflag, size = 0x8, scoped, tag = 'scoped memory for forward_pallas.2']
    #allocation26 [shape = 'u8[2048]{0}', space=vmem, size = 0x800, scoped, tag = 'output window, operand 0']
    #allocation27 [shape = 'u8[2048]{0}', space=vmem, size = 0x800, scoped, tag = 'output window, operand 1']
    #allocation28 [shape = 's32[2]{0}', space=sflag, size = 0x8, scoped, tag = 'scoped memory for forward_pallas.2']
    %30 = vsyncpa [#allocation7], 0
    %s31 = scalar_lea.sflag [#allocation7], 1
    %32 = vsyncpa %s31, 0
    %33 = vsyncpa [#allocation10], 0
    %s34 = scalar_lea.sflag [#allocation10], 1
    %35 = vsyncpa %s34, 0
    %36 = vsyncpa [#allocation13], 0
    %s37 = scalar_lea.sflag [#allocation13], 1
    %38 = vsyncpa %s37, 0
    %39 = vsyncpa [#allocation16], 0
    %s40 = scalar_lea.sflag [#allocation16], 1
    %41 = vsyncpa %s40, 0
    %42 = vsyncpa [#allocation19], 0
    %s43 = scalar_lea.sflag [#allocation19], 1
    %44 = vsyncpa %s43, 0
    %45 = vsyncpa [#allocation22], 0
    %s46 = scalar_lea.sflag [#allocation22], 1
    %47 = vsyncpa %s46, 0
    %48 = vsyncpa [#allocation25], 0
    %s49 = scalar_lea.sflag [#allocation25], 1
    %50 = vsyncpa %s49, 0
    %51 = vsyncpa [#allocation8], 0
    %s52 = scalar_lea.sflag [#allocation8], 1
    %53 = vsyncpa %s52, 0
    %54 = vsyncpa [#allocation28], 0
    %s55 = scalar_lea.sflag [#allocation28], 1
    %56 = vsyncpa %s55, 0
    loop: start=0, step=1, limit=7
    $region2: #{forward_pallas.2} parent=1 // loop_pre_header
      _
    $region3: #{forward_pallas.2} parent=1 // loop_header
      %s58 = sphi 0, %s62
      %p59 = scmp.ge.s32.totalorder %s58, 7
      %s70 = sphi 0, %s72
      %s73 = sphi 0, %s70
      %s74 = sphi 0, %s73
      %s90 = sphi 0, %s74
      %s98 = sphi 0, %s100
      %s101 = sphi 0, %s98
      %s102 = sphi 0, %s101
      %s118 = sphi 0, %s102
      %s124 = sphi 0, %s126
      %s127 = sphi 0, %s124
      %s128 = sphi 0, %s127
      %s144 = sphi 0, %s128
      %s150 = sphi 0, %s152
      %s153 = sphi 0, %s150
      %s154 = sphi 0, %s153
      %s170 = sphi 0, %s154
      %s178 = sphi 0, %s180
      %s181 = sphi 0, %s178
      %s182 = sphi 0, %s181
      %s198 = sphi 0, %s182
      %s206 = sphi 0, %s208
      %s209 = sphi 0, %s206
      %s210 = sphi 0, %s209
      %s226 = sphi 0, %s210
      %s234 = sphi 0, %s236
      %s237 = sphi 0, %s234
      %s238 = sphi 0, %s237
      %s254 = sphi 0, %s238
      %s262 = sphi 0, %s264
      %s265 = sphi 0, %s262
      %s266 = sphi 0, %s265
      %s282 = sphi 0, %s266
      %s290 = sphi 0, %s292
      %s293 = sphi 0, %s290
      %s294 = sphi 0, %s293
      %s310 = sphi 0, %s294
      %s318 = sphi 0, %s320
      %s321 = sphi 0, %s318
      %s322 = sphi 0, %s321
      %s338 = sphi 0, %s322
      %s346 = sphi 0, %s348
      %s349 = sphi 0, %s346
      %s350 = sphi 0, %s349
      %s366 = sphi 0, %s350
      %s374 = sphi 0, %s376
      %s377 = sphi 0, %s374
      %s378 = sphi 0, %s377
      %s394 = sphi 0, %s378
      %s400 = sphi 0, %s402
      %s403 = sphi 0, %s400
      %s404 = sphi 0, %s403
      %s420 = sphi 0, %s404
      %s426 = sphi 0, %s428
      %s429 = sphi 0, %s426
      %s430 = sphi 0, %s429
      %s446 = sphi 0, %s430
    $region4: #{forward_pallas.2} parent=1 // loop_header_branch
      %61 = sbr.rel (%p59) target = $region8
    $region5: #{forward_pallas.2} parent=1 // loop_body
      %s63 = ssub.s32 %s58, 1
      %s64 = ssub.s32 %s58, 2
      %s65 = sadd.s32 %s58, 1
      %s66 = sld [smem:[#allocation3 + %s58]]
      %s67 = sld [smem:[#allocation3 + %s65]]
      %s68 = ssub.s32 %s66, %s67
      %p69 = scmp.eq.s32.totalorder %s68, 0
      %s71 = sadd.s32 %s70, 1
      %s72 = scalar_select %p69, %s70, %s71
      %p75 = pneg %p69
      %p76 = scmp.eq.s32.totalorder %s58, 4
      %p77 = por %p75, %p76
      %p78 = scmp.ne.s32.totalorder %s70, %s73
      %p79 = scmp.eq.s32.totalorder %s58, 0
      %p80 = por %p78, %p79
      %p81 = scmp.ne.s32.totalorder %s70, %s73
      %p82 = scmp.eq.s32.totalorder %s63, 4
      %p83 = por %p81, %p82
      %p84 = scmp.ne.s32.totalorder %s73, %s74
      %p85 = scmp.eq.s32.totalorder %s63, 0
      %p86 = por %p84, %p85
      %p87 = scmp.ne.s32.totalorder %s73, %s74
      %p88 = scmp.eq.s32.totalorder %s64, 4
      %p89 = por %p87, %p88
      %p91 = scmp.ne.s32.totalorder %s74, %s90
      %p92 = scmp.eq.s32.totalorder %s64, 0
      %p93 = por %p91, %p92
      %s94 = sld [smem:[#allocation4 + %s58]]
      %s95 = sld [smem:[#allocation4 + %s65]]
      %s96 = ssub.s32 %s94, %s95
      %p97 = scmp.eq.s32.totalorder %s96, 0
      %s99 = sadd.s32 %s98, 1
      %s100 = scalar_select %p97, %s98, %s99
      %p103 = pneg %p97
      %p104 = scmp.eq.s32.totalorder %s58, 4
      %p105 = por %p103, %p104
      %p106 = scmp.ne.s32.totalorder %s98, %s101
      %p107 = scmp.eq.s32.totalorder %s58, 0
      %p108 = por %p106, %p107
      %p109 = scmp.ne.s32.totalorder %s98, %s101
      %p110 = scmp.eq.s32.totalorder %s63, 4
      %p111 = por %p109, %p110
      %p112 = scmp.ne.s32.totalorder %s101, %s102
      %p113 = scmp.eq.s32.totalorder %s63, 0
      %p114 = por %p112, %p113
      %p115 = scmp.ne.s32.totalorder %s101, %s102
      %p116 = scmp.eq.s32.totalorder %s64, 4
      %p117 = por %p115, %p116
      %p119 = scmp.ne.s32.totalorder %s102, %s118
      %p120 = scmp.eq.s32.totalorder %s64, 0
      %p121 = por %p119, %p120
      %s122 = ssub.s32 %s58, %s65
      %p123 = scmp.eq.s32.totalorder %s122, 0
      %s125 = sadd.s32 %s124, 1
      %s126 = scalar_select %p123, %s124, %s125
      %p129 = pneg %p123
      %p130 = scmp.eq.s32.totalorder %s58, 4
      %p131 = por %p129, %p130
      %p132 = scmp.ne.s32.totalorder %s124, %s127
      %p133 = scmp.eq.s32.totalorder %s58, 0
      %p134 = por %p132, %p133
      %p135 = scmp.ne.s32.totalorder %s124, %s127
      %p136 = scmp.eq.s32.totalorder %s63, 4
      %p137 = por %p135, %p136
      %p138 = scmp.ne.s32.totalorder %s127, %s128
      %p139 = scmp.eq.s32.totalorder %s63, 0
      %p140 = por %p138, %p139
      %p141 = scmp.ne.s32.totalorder %s127, %s128
      %p142 = scmp.eq.s32.totalorder %s64, 4
      %p143 = por %p141, %p142
      %p145 = scmp.ne.s32.totalorder %s128, %s144
      %p146 = scmp.eq.s32.totalorder %s64, 0
      %p147 = por %p145, %p146
      %s148 = ssub.s32 %s58, %s65
      %p149 = scmp.eq.s32.totalorder %s148, 0
      %s151 = sadd.s32 %s150, 1
      %s152 = scalar_select %p149, %s150, %s151
      %p155 = pneg %p149
      %p156 = scmp.eq.s32.totalorder %s58, 4
      %p157 = por %p155, %p156
      %p158 = scmp.ne.s32.totalorder %s150, %s153
      %p159 = scmp.eq.s32.totalorder %s58, 0
      %p160 = por %p158, %p159
      %p161 = scmp.ne.s32.totalorder %s150, %s153
      %p162 = scmp.eq.s32.totalorder %s63, 4
      %p163 = por %p161, %p162
      %p164 = scmp.ne.s32.totalorder %s153, %s154
      %p165 = scmp.eq.s32.totalorder %s63, 0
      %p166 = por %p164, %p165
      %p167 = scmp.ne.s32.totalorder %s153, %s154
      %p168 = scmp.eq.s32.totalorder %s64, 4
      %p169 = por %p167, %p168
      %p171 = scmp.ne.s32.totalorder %s154, %s170
      %p172 = scmp.eq.s32.totalorder %s64, 0
      %p173 = por %p171, %p172
      %s174 = sld [smem:[#allocation5 + %s58]]
      %s175 = sld [smem:[#allocation5 + %s65]]
      %s176 = ssub.s32 %s174, %s175
      %p177 = scmp.eq.s32.totalorder %s176, 0
      %s179 = sadd.s32 %s178, 1
      %s180 = scalar_select %p177, %s178, %s179
      %p183 = pneg %p177
      %p184 = scmp.eq.s32.totalorder %s58, 4
      %p185 = por %p183, %p184
      %p186 = scmp.ne.s32.totalorder %s178, %s181
      %p187 = scmp.eq.s32.totalorder %s58, 0
      %p188 = por %p186, %p187
      %p189 = scmp.ne.s32.totalorder %s178, %s181
      %p190 = scmp.eq.s32.totalorder %s63, 4
      %p191 = por %p189, %p190
      %p192 = scmp.ne.s32.totalorder %s181, %s182
      %p193 = scmp.eq.s32.totalorder %s63, 0
      %p194 = por %p192, %p193
      %p195 = scmp.ne.s32.totalorder %s181, %s182
      %p196 = scmp.eq.s32.totalorder %s64, 4
      %p197 = por %p195, %p196
      %p199 = scmp.ne.s32.totalorder %s182, %s198
      %p200 = scmp.eq.s32.totalorder %s64, 0
      %p201 = por %p199, %p200
      %s202 = sld [smem:[#allocation5 + %s58]]
      %s203 = sld [smem:[#allocation5 + %s65]]
      %s204 = ssub.s32 %s202, %s203
      %p205 = scmp.eq.s32.totalorder %s204, 0
      %s207 = sadd.s32 %s206, 1
      %s208 = scalar_select %p205, %s206, %s207
      %p211 = pneg %p205
      %p212 = scmp.eq.s32.totalorder %s58, 4
      %p213 = por %p211, %p212
      %p214 = scmp.ne.s32.totalorder %s206, %s209
      %p215 = scmp.eq.s32.totalorder %s58, 0
      %p216 = por %p214, %p215
      %p217 = scmp.ne.s32.totalorder %s206, %s209
      %p218 = scmp.eq.s32.totalorder %s63, 4
      %p219 = por %p217, %p218
      %p220 = scmp.ne.s32.totalorder %s209, %s210
      %p221 = scmp.eq.s32.totalorder %s63, 0
      %p222 = por %p220, %p221
      %p223 = scmp.ne.s32.totalorder %s209, %s210
      %p224 = scmp.eq.s32.totalorder %s64, 4
      %p225 = por %p223, %p224
      %p227 = scmp.ne.s32.totalorder %s210, %s226
      %p228 = scmp.eq.s32.totalorder %s64, 0
      %p229 = por %p227, %p228
      %s230 = sld [smem:[#allocation5 + %s58]]
      %s231 = sld [smem:[#allocation5 + %s65]]
      %s232 = ssub.s32 %s230, %s231
      %p233 = scmp.eq.s32.totalorder %s232, 0
      %s235 = sadd.s32 %s234, 1
      %s236 = scalar_select %p233, %s234, %s235
      %p239 = pneg %p233
      %p240 = scmp.eq.s32.totalorder %s58, 4
      %p241 = por %p239, %p240
      %p242 = scmp.ne.s32.totalorder %s234, %s237
      %p243 = scmp.eq.s32.totalorder %s58, 0
      %p244 = por %p242, %p243
      %p245 = scmp.ne.s32.totalorder %s234, %s237
      %p246 = scmp.eq.s32.totalorder %s63, 4
      %p247 = por %p245, %p246
      %p248 = scmp.ne.s32.totalorder %s237, %s238
      %p249 = scmp.eq.s32.totalorder %s63, 0
      %p250 = por %p248, %p249
      %p251 = scmp.ne.s32.totalorder %s237, %s238
      %p252 = scmp.eq.s32.totalorder %s64, 4
      %p253 = por %p251, %p252
      %p255 = scmp.ne.s32.totalorder %s238, %s254
      %p256 = scmp.eq.s32.totalorder %s64, 0
      %p257 = por %p255, %p256
      %s258 = sld [smem:[#allocation5 + %s58]]
      %s259 = sld [smem:[#allocation5 + %s65]]
      %s260 = ssub.s32 %s258, %s259
      %p261 = scmp.eq.s32.totalorder %s260, 0
      %s263 = sadd.s32 %s262, 1
      %s264 = scalar_select %p261, %s262, %s263
      %p267 = pneg %p261
      %p268 = scmp.eq.s32.totalorder %s58, 4
      %p269 = por %p267, %p268
      %p270 = scmp.ne.s32.totalorder %s262, %s265
      %p271 = scmp.eq.s32.totalorder %s58, 0
      %p272 = por %p270, %p271
      %p273 = scmp.ne.s32.totalorder %s262, %s265
      %p274 = scmp.eq.s32.totalorder %s63, 4
      %p275 = por %p273, %p274
      %p276 = scmp.ne.s32.totalorder %s265, %s266
      %p277 = scmp.eq.s32.totalorder %s63, 0
      %p278 = por %p276, %p277
      %p279 = scmp.ne.s32.totalorder %s265, %s266
      %p280 = scmp.eq.s32.totalorder %s64, 4
      %p281 = por %p279, %p280
      %p283 = scmp.ne.s32.totalorder %s266, %s282
      %p284 = scmp.eq.s32.totalorder %s64, 0
      %p285 = por %p283, %p284
      %s286 = sld [smem:[#allocation5 + %s58]]
      %s287 = sld [smem:[#allocation5 + %s65]]
      %s288 = ssub.s32 %s286, %s287
      %p289 = scmp.eq.s32.totalorder %s288, 0
      %s291 = sadd.s32 %s290, 1
      %s292 = scalar_select %p289, %s290, %s291
      %p295 = pneg %p289
      %p296 = scmp.eq.s32.totalorder %s58, 4
      %p297 = por %p295, %p296
      %p298 = scmp.ne.s32.totalorder %s290, %s293
      %p299 = scmp.eq.s32.totalorder %s58, 0
      %p300 = por %p298, %p299
      %p301 = scmp.ne.s32.totalorder %s290, %s293
      %p302 = scmp.eq.s32.totalorder %s63, 4
      %p303 = por %p301, %p302
      %p304 = scmp.ne.s32.totalorder %s293, %s294
      %p305 = scmp.eq.s32.totalorder %s63, 0
      %p306 = por %p304, %p305
      %p307 = scmp.ne.s32.totalorder %s293, %s294
      %p308 = scmp.eq.s32.totalorder %s64, 4
      %p309 = por %p307, %p308
      %p311 = scmp.ne.s32.totalorder %s294, %s310
      %p312 = scmp.eq.s32.totalorder %s64, 0
      %p313 = por %p311, %p312
      %s314 = sld [smem:[#allocation5 + %s58]]
      %s315 = sld [smem:[#allocation5 + %s65]]
      %s316 = ssub.s32 %s314, %s315
      %p317 = scmp.eq.s32.totalorder %s316, 0
      %s319 = sadd.s32 %s318, 1
      %s320 = scalar_select %p317, %s318, %s319
      %p323 = pneg %p317
      %p324 = scmp.eq.s32.totalorder %s58, 4
      %p325 = por %p323, %p324
      %p326 = scmp.ne.s32.totalorder %s318, %s321
      %p327 = scmp.eq.s32.totalorder %s58, 0
      %p328 = por %p326, %p327
      %p329 = scmp.ne.s32.totalorder %s318, %s321
      %p330 = scmp.eq.s32.totalorder %s63, 4
      %p331 = por %p329, %p330
      %p332 = scmp.ne.s32.totalorder %s321, %s322
      %p333 = scmp.eq.s32.totalorder %s63, 0
      %p334 = por %p332, %p333
      %p335 = scmp.ne.s32.totalorder %s321, %s322
      %p336 = scmp.eq.s32.totalorder %s64, 4
      %p337 = por %p335, %p336
      %p339 = scmp.ne.s32.totalorder %s322, %s338
      %p340 = scmp.eq.s32.totalorder %s64, 0
      %p341 = por %p339, %p340
      %s342 = sld [smem:[#allocation5 + %s58]]
      %s343 = sld [smem:[#allocation5 + %s65]]
      %s344 = ssub.s32 %s342, %s343
      %p345 = scmp.eq.s32.totalorder %s344, 0
      %s347 = sadd.s32 %s346, 1
      %s348 = scalar_select %p345, %s346, %s347
      %p351 = pneg %p345
      %p352 = scmp.eq.s32.totalorder %s58, 4
      %p353 = por %p351, %p352
      %p354 = scmp.ne.s32.totalorder %s346, %s349
      %p355 = scmp.eq.s32.totalorder %s58, 0
      %p356 = por %p354, %p355
      %p357 = scmp.ne.s32.totalorder %s346, %s349
      %p358 = scmp.eq.s32.totalorder %s63, 4
      %p359 = por %p357, %p358
      %p360 = scmp.ne.s32.totalorder %s349, %s350
      %p361 = scmp.eq.s32.totalorder %s63, 0
      %p362 = por %p360, %p361
      %p363 = scmp.ne.s32.totalorder %s349, %s350
      %p364 = scmp.eq.s32.totalorder %s64, 4
      %p365 = por %p363, %p364
      %p367 = scmp.ne.s32.totalorder %s350, %s366
      %p368 = scmp.eq.s32.totalorder %s64, 0
      %p369 = por %p367, %p368
      %s370 = sld [smem:[#allocation5 + %s58]]
      %s371 = sld [smem:[#allocation5 + %s65]]
      %s372 = ssub.s32 %s370, %s371
      %p373 = scmp.eq.s32.totalorder %s372, 0
      %s375 = sadd.s32 %s374, 1
      %s376 = scalar_select %p373, %s374, %s375
      %p379 = pneg %p373
      %p380 = scmp.eq.s32.totalorder %s58, 4
      %p381 = por %p379, %p380
      %p382 = scmp.ne.s32.totalorder %s374, %s377
      %p383 = scmp.eq.s32.totalorder %s58, 0
      %p384 = por %p382, %p383
      %p385 = scmp.ne.s32.totalorder %s374, %s377
      %p386 = scmp.eq.s32.totalorder %s63, 4
      %p387 = por %p385, %p386
      %p388 = scmp.ne.s32.totalorder %s377, %s378
      %p389 = scmp.eq.s32.totalorder %s63, 0
      %p390 = por %p388, %p389
      %p391 = scmp.ne.s32.totalorder %s377, %s378
      %p392 = scmp.eq.s32.totalorder %s64, 4
      %p393 = por %p391, %p392
      %p395 = scmp.ne.s32.totalorder %s378, %s394
      %p396 = scmp.eq.s32.totalorder %s64, 0
      %p397 = por %p395, %p396
      %s398 = ssub.s32 %s58, %s65
      %p399 = scmp.eq.s32.totalorder %s398, 0
      %s401 = sadd.s32 %s400, 1
      %s402 = scalar_select %p399, %s400, %s401
      %p405 = pneg %p399
      %p406 = scmp.eq.s32.totalorder %s58, 4
      %p407 = por %p405, %p406
      %p408 = scmp.ne.s32.totalorder %s400, %s403
      %p409 = scmp.eq.s32.totalorder %s58, 0
      %p410 = por %p408, %p409
      %p411 = scmp.ne.s32.totalorder %s400, %s403
      %p412 = scmp.eq.s32.totalorder %s63, 4
      %p413 = por %p411, %p412
      %p414 = scmp.ne.s32.totalorder %s403, %s404
      %p415 = scmp.eq.s32.totalorder %s63, 0
      %p416 = por %p414, %p415
      %p417 = scmp.ne.s32.totalorder %s403, %s404
      %p418 = scmp.eq.s32.totalorder %s64, 4
      %p419 = por %p417, %p418
      %p421 = scmp.ne.s32.totalorder %s404, %s420
      %p422 = scmp.eq.s32.totalorder %s64, 0
      %p423 = por %p421, %p422
      %s424 = ssub.s32 %s58, %s65
      %p425 = scmp.eq.s32.totalorder %s424, 0
      %s427 = sadd.s32 %s426, 1
      %s428 = scalar_select %p425, %s426, %s427
      %p431 = pneg %p425
      %p432 = scmp.eq.s32.totalorder %s58, 4
      %p433 = por %p431, %p432
      %p434 = scmp.ne.s32.totalorder %s426, %s429
      %p435 = scmp.eq.s32.totalorder %s58, 0
      %p436 = por %p434, %p435
      %p437 = scmp.ne.s32.totalorder %s426, %s429
      %p438 = scmp.eq.s32.totalorder %s63, 4
      %p439 = por %p437, %p438
      %p440 = scmp.ne.s32.totalorder %s429, %s430
      %p441 = scmp.eq.s32.totalorder %s63, 0
      %p442 = por %p440, %p441
      %p443 = scmp.ne.s32.totalorder %s429, %s430
      %p444 = scmp.eq.s32.totalorder %s64, 4
      %p445 = por %p443, %p444
      %p447 = scmp.ne.s32.totalorder %s430, %s446
      %p448 = scmp.eq.s32.totalorder %s64, 0
      %p449 = por %p447, %p448
      %p450 = scmp.le.s32.totalorder 1, %s58
      %p451 = scmp.lt.s32.totalorder %s58, 6
      %p452 = pnand %p450, %p451
      %p453 = pneg %p452
      // Predicated region
      $region9: #{forward_pallas.2} parent=5 // pred_check
        _
      $region10: #{forward_pallas.2} parent=5 // pred_check_branch
        %455 = sbr.rel (%p452) target = $region12
      $region11: #{forward_pallas.2} parent=5 // pred_region
        %s456 = ssub.s32 %s58, 1
      $region12: #{forward_pallas.2} parent=5 // pred_fallthru
        _
      %p457 = scmp.lt.s32.totalorder %s58, 5
      // Predicated region
      $region13: #{forward_pallas.2} parent=5 // pred_check
        %p458 = pneg %p457
      $region14: #{forward_pallas.2} parent=5 // pred_check_branch
        %460 = sbr.rel (%p458) target = $region16
      $region15: #{forward_pallas.2} parent=5 // pred_region
        // Predicated region
        $region17: #{forward_pallas.2} parent=15 // pred_check
          %p461 = pneg %p80
        $region18: #{forward_pallas.2} parent=15 // pred_check_branch
          %463 = sbr.rel (%p461) target = $region20
        $region19: #{forward_pallas.2} parent=15 // pred_region
          %s464 = sand.u32 %s70, 1
          %s465 = scalar_lea.sflag [#allocation7], %s464
          %s466 = sand.u32 %s70, 1
          %s467 = smul.addr %s466, 32
          %s468 = scalar_lea.vmem [#allocation6], %s467
          %s469 = sld [smem:[#allocation3 + %s58]]
          %s471 = ssub.s32 512, 512
          %472 = vsyncadd %s465, %s471
          %s473 = smul.addr %s469, 4
          %s474 = smul.addr %s473, 128
          %s475 = scalar_lea.hbm %s3, %s474
          %s476 = sshll.u32 %s468, 4
          %s477 = int_to_ptr.vmem [resolvable:$true] %s476
          %482 = dma.hbm_to_vmem [thread:$0]  %s475, 512, %s477, %s465, 128, 128, 8
        $region20: #{forward_pallas.2} parent=15 // pred_fallthru
          _
        // Predicated region
        $region21: #{forward_pallas.2} parent=15 // pred_check
          %p483 = pneg %p108
        $region22: #{forward_pallas.2} parent=15 // pred_check_branch
          %485 = sbr.rel (%p483) target = $region24
        $region23: #{forward_pallas.2} parent=15 // pred_region
          %s486 = sand.u32 %s58, 1
          %s487 = scalar_lea.sflag [#allocation10], %s486
          %s488 = sand.u32 %s98, 1
          %s489 = smul.addr %s488, 32
          %s490 = scalar_lea.vmem [#allocation9], %s489
          %s491 = sld [smem:[#allocation4 + %s58]]
          %s493 = ssub.s32 512, 512
          %494 = vsyncadd %s487, %s493
          %s495 = smul.addr %s491, 4
          %s496 = smul.addr %s495, 128
          %s497 = scalar_lea.hbm %s4, %s496
          %s498 = sshll.u32 %s490, 4
          %s499 = int_to_ptr.vmem [resolvable:$true] %s498
          %504 = dma.hbm_to_vmem [thread:$0]  %s497, 512, %s499, %s487, 128, 128, 8
        $region24: #{forward_pallas.2} parent=15 // pred_fallthru
          _
        // Predicated region
        $region25: #{forward_pallas.2} parent=15 // pred_check
          %p505 = pneg %p134
        $region26: #{forward_pallas.2} parent=15 // pred_check_branch
          %507 = sbr.rel (%p505) target = $region28
        $region27: #{forward_pallas.2} parent=15 // pred_region
          %s508 = sand.u32 %s58, 1
          %s509 = scalar_lea.sflag [#allocation10], %s508
          %s510 = sand.u32 %s124, 1
          %s511 = scalar_lea.vmem [#allocation11], %s510
          %s513 = ssub.s32 16, 16
          %514 = vsyncadd %s509, %s513
          %s515 = smul.addr %s58, 16
          %s516 = scalar_lea.hbm %s5, %s515
          %s518 = sshll.u32 %s511, 4
          %s519 = int_to_ptr.vmem [resolvable:$true] %s518
          %521 = dma.hbm_to_vmem [thread:$0]  %s516, 16, %s519, %s509
        $region28: #{forward_pallas.2} parent=15 // pred_fallthru
          _
        // Predicated region
        $region29: #{forward_pallas.2} parent=15 // pred_check
          %p522 = pneg %p160
        $region30: #{forward_pallas.2} parent=15 // pred_check_branch
          %524 = sbr.rel (%p522) target = $region32
        $region31: #{forward_pallas.2} parent=15 // pred_region
          %s525 = sand.u32 %s58, 1
          %s526 = scalar_lea.sflag [#allocation13], %s525
          %s527 = sand.u32 %s150, 1
          %s528 = smul.addr %s527, 16
          %s529 = scalar_lea.vmem [#allocation12], %s528
          %s531 = ssub.s32 256, 256
          %532 = vsyncadd %s526, %s531
          %s533 = smul.addr %s58, 2
          %s534 = smul.addr %s533, 128
          %s535 = scalar_lea.hbm %s6, %s534
          %s536 = sshll.u32 %s529, 4
          %s537 = int_to_ptr.vmem [resolvable:$true] %s536
          %542 = dma.hbm_to_vmem [thread:$0]  %s535, 256, %s537, %s526, 128, 128, 8
        $region32: #{forward_pallas.2} parent=15 // pred_fallthru
          _
        // Predicated region
        $region33: #{forward_pallas.2} parent=15 // pred_check
          %p543 = pneg %p188
        $region34: #{forward_pallas.2} parent=15 // pred_check_branch
          %545 = sbr.rel (%p543) target = $region36
        $region35: #{forward_pallas.2} parent=15 // pred_region
          %s546 = sand.u32 %s58, 1
          %s547 = scalar_lea.sflag [#allocation13], %s546
          %s548 = sand.u32 %s178, 1
          %s549 = smul.addr %s548, 64
          %s550 = scalar_lea.vmem [#allocation14], %s549
          %s551 = sld [smem:[#allocation5 + %s58]]
          %s553 = ssub.s32 1024, 1024
          %554 = vsyncadd %s547, %s553
          %s555 = smul.addr %s551, 8
          %s556 = smul.addr %s555, 128
          %s557 = scalar_lea.hbm %s7, %s556
          %s558 = sshll.u32 %s550, 4
          %s559 = int_to_ptr.vmem [resolvable:$true] %s558
          %564 = dma.hbm_to_vmem [thread:$0]  %s557, 1024, %s559, %s547, 128, 128, 8
        $region36: #{forward_pallas.2} parent=15 // pred_fallthru
          _
        // Predicated region
        $region37: #{forward_pallas.2} parent=15 // pred_check
          %p565 = pneg %p216
        $region38: #{forward_pallas.2} parent=15 // pred_check_branch
          %567 = sbr.rel (%p565) target = $region40
        $region39: #{forward_pallas.2} parent=15 // pred_region
          %s568 = sand.u32 %s58, 1
          %s569 = scalar_lea.sflag [#allocation16], %s568
          %s570 = sand.u32 %s206, 1
          %s571 = scalar_lea.vmem [#allocation15], %s570
          %s572 = sld [smem:[#allocation5 + %s58]]
          %s574 = ssub.s32 16, 16
          %575 = vsyncadd %s569, %s574
          %s576 = smul.addr %s572, 16
          %s577 = scalar_lea.hbm %s8, %s576
          %s579 = sshll.u32 %s571, 4
          %s580 = int_to_ptr.vmem [resolvable:$true] %s579
          %582 = dma.hbm_to_vmem [thread:$0]  %s577, 16, %s580, %s569
        $region40: #{forward_pallas.2} parent=15 // pred_fallthru
          _
        // Predicated region
        $region41: #{forward_pallas.2} parent=15 // pred_check
          %p583 = pneg %p244
        $region42: #{forward_pallas.2} parent=15 // pred_check_branch
          %585 = sbr.rel (%p583) target = $region44
        $region43: #{forward_pallas.2} parent=15 // pred_region
          %s586 = sand.u32 %s58, 1
          %s587 = scalar_lea.sflag [#allocation16], %s586
          %s588 = sand.u32 %s234, 1
          %s589 = smul.addr %s588, 64
          %s590 = scalar_lea.vmem [#allocation17], %s589
          %s591 = sld [smem:[#allocation5 + %s58]]
          %s593 = ssub.s32 1024, 1024
          %594 = vsyncadd %s587, %s593
          %s595 = smul.addr %s591, 8
          %s596 = smul.addr %s595, 128
          %s597 = scalar_lea.hbm %s9, %s596
          %s598 = sshll.u32 %s590, 4
          %s599 = int_to_ptr.vmem [resolvable:$true] %s598
          %604 = dma.hbm_to_vmem [thread:$0]  %s597, 1024, %s599, %s587, 128, 128, 8
        $region44: #{forward_pallas.2} parent=15 // pred_fallthru
          _
        // Predicated region
        $region45: #{forward_pallas.2} parent=15 // pred_check
          %p605 = pneg %p272
        $region46: #{forward_pallas.2} parent=15 // pred_check_branch
          %607 = sbr.rel (%p605) target = $region48
        $region47: #{forward_pallas.2} parent=15 // pred_region
          %s608 = sand.u32 %s58, 1
          %s609 = scalar_lea.sflag [#allocation19], %s608
          %s610 = sand.u32 %s262, 1
          %s611 = scalar_lea.vmem [#allocation18], %s610
          %s612 = sld [smem:[#allocation5 + %s58]]
          %s614 = ssub.s32 16, 16
          %615 = vsyncadd %s609, %s614
          %s616 = smul.addr %s612, 16
          %s617 = scalar_lea.hbm %s10, %s616
          %s619 = sshll.u32 %s611, 4
          %s620 = int_to_ptr.vmem [resolvable:$true] %s619
          %622 = dma.hbm_to_vmem [thread:$0]  %s617, 16, %s620, %s609
        $region48: #{forward_pallas.2} parent=15 // pred_fallthru
          _
        // Predicated region
        $region49: #{forward_pallas.2} parent=15 // pred_check
          %p623 = pneg %p300
        $region50: #{forward_pallas.2} parent=15 // pred_check_branch
          %625 = sbr.rel (%p623) target = $region52
        $region51: #{forward_pallas.2} parent=15 // pred_region
          %s626 = sand.u32 %s58, 1
          %s627 = scalar_lea.sflag [#allocation19], %s626
          %s628 = sand.u32 %s290, 1
          %s629 = smul.addr %s628, 64
          %s630 = scalar_lea.vmem [#allocation20], %s629
          %s631 = sld [smem:[#allocation5 + %s58]]
          %s633 = ssub.s32 1024, 1024
          %634 = vsyncadd %s627, %s633
          %s635 = smul.addr %s631, 8
          %s636 = smul.addr %s635, 128
          %s637 = scalar_lea.hbm %s11, %s636
          %s638 = sshll.u32 %s630, 4
          %s639 = int_to_ptr.vmem [resolvable:$true] %s638
          %644 = dma.hbm_to_vmem [thread:$0]  %s637, 1024, %s639, %s627, 128, 128, 8
        $region52: #{forward_pallas.2} parent=15 // pred_fallthru
          _
        // Predicated region
        $region53: #{forward_pallas.2} parent=15 // pred_check
          %p645 = pneg %p328
        $region54: #{forward_pallas.2} parent=15 // pred_check_branch
          %647 = sbr.rel (%p645) target = $region56
        $region55: #{forward_pallas.2} parent=15 // pred_region
          %s648 = sand.u32 %s58, 1
          %s649 = scalar_lea.sflag [#allocation22], %s648
          %s650 = sand.u32 %s318, 1
          %s651 = scalar_lea.vmem [#allocation21], %s650
          %s652 = sld [smem:[#allocation5 + %s58]]
          %s654 = ssub.s32 16, 16
          %655 = vsyncadd %s649, %s654
          %s656 = smul.addr %s652, 16
          %s657 = scalar_lea.hbm %s12, %s656
          %s659 = sshll.u32 %s651, 4
          %s660 = int_to_ptr.vmem [resolvable:$true] %s659
          %662 = dma.hbm_to_vmem [thread:$0]  %s657, 16, %s660, %s649
        $region56: #{forward_pallas.2} parent=15 // pred_fallthru
          _
        // Predicated region
        $region57: #{forward_pallas.2} parent=15 // pred_check
          %p663 = pneg %p356
        $region58: #{forward_pallas.2} parent=15 // pred_check_branch
          %665 = sbr.rel (%p663) target = $region60
        $region59: #{forward_pallas.2} parent=15 // pred_region
          %s666 = sand.u32 %s58, 1
          %s667 = scalar_lea.sflag [#allocation22], %s666
          %s668 = sand.u32 %s346, 1
          %s669 = smul.addr %s668, 64
          %s670 = scalar_lea.vmem [#allocation23], %s669
          %s671 = sld [smem:[#allocation5 + %s58]]
          %s673 = ssub.s32 1024, 1024
          %674 = vsyncadd %s667, %s673
          %s675 = smul.addr %s671, 8
          %s676 = smul.addr %s675, 128
          %s677 = scalar_lea.hbm %s13, %s676
          %s678 = sshll.u32 %s670, 4
          %s679 = int_to_ptr.vmem [resolvable:$true] %s678
          %684 = dma.hbm_to_vmem [thread:$0]  %s677, 1024, %s679, %s667, 128, 128, 8
        $region60: #{forward_pallas.2} parent=15 // pred_fallthru
          _
        // Predicated region
        $region61: #{forward_pallas.2} parent=15 // pred_check
          %p685 = pneg %p384
        $region62: #{forward_pallas.2} parent=15 // pred_check_branch
          %687 = sbr.rel (%p685) target = $region64
        $region63: #{forward_pallas.2} parent=15 // pred_region
          %s688 = sand.u32 %s374, 1
          %s689 = scalar_lea.sflag [#allocation25], %s688
          %s690 = sand.u32 %s374, 1
          %s691 = scalar_lea.vmem [#allocation24], %s690
          %s692 = sld [smem:[#allocation5 + %s58]]
          %s694 = ssub.s32 16, 16
          %695 = vsyncadd %s689, %s694
          %s696 = smul.addr %s692, 16
          %s697 = scalar_lea.hbm %s14, %s696
          %s699 = sshll.u32 %s691, 4
          %s700 = int_to_ptr.vmem [resolvable:$true] %s699
          %702 = dma.hbm_to_vmem [thread:$0]  %s697, 16, %s700, %s689
        $region64: #{forward_pallas.2} parent=15 // pred_fallthru
          _
      $region16: #{forward_pallas.2} parent=5 // pred_fallthru
        _
      %p703 = scmp.le.s32.totalorder 1, %s58
      %p704 = scmp.lt.s32.totalorder %s58, 6
      %p705 = pnand %p703, %p704
      %p706 = pneg %p705
      // Predicated region
      $region65: #{forward_pallas.2} parent=5 // pred_check
        _
      $region66: #{forward_pallas.2} parent=5 // pred_check_branch
        %708 = sbr.rel (%p705) target = $region68
      $region67: #{forward_pallas.2} parent=5 // pred_region
        %s709 = ssub.s32 %s58, 1
        %s710 = sand.u32 %s73, 1
        %s711 = scalar_lea.sflag [#allocation7], %s710
        %s712 = sand.u32 %s73, 1
        %s713 = smul.addr %s712, 32
        %s714 = scalar_lea.vmem [#allocation6], %s713
        // Predicated region
        $region69: #{forward_pallas.2} parent=67 // pred_check
          %p715 = pneg %p86
        $region70: #{forward_pallas.2} parent=67 // pred_check_branch
          %717 = sbr.rel (%p715) target = $region72
        $region71: #{forward_pallas.2} parent=67 // pred_region
          %718 = dma.done %s711, 512
        $region72: #{forward_pallas.2} parent=67 // pred_fallthru
          _
        %s719 = sand.u32 %s63, 1
        %s720 = scalar_lea.sflag [#allocation10], %s719
        %s721 = sand.u32 %s101, 1
        %s722 = smul.addr %s721, 32
        %s723 = scalar_lea.vmem [#allocation9], %s722
        // Predicated region
        $region73: #{forward_pallas.2} parent=67 // pred_check
          %p724 = pneg %p114
        $region74: #{forward_pallas.2} parent=67 // pred_check_branch
          %726 = sbr.rel (%p724) target = $region76
        $region75: #{forward_pallas.2} parent=67 // pred_region
          %727 = dma.done %s720, 512
        $region76: #{forward_pallas.2} parent=67 // pred_fallthru
          _
        %s728 = sand.u32 %s63, 1
        %s729 = scalar_lea.sflag [#allocation10], %s728
        %s730 = sand.u32 %s127, 1
        %s731 = scalar_lea.vmem [#allocation11], %s730
        // Predicated region
        $region77: #{forward_pallas.2} parent=67 // pred_check
          %p732 = pneg %p140
        $region78: #{forward_pallas.2} parent=67 // pred_check_branch
          %734 = sbr.rel (%p732) target = $region80
        $region79: #{forward_pallas.2} parent=67 // pred_region
          %735 = dma.done %s729, 16
        $region80: #{forward_pallas.2} parent=67 // pred_fallthru
          _
        %s736 = sand.u32 %s63, 1
        %s737 = scalar_lea.sflag [#allocation13], %s736
        %s738 = sand.u32 %s153, 1
        %s739 = smul.addr %s738, 16
        %s740 = scalar_lea.vmem [#allocation12], %s739
        // Predicated region
        $region81: #{forward_pallas.2} parent=67 // pred_check
          %p741 = pneg %p166
        $region82: #{forward_pallas.2} parent=67 // pred_check_branch
          %743 = sbr.rel (%p741) target = $region84
        $region83: #{forward_pallas.2} parent=67 // pred_region
          %744 = dma.done %s737, 256
        $region84: #{forward_pallas.2} parent=67 // pred_fallthru
          _
        %s745 = sand.u32 %s63, 1
        %s746 = scalar_lea.sflag [#allocation13], %s745
        %s747 = sand.u32 %s181, 1
        %s748 = smul.addr %s747, 64
        %s749 = scalar_lea.vmem [#allocation14], %s748
        // Predicated region
        $region85: #{forward_pallas.2} parent=67 // pred_check
          %p750 = pneg %p194
        $region86: #{forward_pallas.2} parent=67 // pred_check_branch
          %752 = sbr.rel (%p750) target = $region88
        $region87: #{forward_pallas.2} parent=67 // pred_region
          %753 = dma.done %s746, 1024
        $region88: #{forward_pallas.2} parent=67 // pred_fallthru
          _
        %s754 = sand.u32 %s63, 1
        %s755 = scalar_lea.sflag [#allocation16], %s754
        %s756 = sand.u32 %s209, 1
        %s757 = scalar_lea.vmem [#allocation15], %s756
        // Predicated region
        $region89: #{forward_pallas.2} parent=67 // pred_check
          %p758 = pneg %p222
        $region90: #{forward_pallas.2} parent=67 // pred_check_branch
          %760 = sbr.rel (%p758) target = $region92
        $region91: #{forward_pallas.2} parent=67 // pred_region
          %761 = dma.done %s755, 16
        $region92: #{forward_pallas.2} parent=67 // pred_fallthru
          _
        %s762 = sand.u32 %s63, 1
        %s763 = scalar_lea.sflag [#allocation16], %s762
        %s764 = sand.u32 %s237, 1
        %s765 = smul.addr %s764, 64
        %s766 = scalar_lea.vmem [#allocation17], %s765
        // Predicated region
        $region93: #{forward_pallas.2} parent=67 // pred_check
          %p767 = pneg %p250
        $region94: #{forward_pallas.2} parent=67 // pred_check_branch
          %769 = sbr.rel (%p767) target = $region96
        $region95: #{forward_pallas.2} parent=67 // pred_region
          %770 = dma.done %s763, 1024
        $region96: #{forward_pallas.2} parent=67 // pred_fallthru
          _
        %s771 = sand.u32 %s63, 1
        %s772 = scalar_lea.sflag [#allocation19], %s771
        %s773 = sand.u32 %s265, 1
        %s774 = scalar_lea.vmem [#allocation18], %s773
        // Predicated region
        $region97: #{forward_pallas.2} parent=67 // pred_check
          %p775 = pneg %p278
        $region98: #{forward_pallas.2} parent=67 // pred_check_branch
          %777 = sbr.rel (%p775) target = $region100
        $region99: #{forward_pallas.2} parent=67 // pred_region
          %778 = dma.done %s772, 16
        $region100: #{forward_pallas.2} parent=67 // pred_fallthru
          _
        %s779 = sand.u32 %s63, 1
        %s780 = scalar_lea.sflag [#allocation19], %s779
        %s781 = sand.u32 %s293, 1
        %s782 = smul.addr %s781, 64
        %s783 = scalar_lea.vmem [#allocation20], %s782
        // Predicated region
        $region101: #{forward_pallas.2} parent=67 // pred_check
          %p784 = pneg %p306
        $region102: #{forward_pallas.2} parent=67 // pred_check_branch
          %786 = sbr.rel (%p784) target = $region104
        $region103: #{forward_pallas.2} parent=67 // pred_region
          %787 = dma.done %s780, 1024
        $region104: #{forward_pallas.2} parent=67 // pred_fallthru
          _
        %s788 = sand.u32 %s63, 1
        %s789 = scalar_lea.sflag [#allocation22], %s788
        %s790 = sand.u32 %s321, 1
        %s791 = scalar_lea.vmem [#allocation21], %s790
        // Predicated region
        $region105: #{forward_pallas.2} parent=67 // pred_check
          %p792 = pneg %p334
        $region106: #{forward_pallas.2} parent=67 // pred_check_branch
          %794 = sbr.rel (%p792) target = $region108
        $region107: #{forward_pallas.2} parent=67 // pred_region
          %795 = dma.done %s789, 16
        $region108: #{forward_pallas.2} parent=67 // pred_fallthru
          _
        %s796 = sand.u32 %s63, 1
        %s797 = scalar_lea.sflag [#allocation22], %s796
        %s798 = sand.u32 %s349, 1
        %s799 = smul.addr %s798, 64
        %s800 = scalar_lea.vmem [#allocation23], %s799
        // Predicated region
        $region109: #{forward_pallas.2} parent=67 // pred_check
          %p801 = pneg %p362
        $region110: #{forward_pallas.2} parent=67 // pred_check_branch
          %803 = sbr.rel (%p801) target = $region112
        $region111: #{forward_pallas.2} parent=67 // pred_region
          %804 = dma.done %s797, 1024
        $region112: #{forward_pallas.2} parent=67 // pred_fallthru
          _
        %s805 = sand.u32 %s377, 1
        %s806 = scalar_lea.sflag [#allocation25], %s805
        %s807 = sand.u32 %s377, 1
        %s808 = scalar_lea.vmem [#allocation24], %s807
        // Predicated region
        $region113: #{forward_pallas.2} parent=67 // pred_check
          %p809 = pneg %p390
        $region114: #{forward_pallas.2} parent=67 // pred_check_branch
          %811 = sbr.rel (%p809) target = $region116
        $region115: #{forward_pallas.2} parent=67 // pred_region
          %812 = dma.done %s806, 16
        $region116: #{forward_pallas.2} parent=67 // pred_fallthru
          _
        %s813 = sand.u32 %s73, 1
        %s814 = scalar_lea.sflag [#allocation7], %s813
        %s815 = sand.u32 %s73, 1
        %s816 = smul.addr %s815, 32
        %s817 = scalar_lea.vmem [#allocation6], %s816
        %p818 = pneg %p86
        %p819 = pneg %p83
        %s820 = sand.u32 %s63, 1
        %s821 = scalar_lea.sflag [#allocation10], %s820
        %s822 = sand.u32 %s101, 1
        %s823 = smul.addr %s822, 32
        %s824 = scalar_lea.vmem [#allocation9], %s823
        %p825 = pneg %p114
        %p826 = pneg %p111
        %s827 = sand.u32 %s63, 1
        %s828 = scalar_lea.sflag [#allocation10], %s827
        %s829 = sand.u32 %s127, 1
        %s830 = scalar_lea.vmem [#allocation11], %s829
        %p831 = pneg %p140
        %p832 = pneg %p137
        %s833 = sand.u32 %s63, 1
        %s834 = scalar_lea.sflag [#allocation13], %s833
        %s835 = sand.u32 %s153, 1
        %s836 = smul.addr %s835, 16
        %s837 = scalar_lea.vmem [#allocation12], %s836
        %p838 = pneg %p166
        %p839 = pneg %p163
        %s840 = sand.u32 %s63, 1
        %s841 = scalar_lea.sflag [#allocation13], %s840
        %s842 = sand.u32 %s181, 1
        %s843 = smul.addr %s842, 64
        %s844 = scalar_lea.vmem [#allocation14], %s843
        %p845 = pneg %p194
        %p846 = pneg %p191
        %s847 = sand.u32 %s63, 1
        %s848 = scalar_lea.sflag [#allocation16], %s847
        %s849 = sand.u32 %s209, 1
        %s850 = scalar_lea.vmem [#allocation15], %s849
        %p851 = pneg %p222
        %p852 = pneg %p219
        %s853 = sand.u32 %s63, 1
        %s854 = scalar_lea.sflag [#allocation16], %s853
        %s855 = sand.u32 %s237, 1
        %s856 = smul.addr %s855, 64
        %s857 = scalar_lea.vmem [#allocation17], %s856
        %p858 = pneg %p250
        %p859 = pneg %p247
        %s860 = sand.u32 %s63, 1
        %s861 = scalar_lea.sflag [#allocation19], %s860
        %s862 = sand.u32 %s265, 1
        %s863 = scalar_lea.vmem [#allocation18], %s862
        %p864 = pneg %p278
        %p865 = pneg %p275
        %s866 = sand.u32 %s63, 1
        %s867 = scalar_lea.sflag [#allocation19], %s866
        %s868 = sand.u32 %s293, 1
        %s869 = smul.addr %s868, 64
        %s870 = scalar_lea.vmem [#allocation20], %s869
        %p871 = pneg %p306
        %p872 = pneg %p303
        %s873 = sand.u32 %s63, 1
        %s874 = scalar_lea.sflag [#allocation22], %s873
        %s875 = sand.u32 %s321, 1
        %s876 = scalar_lea.vmem [#allocation21], %s875
        %p877 = pneg %p334
        %p878 = pneg %p331
        %s879 = sand.u32 %s63, 1
        %s880 = scalar_lea.sflag [#allocation22], %s879
        %s881 = sand.u32 %s349, 1
        %s882 = smul.addr %s881, 64
        %s883 = scalar_lea.vmem [#allocation23], %s882
        %p884 = pneg %p362
        %p885 = pneg %p359
        %s886 = sand.u32 %s377, 1
        %s887 = scalar_lea.sflag [#allocation25], %s886
        %s888 = sand.u32 %s377, 1
        %s889 = scalar_lea.vmem [#allocation24], %s888
        %p890 = pneg %p390
        %p891 = pneg %p387
        %p892 = pneg %p416
        %p893 = pneg %p413
        %s894 = sand.u32 %s403, 1
        %s895 = scalar_lea.sflag [#allocation8], %s894
        %s896 = sand.u32 %s403, 1
        %s897 = smul.addr %s896, 2
        %s898 = scalar_lea.vmem [#allocation26], %s897
        %p899 = pneg %p442
        %p900 = pneg %p439
        %s901 = sand.u32 %s429, 1
        %s902 = scalar_lea.sflag [#allocation28], %s901
        %s903 = sand.u32 %s429, 1
        %s904 = smul.addr %s903, 2
        %s905 = scalar_lea.vmem [#allocation27], %s904
        %s906 = sld [smem:[#allocation3 + %s63]]
        %s907 = sld [smem:[#allocation4 + %s63]]
        %s908 = sld [smem:[#allocation5 + %s63]]
        %s909 = sld [smem:[#allocation5 + %s63]]
        %s910 = sld [smem:[#allocation5 + %s63]]
        %s911 = sld [smem:[#allocation5 + %s63]]
        %s912 = sld [smem:[#allocation5 + %s63]]
        %s913 = sld [smem:[#allocation5 + %s63]]
        %s914 = sld [smem:[#allocation5 + %s63]]
        %s915 = sld [smem:[#allocation5 + %s63]]
        %v916 = vld [vmem:[%s714] sm:$0xff]
        %v917 = vld [vmem:[%s714 + $0x8] sm:$0xff]
        %v918 = vld [vmem:[%s714 + $0x10] sm:$0xff]
        %v919 = vld [vmem:[%s714 + $0x18] sm:$0xff]
        %v920 = vld [vmem:[%s723] sm:$0xff]
        %v921 = vld [vmem:[%s723 + $0x8] sm:$0xff]
        %v922 = vld [vmem:[%s723 + $0x10] sm:$0xff]
        %v923 = vld [vmem:[%s723 + $0x18] sm:$0xff]
        %v924 = vld [vmem:[%s731] sm:$0x1]
        %v925 = vld [vmem:[%s740] sm:$0xff]
        %v926 = vld [vmem:[%s740 + $0x8] sm:$0xff]
        %928 = vset.pattern.permute.xlu0 0
        %929 = vperm.xlu0 %928, %v925
        %v930 = vpop.permute.xlu0 %929
        %933 = vset.pattern.permute.xlu0 0
        %934 = vperm.xlu0 %933, %v926
        %v935 = vpop.permute.xlu0 %934
        %v937 = vmul.f32 %v916, %v930
        %v938 = vmul.f32 %v917, %v935
        %v939 = vmul.f32 %v918, %v930
        %v940 = vmul.f32 %v919, %v935
        %vm941 = vcmask 523264
        %v942 = vsel %vm941, %v937, 0.0
        %v943 = vsel %vm941, %v938, 0.0
        %v944 = vadd.f32 %v942, %v943
        %v945 = vrot.slane %v944, 4
        %v946 = vadd.f32 %v944, %v945
        %v947 = vrot.slane %v946, 2
        %v948 = vadd.f32 %v946, %v947
        %v949 = vrot.slane %v948, 1
        %v950 = vadd.f32 %v948, %v949
        %v951 = vsel %vm941, %v939, 0.0
        %v952 = vsel %vm941, %v940, 0.0
        %v953 = vadd.f32 %v951, %v952
        %v954 = vrot.slane %v953, 4
        %v955 = vadd.f32 %v953, %v954
        %v956 = vrot.slane %v955, 2
        %v957 = vadd.f32 %v955, %v956
        %v958 = vrot.slane %v957, 1
        %v959 = vadd.f32 %v957, %v958
        %vm962 = vcmask 1041409
        %v963 = vsel %vm962, %v959, %v950
        %vm965 = vcmask 517120
        %966 = vst.msk [vmem:[%s905] sm:$0x3] %vm965, %v963
        %v967 = vld [vmem:[%s749] sm:$0xff]
        %v968 = vld [vmem:[%s749 + $0x8] sm:$0xff]
        %v969 = vld [vmem:[%s749 + $0x10] sm:$0xff]
        %v970 = vld [vmem:[%s749 + $0x18] sm:$0xff]
        %v971 = vld [vmem:[%s749 + $0x20] sm:$0xff]
        %v972 = vld [vmem:[%s749 + $0x28] sm:$0xff]
        %v973 = vld [vmem:[%s749 + $0x30] sm:$0xff]
        %v974 = vld [vmem:[%s749 + $0x38] sm:$0xff]
        %v975 = vld [vmem:[%s757] sm:$0x1]
        %v977 = vlaneseq
        %v978 = vshrl.u32 %v977, 7
        %v979 = vsub.s32 0, %v978
        %v980 = vrot.slane %v975, %v979
        %v983 = vsel %vm941, %v916, 0
        %v986 = vsel %vm941, %v917, 0
        %v989 = vsel %vm941, %v918, 0
        %v992 = vsel %vm941, %v919, 0
        %994 = vmatprep.subr.mxu0 0.0
        %995 = vmatpush1.msra.mxu0 %v967
        %996 = vmatprep.subr.mxu0 0.0
        %997 = vmatpush1.msra.mxu0 %v968
        %998 = vmatprep.subr.mxu0 0.0
        %999 = vmatpush1.msra.mxu0 %v969
        %1000 = vmatprep.subr.mxu0 0.0
        %1001 = vmatpush1.msra.mxu0 %v970
        %1002 = vmatprep.subr.mxu0 0.0
        %1003 = vmatpush1.msra.mxu0 %v971
        %1004 = vmatprep.subr.mxu0 0.0
        %1005 = vmatpush1.msra.mxu0 %v972
        %1006 = vmatprep.subr.mxu0 0.0
        %1007 = vmatpush1.msra.mxu0 %v973
        %1008 = vmatprep.subr.mxu0 0.0
        %1009 = vmatpush1.msra.mxu0 %v974
        %1010 = vmatprep.subr.mxu0 0.0
        %1011 = vmatpush1.msra.mxu0 0.0
        %1012 = vmatprep.subr.mxu0 0.0
        %1013 = vmatpush1.msra.mxu0 0.0
        %1014 = vmatprep.subr.mxu0 0.0
        %1015 = vmatpush1.msra.mxu0 0.0
        %1016 = vmatprep.subr.mxu0 0.0
        %1017 = vmatpush1.msra.mxu0 0.0
        %1018 = vmatprep.subr.mxu0 0.0
        %1019 = vmatpush1.msra.mxu0 0.0
        %1020 = vmatprep.subr.mxu0 0.0
        %1021 = vmatpush1.msra.mxu0 0.0
        %1022 = vmatprep.subr.mxu0 0.0
        %1023 = vmatpush1.msra.mxu0 0.0
        %1024 = vmatprep.subr.mxu0 0.0
        %1025 = vmatpush1.msra.mxu0 0.0
        %1026 = vmatprep.subr.mxu0 0.0
        %1027 = vmatpush1.msra.mxu0 0.0
        %1028 = vmatprep.subr.mxu0 0.0
        %1029 = vmatpush1.msra.mxu0 0.0
        %1030 = vmatprep.subr.mxu0 0.0
        %1031 = vmatpush1.msra.mxu0 0.0
        %1032 = vmatprep.subr.mxu0 0.0
        %1033 = vmatpush1.msra.mxu0 0.0
        %1034 = vmatprep.subr.mxu0 0.0
        %1035 = vmatpush1.msra.mxu0 0.0
        %1036 = vmatprep.subr.mxu0 0.0
        %1037 = vmatpush1.msra.mxu0 0.0
        %1038 = vmatprep.subr.mxu0 0.0
        %1039 = vmatpush1.msra.mxu0 0.0
        %1040 = vmatprep.subr.mxu0 0.0
        %1041 = vmatpush1.msra.mxu0 0.0
        %1042 = vmatprep.subr.mxu0 0.0
        %1043 = vmatpush1.msra.mxu0 0.0
        %1044 = vmatprep.subr.mxu0 0.0
        %1045 = vmatpush1.msra.mxu0 0.0
        %1046 = vmatprep.subr.mxu0 0.0
        %1047 = vmatpush1.msra.mxu0 0.0
        %1048 = vmatprep.subr.mxu0 0.0
        %1049 = vmatpush1.msra.mxu0 0.0
        %1050 = vmatprep.subr.mxu0 0.0
        %1051 = vmatpush1.msra.mxu0 0.0
        %1052 = vmatprep.subr.mxu0 0.0
        %1053 = vmatpush1.msra.mxu0 0.0
        %1054 = vmatprep.subr.mxu0 0.0
        %1055 = vmatpush1.msra.mxu0 0.0
        %1056 = vmatprep.subr.mxu0 0.0
        %1057 = vmatpush1.msra.mxu0 0.0
        %1058 = vmatprep.mubr.f32.mxu0 0.0
        %1059 = vmatmul.mubr.f32.gmra.mrb[0].mxu0 %v983
        %v1060 = vpop.f32.mrb[0].mxu0
        %v1061 = vadd.f32 %v980, %v1060
        %v1062 = vpop.f32.mrb[0].mxu0
        %1063 = vmatprep.mubr.f32.mxu0 0.0
        %1064 = vmatmul.mubr.f32.gmra.mrb[0].mxu0 %v986
        %v1065 = vpop.f32.mrb[0].mxu0
        %v1066 = vadd.f32 %v980, %v1065
        %v1067 = vpop.f32.mrb[0].mxu0
        %1068 = vmatprep.mubr.f32.mxu0 0.0
        %1069 = vmatmul.mubr.f32.gmra.mrb[0].mxu0 %v989
        %v1070 = vpop.f32.mrb[0].mxu0
        %v1071 = vadd.f32 %v980, %v1070
        %v1072 = vpop.f32.mrb[0].mxu0
        %1073 = vmatprep.mubr.f32.mxu0 0.0
        %1074 = vmatmul.mubr.f32.gmra.mrb[0].mxu0 %v992
        %v1075 = vpop.f32.mrb[0].mxu0
        %v1076 = vadd.f32 %v980, %v1075
        %v1077 = vpop.f32.mrb[0].mxu0
        %1078 = vdwg.mxu0
        %v1079 = vld [vmem:[%s766] sm:$0xff]
        %v1080 = vld [vmem:[%s766 + $0x8] sm:$0xff]
        %v1081 = vld [vmem:[%s766 + $0x10] sm:$0xff]
        %v1082 = vld [vmem:[%s766 + $0x18] sm:$0xff]
        %v1083 = vld [vmem:[%s766 + $0x20] sm:$0xff]
        %v1084 = vld [vmem:[%s766 + $0x28] sm:$0xff]
        %v1085 = vld [vmem:[%s766 + $0x30] sm:$0xff]
        %v1086 = vld [vmem:[%s766 + $0x38] sm:$0xff]
        %v1087 = vld [vmem:[%s774] sm:$0x1]
        %v1089 = vlaneseq
        %v1090 = vshrl.u32 %v1089, 7
        %v1091 = vsub.s32 0, %v1090
        %v1092 = vrot.slane %v1087, %v1091
        %v1095 = vsel %vm941, %v920, 0
        %v1098 = vsel %vm941, %v921, 0
        %v1101 = vsel %vm941, %v922, 0
        %v1104 = vsel %vm941, %v923, 0
        %1106 = vmatprep.subr.mxu0 0.0
        %1107 = vmatpush1.msra.mxu0 %v1079
        %1108 = vmatprep.subr.mxu0 0.0
        %1109 = vmatpush1.msra.mxu0 %v1080
        %1110 = vmatprep.subr.mxu0 0.0
        %1111 = vmatpush1.msra.mxu0 %v1081
        %1112 = vmatprep.subr.mxu0 0.0
        %1113 = vmatpush1.msra.mxu0 %v1082
        %1114 = vmatprep.subr.mxu0 0.0
        %1115 = vmatpush1.msra.mxu0 %v1083
        %1116 = vmatprep.subr.mxu0 0.0
        %1117 = vmatpush1.msra.mxu0 %v1084
        %1118 = vmatprep.subr.mxu0 0.0
        %1119 = vmatpush1.msra.mxu0 %v1085
        %1120 = vmatprep.subr.mxu0 0.0
        %1121 = vmatpush1.msra.mxu0 %v1086
        %1122 = vmatprep.subr.mxu0 0.0
        %1123 = vmatpush1.msra.mxu0 0.0
        %1124 = vmatprep.subr.mxu0 0.0
        %1125 = vmatpush1.msra.mxu0 0.0
        %1126 = vmatprep.subr.mxu0 0.0
        %1127 = vmatpush1.msra.mxu0 0.0
        %1128 = vmatprep.subr.mxu0 0.0
        %1129 = vmatpush1.msra.mxu0 0.0
        %1130 = vmatprep.subr.mxu0 0.0
        %1131 = vmatpush1.msra.mxu0 0.0
        %1132 = vmatprep.subr.mxu0 0.0
        %1133 = vmatpush1.msra.mxu0 0.0
        %1134 = vmatprep.subr.mxu0 0.0
        %1135 = vmatpush1.msra.mxu0 0.0
        %1136 = vmatprep.subr.mxu0 0.0
        %1137 = vmatpush1.msra.mxu0 0.0
        %1138 = vmatprep.subr.mxu0 0.0
        %1139 = vmatpush1.msra.mxu0 0.0
        %1140 = vmatprep.subr.mxu0 0.0
        %1141 = vmatpush1.msra.mxu0 0.0
        %1142 = vmatprep.subr.mxu0 0.0
        %1143 = vmatpush1.msra.mxu0 0.0
        %1144 = vmatprep.subr.mxu0 0.0
        %1145 = vmatpush1.msra.mxu0 0.0
        %1146 = vmatprep.subr.mxu0 0.0
        %1147 = vmatpush1.msra.mxu0 0.0
        %1148 = vmatprep.subr.mxu0 0.0
        %1149 = vmatpush1.msra.mxu0 0.0
        %1150 = vmatprep.subr.mxu0 0.0
        %1151 = vmatpush1.msra.mxu0 0.0
        %1152 = vmatprep.subr.mxu0 0.0
        %1153 = vmatpush1.msra.mxu0 0.0
        %1154 = vmatprep.subr.mxu0 0.0
        %1155 = vmatpush1.msra.mxu0 0.0
        %1156 = vmatprep.subr.mxu0 0.0
        %1157 = vmatpush1.msra.mxu0 0.0
        %1158 = vmatprep.subr.mxu0 0.0
        %1159 = vmatpush1.msra.mxu0 0.0
        %1160 = vmatprep.subr.mxu0 0.0
        %1161 = vmatpush1.msra.mxu0 0.0
        %1162 = vmatprep.subr.mxu0 0.0
        %1163 = vmatpush1.msra.mxu0 0.0
        %1164 = vmatprep.subr.mxu0 0.0
        %1165 = vmatpush1.msra.mxu0 0.0
        %1166 = vmatprep.subr.mxu0 0.0
        %1167 = vmatpush1.msra.mxu0 0.0
        %1168 = vmatprep.subr.mxu0 0.0
        %1169 = vmatpush1.msra.mxu0 0.0
        %1170 = vmatprep.mubr.f32.mxu0 0.0
        %1171 = vmatmul.mubr.f32.gmra.mrb[0].mxu0 %v1095
        %v1172 = vpop.f32.mrb[0].mxu0
        %v1173 = vadd.f32 %v1092, %v1172
        %v1174 = vpop.f32.mrb[0].mxu0
        %1175 = vmatprep.mubr.f32.mxu0 0.0
        %1176 = vmatmul.mubr.f32.gmra.mrb[0].mxu0 %v1098
        %v1177 = vpop.f32.mrb[0].mxu0
        %v1178 = vadd.f32 %v1092, %v1177
        %v1179 = vpop.f32.mrb[0].mxu0
        %1180 = vmatprep.mubr.f32.mxu0 0.0
        %1181 = vmatmul.mubr.f32.gmra.mrb[0].mxu0 %v1101
        %v1182 = vpop.f32.mrb[0].mxu0
        %v1183 = vadd.f32 %v1092, %v1182
        %v1184 = vpop.f32.mrb[0].mxu0
        %1185 = vmatprep.mubr.f32.mxu0 0.0
        %1186 = vmatmul.mubr.f32.gmra.mrb[0].mxu0 %v1104
        %v1187 = vpop.f32.mrb[0].mxu0
        %v1188 = vadd.f32 %v1092, %v1187
        %v1189 = vpop.f32.mrb[0].mxu0
        %1190 = vdwg.mxu0
        %v1191 = vld [vmem:[%s783] sm:$0xff]
        %v1192 = vld [vmem:[%s783 + $0x8] sm:$0xff]
        %v1193 = vld [vmem:[%s783 + $0x10] sm:$0xff]
        %v1194 = vld [vmem:[%s783 + $0x18] sm:$0xff]
        %v1195 = vld [vmem:[%s783 + $0x20] sm:$0xff]
        %v1196 = vld [vmem:[%s783 + $0x28] sm:$0xff]
        %v1197 = vld [vmem:[%s783 + $0x30] sm:$0xff]
        %v1198 = vld [vmem:[%s783 + $0x38] sm:$0xff]
        %v1199 = vld [vmem:[%s791] sm:$0x1]
        %v1201 = vlaneseq
        %v1202 = vshrl.u32 %v1201, 7
        %v1203 = vsub.s32 0, %v1202
        %v1204 = vrot.slane %v1199, %v1203
        %1206 = vmatprep.subr.mxu0 0.0
        %1207 = vmatpush1.msra.mxu0 %v1191
        %1208 = vmatprep.subr.mxu0 0.0
        %1209 = vmatpush1.msra.mxu0 %v1192
        %1210 = vmatprep.subr.mxu0 0.0
        %1211 = vmatpush1.msra.mxu0 %v1193
        %1212 = vmatprep.subr.mxu0 0.0
        %1213 = vmatpush1.msra.mxu0 %v1194
        %1214 = vmatprep.subr.mxu0 0.0
        %1215 = vmatpush1.msra.mxu0 %v1195
        %1216 = vmatprep.subr.mxu0 0.0
        %1217 = vmatpush1.msra.mxu0 %v1196
        %1218 = vmatprep.subr.mxu0 0.0
        %1219 = vmatpush1.msra.mxu0 %v1197
        %1220 = vmatprep.subr.mxu0 0.0
        %1221 = vmatpush1.msra.mxu0 %v1198
        %1222 = vmatprep.subr.mxu0 0.0
        %1223 = vmatpush1.msra.mxu0 0.0
        %1224 = vmatprep.subr.mxu0 0.0
        %1225 = vmatpush1.msra.mxu0 0.0
        %1226 = vmatprep.subr.mxu0 0.0
        %1227 = vmatpush1.msra.mxu0 0.0
        %1228 = vmatprep.subr.mxu0 0.0
        %1229 = vmatpush1.msra.mxu0 0.0
        %1230 = vmatprep.subr.mxu0 0.0
        %1231 = vmatpush1.msra.mxu0 0.0
        %1232 = vmatprep.subr.mxu0 0.0
        %1233 = vmatpush1.msra.mxu0 0.0
        %1234 = vmatprep.subr.mxu0 0.0
        %1235 = vmatpush1.msra.mxu0 0.0
        %1236 = vmatprep.subr.mxu0 0.0
        %1237 = vmatpush1.msra.mxu0 0.0
        %1238 = vmatprep.subr.mxu0 0.0
        %1239 = vmatpush1.msra.mxu0 0.0
        %1240 = vmatprep.subr.mxu0 0.0
        %1241 = vmatpush1.msra.mxu0 0.0
        %1242 = vmatprep.subr.mxu0 0.0
        %1243 = vmatpush1.msra.mxu0 0.0
        %1244 = vmatprep.subr.mxu0 0.0
        %1245 = vmatpush1.msra.mxu0 0.0
        %1246 = vmatprep.subr.mxu0 0.0
        %1247 = vmatpush1.msra.mxu0 0.0
        %1248 = vmatprep.subr.mxu0 0.0
        %1249 = vmatpush1.msra.mxu0 0.0
        %1250 = vmatprep.subr.mxu0 0.0
        %1251 = vmatpush1.msra.mxu0 0.0
        %1252 = vmatprep.subr.mxu0 0.0
        %1253 = vmatpush1.msra.mxu0 0.0
        %1254 = vmatprep.subr.mxu0 0.0
        %1255 = vmatpush1.msra.mxu0 0.0
        %1256 = vmatprep.subr.mxu0 0.0
        %1257 = vmatpush1.msra.mxu0 0.0
        %1258 = vmatprep.subr.mxu0 0.0
        %1259 = vmatpush1.msra.mxu0 0.0
        %1260 = vmatprep.subr.mxu0 0.0
        %1261 = vmatpush1.msra.mxu0 0.0
        %1262 = vmatprep.subr.mxu0 0.0
        %1263 = vmatpush1.msra.mxu0 0.0
        %1264 = vmatprep.subr.mxu0 0.0
        %1265 = vmatpush1.msra.mxu0 0.0
        %1266 = vmatprep.subr.mxu0 0.0
        %1267 = vmatpush1.msra.mxu0 0.0
        %1268 = vmatprep.subr.mxu0 0.0
        %1269 = vmatpush1.msra.mxu0 0.0
        %1270 = vmatprep.mubr.f32.mxu0 0.0
        %1271 = vmatmul.mubr.f32.gmra.mrb[0].mxu0 %v1095
        %v1272 = vpop.f32.mrb[0].mxu0
        %v1273 = vadd.f32 %v1204, %v1272
        %v1274 = vpop.f32.mrb[0].mxu0
        %1275 = vmatprep.mubr.f32.mxu0 0.0
        %1276 = vmatmul.mubr.f32.gmra.mrb[0].mxu0 %v1098
        %v1277 = vpop.f32.mrb[0].mxu0
        %v1278 = vadd.f32 %v1204, %v1277
        %v1279 = vpop.f32.mrb[0].mxu0
        %1280 = vmatprep.mubr.f32.mxu0 0.0
        %1281 = vmatmul.mubr.f32.gmra.mrb[0].mxu0 %v1101
        %v1282 = vpop.f32.mrb[0].mxu0
        %v1283 = vadd.f32 %v1204, %v1282
        %v1284 = vpop.f32.mrb[0].mxu0
        %1285 = vmatprep.mubr.f32.mxu0 0.0
        %1286 = vmatmul.mubr.f32.gmra.mrb[0].mxu0 %v1104
        %v1287 = vpop.f32.mrb[0].mxu0
        %v1288 = vadd.f32 %v1204, %v1287
        %v1289 = vpop.f32.mrb[0].mxu0
        %1290 = vdwg.mxu0
        %vm1291 = vcmask 64512
        %v1293 = vsel %vm1291, %v1061, 0
        %v1296 = vsel %vm1291, %v1066, 0
        %v1299 = vsel %vm1291, %v1173, 0
        %v1302 = vsel %vm1291, %v1178, 0
        %1304 = vmatprep.subr.mxu0 0.0
        %1305 = vmatpush1.xpose.msra.mxu0 %v1299
        %1306 = vmatprep.subr.mxu0 0.0
        %1307 = vmatpush1.xpose.msra.mxu0 %v1302
        %1308 = vmatprep.subr.mxu0 0.0
        %1309 = vmatpush1.xpose.msra.mxu0 0.0
        %1310 = vmatprep.subr.mxu0 0.0
        %1311 = vmatpush1.xpose.msra.mxu0 0.0
        %1312 = vmatprep.subr.mxu0 0.0
        %1313 = vmatpush1.xpose.msra.mxu0 0.0
        %1314 = vmatprep.subr.mxu0 0.0
        %1315 = vmatpush1.xpose.msra.mxu0 0.0
        %1316 = vmatprep.subr.mxu0 0.0
        %1317 = vmatpush1.xpose.msra.mxu0 0.0
        %1318 = vmatprep.subr.mxu0 0.0
        %1319 = vmatpush1.xpose.msra.mxu0 0.0
        %1320 = vmatprep.subr.mxu0 0.0
        %1321 = vmatpush1.xpose.msra.mxu0 0.0
        %1322 = vmatprep.subr.mxu0 0.0
        %1323 = vmatpush1.xpose.msra.mxu0 0.0
        %1324 = vmatprep.subr.mxu0 0.0
        %1325 = vmatpush1.xpose.msra.mxu0 0.0
        %1326 = vmatprep.subr.mxu0 0.0
        %1327 = vmatpush1.xpose.msra.mxu0 0.0
        %1328 = vmatprep.subr.mxu0 0.0
        %1329 = vmatpush1.xpose.msra.mxu0 0.0
        %1330 = vmatprep.subr.mxu0 0.0
        %1331 = vmatpush1.xpose.msra.mxu0 0.0
        %1332 = vmatprep.subr.mxu0 0.0
        %1333 = vmatpush1.xpose.msra.mxu0 0.0
        %1334 = vmatprep.subr.mxu0 0.0
        %1335 = vmatpush1.xpose.msra.mxu0 0.0
        %1336 = vmatprep.subr.mxu0 0.0
        %1337 = vmatpush1.xpose.msra.mxu0 0.0
        %1338 = vmatprep.subr.mxu0 0.0
        %1339 = vmatpush1.xpose.msra.mxu0 0.0
        %1340 = vmatprep.subr.mxu0 0.0
        %1341 = vmatpush1.xpose.msra.mxu0 0.0
        %1342 = vmatprep.subr.mxu0 0.0
        %1343 = vmatpush1.xpose.msra.mxu0 0.0
        %1344 = vmatprep.subr.mxu0 0.0
        %1345 = vmatpush1.xpose.msra.mxu0 0.0
        %1346 = vmatprep.subr.mxu0 0.0
        %1347 = vmatpush1.xpose.msra.mxu0 0.0
        %1348 = vmatprep.subr.mxu0 0.0
        %1349 = vmatpush1.xpose.msra.mxu0 0.0
        %1350 = vmatprep.subr.mxu0 0.0
        %1351 = vmatpush1.xpose.msra.mxu0 0.0
        %1352 = vmatprep.subr.mxu0 0.0
        %1353 = vmatpush1.xpose.msra.mxu0 0.0
        %1354 = vmatprep.subr.mxu0 0.0
        %1355 = vmatpush1.xpose.msra.mxu0 0.0
        %1356 = vmatprep.subr.mxu0 0.0
        %1357 = vmatpush1.xpose.msra.mxu0 0.0
        %1358 = vmatprep.subr.mxu0 0.0
        %1359 = vmatpush1.xpose.msra.mxu0 0.0
        %1360 = vmatprep.subr.mxu0 0.0
        %1361 = vmatpush1.xpose.msra.mxu0 0.0
        %1362 = vmatprep.subr.mxu0 0.0
        %1363 = vmatpush1.xpose.msra.mxu0 0.0
        %1364 = vmatprep.subr.mxu0 0.0
        %1365 = vmatpush1.xpose.msra.mxu0 0.0
        %1366 = vmatprep.subr.mxu0 0.0
        %1367 = vmatpush1.xpose.msra.mxu0 0.0
        %1368 = vmatprep.mubr.f32.mxu0 0.0
        %1369 = vmatmul.mubr.f32.gmra.mrb[0].mxu0 %v1293
        %v1370 = vpop.f32.mrb[0].mxu0
        %v1371 = vadd.f32 0.0, %v1370
        %v1372 = vpop.f32.mrb[0].mxu0
        %1373 = vmatprep.mubr.f32.mxu0 0.0
        %1374 = vmatmul.mubr.f32.gmra.mrb[0].mxu0 %v1296
        %v1375 = vpop.f32.mrb[0].mxu0
        %v1376 = vadd.f32 0.0, %v1375
        %v1377 = vpop.f32.mrb[0].mxu0
        %1378 = vdwg.mxu0
        %v1380 = vsel %vm1291, %v1071, 0
        %v1383 = vsel %vm1291, %v1076, 0
        %v1386 = vsel %vm1291, %v1183, 0
        %v1389 = vsel %vm1291, %v1188, 0
        %1391 = vmatprep.subr.mxu0 0.0
        %1392 = vmatpush1.xpose.msra.mxu0 %v1386
        %1393 = vmatprep.subr.mxu0 0.0
        %1394 = vmatpush1.xpose.msra.mxu0 %v1389
        %1395 = vmatprep.subr.mxu0 0.0
        %1396 = vmatpush1.xpose.msra.mxu0 0.0
        %1397 = vmatprep.subr.mxu0 0.0
        %1398 = vmatpush1.xpose.msra.mxu0 0.0
        %1399 = vmatprep.subr.mxu0 0.0
        %1400 = vmatpush1.xpose.msra.mxu0 0.0
        %1401 = vmatprep.subr.mxu0 0.0
        %1402 = vmatpush1.xpose.msra.mxu0 0.0
        %1403 = vmatprep.subr.mxu0 0.0
        %1404 = vmatpush1.xpose.msra.mxu0 0.0
        %1405 = vmatprep.subr.mxu0 0.0
        %1406 = vmatpush1.xpose.msra.mxu0 0.0
        %1407 = vmatprep.subr.mxu0 0.0
        %1408 = vmatpush1.xpose.msra.mxu0 0.0
        %1409 = vmatprep.subr.mxu0 0.0
        %1410 = vmatpush1.xpose.msra.mxu0 0.0
        %1411 = vmatprep.subr.mxu0 0.0
        %1412 = vmatpush1.xpose.msra.mxu0 0.0
        %1413 = vmatprep.subr.mxu0 0.0
        %1414 = vmatpush1.xpose.msra.mxu0 0.0
        %1415 = vmatprep.subr.mxu0 0.0
        %1416 = vmatpush1.xpose.msra.mxu0 0.0
        %1417 = vmatprep.subr.mxu0 0.0
        %1418 = vmatpush1.xpose.msra.mxu0 0.0
        %1419 = vmatprep.subr.mxu0 0.0
        %1420 = vmatpush1.xpose.msra.mxu0 0.0
        %1421 = vmatprep.subr.mxu0 0.0
        %1422 = vmatpush1.xpose.msra.mxu0 0.0
        %1423 = vmatprep.subr.mxu0 0.0
        %1424 = vmatpush1.xpose.msra.mxu0 0.0
        %1425 = vmatprep.subr.mxu0 0.0
        %1426 = vmatpush1.xpose.msra.mxu0 0.0
        %1427 = vmatprep.subr.mxu0 0.0
        %1428 = vmatpush1.xpose.msra.mxu0 0.0
        %1429 = vmatprep.subr.mxu0 0.0
        %1430 = vmatpush1.xpose.msra.mxu0 0.0
        %1431 = vmatprep.subr.mxu0 0.0
        %1432 = vmatpush1.xpose.msra.mxu0 0.0
        %1433 = vmatprep.subr.mxu0 0.0
        %1434 = vmatpush1.xpose.msra.mxu0 0.0
        %1435 = vmatprep.subr.mxu0 0.0
        %1436 = vmatpush1.xpose.msra.mxu0 0.0
        %1437 = vmatprep.subr.mxu0 0.0
        %1438 = vmatpush1.xpose.msra.mxu0 0.0
        %1439 = vmatprep.subr.mxu0 0.0
        %1440 = vmatpush1.xpose.msra.mxu0 0.0
        %1441 = vmatprep.subr.mxu0 0.0
        %1442 = vmatpush1.xpose.msra.mxu0 0.0
        %1443 = vmatprep.subr.mxu0 0.0
        %1444 = vmatpush1.xpose.msra.mxu0 0.0
        %1445 = vmatprep.subr.mxu0 0.0
        %1446 = vmatpush1.xpose.msra.mxu0 0.0
        %1447 = vmatprep.subr.mxu0 0.0
        %1448 = vmatpush1.xpose.msra.mxu0 0.0
        %1449 = vmatprep.subr.mxu0 0.0
        %1450 = vmatpush1.xpose.msra.mxu0 0.0
        %1451 = vmatprep.subr.mxu0 0.0
        %1452 = vmatpush1.xpose.msra.mxu0 0.0
        %1453 = vmatprep.subr.mxu0 0.0
        %1454 = vmatpush1.xpose.msra.mxu0 0.0
        %1455 = vmatprep.mubr.f32.mxu0 0.0
        %1456 = vmatmul.mubr.f32.gmra.mrb[0].mxu0 %v1380
        %v1457 = vpop.f32.mrb[0].mxu0
        %v1458 = vadd.f32 0.0, %v1457
        %v1459 = vpop.f32.mrb[0].mxu0
        %1460 = vmatprep.mubr.f32.mxu0 0.0
        %1461 = vmatmul.mubr.f32.gmra.mrb[0].mxu0 %v1383
        %v1462 = vpop.f32.mrb[0].mxu0
        %v1463 = vadd.f32 0.0, %v1462
        %v1464 = vpop.f32.mrb[0].mxu0
        %1465 = vdwg.mxu0
        %v1466 = vmul.f32 %v1371, 0.35355338
        %v1467 = vmul.f32 %v1376, 0.35355338
        %v1468 = vmul.f32 %v1458, 0.35355338
        %v1469 = vmul.f32 %v1463, 0.35355338
        %v1471 = vlaneseq
        %v1472 = vshrl.u32 %v1471, 7
        %v1473 = vsub.s32 0, %v1472
        %v1474 = vrot.slane %v924, %v1473
        %v1476 = vadd.f32 %v1466, %v1474
        %v1477 = vadd.f32 %v1467, %v1474
        %v1478 = vadd.f32 %v1468, %v1474
        %v1479 = vadd.f32 %v1469, %v1474
        %vm1480 = vcmask 130048
        %v1481 = vsel %vm1480, %v1476, -inf
        %1482 = vmax.xlane.f32.xlu0 %v1481
        %v1483 = vpop.xlane.xlu0 %1482
        %v1484 = vsel %vm1480, %v1477, -inf
        %1485 = vmax.xlane.f32.xlu0 %v1484
        %v1486 = vpop.xlane.xlu0 %1485
        %v1487 = vsel %vm1480, %v1478, -inf
        %1488 = vmax.xlane.f32.xlu0 %v1487
        %v1489 = vpop.xlane.xlu0 %1488
        %v1490 = vsel %vm1480, %v1479, -inf
        %1491 = vmax.xlane.f32.xlu0 %v1490
        %v1492 = vpop.xlane.xlu0 %1491
        %v1493 = vsub.f32 %v1476, %v1483
        %v1494 = vsub.f32 %v1477, %v1486
        %v1495 = vsub.f32 %v1478, %v1489
        %v1496 = vsub.f32 %v1479, %v1492
        %v1497 = vmul.f32 %v1493, 1.442695
        %v1498 = vpow.pop %v1497
        %v1499 = vmul.f32 %v1494, 1.442695
        %v1500 = vpow.pop %v1499
        %v1501 = vmul.f32 %v1495, 1.442695
        %v1502 = vpow.pop %v1501
        %v1503 = vmul.f32 %v1496, 1.442695
        %v1504 = vpow.pop %v1503
        %v1505 = vsel %vm1480, %v1498, 0.0
        %1506 = vadd.xlane.f32.xlu0 %v1505
        %v1507 = vpop.xlane.xlu0 %1506
        %v1508 = vsel %vm1480, %v1500, 0.0
        %1509 = vadd.xlane.f32.xlu0 %v1508
        %v1510 = vpop.xlane.xlu0 %1509
        %v1511 = vsel %vm1480, %v1502, 0.0
        %1512 = vadd.xlane.f32.xlu0 %v1511
        %v1513 = vpop.xlane.xlu0 %1512
        %v1514 = vsel %vm1480, %v1504, 0.0
        %1515 = vadd.xlane.f32.xlu0 %v1514
        %v1516 = vpop.xlane.xlu0 %1515
        %v1517 = vrcp.pop %v1507
        %v1518 = vrcp.pop %v1510
        %v1519 = vrcp.pop %v1513
        %v1520 = vrcp.pop %v1516
        %v1521 = vmul.f32 %v1498, %v1517
        %v1522 = vmul.f32 %v1500, %v1518
        %v1523 = vmul.f32 %v1502, %v1519
        %v1524 = vmul.f32 %v1504, %v1520
        %v1525 = vmul.f32 %v1521, %v930
        %v1526 = vmul.f32 %v1522, %v935
        %v1527 = vmul.f32 %v1523, %v930
        %v1528 = vmul.f32 %v1524, %v935
        %v1529 = vsel %vm1480, %v1525, 0.0
        %v1530 = vsel %vm1480, %v1526, 0.0
        %v1531 = vadd.f32 %v1529, %v1530
        %v1532 = vrot.slane %v1531, 4
        %v1533 = vadd.f32 %v1531, %v1532
        %v1534 = vrot.slane %v1533, 2
        %v1535 = vadd.f32 %v1533, %v1534
        %v1536 = vrot.slane %v1535, 1
        %v1537 = vadd.f32 %v1535, %v1536
        %v1538 = vsel %vm1480, %v1527, 0.0
        %v1539 = vsel %vm1480, %v1528, 0.0
        %v1540 = vadd.f32 %v1538, %v1539
        %v1541 = vrot.slane %v1540, 4
        %v1542 = vadd.f32 %v1540, %v1541
        %v1543 = vrot.slane %v1542, 2
        %v1544 = vadd.f32 %v1542, %v1543
        %v1545 = vrot.slane %v1544, 1
        %v1546 = vadd.f32 %v1544, %v1545
        %v1548 = vsel %vm1480, %v1537, 0
        %1550 = vmatprep.subr.mxu0 0.0
        %1551 = vmatpush1.msra.mxu0 %v1273
        %1552 = vmatprep.subr.mxu0 0.0
        %1553 = vmatpush1.msra.mxu0 %v1278
        %1554 = vmatprep.subr.mxu0 0.0
        %1555 = vmatpush1.msra.mxu0 0.0
        %1556 = vmatprep.subr.mxu0 0.0
        %1557 = vmatpush1.msra.mxu0 0.0
        %1558 = vmatprep.subr.mxu0 0.0
        %1559 = vmatpush1.msra.mxu0 0.0
        %1560 = vmatprep.subr.mxu0 0.0
        %1561 = vmatpush1.msra.mxu0 0.0
        %1562 = vmatprep.subr.mxu0 0.0
        %1563 = vmatpush1.msra.mxu0 0.0
        %1564 = vmatprep.subr.mxu0 0.0
        %1565 = vmatpush1.msra.mxu0 0.0
        %1566 = vmatprep.subr.mxu0 0.0
        %1567 = vmatpush1.msra.mxu0 0.0
        %1568 = vmatprep.subr.mxu0 0.0
        %1569 = vmatpush1.msra.mxu0 0.0
        %1570 = vmatprep.subr.mxu0 0.0
        %1571 = vmatpush1.msra.mxu0 0.0
        %1572 = vmatprep.subr.mxu0 0.0
        %1573 = vmatpush1.msra.mxu0 0.0
        %1574 = vmatprep.subr.mxu0 0.0
        %1575 = vmatpush1.msra.mxu0 0.0
        %1576 = vmatprep.subr.mxu0 0.0
        %1577 = vmatpush1.msra.mxu0 0.0
        %1578 = vmatprep.subr.mxu0 0.0
        %1579 = vmatpush1.msra.mxu0 0.0
        %1580 = vmatprep.subr.mxu0 0.0
        %1581 = vmatpush1.msra.mxu0 0.0
        %1582 = vmatprep.subr.mxu0 0.0
        %1583 = vmatpush1.msra.mxu0 0.0
        %1584 = vmatprep.subr.mxu0 0.0
        %1585 = vmatpush1.msra.mxu0 0.0
        %1586 = vmatprep.subr.mxu0 0.0
        %1587 = vmatpush1.msra.mxu0 0.0
        %1588 = vmatprep.subr.mxu0 0.0
        %1589 = vmatpush1.msra.mxu0 0.0
        %1590 = vmatprep.subr.mxu0 0.0
        %1591 = vmatpush1.msra.mxu0 0.0
        %1592 = vmatprep.subr.mxu0 0.0
        %1593 = vmatpush1.msra.mxu0 0.0
        %1594 = vmatprep.subr.mxu0 0.0
        %1595 = vmatpush1.msra.mxu0 0.0
        %1596 = vmatprep.subr.mxu0 0.0
        %1597 = vmatpush1.msra.mxu0 0.0
        %1598 = vmatprep.subr.mxu0 0.0
        %1599 = vmatpush1.msra.mxu0 0.0
        %1600 = vmatprep.subr.mxu0 0.0
        %1601 = vmatpush1.msra.mxu0 0.0
        %1602 = vmatprep.subr.mxu0 0.0
        %1603 = vmatpush1.msra.mxu0 0.0
        %1604 = vmatprep.subr.mxu0 0.0
        %1605 = vmatpush1.msra.mxu0 0.0
        %1606 = vmatprep.subr.mxu0 0.0
        %1607 = vmatpush1.msra.mxu0 0.0
        %1608 = vmatprep.subr.mxu0 0.0
        %1609 = vmatpush1.msra.mxu0 0.0
        %1610 = vmatprep.subr.mxu0 0.0
        %1611 = vmatpush1.msra.mxu0 0.0
        %1612 = vmatprep.subr.mxu0 0.0
        %1613 = vmatpush1.msra.mxu0 0.0
        %1614 = vmatprep.mubr.f32.mxu0 0.0
        %1615 = vmatmul.mubr.f32.gmra.mrb[0].mxu0 %v1548
        %v1616 = vpop.f32.mrb[0].mxu0
        %v1617 = vadd.f32 0.0, %v1616
        %v1618 = vpop.f32.mrb[0].mxu0
        %1619 = vdwg.mxu0
        %v1621 = vsel %vm1480, %v1546, 0
        %1623 = vmatprep.subr.mxu0 0.0
        %1624 = vmatpush1.msra.mxu0 %v1283
        %1625 = vmatprep.subr.mxu0 0.0
        %1626 = vmatpush1.msra.mxu0 %v1288
        %1627 = vmatprep.subr.mxu0 0.0
        %1628 = vmatpush1.msra.mxu0 0.0
        %1629 = vmatprep.subr.mxu0 0.0
        %1630 = vmatpush1.msra.mxu0 0.0
        %1631 = vmatprep.subr.mxu0 0.0
        %1632 = vmatpush1.msra.mxu0 0.0
        %1633 = vmatprep.subr.mxu0 0.0
        %1634 = vmatpush1.msra.mxu0 0.0
        %1635 = vmatprep.subr.mxu0 0.0
        %1636 = vmatpush1.msra.mxu0 0.0
        %1637 = vmatprep.subr.mxu0 0.0
        %1638 = vmatpush1.msra.mxu0 0.0
        %1639 = vmatprep.subr.mxu0 0.0
        %1640 = vmatpush1.msra.mxu0 0.0
        %1641 = vmatprep.subr.mxu0 0.0
        %1642 = vmatpush1.msra.mxu0 0.0
        %1643 = vmatprep.subr.mxu0 0.0
        %1644 = vmatpush1.msra.mxu0 0.0
        %1645 = vmatprep.subr.mxu0 0.0
        %1646 = vmatpush1.msra.mxu0 0.0
        %1647 = vmatprep.subr.mxu0 0.0
        %1648 = vmatpush1.msra.mxu0 0.0
        %1649 = vmatprep.subr.mxu0 0.0
        %1650 = vmatpush1.msra.mxu0 0.0
        %1651 = vmatprep.subr.mxu0 0.0
        %1652 = vmatpush1.msra.mxu0 0.0
        %1653 = vmatprep.subr.mxu0 0.0
        %1654 = vmatpush1.msra.mxu0 0.0
        %1655 = vmatprep.subr.mxu0 0.0
        %1656 = vmatpush1.msra.mxu0 0.0
        %1657 = vmatprep.subr.mxu0 0.0
        %1658 = vmatpush1.msra.mxu0 0.0
        %1659 = vmatprep.subr.mxu0 0.0
        %1660 = vmatpush1.msra.mxu0 0.0
        %1661 = vmatprep.subr.mxu0 0.0
        %1662 = vmatpush1.msra.mxu0 0.0
        %1663 = vmatprep.subr.mxu0 0.0
        %1664 = vmatpush1.msra.mxu0 0.0
        %1665 = vmatprep.subr.mxu0 0.0
        %1666 = vmatpush1.msra.mxu0 0.0
        %1667 = vmatprep.subr.mxu0 0.0
        %1668 = vmatpush1.msra.mxu0 0.0
        %1669 = vmatprep.subr.mxu0 0.0
        %1670 = vmatpush1.msra.mxu0 0.0
        %1671 = vmatprep.subr.mxu0 0.0
        %1672 = vmatpush1.msra.mxu0 0.0
        %1673 = vmatprep.subr.mxu0 0.0
        %1674 = vmatpush1.msra.mxu0 0.0
        %1675 = vmatprep.subr.mxu0 0.0
        %1676 = vmatpush1.msra.mxu0 0.0
        %1677 = vmatprep.subr.mxu0 0.0
        %1678 = vmatpush1.msra.mxu0 0.0
        %1679 = vmatprep.subr.mxu0 0.0
        %1680 = vmatpush1.msra.mxu0 0.0
        %1681 = vmatprep.subr.mxu0 0.0
        %1682 = vmatpush1.msra.mxu0 0.0
        %1683 = vmatprep.subr.mxu0 0.0
        %1684 = vmatpush1.msra.mxu0 0.0
        %1685 = vmatprep.subr.mxu0 0.0
        %1686 = vmatpush1.msra.mxu0 0.0
        %1687 = vmatprep.mubr.f32.mxu0 0.0
        %1688 = vmatmul.mubr.f32.gmra.mrb[0].mxu0 %v1621
        %v1689 = vpop.f32.mrb[0].mxu0
        %v1690 = vadd.f32 0.0, %v1689
        %v1691 = vpop.f32.mrb[0].mxu0
        %1692 = vdwg.mxu0
        %1693 = vrot.lane.b32.xlu0 %v1061, 120
        %v1694 = vpop.permute.xlu0 %1693
        %1695 = vrot.lane.b32.xlu0 %v1066, 120
        %v1696 = vpop.permute.xlu0 %1695
        %1697 = vrot.lane.b32.xlu0 %v1173, 120
        %v1698 = vpop.permute.xlu0 %1697
        %1699 = vrot.lane.b32.xlu0 %v1178, 120
        %v1700 = vpop.permute.xlu0 %1699
        %v1701 = vsel %vm1291, %v1694, 0
        %v1703 = vsel %vm1291, %v1696, 0
        %v1705 = vsel %vm1291, %v1698, 0
        %v1707 = vsel %vm1291, %v1700, 0
        %1709 = vmatprep.subr.mxu0 0.0
        %1710 = vmatpush1.xpose.msra.mxu0 %v1705
        %1711 = vmatprep.subr.mxu0 0.0
        %1712 = vmatpush1.xpose.msra.mxu0 %v1707
        %1713 = vmatprep.subr.mxu0 0.0
        %1714 = vmatpush1.xpose.msra.mxu0 0.0
        %1715 = vmatprep.subr.mxu0 0.0
        %1716 = vmatpush1.xpose.msra.mxu0 0.0
        %1717 = vmatprep.subr.mxu0 0.0
        %1718 = vmatpush1.xpose.msra.mxu0 0.0
        %1719 = vmatprep.subr.mxu0 0.0
        %1720 = vmatpush1.xpose.msra.mxu0 0.0
        %1721 = vmatprep.subr.mxu0 0.0
        %1722 = vmatpush1.xpose.msra.mxu0 0.0
        %1723 = vmatprep.subr.mxu0 0.0
        %1724 = vmatpush1.xpose.msra.mxu0 0.0
        %1725 = vmatprep.subr.mxu0 0.0
        %1726 = vmatpush1.xpose.msra.mxu0 0.0
        %1727 = vmatprep.subr.mxu0 0.0
        %1728 = vmatpush1.xpose.msra.mxu0 0.0
        %1729 = vmatprep.subr.mxu0 0.0
        %1730 = vmatpush1.xpose.msra.mxu0 0.0
        %1731 = vmatprep.subr.mxu0 0.0
        %1732 = vmatpush1.xpose.msra.mxu0 0.0
        %1733 = vmatprep.subr.mxu0 0.0
        %1734 = vmatpush1.xpose.msra.mxu0 0.0
        %1735 = vmatprep.subr.mxu0 0.0
        %1736 = vmatpush1.xpose.msra.mxu0 0.0
        %1737 = vmatprep.subr.mxu0 0.0
        %1738 = vmatpush1.xpose.msra.mxu0 0.0
        %1739 = vmatprep.subr.mxu0 0.0
        %1740 = vmatpush1.xpose.msra.mxu0 0.0
        %1741 = vmatprep.subr.mxu0 0.0
        %1742 = vmatpush1.xpose.msra.mxu0 0.0
        %1743 = vmatprep.subr.mxu0 0.0
        %1744 = vmatpush1.xpose.msra.mxu0 0.0
        %1745 = vmatprep.subr.mxu0 0.0
        %1746 = vmatpush1.xpose.msra.mxu0 0.0
        %1747 = vmatprep.subr.mxu0 0.0
        %1748 = vmatpush1.xpose.msra.mxu0 0.0
        %1749 = vmatprep.subr.mxu0 0.0
        %1750 = vmatpush1.xpose.msra.mxu0 0.0
        %1751 = vmatprep.subr.mxu0 0.0
        %1752 = vmatpush1.xpose.msra.mxu0 0.0
        %1753 = vmatprep.subr.mxu0 0.0
        %1754 = vmatpush1.xpose.msra.mxu0 0.0
        %1755 = vmatprep.subr.mxu0 0.0
        %1756 = vmatpush1.xpose.msra.mxu0 0.0
        %1757 = vmatprep.subr.mxu0 0.0
        %1758 = vmatpush1.xpose.msra.mxu0 0.0
        %1759 = vmatprep.subr.mxu0 0.0
        %1760 = vmatpush1.xpose.msra.mxu0 0.0
        %1761 = vmatprep.subr.mxu0 0.0
        %1762 = vmatpush1.xpose.msra.mxu0 0.0
        %1763 = vmatprep.subr.mxu0 0.0
        %1764 = vmatpush1.xpose.msra.mxu0 0.0
        %1765 = vmatprep.subr.mxu0 0.0
        %1766 = vmatpush1.xpose.msra.mxu0 0.0
        %1767 = vmatprep.subr.mxu0 0.0
        %1768 = vmatpush1.xpose.msra.mxu0 0.0
        %1769 = vmatprep.subr.mxu0 0.0
        %1770 = vmatpush1.xpose.msra.mxu0 0.0
        %1771 = vmatprep.subr.mxu0 0.0
        %1772 = vmatpush1.xpose.msra.mxu0 0.0
        %1773 = vmatprep.mubr.f32.mxu0 0.0
        %1774 = vmatmul.mubr.f32.gmra.mrb[0].mxu0 %v1701
        %v1775 = vpop.f32.mrb[0].mxu0
        %v1776 = vadd.f32 0.0, %v1775
        %v1777 = vpop.f32.mrb[0].mxu0
        %1778 = vmatprep.mubr.f32.mxu0 0.0
        %1779 = vmatmul.mubr.f32.gmra.mrb[0].mxu0 %v1703
        %v1780 = vpop.f32.mrb[0].mxu0
        %v1781 = vadd.f32 0.0, %v1780
        %v1782 = vpop.f32.mrb[0].mxu0
        %1783 = vdwg.mxu0
        %1784 = vrot.lane.b32.xlu0 %v1071, 120
        %v1785 = vpop.permute.xlu0 %1784
        %1786 = vrot.lane.b32.xlu0 %v1076, 120
        %v1787 = vpop.permute.xlu0 %1786
        %1788 = vrot.lane.b32.xlu0 %v1183, 120
        %v1789 = vpop.permute.xlu0 %1788
        %1790 = vrot.lane.b32.xlu0 %v1188, 120
        %v1791 = vpop.permute.xlu0 %1790
        %v1792 = vsel %vm1291, %v1785, 0
        %v1794 = vsel %vm1291, %v1787, 0
        %v1796 = vsel %vm1291, %v1789, 0
        %v1798 = vsel %vm1291, %v1791, 0
        %1800 = vmatprep.subr.mxu0 0.0
        %1801 = vmatpush1.xpose.msra.mxu0 %v1796
        %1802 = vmatprep.subr.mxu0 0.0
        %1803 = vmatpush1.xpose.msra.mxu0 %v1798
        %1804 = vmatprep.subr.mxu0 0.0
        %1805 = vmatpush1.xpose.msra.mxu0 0.0
        %1806 = vmatprep.subr.mxu0 0.0
        %1807 = vmatpush1.xpose.msra.mxu0 0.0
        %1808 = vmatprep.subr.mxu0 0.0
        %1809 = vmatpush1.xpose.msra.mxu0 0.0
        %1810 = vmatprep.subr.mxu0 0.0
        %1811 = vmatpush1.xpose.msra.mxu0 0.0
        %1812 = vmatprep.subr.mxu0 0.0
        %1813 = vmatpush1.xpose.msra.mxu0 0.0
        %1814 = vmatprep.subr.mxu0 0.0
        %1815 = vmatpush1.xpose.msra.mxu0 0.0
        %1816 = vmatprep.subr.mxu0 0.0
        %1817 = vmatpush1.xpose.msra.mxu0 0.0
        %1818 = vmatprep.subr.mxu0 0.0
        %1819 = vmatpush1.xpose.msra.mxu0 0.0
        %1820 = vmatprep.subr.mxu0 0.0
        %1821 = vmatpush1.xpose.msra.mxu0 0.0
        %1822 = vmatprep.subr.mxu0 0.0
        %1823 = vmatpush1.xpose.msra.mxu0 0.0
        %1824 = vmatprep.subr.mxu0 0.0
        %1825 = vmatpush1.xpose.msra.mxu0 0.0
        %1826 = vmatprep.subr.mxu0 0.0
        %1827 = vmatpush1.xpose.msra.mxu0 0.0
        %1828 = vmatprep.subr.mxu0 0.0
        %1829 = vmatpush1.xpose.msra.mxu0 0.0
        %1830 = vmatprep.subr.mxu0 0.0
        %1831 = vmatpush1.xpose.msra.mxu0 0.0
        %1832 = vmatprep.subr.mxu0 0.0
        %1833 = vmatpush1.xpose.msra.mxu0 0.0
        %1834 = vmatprep.subr.mxu0 0.0
        %1835 = vmatpush1.xpose.msra.mxu0 0.0
        %1836 = vmatprep.subr.mxu0 0.0
        %1837 = vmatpush1.xpose.msra.mxu0 0.0
        %1838 = vmatprep.subr.mxu0 0.0
        %1839 = vmatpush1.xpose.msra.mxu0 0.0
        %1840 = vmatprep.subr.mxu0 0.0
        %1841 = vmatpush1.xpose.msra.mxu0 0.0
        %1842 = vmatprep.subr.mxu0 0.0
        %1843 = vmatpush1.xpose.msra.mxu0 0.0
        %1844 = vmatprep.subr.mxu0 0.0
        %1845 = vmatpush1.xpose.msra.mxu0 0.0
        %1846 = vmatprep.subr.mxu0 0.0
        %1847 = vmatpush1.xpose.msra.mxu0 0.0
        %1848 = vmatprep.subr.mxu0 0.0
        %1849 = vmatpush1.xpose.msra.mxu0 0.0
        %1850 = vmatprep.subr.mxu0 0.0
        %1851 = vmatpush1.xpose.msra.mxu0 0.0
        %1852 = vmatprep.subr.mxu0 0.0
        %1853 = vmatpush1.xpose.msra.mxu0 0.0
        %1854 = vmatprep.subr.mxu0 0.0
        %1855 = vmatpush1.xpose.msra.mxu0 0.0
        %1856 = vmatprep.subr.mxu0 0.0
        %1857 = vmatpush1.xpose.msra.mxu0 0.0
        %1858 = vmatprep.subr.mxu0 0.0
        %1859 = vmatpush1.xpose.msra.mxu0 0.0
        %1860 = vmatprep.subr.mxu0 0.0
        %1861 = vmatpush1.xpose.msra.mxu0 0.0
        %1862 = vmatprep.subr.mxu0 0.0
        %1863 = vmatpush1.xpose.msra.mxu0 0.0
        %1864 = vmatprep.mubr.f32.mxu0 0.0
        %1865 = vmatmul.mubr.f32.gmra.mrb[0].mxu0 %v1792
        %v1866 = vpop.f32.mrb[0].mxu0
        %v1867 = vadd.f32 0.0, %v1866
        %v1868 = vpop.f32.mrb[0].mxu0
        %1869 = vmatprep.mubr.f32.mxu0 0.0
        %1870 = vmatmul.mubr.f32.gmra.mrb[0].mxu0 %v1794
        %v1871 = vpop.f32.mrb[0].mxu0
        %v1872 = vadd.f32 0.0, %v1871
        %v1873 = vpop.f32.mrb[0].mxu0
        %1874 = vdwg.mxu0
        %v1875 = vmul.f32 %v1776, 0.35355338
        %v1876 = vmul.f32 %v1781, 0.35355338
        %v1877 = vmul.f32 %v1867, 0.35355338
        %v1878 = vmul.f32 %v1872, 0.35355338
        %v1879 = vadd.f32 %v1875, %v1474
        %v1880 = vadd.f32 %v1876, %v1474
        %v1881 = vadd.f32 %v1877, %v1474
        %v1882 = vadd.f32 %v1878, %v1474
        %v1883 = vsel %vm1480, %v1879, -inf
        %1884 = vmax.xlane.f32.xlu0 %v1883
        %v1885 = vpop.xlane.xlu0 %1884
        %v1886 = vsel %vm1480, %v1880, -inf
        %1887 = vmax.xlane.f32.xlu0 %v1886
        %v1888 = vpop.xlane.xlu0 %1887
        %v1889 = vsel %vm1480, %v1881, -inf
        %1890 = vmax.xlane.f32.xlu0 %v1889
        %v1891 = vpop.xlane.xlu0 %1890
        %v1892 = vsel %vm1480, %v1882, -inf
        %1893 = vmax.xlane.f32.xlu0 %v1892
        %v1894 = vpop.xlane.xlu0 %1893
        %v1895 = vsub.f32 %v1879, %v1885
        %v1896 = vsub.f32 %v1880, %v1888
        %v1897 = vsub.f32 %v1881, %v1891
        %v1898 = vsub.f32 %v1882, %v1894
        %v1899 = vmul.f32 %v1895, 1.442695
        %v1900 = vpow.pop %v1899
        %v1901 = vmul.f32 %v1896, 1.442695
        %v1902 = vpow.pop %v1901
        %v1903 = vmul.f32 %v1897, 1.442695
        %v1904 = vpow.pop %v1903
        %v1905 = vmul.f32 %v1898, 1.442695
        %v1906 = vpow.pop %v1905
        %v1907 = vsel %vm1480, %v1900, 0.0
        %1908 = vadd.xlane.f32.xlu0 %v1907
        %v1909 = vpop.xlane.xlu0 %1908
        %v1910 = vsel %vm1480, %v1902, 0.0
        %1911 = vadd.xlane.f32.xlu0 %v1910
        %v1912 = vpop.xlane.xlu0 %1911
        %v1913 = vsel %vm1480, %v1904, 0.0
        %1914 = vadd.xlane.f32.xlu0 %v1913
        %v1915 = vpop.xlane.xlu0 %1914
        %v1916 = vsel %vm1480, %v1906, 0.0
        %1917 = vadd.xlane.f32.xlu0 %v1916
        %v1918 = vpop.xlane.xlu0 %1917
        %v1919 = vrcp.pop %v1909
        %v1920 = vrcp.pop %v1912
        %v1921 = vrcp.pop %v1915
        %v1922 = vrcp.pop %v1918
        %v1923 = vmul.f32 %v1900, %v1919
        %v1924 = vmul.f32 %v1902, %v1920
        %v1925 = vmul.f32 %v1904, %v1921
        %v1926 = vmul.f32 %v1906, %v1922
        %v1927 = vmul.f32 %v1923, %v930
        %v1928 = vmul.f32 %v1924, %v935
        %v1929 = vmul.f32 %v1925, %v930
        %v1930 = vmul.f32 %v1926, %v935
        %v1931 = vsel %vm1480, %v1927, 0.0
        %v1932 = vsel %vm1480, %v1928, 0.0
        %v1933 = vadd.f32 %v1931, %v1932
        %v1934 = vrot.slane %v1933, 4
        %v1935 = vadd.f32 %v1933, %v1934
        %v1936 = vrot.slane %v1935, 2
        %v1937 = vadd.f32 %v1935, %v1936
        %v1938 = vrot.slane %v1937, 1
        %v1939 = vadd.f32 %v1937, %v1938
        %v1940 = vsel %vm1480, %v1929, 0.0
        %v1941 = vsel %vm1480, %v1930, 0.0
        %v1942 = vadd.f32 %v1940, %v1941
        %v1943 = vrot.slane %v1942, 4
        %v1944 = vadd.f32 %v1942, %v1943
        %v1945 = vrot.slane %v1944, 2
        %v1946 = vadd.f32 %v1944, %v1945
        %v1947 = vrot.slane %v1946, 1
        %v1948 = vadd.f32 %v1946, %v1947
        %1951 = vrot.lane.b32.xlu0 %v1273, 120
        %v1952 = vpop.permute.xlu0 %1951
        %1953 = vrot.lane.b32.xlu0 %v1278, 120
        %v1954 = vpop.permute.xlu0 %1953
        %v1958 = vsel %vm1480, %v1939, 0
        %1960 = vmatprep.subr.mxu0 0.0
        %1961 = vmatpush1.msra.mxu0 %v1952
        %1962 = vmatprep.subr.mxu0 0.0
        %1963 = vmatpush1.msra.mxu0 %v1954
        %1964 = vmatprep.subr.mxu0 0.0
        %1965 = vmatpush1.msra.mxu0 0.0
        %1966 = vmatprep.subr.mxu0 0.0
        %1967 = vmatpush1.msra.mxu0 0.0
        %1968 = vmatprep.subr.mxu0 0.0
        %1969 = vmatpush1.msra.mxu0 0.0
        %1970 = vmatprep.subr.mxu0 0.0
        %1971 = vmatpush1.msra.mxu0 0.0
        %1972 = vmatprep.subr.mxu0 0.0
        %1973 = vmatpush1.msra.mxu0 0.0
        %1974 = vmatprep.subr.mxu0 0.0
        %1975 = vmatpush1.msra.mxu0 0.0
        %1976 = vmatprep.subr.mxu0 0.0
        %1977 = vmatpush1.msra.mxu0 0.0
        %1978 = vmatprep.subr.mxu0 0.0
        %1979 = vmatpush1.msra.mxu0 0.0
        %1980 = vmatprep.subr.mxu0 0.0
        %1981 = vmatpush1.msra.mxu0 0.0
        %1982 = vmatprep.subr.mxu0 0.0
        %1983 = vmatpush1.msra.mxu0 0.0
        %1984 = vmatprep.subr.mxu0 0.0
        %1985 = vmatpush1.msra.mxu0 0.0
        %1986 = vmatprep.subr.mxu0 0.0
        %1987 = vmatpush1.msra.mxu0 0.0
        %1988 = vmatprep.subr.mxu0 0.0
        %1989 = vmatpush1.msra.mxu0 0.0
        %1990 = vmatprep.subr.mxu0 0.0
        %1991 = vmatpush1.msra.mxu0 0.0
        %1992 = vmatprep.subr.mxu0 0.0
        %1993 = vmatpush1.msra.mxu0 0.0
        %1994 = vmatprep.subr.mxu0 0.0
        %1995 = vmatpush1.msra.mxu0 0.0
        %1996 = vmatprep.subr.mxu0 0.0
        %1997 = vmatpush1.msra.mxu0 0.0
        %1998 = vmatprep.subr.mxu0 0.0
        %1999 = vmatpush1.msra.mxu0 0.0
        %2000 = vmatprep.subr.mxu0 0.0
        %2001 = vmatpush1.msra.mxu0 0.0
        %2002 = vmatprep.subr.mxu0 0.0
        %2003 = vmatpush1.msra.mxu0 0.0
        %2004 = vmatprep.subr.mxu0 0.0
        %2005 = vmatpush1.msra.mxu0 0.0
        %2006 = vmatprep.subr.mxu0 0.0
        %2007 = vmatpush1.msra.mxu0 0.0
        %2008 = vmatprep.subr.mxu0 0.0
        %2009 = vmatpush1.msra.mxu0 0.0
        %2010 = vmatprep.subr.mxu0 0.0
        %2011 = vmatpush1.msra.mxu0 0.0
        %2012 = vmatprep.subr.mxu0 0.0
        %2013 = vmatpush1.msra.mxu0 0.0
        %2014 = vmatprep.subr.mxu0 0.0
        %2015 = vmatpush1.msra.mxu0 0.0
        %2016 = vmatprep.subr.mxu0 0.0
        %2017 = vmatpush1.msra.mxu0 0.0
        %2018 = vmatprep.subr.mxu0 0.0
        %2019 = vmatpush1.msra.mxu0 0.0
        %2020 = vmatprep.subr.mxu0 0.0
        %2021 = vmatpush1.msra.mxu0 0.0
        %2022 = vmatprep.subr.mxu0 0.0
        %2023 = vmatpush1.msra.mxu0 0.0
        %2024 = vmatprep.mubr.f32.mxu0 0.0
        %2025 = vmatmul.mubr.f32.gmra.mrb[0].mxu0 %v1958
        %v2026 = vpop.f32.mrb[0].mxu0
        %v2027 = vadd.f32 0.0, %v2026
        %v2028 = vpop.f32.mrb[0].mxu0
        %2029 = vdwg.mxu0
        %2032 = vrot.lane.b32.xlu0 %v1283, 120
        %v2033 = vpop.permute.xlu0 %2032
        %2034 = vrot.lane.b32.xlu0 %v1288, 120
        %v2035 = vpop.permute.xlu0 %2034
        %v2039 = vsel %vm1480, %v1948, 0
        %2041 = vmatprep.subr.mxu0 0.0
        %2042 = vmatpush1.msra.mxu0 %v2033
        %2043 = vmatprep.subr.mxu0 0.0
        %2044 = vmatpush1.msra.mxu0 %v2035
        %2045 = vmatprep.subr.mxu0 0.0
        %2046 = vmatpush1.msra.mxu0 0.0
        %2047 = vmatprep.subr.mxu0 0.0
        %2048 = vmatpush1.msra.mxu0 0.0
        %2049 = vmatprep.subr.mxu0 0.0
        %2050 = vmatpush1.msra.mxu0 0.0
        %2051 = vmatprep.subr.mxu0 0.0
        %2052 = vmatpush1.msra.mxu0 0.0
        %2053 = vmatprep.subr.mxu0 0.0
        %2054 = vmatpush1.msra.mxu0 0.0
        %2055 = vmatprep.subr.mxu0 0.0
        %2056 = vmatpush1.msra.mxu0 0.0
        %2057 = vmatprep.subr.mxu0 0.0
        %2058 = vmatpush1.msra.mxu0 0.0
        %2059 = vmatprep.subr.mxu0 0.0
        %2060 = vmatpush1.msra.mxu0 0.0
        %2061 = vmatprep.subr.mxu0 0.0
        %2062 = vmatpush1.msra.mxu0 0.0
        %2063 = vmatprep.subr.mxu0 0.0
        %2064 = vmatpush1.msra.mxu0 0.0
        %2065 = vmatprep.subr.mxu0 0.0
        %2066 = vmatpush1.msra.mxu0 0.0
        %2067 = vmatprep.subr.mxu0 0.0
        %2068 = vmatpush1.msra.mxu0 0.0
        %2069 = vmatprep.subr.mxu0 0.0
        %2070 = vmatpush1.msra.mxu0 0.0
        %2071 = vmatprep.subr.mxu0 0.0
        %2072 = vmatpush1.msra.mxu0 0.0
        %2073 = vmatprep.subr.mxu0 0.0
        %2074 = vmatpush1.msra.mxu0 0.0
        %2075 = vmatprep.subr.mxu0 0.0
        %2076 = vmatpush1.msra.mxu0 0.0
        %2077 = vmatprep.subr.mxu0 0.0
        %2078 = vmatpush1.msra.mxu0 0.0
        %2079 = vmatprep.subr.mxu0 0.0
        %2080 = vmatpush1.msra.mxu0 0.0
        %2081 = vmatprep.subr.mxu0 0.0
        %2082 = vmatpush1.msra.mxu0 0.0
        %2083 = vmatprep.subr.mxu0 0.0
        %2084 = vmatpush1.msra.mxu0 0.0
        %2085 = vmatprep.subr.mxu0 0.0
        %2086 = vmatpush1.msra.mxu0 0.0
        %2087 = vmatprep.subr.mxu0 0.0
        %2088 = vmatpush1.msra.mxu0 0.0
        %2089 = vmatprep.subr.mxu0 0.0
        %2090 = vmatpush1.msra.mxu0 0.0
        %2091 = vmatprep.subr.mxu0 0.0
        %2092 = vmatpush1.msra.mxu0 0.0
        %2093 = vmatprep.subr.mxu0 0.0
        %2094 = vmatpush1.msra.mxu0 0.0
        %2095 = vmatprep.subr.mxu0 0.0
        %2096 = vmatpush1.msra.mxu0 0.0
        %2097 = vmatprep.subr.mxu0 0.0
        %2098 = vmatpush1.msra.mxu0 0.0
        %2099 = vmatprep.subr.mxu0 0.0
        %2100 = vmatpush1.msra.mxu0 0.0
        %2101 = vmatprep.subr.mxu0 0.0
        %2102 = vmatpush1.msra.mxu0 0.0
        %2103 = vmatprep.subr.mxu0 0.0
        %2104 = vmatpush1.msra.mxu0 0.0
        %2105 = vmatprep.mubr.f32.mxu0 0.0
        %2106 = vmatmul.mubr.f32.gmra.mrb[0].mxu0 %v2039
        %v2107 = vpop.f32.mrb[0].mxu0
        %v2108 = vadd.f32 0.0, %v2107
        %v2109 = vpop.f32.mrb[0].mxu0
        %2110 = vdwg.mxu0
        %2111 = vrot.lane.b32.xlu0 %v1061, 112
        %v2112 = vpop.permute.xlu0 %2111
        %2113 = vrot.lane.b32.xlu0 %v1066, 112
        %v2114 = vpop.permute.xlu0 %2113
        %2115 = vrot.lane.b32.xlu0 %v1173, 112
        %v2116 = vpop.permute.xlu0 %2115
        %2117 = vrot.lane.b32.xlu0 %v1178, 112
        %v2118 = vpop.permute.xlu0 %2117
        %v2119 = vsel %vm1291, %v2112, 0
        %v2121 = vsel %vm1291, %v2114, 0
        %v2123 = vsel %vm1291, %v2116, 0
        %v2125 = vsel %vm1291, %v2118, 0
        %2127 = vmatprep.subr.mxu0 0.0
        %2128 = vmatpush1.xpose.msra.mxu0 %v2123
        %2129 = vmatprep.subr.mxu0 0.0
        %2130 = vmatpush1.xpose.msra.mxu0 %v2125
        %2131 = vmatprep.subr.mxu0 0.0
        %2132 = vmatpush1.xpose.msra.mxu0 0.0
        %2133 = vmatprep.subr.mxu0 0.0
        %2134 = vmatpush1.xpose.msra.mxu0 0.0
        %2135 = vmatprep.subr.mxu0 0.0
        %2136 = vmatpush1.xpose.msra.mxu0 0.0
        %2137 = vmatprep.subr.mxu0 0.0
        %2138 = vmatpush1.xpose.msra.mxu0 0.0
        %2139 = vmatprep.subr.mxu0 0.0
        %2140 = vmatpush1.xpose.msra.mxu0 0.0
        %2141 = vmatprep.subr.mxu0 0.0
        %2142 = vmatpush1.xpose.msra.mxu0 0.0
        %2143 = vmatprep.subr.mxu0 0.0
        %2144 = vmatpush1.xpose.msra.mxu0 0.0
        %2145 = vmatprep.subr.mxu0 0.0
        %2146 = vmatpush1.xpose.msra.mxu0 0.0
        %2147 = vmatprep.subr.mxu0 0.0
        %2148 = vmatpush1.xpose.msra.mxu0 0.0
        %2149 = vmatprep.subr.mxu0 0.0
        %2150 = vmatpush1.xpose.msra.mxu0 0.0
        %2151 = vmatprep.subr.mxu0 0.0
        %2152 = vmatpush1.xpose.msra.mxu0 0.0
        %2153 = vmatprep.subr.mxu0 0.0
        %2154 = vmatpush1.xpose.msra.mxu0 0.0
        %2155 = vmatprep.subr.mxu0 0.0
        %2156 = vmatpush1.xpose.msra.mxu0 0.0
        %2157 = vmatprep.subr.mxu0 0.0
        %2158 = vmatpush1.xpose.msra.mxu0 0.0
        %2159 = vmatprep.subr.mxu0 0.0
        %2160 = vmatpush1.xpose.msra.mxu0 0.0
        %2161 = vmatprep.subr.mxu0 0.0
        %2162 = vmatpush1.xpose.msra.mxu0 0.0
        %2163 = vmatprep.subr.mxu0 0.0
        %2164 = vmatpush1.xpose.msra.mxu0 0.0
        %2165 = vmatprep.subr.mxu0 0.0
        %2166 = vmatpush1.xpose.msra.mxu0 0.0
        %2167 = vmatprep.subr.mxu0 0.0
        %2168 = vmatpush1.xpose.msra.mxu0 0.0
        %2169 = vmatprep.subr.mxu0 0.0
        %2170 = vmatpush1.xpose.msra.mxu0 0.0
        %2171 = vmatprep.subr.mxu0 0.0
        %2172 = vmatpush1.xpose.msra.mxu0 0.0
        %2173 = vmatprep.subr.mxu0 0.0
        %2174 = vmatpush1.xpose.msra.mxu0 0.0
        %2175 = vmatprep.subr.mxu0 0.0
        %2176 = vmatpush1.xpose.msra.mxu0 0.0
        %2177 = vmatprep.subr.mxu0 0.0
        %2178 = vmatpush1.xpose.msra.mxu0 0.0
        %2179 = vmatprep.subr.mxu0 0.0
        %2180 = vmatpush1.xpose.msra.mxu0 0.0
        %2181 = vmatprep.subr.mxu0 0.0
        %2182 = vmatpush1.xpose.msra.mxu0 0.0
        %2183 = vmatprep.subr.mxu0 0.0
        %2184 = vmatpush1.xpose.msra.mxu0 0.0
        %2185 = vmatprep.subr.mxu0 0.0
        %2186 = vmatpush1.xpose.msra.mxu0 0.0
        %2187 = vmatprep.subr.mxu0 0.0
        %2188 = vmatpush1.xpose.msra.mxu0 0.0
        %2189 = vmatprep.subr.mxu0 0.0
        %2190 = vmatpush1.xpose.msra.mxu0 0.0
        %2191 = vmatprep.mubr.f32.mxu0 0.0
        %2192 = vmatmul.mubr.f32.gmra.mrb[0].mxu0 %v2119
        %v2193 = vpop.f32.mrb[0].mxu0
        %v2194 = vadd.f32 0.0, %v2193
        %v2195 = vpop.f32.mrb[0].mxu0
        %2196 = vmatprep.mubr.f32.mxu0 0.0
        %2197 = vmatmul.mubr.f32.gmra.mrb[0].mxu0 %v2121
        %v2198 = vpop.f32.mrb[0].mxu0
        %v2199 = vadd.f32 0.0, %v2198
        %v2200 = vpop.f32.mrb[0].mxu0
        %2201 = vdwg.mxu0
        %2202 = vrot.lane.b32.xlu0 %v1071, 112
        %v2203 = vpop.permute.xlu0 %2202
        %2204 = vrot.lane.b32.xlu0 %v1076, 112
        %v2205 = vpop.permute.xlu0 %2204
        %2206 = vrot.lane.b32.xlu0 %v1183, 112
        %v2207 = vpop.permute.xlu0 %2206
        %2208 = vrot.lane.b32.xlu0 %v1188, 112
        %v2209 = vpop.permute.xlu0 %2208
        %v2210 = vsel %vm1291, %v2203, 0
        %v2212 = vsel %vm1291, %v2205, 0
        %v2214 = vsel %vm1291, %v2207, 0
        %v2216 = vsel %vm1291, %v2209, 0
        %2218 = vmatprep.subr.mxu0 0.0
        %2219 = vmatpush1.xpose.msra.mxu0 %v2214
        %2220 = vmatprep.subr.mxu0 0.0
        %2221 = vmatpush1.xpose.msra.mxu0 %v2216
        %2222 = vmatprep.subr.mxu0 0.0
        %2223 = vmatpush1.xpose.msra.mxu0 0.0
        %2224 = vmatprep.subr.mxu0 0.0
        %2225 = vmatpush1.xpose.msra.mxu0 0.0
        %2226 = vmatprep.subr.mxu0 0.0
        %2227 = vmatpush1.xpose.msra.mxu0 0.0
        %2228 = vmatprep.subr.mxu0 0.0
        %2229 = vmatpush1.xpose.msra.mxu0 0.0
        %2230 = vmatprep.subr.mxu0 0.0
        %2231 = vmatpush1.xpose.msra.mxu0 0.0
        %2232 = vmatprep.subr.mxu0 0.0
        %2233 = vmatpush1.xpose.msra.mxu0 0.0
        %2234 = vmatprep.subr.mxu0 0.0
        %2235 = vmatpush1.xpose.msra.mxu0 0.0
        %2236 = vmatprep.subr.mxu0 0.0
        %2237 = vmatpush1.xpose.msra.mxu0 0.0
        %2238 = vmatprep.subr.mxu0 0.0
        %2239 = vmatpush1.xpose.msra.mxu0 0.0
        %2240 = vmatprep.subr.mxu0 0.0
        %2241 = vmatpush1.xpose.msra.mxu0 0.0
        %2242 = vmatprep.subr.mxu0 0.0
        %2243 = vmatpush1.xpose.msra.mxu0 0.0
        %2244 = vmatprep.subr.mxu0 0.0
        %2245 = vmatpush1.xpose.msra.mxu0 0.0
        %2246 = vmatprep.subr.mxu0 0.0
        %2247 = vmatpush1.xpose.msra.mxu0 0.0
        %2248 = vmatprep.subr.mxu0 0.0
        %2249 = vmatpush1.xpose.msra.mxu0 0.0
        %2250 = vmatprep.subr.mxu0 0.0
        %2251 = vmatpush1.xpose.msra.mxu0 0.0
        %2252 = vmatprep.subr.mxu0 0.0
        %2253 = vmatpush1.xpose.msra.mxu0 0.0
        %2254 = vmatprep.subr.mxu0 0.0
        %2255 = vmatpush1.xpose.msra.mxu0 0.0
        %2256 = vmatprep.subr.mxu0 0.0
        %2257 = vmatpush1.xpose.msra.mxu0 0.0
        %2258 = vmatprep.subr.mxu0 0.0
        %2259 = vmatpush1.xpose.msra.mxu0 0.0
        %2260 = vmatprep.subr.mxu0 0.0
        %2261 = vmatpush1.xpose.msra.mxu0 0.0
        %2262 = vmatprep.subr.mxu0 0.0
        %2263 = vmatpush1.xpose.msra.mxu0 0.0
        %2264 = vmatprep.subr.mxu0 0.0
        %2265 = vmatpush1.xpose.msra.mxu0 0.0
        %2266 = vmatprep.subr.mxu0 0.0
        %2267 = vmatpush1.xpose.msra.mxu0 0.0
        %2268 = vmatprep.subr.mxu0 0.0
        %2269 = vmatpush1.xpose.msra.mxu0 0.0
        %2270 = vmatprep.subr.mxu0 0.0
        %2271 = vmatpush1.xpose.msra.mxu0 0.0
        %2272 = vmatprep.subr.mxu0 0.0
        %2273 = vmatpush1.xpose.msra.mxu0 0.0
        %2274 = vmatprep.subr.mxu0 0.0
        %2275 = vmatpush1.xpose.msra.mxu0 0.0
        %2276 = vmatprep.subr.mxu0 0.0
        %2277 = vmatpush1.xpose.msra.mxu0 0.0
        %2278 = vmatprep.subr.mxu0 0.0
        %2279 = vmatpush1.xpose.msra.mxu0 0.0
        %2280 = vmatprep.subr.mxu0 0.0
        %2281 = vmatpush1.xpose.msra.mxu0 0.0
        %2282 = vmatprep.mubr.f32.mxu0 0.0
        %2283 = vmatmul.mubr.f32.gmra.mrb[0].mxu0 %v2210
        %v2284 = vpop.f32.mrb[0].mxu0
        %v2285 = vadd.f32 0.0, %v2284
        %v2286 = vpop.f32.mrb[0].mxu0
        %2287 = vmatprep.mubr.f32.mxu0 0.0
        %2288 = vmatmul.mubr.f32.gmra.mrb[0].mxu0 %v2212
        %v2289 = vpop.f32.mrb[0].mxu0
        %v2290 = vadd.f32 0.0, %v2289
        %v2291 = vpop.f32.mrb[0].mxu0
        %2292 = vdwg.mxu0
        %v2293 = vmul.f32 %v2194, 0.35355338
        %v2294 = vmul.f32 %v2199, 0.35355338
        %v2295 = vmul.f32 %v2285, 0.35355338
        %v2296 = vmul.f32 %v2290, 0.35355338
        %v2297 = vadd.f32 %v2293, %v1474
        %v2298 = vadd.f32 %v2294, %v1474
        %v2299 = vadd.f32 %v2295, %v1474
        %v2300 = vadd.f32 %v2296, %v1474
        %v2301 = vsel %vm1480, %v2297, -inf
        %2302 = vmax.xlane.f32.xlu0 %v2301
        %v2303 = vpop.xlane.xlu0 %2302
        %v2304 = vsel %vm1480, %v2298, -inf
        %2305 = vmax.xlane.f32.xlu0 %v2304
        %v2306 = vpop.xlane.xlu0 %2305
        %v2307 = vsel %vm1480, %v2299, -inf
        %2308 = vmax.xlane.f32.xlu0 %v2307
        %v2309 = vpop.xlane.xlu0 %2308
        %v2310 = vsel %vm1480, %v2300, -inf
        %2311 = vmax.xlane.f32.xlu0 %v2310
        %v2312 = vpop.xlane.xlu0 %2311
        %v2313 = vsub.f32 %v2297, %v2303
        %v2314 = vsub.f32 %v2298, %v2306
        %v2315 = vsub.f32 %v2299, %v2309
        %v2316 = vsub.f32 %v2300, %v2312
        %v2317 = vmul.f32 %v2313, 1.442695
        %v2318 = vpow.pop %v2317
        %v2319 = vmul.f32 %v2314, 1.442695
        %v2320 = vpow.pop %v2319
        %v2321 = vmul.f32 %v2315, 1.442695
        %v2322 = vpow.pop %v2321
        %v2323 = vmul.f32 %v2316, 1.442695
        %v2324 = vpow.pop %v2323
        %v2325 = vsel %vm1480, %v2318, 0.0
        %2326 = vadd.xlane.f32.xlu0 %v2325
        %v2327 = vpop.xlane.xlu0 %2326
        %v2328 = vsel %vm1480, %v2320, 0.0
        %2329 = vadd.xlane.f32.xlu0 %v2328
        %v2330 = vpop.xlane.xlu0 %2329
        %v2331 = vsel %vm1480, %v2322, 0.0
        %2332 = vadd.xlane.f32.xlu0 %v2331
        %v2333 = vpop.xlane.xlu0 %2332
        %v2334 = vsel %vm1480, %v2324, 0.0
        %2335 = vadd.xlane.f32.xlu0 %v2334
        %v2336 = vpop.xlane.xlu0 %2335
        %v2337 = vrcp.pop %v2327
        %v2338 = vrcp.pop %v2330
        %v2339 = vrcp.pop %v2333
        %v2340 = vrcp.pop %v2336
        %v2341 = vmul.f32 %v2318, %v2337
        %v2342 = vmul.f32 %v2320, %v2338
        %v2343 = vmul.f32 %v2322, %v2339
        %v2344 = vmul.f32 %v2324, %v2340
        %v2345 = vmul.f32 %v2341, %v930
        %v2346 = vmul.f32 %v2342, %v935
        %v2347 = vmul.f32 %v2343, %v930
        %v2348 = vmul.f32 %v2344, %v935
        %v2349 = vsel %vm1480, %v2345, 0.0
        %v2350 = vsel %vm1480, %v2346, 0.0
        %v2351 = vadd.f32 %v2349, %v2350
        %v2352 = vrot.slane %v2351, 4
        %v2353 = vadd.f32 %v2351, %v2352
        %v2354 = vrot.slane %v2353, 2
        %v2355 = vadd.f32 %v2353, %v2354
        %v2356 = vrot.slane %v2355, 1
        %v2357 = vadd.f32 %v2355, %v2356
        %v2358 = vsel %vm1480, %v2347, 0.0
        %v2359 = vsel %vm1480, %v2348, 0.0
        %v2360 = vadd.f32 %v2358, %v2359
        %v2361 = vrot.slane %v2360, 4
        %v2362 = vadd.f32 %v2360, %v2361
        %v2363 = vrot.slane %v2362, 2
        %v2364 = vadd.f32 %v2362, %v2363
        %v2365 = vrot.slane %v2364, 1
        %v2366 = vadd.f32 %v2364, %v2365
        %2367 = vrot.lane.b32.xlu0 %v1273, 112
        %v2368 = vpop.permute.xlu0 %2367
        %2369 = vrot.lane.b32.xlu0 %v1278, 112
        %v2370 = vpop.permute.xlu0 %2369
        %v2374 = vsel %vm1480, %v2357, 0
        %2376 = vmatprep.subr.mxu0 0.0
        %2377 = vmatpush1.msra.mxu0 %v2368
        %2378 = vmatprep.subr.mxu0 0.0
        %2379 = vmatpush1.msra.mxu0 %v2370
        %2380 = vmatprep.subr.mxu0 0.0
        %2381 = vmatpush1.msra.mxu0 0.0
        %2382 = vmatprep.subr.mxu0 0.0
        %2383 = vmatpush1.msra.mxu0 0.0
        %2384 = vmatprep.subr.mxu0 0.0
        %2385 = vmatpush1.msra.mxu0 0.0
        %2386 = vmatprep.subr.mxu0 0.0
        %2387 = vmatpush1.msra.mxu0 0.0
        %2388 = vmatprep.subr.mxu0 0.0
        %2389 = vmatpush1.msra.mxu0 0.0
        %2390 = vmatprep.subr.mxu0 0.0
        %2391 = vmatpush1.msra.mxu0 0.0
        %2392 = vmatprep.subr.mxu0 0.0
        %2393 = vmatpush1.msra.mxu0 0.0
        %2394 = vmatprep.subr.mxu0 0.0
        %2395 = vmatpush1.msra.mxu0 0.0
        %2396 = vmatprep.subr.mxu0 0.0
        %2397 = vmatpush1.msra.mxu0 0.0
        %2398 = vmatprep.subr.mxu0 0.0
        %2399 = vmatpush1.msra.mxu0 0.0
        %2400 = vmatprep.subr.mxu0 0.0
        %2401 = vmatpush1.msra.mxu0 0.0
        %2402 = vmatprep.subr.mxu0 0.0
        %2403 = vmatpush1.msra.mxu0 0.0
        %2404 = vmatprep.subr.mxu0 0.0
        %2405 = vmatpush1.msra.mxu0 0.0
        %2406 = vmatprep.subr.mxu0 0.0
        %2407 = vmatpush1.msra.mxu0 0.0
        %2408 = vmatprep.subr.mxu0 0.0
        %2409 = vmatpush1.msra.mxu0 0.0
        %2410 = vmatprep.subr.mxu0 0.0
        %2411 = vmatpush1.msra.mxu0 0.0
        %2412 = vmatprep.subr.mxu0 0.0
        %2413 = vmatpush1.msra.mxu0 0.0
        %2414 = vmatprep.subr.mxu0 0.0
        %2415 = vmatpush1.msra.mxu0 0.0
        %2416 = vmatprep.subr.mxu0 0.0
        %2417 = vmatpush1.msra.mxu0 0.0
        %2418 = vmatprep.subr.mxu0 0.0
        %2419 = vmatpush1.msra.mxu0 0.0
        %2420 = vmatprep.subr.mxu0 0.0
        %2421 = vmatpush1.msra.mxu0 0.0
        %2422 = vmatprep.subr.mxu0 0.0
        %2423 = vmatpush1.msra.mxu0 0.0
        %2424 = vmatprep.subr.mxu0 0.0
        %2425 = vmatpush1.msra.mxu0 0.0
        %2426 = vmatprep.subr.mxu0 0.0
        %2427 = vmatpush1.msra.mxu0 0.0
        %2428 = vmatprep.subr.mxu0 0.0
        %2429 = vmatpush1.msra.mxu0 0.0
        %2430 = vmatprep.subr.mxu0 0.0
        %2431 = vmatpush1.msra.mxu0 0.0
        %2432 = vmatprep.subr.mxu0 0.0
        %2433 = vmatpush1.msra.mxu0 0.0
        %2434 = vmatprep.subr.mxu0 0.0
        %2435 = vmatpush1.msra.mxu0 0.0
        %2436 = vmatprep.subr.mxu0 0.0
        %2437 = vmatpush1.msra.mxu0 0.0
        %2438 = vmatprep.subr.mxu0 0.0
        %2439 = vmatpush1.msra.mxu0 0.0
        %2440 = vmatprep.mubr.f32.mxu0 0.0
        %2441 = vmatmul.mubr.f32.gmra.mrb[0].mxu0 %v2374
        %v2442 = vpop.f32.mrb[0].mxu0
        %v2443 = vadd.f32 0.0, %v2442
        %v2444 = vpop.f32.mrb[0].mxu0
        %2445 = vdwg.mxu0
        %2446 = vrot.lane.b32.xlu0 %v1283, 112
        %v2447 = vpop.permute.xlu0 %2446
        %2448 = vrot.lane.b32.xlu0 %v1288, 112
        %v2449 = vpop.permute.xlu0 %2448
        %v2453 = vsel %vm1480, %v2366, 0
        %2455 = vmatprep.subr.mxu0 0.0
        %2456 = vmatpush1.msra.mxu0 %v2447
        %2457 = vmatprep.subr.mxu0 0.0
        %2458 = vmatpush1.msra.mxu0 %v2449
        %2459 = vmatprep.subr.mxu0 0.0
        %2460 = vmatpush1.msra.mxu0 0.0
        %2461 = vmatprep.subr.mxu0 0.0
        %2462 = vmatpush1.msra.mxu0 0.0
        %2463 = vmatprep.subr.mxu0 0.0
        %2464 = vmatpush1.msra.mxu0 0.0
        %2465 = vmatprep.subr.mxu0 0.0
        %2466 = vmatpush1.msra.mxu0 0.0
        %2467 = vmatprep.subr.mxu0 0.0
        %2468 = vmatpush1.msra.mxu0 0.0
        %2469 = vmatprep.subr.mxu0 0.0
        %2470 = vmatpush1.msra.mxu0 0.0
        %2471 = vmatprep.subr.mxu0 0.0
        %2472 = vmatpush1.msra.mxu0 0.0
        %2473 = vmatprep.subr.mxu0 0.0
        %2474 = vmatpush1.msra.mxu0 0.0
        %2475 = vmatprep.subr.mxu0 0.0
        %2476 = vmatpush1.msra.mxu0 0.0
        %2477 = vmatprep.subr.mxu0 0.0
        %2478 = vmatpush1.msra.mxu0 0.0
        %2479 = vmatprep.subr.mxu0 0.0
        %2480 = vmatpush1.msra.mxu0 0.0
        %2481 = vmatprep.subr.mxu0 0.0
        %2482 = vmatpush1.msra.mxu0 0.0
        %2483 = vmatprep.subr.mxu0 0.0
        %2484 = vmatpush1.msra.mxu0 0.0
        %2485 = vmatprep.subr.mxu0 0.0
        %2486 = vmatpush1.msra.mxu0 0.0
        %2487 = vmatprep.subr.mxu0 0.0
        %2488 = vmatpush1.msra.mxu0 0.0
        %2489 = vmatprep.subr.mxu0 0.0
        %2490 = vmatpush1.msra.mxu0 0.0
        %2491 = vmatprep.subr.mxu0 0.0
        %2492 = vmatpush1.msra.mxu0 0.0
        %2493 = vmatprep.subr.mxu0 0.0
        %2494 = vmatpush1.msra.mxu0 0.0
        %2495 = vmatprep.subr.mxu0 0.0
        %2496 = vmatpush1.msra.mxu0 0.0
        %2497 = vmatprep.subr.mxu0 0.0
        %2498 = vmatpush1.msra.mxu0 0.0
        %2499 = vmatprep.subr.mxu0 0.0
        %2500 = vmatpush1.msra.mxu0 0.0
        %2501 = vmatprep.subr.mxu0 0.0
        %2502 = vmatpush1.msra.mxu0 0.0
        %2503 = vmatprep.subr.mxu0 0.0
        %2504 = vmatpush1.msra.mxu0 0.0
        %2505 = vmatprep.subr.mxu0 0.0
        %2506 = vmatpush1.msra.mxu0 0.0
        %2507 = vmatprep.subr.mxu0 0.0
        %2508 = vmatpush1.msra.mxu0 0.0
        %2509 = vmatprep.subr.mxu0 0.0
        %2510 = vmatpush1.msra.mxu0 0.0
        %2511 = vmatprep.subr.mxu0 0.0
        %2512 = vmatpush1.msra.mxu0 0.0
        %2513 = vmatprep.subr.mxu0 0.0
        %2514 = vmatpush1.msra.mxu0 0.0
        %2515 = vmatprep.subr.mxu0 0.0
        %2516 = vmatpush1.msra.mxu0 0.0
        %2517 = vmatprep.subr.mxu0 0.0
        %2518 = vmatpush1.msra.mxu0 0.0
        %2519 = vmatprep.mubr.f32.mxu0 0.0
        %2520 = vmatmul.mubr.f32.gmra.mrb[0].mxu0 %v2453
        %v2521 = vpop.f32.mrb[0].mxu0
        %v2522 = vadd.f32 0.0, %v2521
        %v2523 = vpop.f32.mrb[0].mxu0
        %2524 = vdwg.mxu0
        %2525 = vrot.lane.b32.xlu0 %v1061, 104
        %v2526 = vpop.permute.xlu0 %2525
        %2527 = vrot.lane.b32.xlu0 %v1066, 104
        %v2528 = vpop.permute.xlu0 %2527
        %2529 = vrot.lane.b32.xlu0 %v1173, 104
        %v2530 = vpop.permute.xlu0 %2529
        %2531 = vrot.lane.b32.xlu0 %v1178, 104
        %v2532 = vpop.permute.xlu0 %2531
        %v2533 = vsel %vm1291, %v2526, 0
        %v2535 = vsel %vm1291, %v2528, 0
        %v2537 = vsel %vm1291, %v2530, 0
        %v2539 = vsel %vm1291, %v2532, 0
        %2541 = vmatprep.subr.mxu0 0.0
        %2542 = vmatpush1.xpose.msra.mxu0 %v2537
        %2543 = vmatprep.subr.mxu0 0.0
        %2544 = vmatpush1.xpose.msra.mxu0 %v2539
        %2545 = vmatprep.subr.mxu0 0.0
        %2546 = vmatpush1.xpose.msra.mxu0 0.0
        %2547 = vmatprep.subr.mxu0 0.0
        %2548 = vmatpush1.xpose.msra.mxu0 0.0
        %2549 = vmatprep.subr.mxu0 0.0
        %2550 = vmatpush1.xpose.msra.mxu0 0.0
        %2551 = vmatprep.subr.mxu0 0.0
        %2552 = vmatpush1.xpose.msra.mxu0 0.0
        %2553 = vmatprep.subr.mxu0 0.0
        %2554 = vmatpush1.xpose.msra.mxu0 0.0
        %2555 = vmatprep.subr.mxu0 0.0
        %2556 = vmatpush1.xpose.msra.mxu0 0.0
        %2557 = vmatprep.subr.mxu0 0.0
        %2558 = vmatpush1.xpose.msra.mxu0 0.0
        %2559 = vmatprep.subr.mxu0 0.0
        %2560 = vmatpush1.xpose.msra.mxu0 0.0
        %2561 = vmatprep.subr.mxu0 0.0
        %2562 = vmatpush1.xpose.msra.mxu0 0.0
        %2563 = vmatprep.subr.mxu0 0.0
        %2564 = vmatpush1.xpose.msra.mxu0 0.0
        %2565 = vmatprep.subr.mxu0 0.0
        %2566 = vmatpush1.xpose.msra.mxu0 0.0
        %2567 = vmatprep.subr.mxu0 0.0
        %2568 = vmatpush1.xpose.msra.mxu0 0.0
        %2569 = vmatprep.subr.mxu0 0.0
        %2570 = vmatpush1.xpose.msra.mxu0 0.0
        %2571 = vmatprep.subr.mxu0 0.0
        %2572 = vmatpush1.xpose.msra.mxu0 0.0
        %2573 = vmatprep.subr.mxu0 0.0
        %2574 = vmatpush1.xpose.msra.mxu0 0.0
        %2575 = vmatprep.subr.mxu0 0.0
        %2576 = vmatpush1.xpose.msra.mxu0 0.0
        %2577 = vmatprep.subr.mxu0 0.0
        %2578 = vmatpush1.xpose.msra.mxu0 0.0
        %2579 = vmatprep.subr.mxu0 0.0
        %2580 = vmatpush1.xpose.msra.mxu0 0.0
        %2581 = vmatprep.subr.mxu0 0.0
        %2582 = vmatpush1.xpose.msra.mxu0 0.0
        %2583 = vmatprep.subr.mxu0 0.0
        %2584 = vmatpush1.xpose.msra.mxu0 0.0
        %2585 = vmatprep.subr.mxu0 0.0
        %2586 = vmatpush1.xpose.msra.mxu0 0.0
        %2587 = vmatprep.subr.mxu0 0.0
        %2588 = vmatpush1.xpose.msra.mxu0 0.0
        %2589 = vmatprep.subr.mxu0 0.0
        %2590 = vmatpush1.xpose.msra.mxu0 0.0
        %2591 = vmatprep.subr.mxu0 0.0
        %2592 = vmatpush1.xpose.msra.mxu0 0.0
        %2593 = vmatprep.subr.mxu0 0.0
        %2594 = vmatpush1.xpose.msra.mxu0 0.0
        %2595 = vmatprep.subr.mxu0 0.0
        %2596 = vmatpush1.xpose.msra.mxu0 0.0
        %2597 = vmatprep.subr.mxu0 0.0
        %2598 = vmatpush1.xpose.msra.mxu0 0.0
        %2599 = vmatprep.subr.mxu0 0.0
        %2600 = vmatpush1.xpose.msra.mxu0 0.0
        %2601 = vmatprep.subr.mxu0 0.0
        %2602 = vmatpush1.xpose.msra.mxu0 0.0
        %2603 = vmatprep.subr.mxu0 0.0
        %2604 = vmatpush1.xpose.msra.mxu0 0.0
        %2605 = vmatprep.mubr.f32.mxu0 0.0
        %2606 = vmatmul.mubr.f32.gmra.mrb[0].mxu0 %v2533
        %v2607 = vpop.f32.mrb[0].mxu0
        %v2608 = vadd.f32 0.0, %v2607
        %v2609 = vpop.f32.mrb[0].mxu0
        %2610 = vmatprep.mubr.f32.mxu0 0.0
        %2611 = vmatmul.mubr.f32.gmra.mrb[0].mxu0 %v2535
        %v2612 = vpop.f32.mrb[0].mxu0
        %v2613 = vadd.f32 0.0, %v2612
        %v2614 = vpop.f32.mrb[0].mxu0
        %2615 = vdwg.mxu0
        %2616 = vrot.lane.b32.xlu0 %v1071, 104
        %v2617 = vpop.permute.xlu0 %2616
        %2618 = vrot.lane.b32.xlu0 %v1076, 104
        %v2619 = vpop.permute.xlu0 %2618
        %2620 = vrot.lane.b32.xlu0 %v1183, 104
        %v2621 = vpop.permute.xlu0 %2620
        %2622 = vrot.lane.b32.xlu0 %v1188, 104
        %v2623 = vpop.permute.xlu0 %2622
        %v2624 = vsel %vm1291, %v2617, 0
        %v2626 = vsel %vm1291, %v2619, 0
        %v2628 = vsel %vm1291, %v2621, 0
        %v2630 = vsel %vm1291, %v2623, 0
        %2632 = vmatprep.subr.mxu0 0.0
        %2633 = vmatpush1.xpose.msra.mxu0 %v2628
        %2634 = vmatprep.subr.mxu0 0.0
        %2635 = vmatpush1.xpose.msra.mxu0 %v2630
        %2636 = vmatprep.subr.mxu0 0.0
        %2637 = vmatpush1.xpose.msra.mxu0 0.0
        %2638 = vmatprep.subr.mxu0 0.0
        %2639 = vmatpush1.xpose.msra.mxu0 0.0
        %2640 = vmatprep.subr.mxu0 0.0
        %2641 = vmatpush1.xpose.msra.mxu0 0.0
        %2642 = vmatprep.subr.mxu0 0.0
        %2643 = vmatpush1.xpose.msra.mxu0 0.0
        %2644 = vmatprep.subr.mxu0 0.0
        %2645 = vmatpush1.xpose.msra.mxu0 0.0
        %2646 = vmatprep.subr.mxu0 0.0
        %2647 = vmatpush1.xpose.msra.mxu0 0.0
        %2648 = vmatprep.subr.mxu0 0.0
        %2649 = vmatpush1.xpose.msra.mxu0 0.0
        %2650 = vmatprep.subr.mxu0 0.0
        %2651 = vmatpush1.xpose.msra.mxu0 0.0
        %2652 = vmatprep.subr.mxu0 0.0
        %2653 = vmatpush1.xpose.msra.mxu0 0.0
        %2654 = vmatprep.subr.mxu0 0.0
        %2655 = vmatpush1.xpose.msra.mxu0 0.0
        %2656 = vmatprep.subr.mxu0 0.0
        %2657 = vmatpush1.xpose.msra.mxu0 0.0
        %2658 = vmatprep.subr.mxu0 0.0
        %2659 = vmatpush1.xpose.msra.mxu0 0.0
        %2660 = vmatprep.subr.mxu0 0.0
        %2661 = vmatpush1.xpose.msra.mxu0 0.0
        %2662 = vmatprep.subr.mxu0 0.0
        %2663 = vmatpush1.xpose.msra.mxu0 0.0
        %2664 = vmatprep.subr.mxu0 0.0
        %2665 = vmatpush1.xpose.msra.mxu0 0.0
        %2666 = vmatprep.subr.mxu0 0.0
        %2667 = vmatpush1.xpose.msra.mxu0 0.0
        %2668 = vmatprep.subr.mxu0 0.0
        %2669 = vmatpush1.xpose.msra.mxu0 0.0
        %2670 = vmatprep.subr.mxu0 0.0
        %2671 = vmatpush1.xpose.msra.mxu0 0.0
        %2672 = vmatprep.subr.mxu0 0.0
        %2673 = vmatpush1.xpose.msra.mxu0 0.0
        %2674 = vmatprep.subr.mxu0 0.0
        %2675 = vmatpush1.xpose.msra.mxu0 0.0
        %2676 = vmatprep.subr.mxu0 0.0
        %2677 = vmatpush1.xpose.msra.mxu0 0.0
        %2678 = vmatprep.subr.mxu0 0.0
        %2679 = vmatpush1.xpose.msra.mxu0 0.0
        %2680 = vmatprep.subr.mxu0 0.0
        %2681 = vmatpush1.xpose.msra.mxu0 0.0
        %2682 = vmatprep.subr.mxu0 0.0
        %2683 = vmatpush1.xpose.msra.mxu0 0.0
        %2684 = vmatprep.subr.mxu0 0.0
        %2685 = vmatpush1.xpose.msra.mxu0 0.0
        %2686 = vmatprep.subr.mxu0 0.0
        %2687 = vmatpush1.xpose.msra.mxu0 0.0
        %2688 = vmatprep.subr.mxu0 0.0
        %2689 = vmatpush1.xpose.msra.mxu0 0.0
        %2690 = vmatprep.subr.mxu0 0.0
        %2691 = vmatpush1.xpose.msra.mxu0 0.0
        %2692 = vmatprep.subr.mxu0 0.0
        %2693 = vmatpush1.xpose.msra.mxu0 0.0
        %2694 = vmatprep.subr.mxu0 0.0
        %2695 = vmatpush1.xpose.msra.mxu0 0.0
        %2696 = vmatprep.mubr.f32.mxu0 0.0
        %2697 = vmatmul.mubr.f32.gmra.mrb[0].mxu0 %v2624
        %v2698 = vpop.f32.mrb[0].mxu0
        %v2699 = vadd.f32 0.0, %v2698
        %v2700 = vpop.f32.mrb[0].mxu0
        %2701 = vmatprep.mubr.f32.mxu0 0.0
        %2702 = vmatmul.mubr.f32.gmra.mrb[0].mxu0 %v2626
        %v2703 = vpop.f32.mrb[0].mxu0
        %v2704 = vadd.f32 0.0, %v2703
        %v2705 = vpop.f32.mrb[0].mxu0
        %2706 = vdwg.mxu0
        %v2707 = vmul.f32 %v2608, 0.35355338
        %v2708 = vmul.f32 %v2613, 0.35355338
        %v2709 = vmul.f32 %v2699, 0.35355338
        %v2710 = vmul.f32 %v2704, 0.35355338
        %v2711 = vadd.f32 %v2707, %v1474
        %v2712 = vadd.f32 %v2708, %v1474
        %v2713 = vadd.f32 %v2709, %v1474
        %v2714 = vadd.f32 %v2710, %v1474
        %v2715 = vsel %vm1480, %v2711, -inf
        %2716 = vmax.xlane.f32.xlu0 %v2715
        %v2717 = vpop.xlane.xlu0 %2716
        %v2718 = vsel %vm1480, %v2712, -inf
        %2719 = vmax.xlane.f32.xlu0 %v2718
        %v2720 = vpop.xlane.xlu0 %2719
        %v2721 = vsel %vm1480, %v2713, -inf
        %2722 = vmax.xlane.f32.xlu0 %v2721
        %v2723 = vpop.xlane.xlu0 %2722
        %v2724 = vsel %vm1480, %v2714, -inf
        %2725 = vmax.xlane.f32.xlu0 %v2724
        %v2726 = vpop.xlane.xlu0 %2725
        %v2727 = vsub.f32 %v2711, %v2717
        %v2728 = vsub.f32 %v2712, %v2720
        %v2729 = vsub.f32 %v2713, %v2723
        %v2730 = vsub.f32 %v2714, %v2726
        %v2731 = vmul.f32 %v2727, 1.442695
        %v2732 = vpow.pop %v2731
        %v2733 = vmul.f32 %v2728, 1.442695
        %v2734 = vpow.pop %v2733
        %v2735 = vmul.f32 %v2729, 1.442695
        %v2736 = vpow.pop %v2735
        %v2737 = vmul.f32 %v2730, 1.442695
        %v2738 = vpow.pop %v2737
        %v2739 = vsel %vm1480, %v2732, 0.0
        %2740 = vadd.xlane.f32.xlu0 %v2739
        %v2741 = vpop.xlane.xlu0 %2740
        %v2742 = vsel %vm1480, %v2734, 0.0
        %2743 = vadd.xlane.f32.xlu0 %v2742
        %v2744 = vpop.xlane.xlu0 %2743
        %v2745 = vsel %vm1480, %v2736, 0.0
        %2746 = vadd.xlane.f32.xlu0 %v2745
        %v2747 = vpop.xlane.xlu0 %2746
        %v2748 = vsel %vm1480, %v2738, 0.0
        %2749 = vadd.xlane.f32.xlu0 %v2748
        %v2750 = vpop.xlane.xlu0 %2749
        %v2751 = vrcp.pop %v2741
        %v2752 = vrcp.pop %v2744
        %v2753 = vrcp.pop %v2747
        %v2754 = vrcp.pop %v2750
        %v2755 = vmul.f32 %v2732, %v2751
        %v2756 = vmul.f32 %v2734, %v2752
        %v2757 = vmul.f32 %v2736, %v2753
        %v2758 = vmul.f32 %v2738, %v2754
        %v2759 = vmul.f32 %v2755, %v930
        %v2760 = vmul.f32 %v2756, %v935
        %v2761 = vmul.f32 %v2757, %v930
        %v2762 = vmul.f32 %v2758, %v935
        %v2763 = vsel %vm1480, %v2759, 0.0
        %v2764 = vsel %vm1480, %v2760, 0.0
        %v2765 = vadd.f32 %v2763, %v2764
        %v2766 = vrot.slane %v2765, 4
        %v2767 = vadd.f32 %v2765, %v2766
        %v2768 = vrot.slane %v2767, 2
        %v2769 = vadd.f32 %v2767, %v2768
        %v2770 = vrot.slane %v2769, 1
        %v2771 = vadd.f32 %v2769, %v2770
        %v2772 = vsel %vm1480, %v2761, 0.0
        %v2773 = vsel %vm1480, %v2762, 0.0
        %v2774 = vadd.f32 %v2772, %v2773
        %v2775 = vrot.slane %v2774, 4
        %v2776 = vadd.f32 %v2774, %v2775
        %v2777 = vrot.slane %v2776, 2
        %v2778 = vadd.f32 %v2776, %v2777
        %v2779 = vrot.slane %v2778, 1
        %v2780 = vadd.f32 %v2778, %v2779
        %2781 = vrot.lane.b32.xlu0 %v1273, 104
        %v2782 = vpop.permute.xlu0 %2781
        %2783 = vrot.lane.b32.xlu0 %v1278, 104
        %v2784 = vpop.permute.xlu0 %2783
        %v2788 = vsel %vm1480, %v2771, 0
        %2790 = vmatprep.subr.mxu0 0.0
        %2791 = vmatpush1.msra.mxu0 %v2782
        %2792 = vmatprep.subr.mxu0 0.0
        %2793 = vmatpush1.msra.mxu0 %v2784
        %2794 = vmatprep.subr.mxu0 0.0
        %2795 = vmatpush1.msra.mxu0 0.0
        %2796 = vmatprep.subr.mxu0 0.0
        %2797 = vmatpush1.msra.mxu0 0.0
        %2798 = vmatprep.subr.mxu0 0.0
        %2799 = vmatpush1.msra.mxu0 0.0
        %2800 = vmatprep.subr.mxu0 0.0
        %2801 = vmatpush1.msra.mxu0 0.0
        %2802 = vmatprep.subr.mxu0 0.0
        %2803 = vmatpush1.msra.mxu0 0.0
        %2804 = vmatprep.subr.mxu0 0.0
        %2805 = vmatpush1.msra.mxu0 0.0
        %2806 = vmatprep.subr.mxu0 0.0
        %2807 = vmatpush1.msra.mxu0 0.0
        %2808 = vmatprep.subr.mxu0 0.0
        %2809 = vmatpush1.msra.mxu0 0.0
        %2810 = vmatprep.subr.mxu0 0.0
        %2811 = vmatpush1.msra.mxu0 0.0
        %2812 = vmatprep.subr.mxu0 0.0
        %2813 = vmatpush1.msra.mxu0 0.0
        %2814 = vmatprep.subr.mxu0 0.0
        %2815 = vmatpush1.msra.mxu0 0.0
        %2816 = vmatprep.subr.mxu0 0.0
        %2817 = vmatpush1.msra.mxu0 0.0
        %2818 = vmatprep.subr.mxu0 0.0
        %2819 = vmatpush1.msra.mxu0 0.0
        %2820 = vmatprep.subr.mxu0 0.0
        %2821 = vmatpush1.msra.mxu0 0.0
        %2822 = vmatprep.subr.mxu0 0.0
        %2823 = vmatpush1.msra.mxu0 0.0
        %2824 = vmatprep.subr.mxu0 0.0
        %2825 = vmatpush1.msra.mxu0 0.0
        %2826 = vmatprep.subr.mxu0 0.0
        %2827 = vmatpush1.msra.mxu0 0.0
        %2828 = vmatprep.subr.mxu0 0.0
        %2829 = vmatpush1.msra.mxu0 0.0
        %2830 = vmatprep.subr.mxu0 0.0
        %2831 = vmatpush1.msra.mxu0 0.0
        %2832 = vmatprep.subr.mxu0 0.0
        %2833 = vmatpush1.msra.mxu0 0.0
        %2834 = vmatprep.subr.mxu0 0.0
        %2835 = vmatpush1.msra.mxu0 0.0
        %2836 = vmatprep.subr.mxu0 0.0
        %2837 = vmatpush1.msra.mxu0 0.0
        %2838 = vmatprep.subr.mxu0 0.0
        %2839 = vmatpush1.msra.mxu0 0.0
        %2840 = vmatprep.subr.mxu0 0.0
        %2841 = vmatpush1.msra.mxu0 0.0
        %2842 = vmatprep.subr.mxu0 0.0
        %2843 = vmatpush1.msra.mxu0 0.0
        %2844 = vmatprep.subr.mxu0 0.0
        %2845 = vmatpush1.msra.mxu0 0.0
        %2846 = vmatprep.subr.mxu0 0.0
        %2847 = vmatpush1.msra.mxu0 0.0
        %2848 = vmatprep.subr.mxu0 0.0
        %2849 = vmatpush1.msra.mxu0 0.0
        %2850 = vmatprep.subr.mxu0 0.0
        %2851 = vmatpush1.msra.mxu0 0.0
        %2852 = vmatprep.subr.mxu0 0.0
        %2853 = vmatpush1.msra.mxu0 0.0
        %2854 = vmatprep.mubr.f32.mxu0 0.0
        %2855 = vmatmul.mubr.f32.gmra.mrb[0].mxu0 %v2788
        %v2856 = vpop.f32.mrb[0].mxu0
        %v2857 = vadd.f32 0.0, %v2856
        %v2858 = vpop.f32.mrb[0].mxu0
        %2859 = vdwg.mxu0
        %2860 = vrot.lane.b32.xlu0 %v1283, 104
        %v2861 = vpop.permute.xlu0 %2860
        %2862 = vrot.lane.b32.xlu0 %v1288, 104
        %v2863 = vpop.permute.xlu0 %2862
        %v2867 = vsel %vm1480, %v2780, 0
        %2869 = vmatprep.subr.mxu0 0.0
        %2870 = vmatpush1.msra.mxu0 %v2861
        %2871 = vmatprep.subr.mxu0 0.0
        %2872 = vmatpush1.msra.mxu0 %v2863
        %2873 = vmatprep.subr.mxu0 0.0
        %2874 = vmatpush1.msra.mxu0 0.0
        %2875 = vmatprep.subr.mxu0 0.0
        %2876 = vmatpush1.msra.mxu0 0.0
        %2877 = vmatprep.subr.mxu0 0.0
        %2878 = vmatpush1.msra.mxu0 0.0
        %2879 = vmatprep.subr.mxu0 0.0
        %2880 = vmatpush1.msra.mxu0 0.0
        %2881 = vmatprep.subr.mxu0 0.0
        %2882 = vmatpush1.msra.mxu0 0.0
        %2883 = vmatprep.subr.mxu0 0.0
        %2884 = vmatpush1.msra.mxu0 0.0
        %2885 = vmatprep.subr.mxu0 0.0
        %2886 = vmatpush1.msra.mxu0 0.0
        %2887 = vmatprep.subr.mxu0 0.0
        %2888 = vmatpush1.msra.mxu0 0.0
        %2889 = vmatprep.subr.mxu0 0.0
        %2890 = vmatpush1.msra.mxu0 0.0
        %2891 = vmatprep.subr.mxu0 0.0
        %2892 = vmatpush1.msra.mxu0 0.0
        %2893 = vmatprep.subr.mxu0 0.0
        %2894 = vmatpush1.msra.mxu0 0.0
        %2895 = vmatprep.subr.mxu0 0.0
        %2896 = vmatpush1.msra.mxu0 0.0
        %2897 = vmatprep.subr.mxu0 0.0
        %2898 = vmatpush1.msra.mxu0 0.0
        %2899 = vmatprep.subr.mxu0 0.0
        %2900 = vmatpush1.msra.mxu0 0.0
        %2901 = vmatprep.subr.mxu0 0.0
        %2902 = vmatpush1.msra.mxu0 0.0
        %2903 = vmatprep.subr.mxu0 0.0
        %2904 = vmatpush1.msra.mxu0 0.0
        %2905 = vmatprep.subr.mxu0 0.0
        %2906 = vmatpush1.msra.mxu0 0.0
        %2907 = vmatprep.subr.mxu0 0.0
        %2908 = vmatpush1.msra.mxu0 0.0
        %2909 = vmatprep.subr.mxu0 0.0
        %2910 = vmatpush1.msra.mxu0 0.0
        %2911 = vmatprep.subr.mxu0 0.0
        %2912 = vmatpush1.msra.mxu0 0.0
        %2913 = vmatprep.subr.mxu0 0.0
        %2914 = vmatpush1.msra.mxu0 0.0
        %2915 = vmatprep.subr.mxu0 0.0
        %2916 = vmatpush1.msra.mxu0 0.0
        %2917 = vmatprep.subr.mxu0 0.0
        %2918 = vmatpush1.msra.mxu0 0.0
        %2919 = vmatprep.subr.mxu0 0.0
        %2920 = vmatpush1.msra.mxu0 0.0
        %2921 = vmatprep.subr.mxu0 0.0
        %2922 = vmatpush1.msra.mxu0 0.0
        %2923 = vmatprep.subr.mxu0 0.0
        %2924 = vmatpush1.msra.mxu0 0.0
        %2925 = vmatprep.subr.mxu0 0.0
        %2926 = vmatpush1.msra.mxu0 0.0
        %2927 = vmatprep.subr.mxu0 0.0
        %2928 = vmatpush1.msra.mxu0 0.0
        %2929 = vmatprep.subr.mxu0 0.0
        %2930 = vmatpush1.msra.mxu0 0.0
        %2931 = vmatprep.subr.mxu0 0.0
        %2932 = vmatpush1.msra.mxu0 0.0
        %2933 = vmatprep.mubr.f32.mxu0 0.0
        %2934 = vmatmul.mubr.f32.gmra.mrb[0].mxu0 %v2867
        %v2935 = vpop.f32.mrb[0].mxu0
        %v2936 = vadd.f32 0.0, %v2935
        %v2937 = vpop.f32.mrb[0].mxu0
        %2938 = vdwg.mxu0
        %2939 = vrot.lane.b32.xlu0 %v1061, 96
        %v2940 = vpop.permute.xlu0 %2939
        %2941 = vrot.lane.b32.xlu0 %v1066, 96
        %v2942 = vpop.permute.xlu0 %2941
        %2943 = vrot.lane.b32.xlu0 %v1173, 96
        %v2944 = vpop.permute.xlu0 %2943
        %2945 = vrot.lane.b32.xlu0 %v1178, 96
        %v2946 = vpop.permute.xlu0 %2945
        %v2947 = vsel %vm1291, %v2940, 0
        %v2949 = vsel %vm1291, %v2942, 0
        %v2951 = vsel %vm1291, %v2944, 0
        %v2953 = vsel %vm1291, %v2946, 0
        %2955 = vmatprep.subr.mxu0 0.0
        %2956 = vmatpush1.xpose.msra.mxu0 %v2951
        %2957 = vmatprep.subr.mxu0 0.0
        %2958 = vmatpush1.xpose.msra.mxu0 %v2953
        %2959 = vmatprep.subr.mxu0 0.0
        %2960 = vmatpush1.xpose.msra.mxu0 0.0
        %2961 = vmatprep.subr.mxu0 0.0
        %2962 = vmatpush1.xpose.msra.mxu0 0.0
        %2963 = vmatprep.subr.mxu0 0.0
        %2964 = vmatpush1.xpose.msra.mxu0 0.0
        %2965 = vmatprep.subr.mxu0 0.0
        %2966 = vmatpush1.xpose.msra.mxu0 0.0
        %2967 = vmatprep.subr.mxu0 0.0
        %2968 = vmatpush1.xpose.msra.mxu0 0.0
        %2969 = vmatprep.subr.mxu0 0.0
        %2970 = vmatpush1.xpose.msra.mxu0 0.0
        %2971 = vmatprep.subr.mxu0 0.0
        %2972 = vmatpush1.xpose.msra.mxu0 0.0
        %2973 = vmatprep.subr.mxu0 0.0
        %2974 = vmatpush1.xpose.msra.mxu0 0.0
        %2975 = vmatprep.subr.mxu0 0.0
        %2976 = vmatpush1.xpose.msra.mxu0 0.0
        %2977 = vmatprep.subr.mxu0 0.0
        %2978 = vmatpush1.xpose.msra.mxu0 0.0
        %2979 = vmatprep.subr.mxu0 0.0
        %2980 = vmatpush1.xpose.msra.mxu0 0.0
        %2981 = vmatprep.subr.mxu0 0.0
        %2982 = vmatpush1.xpose.msra.mxu0 0.0
        %2983 = vmatprep.subr.mxu0 0.0
        %2984 = vmatpush1.xpose.msra.mxu0 0.0
        %2985 = vmatprep.subr.mxu0 0.0
        %2986 = vmatpush1.xpose.msra.mxu0 0.0
        %2987 = vmatprep.subr.mxu0 0.0
        %2988 = vmatpush1.xpose.msra.mxu0 0.0
        %2989 = vmatprep.subr.mxu0 0.0
        %2990 = vmatpush1.xpose.msra.mxu0 0.0
        %2991 = vmatprep.subr.mxu0 0.0
        %2992 = vmatpush1.xpose.msra.mxu0 0.0
        %2993 = vmatprep.subr.mxu0 0.0
        %2994 = vmatpush1.xpose.msra.mxu0 0.0
        %2995 = vmatprep.subr.mxu0 0.0
        %2996 = vmatpush1.xpose.msra.mxu0 0.0
        %2997 = vmatprep.subr.mxu0 0.0
        %2998 = vmatpush1.xpose.msra.mxu0 0.0
        %2999 = vmatprep.subr.mxu0 0.0
        %3000 = vmatpush1.xpose.msra.mxu0 0.0
        %3001 = vmatprep.subr.mxu0 0.0
        %3002 = vmatpush1.xpose.msra.mxu0 0.0
        %3003 = vmatprep.subr.mxu0 0.0
        %3004 = vmatpush1.xpose.msra.mxu0 0.0
        %3005 = vmatprep.subr.mxu0 0.0
        %3006 = vmatpush1.xpose.msra.mxu0 0.0
        %3007 = vmatprep.subr.mxu0 0.0
        %3008 = vmatpush1.xpose.msra.mxu0 0.0
        %3009 = vmatprep.subr.mxu0 0.0
        %3010 = vmatpush1.xpose.msra.mxu0 0.0
        %3011 = vmatprep.subr.mxu0 0.0
        %3012 = vmatpush1.xpose.msra.mxu0 0.0
        %3013 = vmatprep.subr.mxu0 0.0
        %3014 = vmatpush1.xpose.msra.mxu0 0.0
        %3015 = vmatprep.subr.mxu0 0.0
        %3016 = vmatpush1.xpose.msra.mxu0 0.0
        %3017 = vmatprep.subr.mxu0 0.0
        %3018 = vmatpush1.xpose.msra.mxu0 0.0
        %3019 = vmatprep.mubr.f32.mxu0 0.0
        %3020 = vmatmul.mubr.f32.gmra.mrb[0].mxu0 %v2947
        %v3021 = vpop.f32.mrb[0].mxu0
        %v3022 = vadd.f32 0.0, %v3021
        %v3023 = vpop.f32.mrb[0].mxu0
        %3024 = vmatprep.mubr.f32.mxu0 0.0
        %3025 = vmatmul.mubr.f32.gmra.mrb[0].mxu0 %v2949
        %v3026 = vpop.f32.mrb[0].mxu0
        %v3027 = vadd.f32 0.0, %v3026
        %v3028 = vpop.f32.mrb[0].mxu0
        %3029 = vdwg.mxu0
        %3030 = vrot.lane.b32.xlu0 %v1071, 96
        %v3031 = vpop.permute.xlu0 %3030
        %3032 = vrot.lane.b32.xlu0 %v1076, 96
        %v3033 = vpop.permute.xlu0 %3032
        %3034 = vrot.lane.b32.xlu0 %v1183, 96
        %v3035 = vpop.permute.xlu0 %3034
        %3036 = vrot.lane.b32.xlu0 %v1188, 96
        %v3037 = vpop.permute.xlu0 %3036
        %v3038 = vsel %vm1291, %v3031, 0
        %v3040 = vsel %vm1291, %v3033, 0
        %v3042 = vsel %vm1291, %v3035, 0
        %v3044 = vsel %vm1291, %v3037, 0
        %3046 = vmatprep.subr.mxu0 0.0
        %3047 = vmatpush1.xpose.msra.mxu0 %v3042
        %3048 = vmatprep.subr.mxu0 0.0
        %3049 = vmatpush1.xpose.msra.mxu0 %v3044
        %3050 = vmatprep.subr.mxu0 0.0
        %3051 = vmatpush1.xpose.msra.mxu0 0.0
        %3052 = vmatprep.subr.mxu0 0.0
        %3053 = vmatpush1.xpose.msra.mxu0 0.0
        %3054 = vmatprep.subr.mxu0 0.0
        %3055 = vmatpush1.xpose.msra.mxu0 0.0
        %3056 = vmatprep.subr.mxu0 0.0
        %3057 = vmatpush1.xpose.msra.mxu0 0.0
        %3058 = vmatprep.subr.mxu0 0.0
        %3059 = vmatpush1.xpose.msra.mxu0 0.0
        %3060 = vmatprep.subr.mxu0 0.0
        %3061 = vmatpush1.xpose.msra.mxu0 0.0
        %3062 = vmatprep.subr.mxu0 0.0
        %3063 = vmatpush1.xpose.msra.mxu0 0.0
        %3064 = vmatprep.subr.mxu0 0.0
        %3065 = vmatpush1.xpose.msra.mxu0 0.0
        %3066 = vmatprep.subr.mxu0 0.0
        %3067 = vmatpush1.xpose.msra.mxu0 0.0
        %3068 = vmatprep.subr.mxu0 0.0
        %3069 = vmatpush1.xpose.msra.mxu0 0.0
        %3070 = vmatprep.subr.mxu0 0.0
        %3071 = vmatpush1.xpose.msra.mxu0 0.0
        %3072 = vmatprep.subr.mxu0 0.0
        %3073 = vmatpush1.xpose.msra.mxu0 0.0
        %3074 = vmatprep.subr.mxu0 0.0
        %3075 = vmatpush1.xpose.msra.mxu0 0.0
        %3076 = vmatprep.subr.mxu0 0.0
        %3077 = vmatpush1.xpose.msra.mxu0 0.0
        %3078 = vmatprep.subr.mxu0 0.0
        %3079 = vmatpush1.xpose.msra.mxu0 0.0
        %3080 = vmatprep.subr.mxu0 0.0
        %3081 = vmatpush1.xpose.msra.mxu0 0.0
        %3082 = vmatprep.subr.mxu0 0.0
        %3083 = vmatpush1.xpose.msra.mxu0 0.0
        %3084 = vmatprep.subr.mxu0 0.0
        %3085 = vmatpush1.xpose.msra.mxu0 0.0
        %3086 = vmatprep.subr.mxu0 0.0
        %3087 = vmatpush1.xpose.msra.mxu0 0.0
        %3088 = vmatprep.subr.mxu0 0.0
        %3089 = vmatpush1.xpose.msra.mxu0 0.0
        %3090 = vmatprep.subr.mxu0 0.0
        %3091 = vmatpush1.xpose.msra.mxu0 0.0
        %3092 = vmatprep.subr.mxu0 0.0
        %3093 = vmatpush1.xpose.msra.mxu0 0.0
        %3094 = vmatprep.subr.mxu0 0.0
        %3095 = vmatpush1.xpose.msra.mxu0 0.0
        %3096 = vmatprep.subr.mxu0 0.0
        %3097 = vmatpush1.xpose.msra.mxu0 0.0
        %3098 = vmatprep.subr.mxu0 0.0
        %3099 = vmatpush1.xpose.msra.mxu0 0.0
        %3100 = vmatprep.subr.mxu0 0.0
        %3101 = vmatpush1.xpose.msra.mxu0 0.0
        %3102 = vmatprep.subr.mxu0 0.0
        %3103 = vmatpush1.xpose.msra.mxu0 0.0
        %3104 = vmatprep.subr.mxu0 0.0
        %3105 = vmatpush1.xpose.msra.mxu0 0.0
        %3106 = vmatprep.subr.mxu0 0.0
        %3107 = vmatpush1.xpose.msra.mxu0 0.0
        %3108 = vmatprep.subr.mxu0 0.0
        %3109 = vmatpush1.xpose.msra.mxu0 0.0
        %3110 = vmatprep.mubr.f32.mxu0 0.0
        %3111 = vmatmul.mubr.f32.gmra.mrb[0].mxu0 %v3038
        %v3112 = vpop.f32.mrb[0].mxu0
        %v3113 = vadd.f32 0.0, %v3112
        %v3114 = vpop.f32.mrb[0].mxu0
        %3115 = vmatprep.mubr.f32.mxu0 0.0
        %3116 = vmatmul.mubr.f32.gmra.mrb[0].mxu0 %v3040
        %v3117 = vpop.f32.mrb[0].mxu0
        %v3118 = vadd.f32 0.0, %v3117
        %v3119 = vpop.f32.mrb[0].mxu0
        %3120 = vdwg.mxu0
        %v3121 = vmul.f32 %v3022, 0.35355338
        %v3122 = vmul.f32 %v3027, 0.35355338
        %v3123 = vmul.f32 %v3113, 0.35355338
        %v3124 = vmul.f32 %v3118, 0.35355338
        %v3125 = vadd.f32 %v3121, %v1474
        %v3126 = vadd.f32 %v3122, %v1474
        %v3127 = vadd.f32 %v3123, %v1474
        %v3128 = vadd.f32 %v3124, %v1474
        %v3129 = vsel %vm1480, %v3125, -inf
        %3130 = vmax.xlane.f32.xlu0 %v3129
        %v3131 = vpop.xlane.xlu0 %3130
        %v3132 = vsel %vm1480, %v3126, -inf
        %3133 = vmax.xlane.f32.xlu0 %v3132
        %v3134 = vpop.xlane.xlu0 %3133
        %v3135 = vsel %vm1480, %v3127, -inf
        %3136 = vmax.xlane.f32.xlu0 %v3135
        %v3137 = vpop.xlane.xlu0 %3136
        %v3138 = vsel %vm1480, %v3128, -inf
        %3139 = vmax.xlane.f32.xlu0 %v3138
        %v3140 = vpop.xlane.xlu0 %3139
        %v3141 = vsub.f32 %v3125, %v3131
        %v3142 = vsub.f32 %v3126, %v3134
        %v3143 = vsub.f32 %v3127, %v3137
        %v3144 = vsub.f32 %v3128, %v3140
        %v3145 = vmul.f32 %v3141, 1.442695
        %v3146 = vpow.pop %v3145
        %v3147 = vmul.f32 %v3142, 1.442695
        %v3148 = vpow.pop %v3147
        %v3149 = vmul.f32 %v3143, 1.442695
        %v3150 = vpow.pop %v3149
        %v3151 = vmul.f32 %v3144, 1.442695
        %v3152 = vpow.pop %v3151
        %v3153 = vsel %vm1480, %v3146, 0.0
        %3154 = vadd.xlane.f32.xlu0 %v3153
        %v3155 = vpop.xlane.xlu0 %3154
        %v3156 = vsel %vm1480, %v3148, 0.0
        %3157 = vadd.xlane.f32.xlu0 %v3156
        %v3158 = vpop.xlane.xlu0 %3157
        %v3159 = vsel %vm1480, %v3150, 0.0
        %3160 = vadd.xlane.f32.xlu0 %v3159
        %v3161 = vpop.xlane.xlu0 %3160
        %v3162 = vsel %vm1480, %v3152, 0.0
        %3163 = vadd.xlane.f32.xlu0 %v3162
        %v3164 = vpop.xlane.xlu0 %3163
        %v3165 = vrcp.pop %v3155
        %v3166 = vrcp.pop %v3158
        %v3167 = vrcp.pop %v3161
        %v3168 = vrcp.pop %v3164
        %v3169 = vmul.f32 %v3146, %v3165
        %v3170 = vmul.f32 %v3148, %v3166
        %v3171 = vmul.f32 %v3150, %v3167
        %v3172 = vmul.f32 %v3152, %v3168
        %v3173 = vmul.f32 %v3169, %v930
        %v3174 = vmul.f32 %v3170, %v935
        %v3175 = vmul.f32 %v3171, %v930
        %v3176 = vmul.f32 %v3172, %v935
        %v3177 = vsel %vm1480, %v3173, 0.0
        %v3178 = vsel %vm1480, %v3174, 0.0
        %v3179 = vadd.f32 %v3177, %v3178
        %v3180 = vrot.slane %v3179, 4
        %v3181 = vadd.f32 %v3179, %v3180
        %v3182 = vrot.slane %v3181, 2
        %v3183 = vadd.f32 %v3181, %v3182
        %v3184 = vrot.slane %v3183, 1
        %v3185 = vadd.f32 %v3183, %v3184
        %v3186 = vsel %vm1480, %v3175, 0.0
        %v3187 = vsel %vm1480, %v3176, 0.0
        %v3188 = vadd.f32 %v3186, %v3187
        %v3189 = vrot.slane %v3188, 4
        %v3190 = vadd.f32 %v3188, %v3189
        %v3191 = vrot.slane %v3190, 2
        %v3192 = vadd.f32 %v3190, %v3191
        %v3193 = vrot.slane %v3192, 1
        %v3194 = vadd.f32 %v3192, %v3193
        %3195 = vrot.lane.b32.xlu0 %v1273, 96
        %v3196 = vpop.permute.xlu0 %3195
        %3197 = vrot.lane.b32.xlu0 %v1278, 96
        %v3198 = vpop.permute.xlu0 %3197
        %v3202 = vsel %vm1480, %v3185, 0
        %3204 = vmatprep.subr.mxu0 0.0
        %3205 = vmatpush1.msra.mxu0 %v3196
        %3206 = vmatprep.subr.mxu0 0.0
        %3207 = vmatpush1.msra.mxu0 %v3198
        %3208 = vmatprep.subr.mxu0 0.0
        %3209 = vmatpush1.msra.mxu0 0.0
        %3210 = vmatprep.subr.mxu0 0.0
        %3211 = vmatpush1.msra.mxu0 0.0
        %3212 = vmatprep.subr.mxu0 0.0
        %3213 = vmatpush1.msra.mxu0 0.0
        %3214 = vmatprep.subr.mxu0 0.0
        %3215 = vmatpush1.msra.mxu0 0.0
        %3216 = vmatprep.subr.mxu0 0.0
        %3217 = vmatpush1.msra.mxu0 0.0
        %3218 = vmatprep.subr.mxu0 0.0
        %3219 = vmatpush1.msra.mxu0 0.0
        %3220 = vmatprep.subr.mxu0 0.0
        %3221 = vmatpush1.msra.mxu0 0.0
        %3222 = vmatprep.subr.mxu0 0.0
        %3223 = vmatpush1.msra.mxu0 0.0
        %3224 = vmatprep.subr.mxu0 0.0
        %3225 = vmatpush1.msra.mxu0 0.0
        %3226 = vmatprep.subr.mxu0 0.0
        %3227 = vmatpush1.msra.mxu0 0.0
        %3228 = vmatprep.subr.mxu0 0.0
        %3229 = vmatpush1.msra.mxu0 0.0
        %3230 = vmatprep.subr.mxu0 0.0
        %3231 = vmatpush1.msra.mxu0 0.0
        %3232 = vmatprep.subr.mxu0 0.0
        %3233 = vmatpush1.msra.mxu0 0.0
        %3234 = vmatprep.subr.mxu0 0.0
        %3235 = vmatpush1.msra.mxu0 0.0
        %3236 = vmatprep.subr.mxu0 0.0
        %3237 = vmatpush1.msra.mxu0 0.0
        %3238 = vmatprep.subr.mxu0 0.0
        %3239 = vmatpush1.msra.mxu0 0.0
        %3240 = vmatprep.subr.mxu0 0.0
        %3241 = vmatpush1.msra.mxu0 0.0
        %3242 = vmatprep.subr.mxu0 0.0
        %3243 = vmatpush1.msra.mxu0 0.0
        %3244 = vmatprep.subr.mxu0 0.0
        %3245 = vmatpush1.msra.mxu0 0.0
        %3246 = vmatprep.subr.mxu0 0.0
        %3247 = vmatpush1.msra.mxu0 0.0
        %3248 = vmatprep.subr.mxu0 0.0
        %3249 = vmatpush1.msra.mxu0 0.0
        %3250 = vmatprep.subr.mxu0 0.0
        %3251 = vmatpush1.msra.mxu0 0.0
        %3252 = vmatprep.subr.mxu0 0.0
        %3253 = vmatpush1.msra.mxu0 0.0
        %3254 = vmatprep.subr.mxu0 0.0
        %3255 = vmatpush1.msra.mxu0 0.0
        %3256 = vmatprep.subr.mxu0 0.0
        %3257 = vmatpush1.msra.mxu0 0.0
        %3258 = vmatprep.subr.mxu0 0.0
        %3259 = vmatpush1.msra.mxu0 0.0
        %3260 = vmatprep.subr.mxu0 0.0
        %3261 = vmatpush1.msra.mxu0 0.0
        %3262 = vmatprep.subr.mxu0 0.0
        %3263 = vmatpush1.msra.mxu0 0.0
        %3264 = vmatprep.subr.mxu0 0.0
        %3265 = vmatpush1.msra.mxu0 0.0
        %3266 = vmatprep.subr.mxu0 0.0
        %3267 = vmatpush1.msra.mxu0 0.0
        %3268 = vmatprep.mubr.f32.mxu0 0.0
        %3269 = vmatmul.mubr.f32.gmra.mrb[0].mxu0 %v3202
        %v3270 = vpop.f32.mrb[0].mxu0
        %v3271 = vadd.f32 0.0, %v3270
        %v3272 = vpop.f32.mrb[0].mxu0
        %3273 = vdwg.mxu0
        %3274 = vrot.lane.b32.xlu0 %v1283, 96
        %v3275 = vpop.permute.xlu0 %3274
        %3276 = vrot.lane.b32.xlu0 %v1288, 96
        %v3277 = vpop.permute.xlu0 %3276
        %v3281 = vsel %vm1480, %v3194, 0
        %3283 = vmatprep.subr.mxu0 0.0
        %3284 = vmatpush1.msra.mxu0 %v3275
        %3285 = vmatprep.subr.mxu0 0.0
        %3286 = vmatpush1.msra.mxu0 %v3277
        %3287 = vmatprep.subr.mxu0 0.0
        %3288 = vmatpush1.msra.mxu0 0.0
        %3289 = vmatprep.subr.mxu0 0.0
        %3290 = vmatpush1.msra.mxu0 0.0
        %3291 = vmatprep.subr.mxu0 0.0
        %3292 = vmatpush1.msra.mxu0 0.0
        %3293 = vmatprep.subr.mxu0 0.0
        %3294 = vmatpush1.msra.mxu0 0.0
        %3295 = vmatprep.subr.mxu0 0.0
        %3296 = vmatpush1.msra.mxu0 0.0
        %3297 = vmatprep.subr.mxu0 0.0
        %3298 = vmatpush1.msra.mxu0 0.0
        %3299 = vmatprep.subr.mxu0 0.0
        %3300 = vmatpush1.msra.mxu0 0.0
        %3301 = vmatprep.subr.mxu0 0.0
        %3302 = vmatpush1.msra.mxu0 0.0
        %3303 = vmatprep.subr.mxu0 0.0
        %3304 = vmatpush1.msra.mxu0 0.0
        %3305 = vmatprep.subr.mxu0 0.0
        %3306 = vmatpush1.msra.mxu0 0.0
        %3307 = vmatprep.subr.mxu0 0.0
        %3308 = vmatpush1.msra.mxu0 0.0
        %3309 = vmatprep.subr.mxu0 0.0
        %3310 = vmatpush1.msra.mxu0 0.0
        %3311 = vmatprep.subr.mxu0 0.0
        %3312 = vmatpush1.msra.mxu0 0.0
        %3313 = vmatprep.subr.mxu0 0.0
        %3314 = vmatpush1.msra.mxu0 0.0
        %3315 = vmatprep.subr.mxu0 0.0
        %3316 = vmatpush1.msra.mxu0 0.0
        %3317 = vmatprep.subr.mxu0 0.0
        %3318 = vmatpush1.msra.mxu0 0.0
        %3319 = vmatprep.subr.mxu0 0.0
        %3320 = vmatpush1.msra.mxu0 0.0
        %3321 = vmatprep.subr.mxu0 0.0
        %3322 = vmatpush1.msra.mxu0 0.0
        %3323 = vmatprep.subr.mxu0 0.0
        %3324 = vmatpush1.msra.mxu0 0.0
        %3325 = vmatprep.subr.mxu0 0.0
        %3326 = vmatpush1.msra.mxu0 0.0
        %3327 = vmatprep.subr.mxu0 0.0
        %3328 = vmatpush1.msra.mxu0 0.0
        %3329 = vmatprep.subr.mxu0 0.0
        %3330 = vmatpush1.msra.mxu0 0.0
        %3331 = vmatprep.subr.mxu0 0.0
        %3332 = vmatpush1.msra.mxu0 0.0
        %3333 = vmatprep.subr.mxu0 0.0
        %3334 = vmatpush1.msra.mxu0 0.0
        %3335 = vmatprep.subr.mxu0 0.0
        %3336 = vmatpush1.msra.mxu0 0.0
        %3337 = vmatprep.subr.mxu0 0.0
        %3338 = vmatpush1.msra.mxu0 0.0
        %3339 = vmatprep.subr.mxu0 0.0
        %3340 = vmatpush1.msra.mxu0 0.0
        %3341 = vmatprep.subr.mxu0 0.0
        %3342 = vmatpush1.msra.mxu0 0.0
        %3343 = vmatprep.subr.mxu0 0.0
        %3344 = vmatpush1.msra.mxu0 0.0
        %3345 = vmatprep.subr.mxu0 0.0
        %3346 = vmatpush1.msra.mxu0 0.0
        %3347 = vmatprep.mubr.f32.mxu0 0.0
        %3348 = vmatmul.mubr.f32.gmra.mrb[0].mxu0 %v3281
        %v3349 = vpop.f32.mrb[0].mxu0
        %v3350 = vadd.f32 0.0, %v3349
        %v3351 = vpop.f32.mrb[0].mxu0
        %3352 = vdwg.mxu0
        %3353 = vrot.lane.b32.xlu0 %v1061, 88
        %v3354 = vpop.permute.xlu0 %3353
        %3355 = vrot.lane.b32.xlu0 %v1066, 88
        %v3356 = vpop.permute.xlu0 %3355
        %3357 = vrot.lane.b32.xlu0 %v1173, 88
        %v3358 = vpop.permute.xlu0 %3357
        %3359 = vrot.lane.b32.xlu0 %v1178, 88
        %v3360 = vpop.permute.xlu0 %3359
        %v3361 = vsel %vm1291, %v3354, 0
        %v3363 = vsel %vm1291, %v3356, 0
        %v3365 = vsel %vm1291, %v3358, 0
        %v3367 = vsel %vm1291, %v3360, 0
        %3369 = vmatprep.subr.mxu0 0.0
        %3370 = vmatpush1.xpose.msra.mxu0 %v3365
        %3371 = vmatprep.subr.mxu0 0.0
        %3372 = vmatpush1.xpose.msra.mxu0 %v3367
        %3373 = vmatprep.subr.mxu0 0.0
        %3374 = vmatpush1.xpose.msra.mxu0 0.0
        %3375 = vmatprep.subr.mxu0 0.0
        %3376 = vmatpush1.xpose.msra.mxu0 0.0
        %3377 = vmatprep.subr.mxu0 0.0
        %3378 = vmatpush1.xpose.msra.mxu0 0.0
        %3379 = vmatprep.subr.mxu0 0.0
        %3380 = vmatpush1.xpose.msra.mxu0 0.0
        %3381 = vmatprep.subr.mxu0 0.0
        %3382 = vmatpush1.xpose.msra.mxu0 0.0
        %3383 = vmatprep.subr.mxu0 0.0
        %3384 = vmatpush1.xpose.msra.mxu0 0.0
        %3385 = vmatprep.subr.mxu0 0.0
        %3386 = vmatpush1.xpose.msra.mxu0 0.0
        %3387 = vmatprep.subr.mxu0 0.0
        %3388 = vmatpush1.xpose.msra.mxu0 0.0
        %3389 = vmatprep.subr.mxu0 0.0
        %3390 = vmatpush1.xpose.msra.mxu0 0.0
        %3391 = vmatprep.subr.mxu0 0.0
        %3392 = vmatpush1.xpose.msra.mxu0 0.0
        %3393 = vmatprep.subr.mxu0 0.0
        %3394 = vmatpush1.xpose.msra.mxu0 0.0
        %3395 = vmatprep.subr.mxu0 0.0
        %3396 = vmatpush1.xpose.msra.mxu0 0.0
        %3397 = vmatprep.subr.mxu0 0.0
        %3398 = vmatpush1.xpose.msra.mxu0 0.0
        %3399 = vmatprep.subr.mxu0 0.0
        %3400 = vmatpush1.xpose.msra.mxu0 0.0
        %3401 = vmatprep.subr.mxu0 0.0
        %3402 = vmatpush1.xpose.msra.mxu0 0.0
        %3403 = vmatprep.subr.mxu0 0.0
        %3404 = vmatpush1.xpose.msra.mxu0 0.0
        %3405 = vmatprep.subr.mxu0 0.0
        %3406 = vmatpush1.xpose.msra.mxu0 0.0
        %3407 = vmatprep.subr.mxu0 0.0
        %3408 = vmatpush1.xpose.msra.mxu0 0.0
        %3409 = vmatprep.subr.mxu0 0.0
        %3410 = vmatpush1.xpose.msra.mxu0 0.0
        %3411 = vmatprep.subr.mxu0 0.0
        %3412 = vmatpush1.xpose.msra.mxu0 0.0
        %3413 = vmatprep.subr.mxu0 0.0
        %3414 = vmatpush1.xpose.msra.mxu0 0.0
        %3415 = vmatprep.subr.mxu0 0.0
        %3416 = vmatpush1.xpose.msra.mxu0 0.0
        %3417 = vmatprep.subr.mxu0 0.0
        %3418 = vmatpush1.xpose.msra.mxu0 0.0
        %3419 = vmatprep.subr.mxu0 0.0
        %3420 = vmatpush1.xpose.msra.mxu0 0.0
        %3421 = vmatprep.subr.mxu0 0.0
        %3422 = vmatpush1.xpose.msra.mxu0 0.0
        %3423 = vmatprep.subr.mxu0 0.0
        %3424 = vmatpush1.xpose.msra.mxu0 0.0
        %3425 = vmatprep.subr.mxu0 0.0
        %3426 = vmatpush1.xpose.msra.mxu0 0.0
        %3427 = vmatprep.subr.mxu0 0.0
        %3428 = vmatpush1.xpose.msra.mxu0 0.0
        %3429 = vmatprep.subr.mxu0 0.0
        %3430 = vmatpush1.xpose.msra.mxu0 0.0
        %3431 = vmatprep.subr.mxu0 0.0
        %3432 = vmatpush1.xpose.msra.mxu0 0.0
        %3433 = vmatprep.mubr.f32.mxu0 0.0
        %3434 = vmatmul.mubr.f32.gmra.mrb[0].mxu0 %v3361
        %v3435 = vpop.f32.mrb[0].mxu0
        %v3436 = vadd.f32 0.0, %v3435
        %v3437 = vpop.f32.mrb[0].mxu0
        %3438 = vmatprep.mubr.f32.mxu0 0.0
        %3439 = vmatmul.mubr.f32.gmra.mrb[0].mxu0 %v3363
        %v3440 = vpop.f32.mrb[0].mxu0
        %v3441 = vadd.f32 0.0, %v3440
        %v3442 = vpop.f32.mrb[0].mxu0
        %3443 = vdwg.mxu0
        %3444 = vrot.lane.b32.xlu0 %v1071, 88
        %v3445 = vpop.permute.xlu0 %3444
        %3446 = vrot.lane.b32.xlu0 %v1076, 88
        %v3447 = vpop.permute.xlu0 %3446
        %3448 = vrot.lane.b32.xlu0 %v1183, 88
        %v3449 = vpop.permute.xlu0 %3448
        %3450 = vrot.lane.b32.xlu0 %v1188, 88
        %v3451 = vpop.permute.xlu0 %3450
        %v3452 = vsel %vm1291, %v3445, 0
        %v3454 = vsel %vm1291, %v3447, 0
        %v3456 = vsel %vm1291, %v3449, 0
        %v3458 = vsel %vm1291, %v3451, 0
        %3460 = vmatprep.subr.mxu0 0.0
        %3461 = vmatpush1.xpose.msra.mxu0 %v3456
        %3462 = vmatprep.subr.mxu0 0.0
        %3463 = vmatpush1.xpose.msra.mxu0 %v3458
        %3464 = vmatprep.subr.mxu0 0.0
        %3465 = vmatpush1.xpose.msra.mxu0 0.0
        %3466 = vmatprep.subr.mxu0 0.0
        %3467 = vmatpush1.xpose.msra.mxu0 0.0
        %3468 = vmatprep.subr.mxu0 0.0
        %3469 = vmatpush1.xpose.msra.mxu0 0.0
        %3470 = vmatprep.subr.mxu0 0.0
        %3471 = vmatpush1.xpose.msra.mxu0 0.0
        %3472 = vmatprep.subr.mxu0 0.0
        %3473 = vmatpush1.xpose.msra.mxu0 0.0
        %3474 = vmatprep.subr.mxu0 0.0
        %3475 = vmatpush1.xpose.msra.mxu0 0.0
        %3476 = vmatprep.subr.mxu0 0.0
        %3477 = vmatpush1.xpose.msra.mxu0 0.0
        %3478 = vmatprep.subr.mxu0 0.0
        %3479 = vmatpush1.xpose.msra.mxu0 0.0
        %3480 = vmatprep.subr.mxu0 0.0
        %3481 = vmatpush1.xpose.msra.mxu0 0.0
        %3482 = vmatprep.subr.mxu0 0.0
        %3483 = vmatpush1.xpose.msra.mxu0 0.0
        %3484 = vmatprep.subr.mxu0 0.0
        %3485 = vmatpush1.xpose.msra.mxu0 0.0
        %3486 = vmatprep.subr.mxu0 0.0
        %3487 = vmatpush1.xpose.msra.mxu0 0.0
        %3488 = vmatprep.subr.mxu0 0.0
        %3489 = vmatpush1.xpose.msra.mxu0 0.0
        %3490 = vmatprep.subr.mxu0 0.0
        %3491 = vmatpush1.xpose.msra.mxu0 0.0
        %3492 = vmatprep.subr.mxu0 0.0
        %3493 = vmatpush1.xpose.msra.mxu0 0.0
        %3494 = vmatprep.subr.mxu0 0.0
        %3495 = vmatpush1.xpose.msra.mxu0 0.0
        %3496 = vmatprep.subr.mxu0 0.0
        %3497 = vmatpush1.xpose.msra.mxu0 0.0
        %3498 = vmatprep.subr.mxu0 0.0
        %3499 = vmatpush1.xpose.msra.mxu0 0.0
        %3500 = vmatprep.subr.mxu0 0.0
        %3501 = vmatpush1.xpose.msra.mxu0 0.0
        %3502 = vmatprep.subr.mxu0 0.0
        %3503 = vmatpush1.xpose.msra.mxu0 0.0
        %3504 = vmatprep.subr.mxu0 0.0
        %3505 = vmatpush1.xpose.msra.mxu0 0.0
        %3506 = vmatprep.subr.mxu0 0.0
        %3507 = vmatpush1.xpose.msra.mxu0 0.0
        %3508 = vmatprep.subr.mxu0 0.0
        %3509 = vmatpush1.xpose.msra.mxu0 0.0
        %3510 = vmatprep.subr.mxu0 0.0
        %3511 = vmatpush1.xpose.msra.mxu0 0.0
        %3512 = vmatprep.subr.mxu0 0.0
        %3513 = vmatpush1.xpose.msra.mxu0 0.0
        %3514 = vmatprep.subr.mxu0 0.0
        %3515 = vmatpush1.xpose.msra.mxu0 0.0
        %3516 = vmatprep.subr.mxu0 0.0
        %3517 = vmatpush1.xpose.msra.mxu0 0.0
        %3518 = vmatprep.subr.mxu0 0.0
        %3519 = vmatpush1.xpose.msra.mxu0 0.0
        %3520 = vmatprep.subr.mxu0 0.0
        %3521 = vmatpush1.xpose.msra.mxu0 0.0
        %3522 = vmatprep.subr.mxu0 0.0
        %3523 = vmatpush1.xpose.msra.mxu0 0.0
        %3524 = vmatprep.mubr.f32.mxu0 0.0
        %3525 = vmatmul.mubr.f32.gmra.mrb[0].mxu0 %v3452
        %v3526 = vpop.f32.mrb[0].mxu0
        %v3527 = vadd.f32 0.0, %v3526
        %v3528 = vpop.f32.mrb[0].mxu0
        %3529 = vmatprep.mubr.f32.mxu0 0.0
        %3530 = vmatmul.mubr.f32.gmra.mrb[0].mxu0 %v3454
        %v3531 = vpop.f32.mrb[0].mxu0
        %v3532 = vadd.f32 0.0, %v3531
        %v3533 = vpop.f32.mrb[0].mxu0
        %3534 = vdwg.mxu0
        %v3535 = vmul.f32 %v3436, 0.35355338
        %v3536 = vmul.f32 %v3441, 0.35355338
        %v3537 = vmul.f32 %v3527, 0.35355338
        %v3538 = vmul.f32 %v3532, 0.35355338
        %v3539 = vadd.f32 %v3535, %v1474
        %v3540 = vadd.f32 %v3536, %v1474
        %v3541 = vadd.f32 %v3537, %v1474
        %v3542 = vadd.f32 %v3538, %v1474
        %v3543 = vsel %vm1480, %v3539, -inf
        %3544 = vmax.xlane.f32.xlu0 %v3543
        %v3545 = vpop.xlane.xlu0 %3544
        %v3546 = vsel %vm1480, %v3540, -inf
        %3547 = vmax.xlane.f32.xlu0 %v3546
        %v3548 = vpop.xlane.xlu0 %3547
        %v3549 = vsel %vm1480, %v3541, -inf
        %3550 = vmax.xlane.f32.xlu0 %v3549
        %v3551 = vpop.xlane.xlu0 %3550
        %v3552 = vsel %vm1480, %v3542, -inf
        %3553 = vmax.xlane.f32.xlu0 %v3552
        %v3554 = vpop.xlane.xlu0 %3553
        %v3555 = vsub.f32 %v3539, %v3545
        %v3556 = vsub.f32 %v3540, %v3548
        %v3557 = vsub.f32 %v3541, %v3551
        %v3558 = vsub.f32 %v3542, %v3554
        %v3559 = vmul.f32 %v3555, 1.442695
        %v3560 = vpow.pop %v3559
        %v3561 = vmul.f32 %v3556, 1.442695
        %v3562 = vpow.pop %v3561
        %v3563 = vmul.f32 %v3557, 1.442695
        %v3564 = vpow.pop %v3563
        %v3565 = vmul.f32 %v3558, 1.442695
        %v3566 = vpow.pop %v3565
        %v3567 = vsel %vm1480, %v3560, 0.0
        %3568 = vadd.xlane.f32.xlu0 %v3567
        %v3569 = vpop.xlane.xlu0 %3568
        %v3570 = vsel %vm1480, %v3562, 0.0
        %3571 = vadd.xlane.f32.xlu0 %v3570
        %v3572 = vpop.xlane.xlu0 %3571
        %v3573 = vsel %vm1480, %v3564, 0.0
        %3574 = vadd.xlane.f32.xlu0 %v3573
        %v3575 = vpop.xlane.xlu0 %3574
        %v3576 = vsel %vm1480, %v3566, 0.0
        %3577 = vadd.xlane.f32.xlu0 %v3576
        %v3578 = vpop.xlane.xlu0 %3577
        %v3579 = vrcp.pop %v3569
        %v3580 = vrcp.pop %v3572
        %v3581 = vrcp.pop %v3575
        %v3582 = vrcp.pop %v3578
        %v3583 = vmul.f32 %v3560, %v3579
        %v3584 = vmul.f32 %v3562, %v3580
        %v3585 = vmul.f32 %v3564, %v3581
        %v3586 = vmul.f32 %v3566, %v3582
        %v3587 = vmul.f32 %v3583, %v930
        %v3588 = vmul.f32 %v3584, %v935
        %v3589 = vmul.f32 %v3585, %v930
        %v3590 = vmul.f32 %v3586, %v935
        %v3591 = vsel %vm1480, %v3587, 0.0
        %v3592 = vsel %vm1480, %v3588, 0.0
        %v3593 = vadd.f32 %v3591, %v3592
        %v3594 = vrot.slane %v3593, 4
        %v3595 = vadd.f32 %v3593, %v3594
        %v3596 = vrot.slane %v3595, 2
        %v3597 = vadd.f32 %v3595, %v3596
        %v3598 = vrot.slane %v3597, 1
        %v3599 = vadd.f32 %v3597, %v3598
        %v3600 = vsel %vm1480, %v3589, 0.0
        %v3601 = vsel %vm1480, %v3590, 0.0
        %v3602 = vadd.f32 %v3600, %v3601
        %v3603 = vrot.slane %v3602, 4
        %v3604 = vadd.f32 %v3602, %v3603
        %v3605 = vrot.slane %v3604, 2
        %v3606 = vadd.f32 %v3604, %v3605
        %v3607 = vrot.slane %v3606, 1
        %v3608 = vadd.f32 %v3606, %v3607
        %3609 = vrot.lane.b32.xlu0 %v1273, 88
        %v3610 = vpop.permute.xlu0 %3609
        %3611 = vrot.lane.b32.xlu0 %v1278, 88
        %v3612 = vpop.permute.xlu0 %3611
        %v3616 = vsel %vm1480, %v3599, 0
        %3618 = vmatprep.subr.mxu0 0.0
        %3619 = vmatpush1.msra.mxu0 %v3610
        %3620 = vmatprep.subr.mxu0 0.0
        %3621 = vmatpush1.msra.mxu0 %v3612
        %3622 = vmatprep.subr.mxu0 0.0
        %3623 = vmatpush1.msra.mxu0 0.0
        %3624 = vmatprep.subr.mxu0 0.0
        %3625 = vmatpush1.msra.mxu0 0.0
        %3626 = vmatprep.subr.mxu0 0.0
        %3627 = vmatpush1.msra.mxu0 0.0
        %3628 = vmatprep.subr.mxu0 0.0
        %3629 = vmatpush1.msra.mxu0 0.0
        %3630 = vmatprep.subr.mxu0 0.0
        %3631 = vmatpush1.msra.mxu0 0.0
        %3632 = vmatprep.subr.mxu0 0.0
        %3633 = vmatpush1.msra.mxu0 0.0
        %3634 = vmatprep.subr.mxu0 0.0
        %3635 = vmatpush1.msra.mxu0 0.0
        %3636 = vmatprep.subr.mxu0 0.0
        %3637 = vmatpush1.msra.mxu0 0.0
        %3638 = vmatprep.subr.mxu0 0.0
        %3639 = vmatpush1.msra.mxu0 0.0
        %3640 = vmatprep.subr.mxu0 0.0
        %3641 = vmatpush1.msra.mxu0 0.0
        %3642 = vmatprep.subr.mxu0 0.0
        %3643 = vmatpush1.msra.mxu0 0.0
        %3644 = vmatprep.subr.mxu0 0.0
        %3645 = vmatpush1.msra.mxu0 0.0
        %3646 = vmatprep.subr.mxu0 0.0
        %3647 = vmatpush1.msra.mxu0 0.0
        %3648 = vmatprep.subr.mxu0 0.0
        %3649 = vmatpush1.msra.mxu0 0.0
        %3650 = vmatprep.subr.mxu0 0.0
        %3651 = vmatpush1.msra.mxu0 0.0
        %3652 = vmatprep.subr.mxu0 0.0
        %3653 = vmatpush1.msra.mxu0 0.0
        %3654 = vmatprep.subr.mxu0 0.0
        %3655 = vmatpush1.msra.mxu0 0.0
        %3656 = vmatprep.subr.mxu0 0.0
        %3657 = vmatpush1.msra.mxu0 0.0
        %3658 = vmatprep.subr.mxu0 0.0
        %3659 = vmatpush1.msra.mxu0 0.0
        %3660 = vmatprep.subr.mxu0 0.0
        %3661 = vmatpush1.msra.mxu0 0.0
        %3662 = vmatprep.subr.mxu0 0.0
        %3663 = vmatpush1.msra.mxu0 0.0
        %3664 = vmatprep.subr.mxu0 0.0
        %3665 = vmatpush1.msra.mxu0 0.0
        %3666 = vmatprep.subr.mxu0 0.0
        %3667 = vmatpush1.msra.mxu0 0.0
        %3668 = vmatprep.subr.mxu0 0.0
        %3669 = vmatpush1.msra.mxu0 0.0
        %3670 = vmatprep.subr.mxu0 0.0
        %3671 = vmatpush1.msra.mxu0 0.0
        %3672 = vmatprep.subr.mxu0 0.0
        %3673 = vmatpush1.msra.mxu0 0.0
        %3674 = vmatprep.subr.mxu0 0.0
        %3675 = vmatpush1.msra.mxu0 0.0
        %3676 = vmatprep.subr.mxu0 0.0
        %3677 = vmatpush1.msra.mxu0 0.0
        %3678 = vmatprep.subr.mxu0 0.0
        %3679 = vmatpush1.msra.mxu0 0.0
        %3680 = vmatprep.subr.mxu0 0.0
        %3681 = vmatpush1.msra.mxu0 0.0
        %3682 = vmatprep.mubr.f32.mxu0 0.0
        %3683 = vmatmul.mubr.f32.gmra.mrb[0].mxu0 %v3616
        %v3684 = vpop.f32.mrb[0].mxu0
        %v3685 = vadd.f32 0.0, %v3684
        %v3686 = vpop.f32.mrb[0].mxu0
        %3687 = vdwg.mxu0
        %3688 = vrot.lane.b32.xlu0 %v1283, 88
        %v3689 = vpop.permute.xlu0 %3688
        %3690 = vrot.lane.b32.xlu0 %v1288, 88
        %v3691 = vpop.permute.xlu0 %3690
        %v3695 = vsel %vm1480, %v3608, 0
        %3697 = vmatprep.subr.mxu0 0.0
        %3698 = vmatpush1.msra.mxu0 %v3689
        %3699 = vmatprep.subr.mxu0 0.0
        %3700 = vmatpush1.msra.mxu0 %v3691
        %3701 = vmatprep.subr.mxu0 0.0
        %3702 = vmatpush1.msra.mxu0 0.0
        %3703 = vmatprep.subr.mxu0 0.0
        %3704 = vmatpush1.msra.mxu0 0.0
        %3705 = vmatprep.subr.mxu0 0.0
        %3706 = vmatpush1.msra.mxu0 0.0
        %3707 = vmatprep.subr.mxu0 0.0
        %3708 = vmatpush1.msra.mxu0 0.0
        %3709 = vmatprep.subr.mxu0 0.0
        %3710 = vmatpush1.msra.mxu0 0.0
        %3711 = vmatprep.subr.mxu0 0.0
        %3712 = vmatpush1.msra.mxu0 0.0
        %3713 = vmatprep.subr.mxu0 0.0
        %3714 = vmatpush1.msra.mxu0 0.0
        %3715 = vmatprep.subr.mxu0 0.0
        %3716 = vmatpush1.msra.mxu0 0.0
        %3717 = vmatprep.subr.mxu0 0.0
        %3718 = vmatpush1.msra.mxu0 0.0
        %3719 = vmatprep.subr.mxu0 0.0
        %3720 = vmatpush1.msra.mxu0 0.0
        %3721 = vmatprep.subr.mxu0 0.0
        %3722 = vmatpush1.msra.mxu0 0.0
        %3723 = vmatprep.subr.mxu0 0.0
        %3724 = vmatpush1.msra.mxu0 0.0
        %3725 = vmatprep.subr.mxu0 0.0
        %3726 = vmatpush1.msra.mxu0 0.0
        %3727 = vmatprep.subr.mxu0 0.0
        %3728 = vmatpush1.msra.mxu0 0.0
        %3729 = vmatprep.subr.mxu0 0.0
        %3730 = vmatpush1.msra.mxu0 0.0
        %3731 = vmatprep.subr.mxu0 0.0
        %3732 = vmatpush1.msra.mxu0 0.0
        %3733 = vmatprep.subr.mxu0 0.0
        %3734 = vmatpush1.msra.mxu0 0.0
        %3735 = vmatprep.subr.mxu0 0.0
        %3736 = vmatpush1.msra.mxu0 0.0
        %3737 = vmatprep.subr.mxu0 0.0
        %3738 = vmatpush1.msra.mxu0 0.0
        %3739 = vmatprep.subr.mxu0 0.0
        %3740 = vmatpush1.msra.mxu0 0.0
        %3741 = vmatprep.subr.mxu0 0.0
        %3742 = vmatpush1.msra.mxu0 0.0
        %3743 = vmatprep.subr.mxu0 0.0
        %3744 = vmatpush1.msra.mxu0 0.0
        %3745 = vmatprep.subr.mxu0 0.0
        %3746 = vmatpush1.msra.mxu0 0.0
        %3747 = vmatprep.subr.mxu0 0.0
        %3748 = vmatpush1.msra.mxu0 0.0
        %3749 = vmatprep.subr.mxu0 0.0
        %3750 = vmatpush1.msra.mxu0 0.0
        %3751 = vmatprep.subr.mxu0 0.0
        %3752 = vmatpush1.msra.mxu0 0.0
        %3753 = vmatprep.subr.mxu0 0.0
        %3754 = vmatpush1.msra.mxu0 0.0
        %3755 = vmatprep.subr.mxu0 0.0
        %3756 = vmatpush1.msra.mxu0 0.0
        %3757 = vmatprep.subr.mxu0 0.0
        %3758 = vmatpush1.msra.mxu0 0.0
        %3759 = vmatprep.subr.mxu0 0.0
        %3760 = vmatpush1.msra.mxu0 0.0
        %3761 = vmatprep.mubr.f32.mxu0 0.0
        %3762 = vmatmul.mubr.f32.gmra.mrb[0].mxu0 %v3695
        %v3763 = vpop.f32.mrb[0].mxu0
        %v3764 = vadd.f32 0.0, %v3763
        %v3765 = vpop.f32.mrb[0].mxu0
        %3766 = vdwg.mxu0
        %3767 = vrot.lane.b32.xlu0 %v1061, 80
        %v3768 = vpop.permute.xlu0 %3767
        %3769 = vrot.lane.b32.xlu0 %v1066, 80
        %v3770 = vpop.permute.xlu0 %3769
        %3771 = vrot.lane.b32.xlu0 %v1173, 80
        %v3772 = vpop.permute.xlu0 %3771
        %3773 = vrot.lane.b32.xlu0 %v1178, 80
        %v3774 = vpop.permute.xlu0 %3773
        %v3775 = vsel %vm1291, %v3768, 0
        %v3777 = vsel %vm1291, %v3770, 0
        %v3779 = vsel %vm1291, %v3772, 0
        %v3781 = vsel %vm1291, %v3774, 0
        %3783 = vmatprep.subr.mxu0 0.0
        %3784 = vmatpush1.xpose.msra.mxu0 %v3779
        %3785 = vmatprep.subr.mxu0 0.0
        %3786 = vmatpush1.xpose.msra.mxu0 %v3781
        %3787 = vmatprep.subr.mxu0 0.0
        %3788 = vmatpush1.xpose.msra.mxu0 0.0
        %3789 = vmatprep.subr.mxu0 0.0
        %3790 = vmatpush1.xpose.msra.mxu0 0.0
        %3791 = vmatprep.subr.mxu0 0.0
        %3792 = vmatpush1.xpose.msra.mxu0 0.0
        %3793 = vmatprep.subr.mxu0 0.0
        %3794 = vmatpush1.xpose.msra.mxu0 0.0
        %3795 = vmatprep.subr.mxu0 0.0
        %3796 = vmatpush1.xpose.msra.mxu0 0.0
        %3797 = vmatprep.subr.mxu0 0.0
        %3798 = vmatpush1.xpose.msra.mxu0 0.0
        %3799 = vmatprep.subr.mxu0 0.0
        %3800 = vmatpush1.xpose.msra.mxu0 0.0
        %3801 = vmatprep.subr.mxu0 0.0
        %3802 = vmatpush1.xpose.msra.mxu0 0.0
        %3803 = vmatprep.subr.mxu0 0.0
        %3804 = vmatpush1.xpose.msra.mxu0 0.0
        %3805 = vmatprep.subr.mxu0 0.0
        %3806 = vmatpush1.xpose.msra.mxu0 0.0
        %3807 = vmatprep.subr.mxu0 0.0
        %3808 = vmatpush1.xpose.msra.mxu0 0.0
        %3809 = vmatprep.subr.mxu0 0.0
        %3810 = vmatpush1.xpose.msra.mxu0 0.0
        %3811 = vmatprep.subr.mxu0 0.0
        %3812 = vmatpush1.xpose.msra.mxu0 0.0
        %3813 = vmatprep.subr.mxu0 0.0
        %3814 = vmatpush1.xpose.msra.mxu0 0.0
        %3815 = vmatprep.subr.mxu0 0.0
        %3816 = vmatpush1.xpose.msra.mxu0 0.0
        %3817 = vmatprep.subr.mxu0 0.0
        %3818 = vmatpush1.xpose.msra.mxu0 0.0
        %3819 = vmatprep.subr.mxu0 0.0
        %3820 = vmatpush1.xpose.msra.mxu0 0.0
        %3821 = vmatprep.subr.mxu0 0.0
        %3822 = vmatpush1.xpose.msra.mxu0 0.0
        %3823 = vmatprep.subr.mxu0 0.0
        %3824 = vmatpush1.xpose.msra.mxu0 0.0
        %3825 = vmatprep.subr.mxu0 0.0
        %3826 = vmatpush1.xpose.msra.mxu0 0.0
        %3827 = vmatprep.subr.mxu0 0.0
        %3828 = vmatpush1.xpose.msra.mxu0 0.0
        %3829 = vmatprep.subr.mxu0 0.0
        %3830 = vmatpush1.xpose.msra.mxu0 0.0
        %3831 = vmatprep.subr.mxu0 0.0
        %3832 = vmatpush1.xpose.msra.mxu0 0.0
        %3833 = vmatprep.subr.mxu0 0.0
        %3834 = vmatpush1.xpose.msra.mxu0 0.0
        %3835 = vmatprep.subr.mxu0 0.0
        %3836 = vmatpush1.xpose.msra.mxu0 0.0
        %3837 = vmatprep.subr.mxu0 0.0
        %3838 = vmatpush1.xpose.msra.mxu0 0.0
        %3839 = vmatprep.subr.mxu0 0.0
        %3840 = vmatpush1.xpose.msra.mxu0 0.0
        %3841 = vmatprep.subr.mxu0 0.0
        %3842 = vmatpush1.xpose.msra.mxu0 0.0
        %3843 = vmatprep.subr.mxu0 0.0
        %3844 = vmatpush1.xpose.msra.mxu0 0.0
        %3845 = vmatprep.subr.mxu0 0.0
        %3846 = vmatpush1.xpose.msra.mxu0 0.0
        %3847 = vmatprep.mubr.f32.mxu0 0.0
        %3848 = vmatmul.mubr.f32.gmra.mrb[0].mxu0 %v3775
        %v3849 = vpop.f32.mrb[0].mxu0
        %v3850 = vadd.f32 0.0, %v3849
        %v3851 = vpop.f32.mrb[0].mxu0
        %3852 = vmatprep.mubr.f32.mxu0 0.0
        %3853 = vmatmul.mubr.f32.gmra.mrb[0].mxu0 %v3777
        %v3854 = vpop.f32.mrb[0].mxu0
        %v3855 = vadd.f32 0.0, %v3854
        %v3856 = vpop.f32.mrb[0].mxu0
        %3857 = vdwg.mxu0
        %3858 = vrot.lane.b32.xlu0 %v1071, 80
        %v3859 = vpop.permute.xlu0 %3858
        %3860 = vrot.lane.b32.xlu0 %v1076, 80
        %v3861 = vpop.permute.xlu0 %3860
        %3862 = vrot.lane.b32.xlu0 %v1183, 80
        %v3863 = vpop.permute.xlu0 %3862
        %3864 = vrot.lane.b32.xlu0 %v1188, 80
        %v3865 = vpop.permute.xlu0 %3864
        %v3866 = vsel %vm1291, %v3859, 0
        %v3868 = vsel %vm1291, %v3861, 0
        %v3870 = vsel %vm1291, %v3863, 0
        %v3872 = vsel %vm1291, %v3865, 0
        %3874 = vmatprep.subr.mxu0 0.0
        %3875 = vmatpush1.xpose.msra.mxu0 %v3870
        %3876 = vmatprep.subr.mxu0 0.0
        %3877 = vmatpush1.xpose.msra.mxu0 %v3872
        %3878 = vmatprep.subr.mxu0 0.0
        %3879 = vmatpush1.xpose.msra.mxu0 0.0
        %3880 = vmatprep.subr.mxu0 0.0
        %3881 = vmatpush1.xpose.msra.mxu0 0.0
        %3882 = vmatprep.subr.mxu0 0.0
        %3883 = vmatpush1.xpose.msra.mxu0 0.0
        %3884 = vmatprep.subr.mxu0 0.0
        %3885 = vmatpush1.xpose.msra.mxu0 0.0
        %3886 = vmatprep.subr.mxu0 0.0
        %3887 = vmatpush1.xpose.msra.mxu0 0.0
        %3888 = vmatprep.subr.mxu0 0.0
        %3889 = vmatpush1.xpose.msra.mxu0 0.0
        %3890 = vmatprep.subr.mxu0 0.0
        %3891 = vmatpush1.xpose.msra.mxu0 0.0
        %3892 = vmatprep.subr.mxu0 0.0
        %3893 = vmatpush1.xpose.msra.mxu0 0.0
        %3894 = vmatprep.subr.mxu0 0.0
        %3895 = vmatpush1.xpose.msra.mxu0 0.0
        %3896 = vmatprep.subr.mxu0 0.0
        %3897 = vmatpush1.xpose.msra.mxu0 0.0
        %3898 = vmatprep.subr.mxu0 0.0
        %3899 = vmatpush1.xpose.msra.mxu0 0.0
        %3900 = vmatprep.subr.mxu0 0.0
        %3901 = vmatpush1.xpose.msra.mxu0 0.0
        %3902 = vmatprep.subr.mxu0 0.0
        %3903 = vmatpush1.xpose.msra.mxu0 0.0
        %3904 = vmatprep.subr.mxu0 0.0
        %3905 = vmatpush1.xpose.msra.mxu0 0.0
        %3906 = vmatprep.subr.mxu0 0.0
        %3907 = vmatpush1.xpose.msra.mxu0 0.0
        %3908 = vmatprep.subr.mxu0 0.0
        %3909 = vmatpush1.xpose.msra.mxu0 0.0
        %3910 = vmatprep.subr.mxu0 0.0
        %3911 = vmatpush1.xpose.msra.mxu0 0.0
        %3912 = vmatprep.subr.mxu0 0.0
        %3913 = vmatpush1.xpose.msra.mxu0 0.0
        %3914 = vmatprep.subr.mxu0 0.0
        %3915 = vmatpush1.xpose.msra.mxu0 0.0
        %3916 = vmatprep.subr.mxu0 0.0
        %3917 = vmatpush1.xpose.msra.mxu0 0.0
        %3918 = vmatprep.subr.mxu0 0.0
        %3919 = vmatpush1.xpose.msra.mxu0 0.0
        %3920 = vmatprep.subr.mxu0 0.0
        %3921 = vmatpush1.xpose.msra.mxu0 0.0
        %3922 = vmatprep.subr.mxu0 0.0
        %3923 = vmatpush1.xpose.msra.mxu0 0.0
        %3924 = vmatprep.subr.mxu0 0.0
        %3925 = vmatpush1.xpose.msra.mxu0 0.0
        %3926 = vmatprep.subr.mxu0 0.0
        %3927 = vmatpush1.xpose.msra.mxu0 0.0
        %3928 = vmatprep.subr.mxu0 0.0
        %3929 = vmatpush1.xpose.msra.mxu0 0.0
        %3930 = vmatprep.subr.mxu0 0.0
        %3931 = vmatpush1.xpose.msra.mxu0 0.0
        %3932 = vmatprep.subr.mxu0 0.0
        %3933 = vmatpush1.xpose.msra.mxu0 0.0
        %3934 = vmatprep.subr.mxu0 0.0
        %3935 = vmatpush1.xpose.msra.mxu0 0.0
        %3936 = vmatprep.subr.mxu0 0.0
        %3937 = vmatpush1.xpose.msra.mxu0 0.0
        %3938 = vmatprep.mubr.f32.mxu0 0.0
        %3939 = vmatmul.mubr.f32.gmra.mrb[0].mxu0 %v3866
        %v3940 = vpop.f32.mrb[0].mxu0
        %v3941 = vadd.f32 0.0, %v3940
        %v3942 = vpop.f32.mrb[0].mxu0
        %3943 = vmatprep.mubr.f32.mxu0 0.0
        %3944 = vmatmul.mubr.f32.gmra.mrb[0].mxu0 %v3868
        %v3945 = vpop.f32.mrb[0].mxu0
        %v3946 = vadd.f32 0.0, %v3945
        %v3947 = vpop.f32.mrb[0].mxu0
        %3948 = vdwg.mxu0
        %v3949 = vmul.f32 %v3850, 0.35355338
        %v3950 = vmul.f32 %v3855, 0.35355338
        %v3951 = vmul.f32 %v3941, 0.35355338
        %v3952 = vmul.f32 %v3946, 0.35355338
        %v3953 = vadd.f32 %v3949, %v1474
        %v3954 = vadd.f32 %v3950, %v1474
        %v3955 = vadd.f32 %v3951, %v1474
        %v3956 = vadd.f32 %v3952, %v1474
        %v3957 = vsel %vm1480, %v3953, -inf
        %3958 = vmax.xlane.f32.xlu0 %v3957
        %v3959 = vpop.xlane.xlu0 %3958
        %v3960 = vsel %vm1480, %v3954, -inf
        %3961 = vmax.xlane.f32.xlu0 %v3960
        %v3962 = vpop.xlane.xlu0 %3961
        %v3963 = vsel %vm1480, %v3955, -inf
        %3964 = vmax.xlane.f32.xlu0 %v3963
        %v3965 = vpop.xlane.xlu0 %3964
        %v3966 = vsel %vm1480, %v3956, -inf
        %3967 = vmax.xlane.f32.xlu0 %v3966
        %v3968 = vpop.xlane.xlu0 %3967
        %v3969 = vsub.f32 %v3953, %v3959
        %v3970 = vsub.f32 %v3954, %v3962
        %v3971 = vsub.f32 %v3955, %v3965
        %v3972 = vsub.f32 %v3956, %v3968
        %v3973 = vmul.f32 %v3969, 1.442695
        %v3974 = vpow.pop %v3973
        %v3975 = vmul.f32 %v3970, 1.442695
        %v3976 = vpow.pop %v3975
        %v3977 = vmul.f32 %v3971, 1.442695
        %v3978 = vpow.pop %v3977
        %v3979 = vmul.f32 %v3972, 1.442695
        %v3980 = vpow.pop %v3979
        %v3981 = vsel %vm1480, %v3974, 0.0
        %3982 = vadd.xlane.f32.xlu0 %v3981
        %v3983 = vpop.xlane.xlu0 %3982
        %v3984 = vsel %vm1480, %v3976, 0.0
        %3985 = vadd.xlane.f32.xlu0 %v3984
        %v3986 = vpop.xlane.xlu0 %3985
        %v3987 = vsel %vm1480, %v3978, 0.0
        %3988 = vadd.xlane.f32.xlu0 %v3987
        %v3989 = vpop.xlane.xlu0 %3988
        %v3990 = vsel %vm1480, %v3980, 0.0
        %3991 = vadd.xlane.f32.xlu0 %v3990
        %v3992 = vpop.xlane.xlu0 %3991
        %v3993 = vrcp.pop %v3983
        %v3994 = vrcp.pop %v3986
        %v3995 = vrcp.pop %v3989
        %v3996 = vrcp.pop %v3992
        %v3997 = vmul.f32 %v3974, %v3993
        %v3998 = vmul.f32 %v3976, %v3994
        %v3999 = vmul.f32 %v3978, %v3995
        %v4000 = vmul.f32 %v3980, %v3996
        %v4001 = vmul.f32 %v3997, %v930
        %v4002 = vmul.f32 %v3998, %v935
        %v4003 = vmul.f32 %v3999, %v930
        %v4004 = vmul.f32 %v4000, %v935
        %v4005 = vsel %vm1480, %v4001, 0.0
        %v4006 = vsel %vm1480, %v4002, 0.0
        %v4007 = vadd.f32 %v4005, %v4006
        %v4008 = vrot.slane %v4007, 4
        %v4009 = vadd.f32 %v4007, %v4008
        %v4010 = vrot.slane %v4009, 2
        %v4011 = vadd.f32 %v4009, %v4010
        %v4012 = vrot.slane %v4011, 1
        %v4013 = vadd.f32 %v4011, %v4012
        %v4014 = vsel %vm1480, %v4003, 0.0
        %v4015 = vsel %vm1480, %v4004, 0.0
        %v4016 = vadd.f32 %v4014, %v4015
        %v4017 = vrot.slane %v4016, 4
        %v4018 = vadd.f32 %v4016, %v4017
        %v4019 = vrot.slane %v4018, 2
        %v4020 = vadd.f32 %v4018, %v4019
        %v4021 = vrot.slane %v4020, 1
        %v4022 = vadd.f32 %v4020, %v4021
        %4023 = vrot.lane.b32.xlu0 %v1273, 80
        %v4024 = vpop.permute.xlu0 %4023
        %4025 = vrot.lane.b32.xlu0 %v1278, 80
        %v4026 = vpop.permute.xlu0 %4025
        %v4030 = vsel %vm1480, %v4013, 0
        %4032 = vmatprep.subr.mxu0 0.0
        %4033 = vmatpush1.msra.mxu0 %v4024
        %4034 = vmatprep.subr.mxu0 0.0
        %4035 = vmatpush1.msra.mxu0 %v4026
        %4036 = vmatprep.subr.mxu0 0.0
        %4037 = vmatpush1.msra.mxu0 0.0
        %4038 = vmatprep.subr.mxu0 0.0
        %4039 = vmatpush1.msra.mxu0 0.0
        %4040 = vmatprep.subr.mxu0 0.0
        %4041 = vmatpush1.msra.mxu0 0.0
        %4042 = vmatprep.subr.mxu0 0.0
        %4043 = vmatpush1.msra.mxu0 0.0
        %4044 = vmatprep.subr.mxu0 0.0
        %4045 = vmatpush1.msra.mxu0 0.0
        %4046 = vmatprep.subr.mxu0 0.0
        %4047 = vmatpush1.msra.mxu0 0.0
        %4048 = vmatprep.subr.mxu0 0.0
        %4049 = vmatpush1.msra.mxu0 0.0
        %4050 = vmatprep.subr.mxu0 0.0
        %4051 = vmatpush1.msra.mxu0 0.0
        %4052 = vmatprep.subr.mxu0 0.0
        %4053 = vmatpush1.msra.mxu0 0.0
        %4054 = vmatprep.subr.mxu0 0.0
        %4055 = vmatpush1.msra.mxu0 0.0
        %4056 = vmatprep.subr.mxu0 0.0
        %4057 = vmatpush1.msra.mxu0 0.0
        %4058 = vmatprep.subr.mxu0 0.0
        %4059 = vmatpush1.msra.mxu0 0.0
        %4060 = vmatprep.subr.mxu0 0.0
        %4061 = vmatpush1.msra.mxu0 0.0
        %4062 = vmatprep.subr.mxu0 0.0
        %4063 = vmatpush1.msra.mxu0 0.0
        %4064 = vmatprep.subr.mxu0 0.0
        %4065 = vmatpush1.msra.mxu0 0.0
        %4066 = vmatprep.subr.mxu0 0.0
        %4067 = vmatpush1.msra.mxu0 0.0
        %4068 = vmatprep.subr.mxu0 0.0
        %4069 = vmatpush1.msra.mxu0 0.0
        %4070 = vmatprep.subr.mxu0 0.0
        %4071 = vmatpush1.msra.mxu0 0.0
        %4072 = vmatprep.subr.mxu0 0.0
        %4073 = vmatpush1.msra.mxu0 0.0
        %4074 = vmatprep.subr.mxu0 0.0
        %4075 = vmatpush1.msra.mxu0 0.0
        %4076 = vmatprep.subr.mxu0 0.0
        %4077 = vmatpush1.msra.mxu0 0.0
        %4078 = vmatprep.subr.mxu0 0.0
        %4079 = vmatpush1.msra.mxu0 0.0
        %4080 = vmatprep.subr.mxu0 0.0
        %4081 = vmatpush1.msra.mxu0 0.0
        %4082 = vmatprep.subr.mxu0 0.0
        %4083 = vmatpush1.msra.mxu0 0.0
        %4084 = vmatprep.subr.mxu0 0.0
        %4085 = vmatpush1.msra.mxu0 0.0
        %4086 = vmatprep.subr.mxu0 0.0
        %4087 = vmatpush1.msra.mxu0 0.0
        %4088 = vmatprep.subr.mxu0 0.0
        %4089 = vmatpush1.msra.mxu0 0.0
        %4090 = vmatprep.subr.mxu0 0.0
        %4091 = vmatpush1.msra.mxu0 0.0
        %4092 = vmatprep.subr.mxu0 0.0
        %4093 = vmatpush1.msra.mxu0 0.0
        %4094 = vmatprep.subr.mxu0 0.0
        %4095 = vmatpush1.msra.mxu0 0.0
        %4096 = vmatprep.mubr.f32.mxu0 0.0
        %4097 = vmatmul.mubr.f32.gmra.mrb[0].mxu0 %v4030
        %v4098 = vpop.f32.mrb[0].mxu0
        %v4099 = vadd.f32 0.0, %v4098
        %v4100 = vpop.f32.mrb[0].mxu0
        %4101 = vdwg.mxu0
        %4102 = vrot.lane.b32.xlu0 %v1283, 80
        %v4103 = vpop.permute.xlu0 %4102
        %4104 = vrot.lane.b32.xlu0 %v1288, 80
        %v4105 = vpop.permute.xlu0 %4104
        %v4109 = vsel %vm1480, %v4022, 0
        %4111 = vmatprep.subr.mxu0 0.0
        %4112 = vmatpush1.msra.mxu0 %v4103
        %4113 = vmatprep.subr.mxu0 0.0
        %4114 = vmatpush1.msra.mxu0 %v4105
        %4115 = vmatprep.subr.mxu0 0.0
        %4116 = vmatpush1.msra.mxu0 0.0
        %4117 = vmatprep.subr.mxu0 0.0
        %4118 = vmatpush1.msra.mxu0 0.0
        %4119 = vmatprep.subr.mxu0 0.0
        %4120 = vmatpush1.msra.mxu0 0.0
        %4121 = vmatprep.subr.mxu0 0.0
        %4122 = vmatpush1.msra.mxu0 0.0
        %4123 = vmatprep.subr.mxu0 0.0
        %4124 = vmatpush1.msra.mxu0 0.0
        %4125 = vmatprep.subr.mxu0 0.0
        %4126 = vmatpush1.msra.mxu0 0.0
        %4127 = vmatprep.subr.mxu0 0.0
        %4128 = vmatpush1.msra.mxu0 0.0
        %4129 = vmatprep.subr.mxu0 0.0
        %4130 = vmatpush1.msra.mxu0 0.0
        %4131 = vmatprep.subr.mxu0 0.0
        %4132 = vmatpush1.msra.mxu0 0.0
        %4133 = vmatprep.subr.mxu0 0.0
        %4134 = vmatpush1.msra.mxu0 0.0
        %4135 = vmatprep.subr.mxu0 0.0
        %4136 = vmatpush1.msra.mxu0 0.0
        %4137 = vmatprep.subr.mxu0 0.0
        %4138 = vmatpush1.msra.mxu0 0.0
        %4139 = vmatprep.subr.mxu0 0.0
        %4140 = vmatpush1.msra.mxu0 0.0
        %4141 = vmatprep.subr.mxu0 0.0
        %4142 = vmatpush1.msra.mxu0 0.0
        %4143 = vmatprep.subr.mxu0 0.0
        %4144 = vmatpush1.msra.mxu0 0.0
        %4145 = vmatprep.subr.mxu0 0.0
        %4146 = vmatpush1.msra.mxu0 0.0
        %4147 = vmatprep.subr.mxu0 0.0
        %4148 = vmatpush1.msra.mxu0 0.0
        %4149 = vmatprep.subr.mxu0 0.0
        %4150 = vmatpush1.msra.mxu0 0.0
        %4151 = vmatprep.subr.mxu0 0.0
        %4152 = vmatpush1.msra.mxu0 0.0
        %4153 = vmatprep.subr.mxu0 0.0
        %4154 = vmatpush1.msra.mxu0 0.0
        %4155 = vmatprep.subr.mxu0 0.0
        %4156 = vmatpush1.msra.mxu0 0.0
        %4157 = vmatprep.subr.mxu0 0.0
        %4158 = vmatpush1.msra.mxu0 0.0
        %4159 = vmatprep.subr.mxu0 0.0
        %4160 = vmatpush1.msra.mxu0 0.0
        %4161 = vmatprep.subr.mxu0 0.0
        %4162 = vmatpush1.msra.mxu0 0.0
        %4163 = vmatprep.subr.mxu0 0.0
        %4164 = vmatpush1.msra.mxu0 0.0
        %4165 = vmatprep.subr.mxu0 0.0
        %4166 = vmatpush1.msra.mxu0 0.0
        %4167 = vmatprep.subr.mxu0 0.0
        %4168 = vmatpush1.msra.mxu0 0.0
        %4169 = vmatprep.subr.mxu0 0.0
        %4170 = vmatpush1.msra.mxu0 0.0
        %4171 = vmatprep.subr.mxu0 0.0
        %4172 = vmatpush1.msra.mxu0 0.0
        %4173 = vmatprep.subr.mxu0 0.0
        %4174 = vmatpush1.msra.mxu0 0.0
        %4175 = vmatprep.mubr.f32.mxu0 0.0
        %4176 = vmatmul.mubr.f32.gmra.mrb[0].mxu0 %v4109
        %v4177 = vpop.f32.mrb[0].mxu0
        %v4178 = vadd.f32 0.0, %v4177
        %v4179 = vpop.f32.mrb[0].mxu0
        %4180 = vdwg.mxu0
        %4181 = vrot.lane.b32.xlu0 %v1061, 72
        %v4182 = vpop.permute.xlu0 %4181
        %4183 = vrot.lane.b32.xlu0 %v1066, 72
        %v4184 = vpop.permute.xlu0 %4183
        %4185 = vrot.lane.b32.xlu0 %v1173, 72
        %v4186 = vpop.permute.xlu0 %4185
        %4187 = vrot.lane.b32.xlu0 %v1178, 72
        %v4188 = vpop.permute.xlu0 %4187
        %v4189 = vsel %vm1291, %v4182, 0
        %v4191 = vsel %vm1291, %v4184, 0
        %v4193 = vsel %vm1291, %v4186, 0
        %v4195 = vsel %vm1291, %v4188, 0
        %4197 = vmatprep.subr.mxu0 0.0
        %4198 = vmatpush1.xpose.msra.mxu0 %v4193
        %4199 = vmatprep.subr.mxu0 0.0
        %4200 = vmatpush1.xpose.msra.mxu0 %v4195
        %4201 = vmatprep.subr.mxu0 0.0
        %4202 = vmatpush1.xpose.msra.mxu0 0.0
        %4203 = vmatprep.subr.mxu0 0.0
        %4204 = vmatpush1.xpose.msra.mxu0 0.0
        %4205 = vmatprep.subr.mxu0 0.0
        %4206 = vmatpush1.xpose.msra.mxu0 0.0
        %4207 = vmatprep.subr.mxu0 0.0
        %4208 = vmatpush1.xpose.msra.mxu0 0.0
        %4209 = vmatprep.subr.mxu0 0.0
        %4210 = vmatpush1.xpose.msra.mxu0 0.0
        %4211 = vmatprep.subr.mxu0 0.0
        %4212 = vmatpush1.xpose.msra.mxu0 0.0
        %4213 = vmatprep.subr.mxu0 0.0
        %4214 = vmatpush1.xpose.msra.mxu0 0.0
        %4215 = vmatprep.subr.mxu0 0.0
        %4216 = vmatpush1.xpose.msra.mxu0 0.0
        %4217 = vmatprep.subr.mxu0 0.0
        %4218 = vmatpush1.xpose.msra.mxu0 0.0
        %4219 = vmatprep.subr.mxu0 0.0
        %4220 = vmatpush1.xpose.msra.mxu0 0.0
        %4221 = vmatprep.subr.mxu0 0.0
        %4222 = vmatpush1.xpose.msra.mxu0 0.0
        %4223 = vmatprep.subr.mxu0 0.0
        %4224 = vmatpush1.xpose.msra.mxu0 0.0
        %4225 = vmatprep.subr.mxu0 0.0
        %4226 = vmatpush1.xpose.msra.mxu0 0.0
        %4227 = vmatprep.subr.mxu0 0.0
        %4228 = vmatpush1.xpose.msra.mxu0 0.0
        %4229 = vmatprep.subr.mxu0 0.0
        %4230 = vmatpush1.xpose.msra.mxu0 0.0
        %4231 = vmatprep.subr.mxu0 0.0
        %4232 = vmatpush1.xpose.msra.mxu0 0.0
        %4233 = vmatprep.subr.mxu0 0.0
        %4234 = vmatpush1.xpose.msra.mxu0 0.0
        %4235 = vmatprep.subr.mxu0 0.0
        %4236 = vmatpush1.xpose.msra.mxu0 0.0
        %4237 = vmatprep.subr.mxu0 0.0
        %4238 = vmatpush1.xpose.msra.mxu0 0.0
        %4239 = vmatprep.subr.mxu0 0.0
        %4240 = vmatpush1.xpose.msra.mxu0 0.0
        %4241 = vmatprep.subr.mxu0 0.0
        %4242 = vmatpush1.xpose.msra.mxu0 0.0
        %4243 = vmatprep.subr.mxu0 0.0
        %4244 = vmatpush1.xpose.msra.mxu0 0.0
        %4245 = vmatprep.subr.mxu0 0.0
        %4246 = vmatpush1.xpose.msra.mxu0 0.0
        %4247 = vmatprep.subr.mxu0 0.0
        %4248 = vmatpush1.xpose.msra.mxu0 0.0
        %4249 = vmatprep.subr.mxu0 0.0
        %4250 = vmatpush1.xpose.msra.mxu0 0.0
        %4251 = vmatprep.subr.mxu0 0.0
        %4252 = vmatpush1.xpose.msra.mxu0 0.0
        %4253 = vmatprep.subr.mxu0 0.0
        %4254 = vmatpush1.xpose.msra.mxu0 0.0
        %4255 = vmatprep.subr.mxu0 0.0
        %4256 = vmatpush1.xpose.msra.mxu0 0.0
        %4257 = vmatprep.subr.mxu0 0.0
        %4258 = vmatpush1.xpose.msra.mxu0 0.0
        %4259 = vmatprep.subr.mxu0 0.0
        %4260 = vmatpush1.xpose.msra.mxu0 0.0
        %4261 = vmatprep.mubr.f32.mxu0 0.0
        %4262 = vmatmul.mubr.f32.gmra.mrb[0].mxu0 %v4189
        %v4263 = vpop.f32.mrb[0].mxu0
        %v4264 = vadd.f32 0.0, %v4263
        %v4265 = vpop.f32.mrb[0].mxu0
        %4266 = vmatprep.mubr.f32.mxu0 0.0
        %4267 = vmatmul.mubr.f32.gmra.mrb[0].mxu0 %v4191
        %v4268 = vpop.f32.mrb[0].mxu0
        %v4269 = vadd.f32 0.0, %v4268
        %v4270 = vpop.f32.mrb[0].mxu0
        %4271 = vdwg.mxu0
        %4272 = vrot.lane.b32.xlu0 %v1071, 72
        %v4273 = vpop.permute.xlu0 %4272
        %4274 = vrot.lane.b32.xlu0 %v1076, 72
        %v4275 = vpop.permute.xlu0 %4274
        %4276 = vrot.lane.b32.xlu0 %v1183, 72
        %v4277 = vpop.permute.xlu0 %4276
        %4278 = vrot.lane.b32.xlu0 %v1188, 72
        %v4279 = vpop.permute.xlu0 %4278
        %v4280 = vsel %vm1291, %v4273, 0
        %v4282 = vsel %vm1291, %v4275, 0
        %v4284 = vsel %vm1291, %v4277, 0
        %v4286 = vsel %vm1291, %v4279, 0
        %4288 = vmatprep.subr.mxu0 0.0
        %4289 = vmatpush1.xpose.msra.mxu0 %v4284
        %4290 = vmatprep.subr.mxu0 0.0
        %4291 = vmatpush1.xpose.msra.mxu0 %v4286
        %4292 = vmatprep.subr.mxu0 0.0
        %4293 = vmatpush1.xpose.msra.mxu0 0.0
        %4294 = vmatprep.subr.mxu0 0.0
        %4295 = vmatpush1.xpose.msra.mxu0 0.0
        %4296 = vmatprep.subr.mxu0 0.0
        %4297 = vmatpush1.xpose.msra.mxu0 0.0
        %4298 = vmatprep.subr.mxu0 0.0
        %4299 = vmatpush1.xpose.msra.mxu0 0.0
        %4300 = vmatprep.subr.mxu0 0.0
        %4301 = vmatpush1.xpose.msra.mxu0 0.0
        %4302 = vmatprep.subr.mxu0 0.0
        %4303 = vmatpush1.xpose.msra.mxu0 0.0
        %4304 = vmatprep.subr.mxu0 0.0
        %4305 = vmatpush1.xpose.msra.mxu0 0.0
        %4306 = vmatprep.subr.mxu0 0.0
        %4307 = vmatpush1.xpose.msra.mxu0 0.0
        %4308 = vmatprep.subr.mxu0 0.0
        %4309 = vmatpush1.xpose.msra.mxu0 0.0
        %4310 = vmatprep.subr.mxu0 0.0
        %4311 = vmatpush1.xpose.msra.mxu0 0.0
        %4312 = vmatprep.subr.mxu0 0.0
        %4313 = vmatpush1.xpose.msra.mxu0 0.0
        %4314 = vmatprep.subr.mxu0 0.0
        %4315 = vmatpush1.xpose.msra.mxu0 0.0
        %4316 = vmatprep.subr.mxu0 0.0
        %4317 = vmatpush1.xpose.msra.mxu0 0.0
        %4318 = vmatprep.subr.mxu0 0.0
        %4319 = vmatpush1.xpose.msra.mxu0 0.0
        %4320 = vmatprep.subr.mxu0 0.0
        %4321 = vmatpush1.xpose.msra.mxu0 0.0
        %4322 = vmatprep.subr.mxu0 0.0
        %4323 = vmatpush1.xpose.msra.mxu0 0.0
        %4324 = vmatprep.subr.mxu0 0.0
        %4325 = vmatpush1.xpose.msra.mxu0 0.0
        %4326 = vmatprep.subr.mxu0 0.0
        %4327 = vmatpush1.xpose.msra.mxu0 0.0
        %4328 = vmatprep.subr.mxu0 0.0
        %4329 = vmatpush1.xpose.msra.mxu0 0.0
        %4330 = vmatprep.subr.mxu0 0.0
        %4331 = vmatpush1.xpose.msra.mxu0 0.0
        %4332 = vmatprep.subr.mxu0 0.0
        %4333 = vmatpush1.xpose.msra.mxu0 0.0
        %4334 = vmatprep.subr.mxu0 0.0
        %4335 = vmatpush1.xpose.msra.mxu0 0.0
        %4336 = vmatprep.subr.mxu0 0.0
        %4337 = vmatpush1.xpose.msra.mxu0 0.0
        %4338 = vmatprep.subr.mxu0 0.0
        %4339 = vmatpush1.xpose.msra.mxu0 0.0
        %4340 = vmatprep.subr.mxu0 0.0
        %4341 = vmatpush1.xpose.msra.mxu0 0.0
        %4342 = vmatprep.subr.mxu0 0.0
        %4343 = vmatpush1.xpose.msra.mxu0 0.0
        %4344 = vmatprep.subr.mxu0 0.0
        %4345 = vmatpush1.xpose.msra.mxu0 0.0
        %4346 = vmatprep.subr.mxu0 0.0
        %4347 = vmatpush1.xpose.msra.mxu0 0.0
        %4348 = vmatprep.subr.mxu0 0.0
        %4349 = vmatpush1.xpose.msra.mxu0 0.0
        %4350 = vmatprep.subr.mxu0 0.0
        %4351 = vmatpush1.xpose.msra.mxu0 0.0
        %4352 = vmatprep.mubr.f32.mxu0 0.0
        %4353 = vmatmul.mubr.f32.gmra.mrb[0].mxu0 %v4280
        %v4354 = vpop.f32.mrb[0].mxu0
        %v4355 = vadd.f32 0.0, %v4354
        %v4356 = vpop.f32.mrb[0].mxu0
        %4357 = vmatprep.mubr.f32.mxu0 0.0
        %4358 = vmatmul.mubr.f32.gmra.mrb[0].mxu0 %v4282
        %v4359 = vpop.f32.mrb[0].mxu0
        %v4360 = vadd.f32 0.0, %v4359
        %v4361 = vpop.f32.mrb[0].mxu0
        %4362 = vdwg.mxu0
        %v4363 = vmul.f32 %v4264, 0.35355338
        %v4364 = vmul.f32 %v4269, 0.35355338
        %v4365 = vmul.f32 %v4355, 0.35355338
        %v4366 = vmul.f32 %v4360, 0.35355338
        %v4367 = vadd.f32 %v4363, %v1474
        %v4368 = vadd.f32 %v4364, %v1474
        %v4369 = vadd.f32 %v4365, %v1474
        %v4370 = vadd.f32 %v4366, %v1474
        %v4371 = vsel %vm1480, %v4367, -inf
        %4372 = vmax.xlane.f32.xlu0 %v4371
        %v4373 = vpop.xlane.xlu0 %4372
        %v4374 = vsel %vm1480, %v4368, -inf
        %4375 = vmax.xlane.f32.xlu0 %v4374
        %v4376 = vpop.xlane.xlu0 %4375
        %v4377 = vsel %vm1480, %v4369, -inf
        %4378 = vmax.xlane.f32.xlu0 %v4377
        %v4379 = vpop.xlane.xlu0 %4378
        %v4380 = vsel %vm1480, %v4370, -inf
        %4381 = vmax.xlane.f32.xlu0 %v4380
        %v4382 = vpop.xlane.xlu0 %4381
        %v4383 = vsub.f32 %v4367, %v4373
        %v4384 = vsub.f32 %v4368, %v4376
        %v4385 = vsub.f32 %v4369, %v4379
        %v4386 = vsub.f32 %v4370, %v4382
        %v4387 = vmul.f32 %v4383, 1.442695
        %v4388 = vpow.pop %v4387
        %v4389 = vmul.f32 %v4384, 1.442695
        %v4390 = vpow.pop %v4389
        %v4391 = vmul.f32 %v4385, 1.442695
        %v4392 = vpow.pop %v4391
        %v4393 = vmul.f32 %v4386, 1.442695
        %v4394 = vpow.pop %v4393
        %v4395 = vsel %vm1480, %v4388, 0.0
        %4396 = vadd.xlane.f32.xlu0 %v4395
        %v4397 = vpop.xlane.xlu0 %4396
        %v4398 = vsel %vm1480, %v4390, 0.0
        %4399 = vadd.xlane.f32.xlu0 %v4398
        %v4400 = vpop.xlane.xlu0 %4399
        %v4401 = vsel %vm1480, %v4392, 0.0
        %4402 = vadd.xlane.f32.xlu0 %v4401
        %v4403 = vpop.xlane.xlu0 %4402
        %v4404 = vsel %vm1480, %v4394, 0.0
        %4405 = vadd.xlane.f32.xlu0 %v4404
        %v4406 = vpop.xlane.xlu0 %4405
        %v4407 = vrcp.pop %v4397
        %v4408 = vrcp.pop %v4400
        %v4409 = vrcp.pop %v4403
        %v4410 = vrcp.pop %v4406
        %v4411 = vmul.f32 %v4388, %v4407
        %v4412 = vmul.f32 %v4390, %v4408
        %v4413 = vmul.f32 %v4392, %v4409
        %v4414 = vmul.f32 %v4394, %v4410
        %v4415 = vmul.f32 %v4411, %v930
        %v4416 = vmul.f32 %v4412, %v935
        %v4417 = vmul.f32 %v4413, %v930
        %v4418 = vmul.f32 %v4414, %v935
        %v4419 = vsel %vm1480, %v4415, 0.0
        %v4420 = vsel %vm1480, %v4416, 0.0
        %v4421 = vadd.f32 %v4419, %v4420
        %v4422 = vrot.slane %v4421, 4
        %v4423 = vadd.f32 %v4421, %v4422
        %v4424 = vrot.slane %v4423, 2
        %v4425 = vadd.f32 %v4423, %v4424
        %v4426 = vrot.slane %v4425, 1
        %v4427 = vadd.f32 %v4425, %v4426
        %v4428 = vsel %vm1480, %v4417, 0.0
        %v4429 = vsel %vm1480, %v4418, 0.0
        %v4430 = vadd.f32 %v4428, %v4429
        %v4431 = vrot.slane %v4430, 4
        %v4432 = vadd.f32 %v4430, %v4431
        %v4433 = vrot.slane %v4432, 2
        %v4434 = vadd.f32 %v4432, %v4433
        %v4435 = vrot.slane %v4434, 1
        %v4436 = vadd.f32 %v4434, %v4435
        %4437 = vrot.lane.b32.xlu0 %v1273, 72
        %v4438 = vpop.permute.xlu0 %4437
        %4439 = vrot.lane.b32.xlu0 %v1278, 72
        %v4440 = vpop.permute.xlu0 %4439
        %v4444 = vsel %vm1480, %v4427, 0
        %4446 = vmatprep.subr.mxu0 0.0
        %4447 = vmatpush1.msra.mxu0 %v4438
        %4448 = vmatprep.subr.mxu0 0.0
        %4449 = vmatpush1.msra.mxu0 %v4440
        %4450 = vmatprep.subr.mxu0 0.0
        %4451 = vmatpush1.msra.mxu0 0.0
        %4452 = vmatprep.subr.mxu0 0.0
        %4453 = vmatpush1.msra.mxu0 0.0
        %4454 = vmatprep.subr.mxu0 0.0
        %4455 = vmatpush1.msra.mxu0 0.0
        %4456 = vmatprep.subr.mxu0 0.0
        %4457 = vmatpush1.msra.mxu0 0.0
        %4458 = vmatprep.subr.mxu0 0.0
        %4459 = vmatpush1.msra.mxu0 0.0
        %4460 = vmatprep.subr.mxu0 0.0
        %4461 = vmatpush1.msra.mxu0 0.0
        %4462 = vmatprep.subr.mxu0 0.0
        %4463 = vmatpush1.msra.mxu0 0.0
        %4464 = vmatprep.subr.mxu0 0.0
        %4465 = vmatpush1.msra.mxu0 0.0
        %4466 = vmatprep.subr.mxu0 0.0
        %4467 = vmatpush1.msra.mxu0 0.0
        %4468 = vmatprep.subr.mxu0 0.0
        %4469 = vmatpush1.msra.mxu0 0.0
        %4470 = vmatprep.subr.mxu0 0.0
        %4471 = vmatpush1.msra.mxu0 0.0
        %4472 = vmatprep.subr.mxu0 0.0
        %4473 = vmatpush1.msra.mxu0 0.0
        %4474 = vmatprep.subr.mxu0 0.0
        %4475 = vmatpush1.msra.mxu0 0.0
        %4476 = vmatprep.subr.mxu0 0.0
        %4477 = vmatpush1.msra.mxu0 0.0
        %4478 = vmatprep.subr.mxu0 0.0
        %4479 = vmatpush1.msra.mxu0 0.0
        %4480 = vmatprep.subr.mxu0 0.0
        %4481 = vmatpush1.msra.mxu0 0.0
        %4482 = vmatprep.subr.mxu0 0.0
        %4483 = vmatpush1.msra.mxu0 0.0
        %4484 = vmatprep.subr.mxu0 0.0
        %4485 = vmatpush1.msra.mxu0 0.0
        %4486 = vmatprep.subr.mxu0 0.0
        %4487 = vmatpush1.msra.mxu0 0.0
        %4488 = vmatprep.subr.mxu0 0.0
        %4489 = vmatpush1.msra.mxu0 0.0
        %4490 = vmatprep.subr.mxu0 0.0
        %4491 = vmatpush1.msra.mxu0 0.0
        %4492 = vmatprep.subr.mxu0 0.0
        %4493 = vmatpush1.msra.mxu0 0.0
        %4494 = vmatprep.subr.mxu0 0.0
        %4495 = vmatpush1.msra.mxu0 0.0
        %4496 = vmatprep.subr.mxu0 0.0
        %4497 = vmatpush1.msra.mxu0 0.0
        %4498 = vmatprep.subr.mxu0 0.0
        %4499 = vmatpush1.msra.mxu0 0.0
        %4500 = vmatprep.subr.mxu0 0.0
        %4501 = vmatpush1.msra.mxu0 0.0
        %4502 = vmatprep.subr.mxu0 0.0
        %4503 = vmatpush1.msra.mxu0 0.0
        %4504 = vmatprep.subr.mxu0 0.0
        %4505 = vmatpush1.msra.mxu0 0.0
        %4506 = vmatprep.subr.mxu0 0.0
        %4507 = vmatpush1.msra.mxu0 0.0
        %4508 = vmatprep.subr.mxu0 0.0
        %4509 = vmatpush1.msra.mxu0 0.0
        %4510 = vmatprep.mubr.f32.mxu0 0.0
        %4511 = vmatmul.mubr.f32.gmra.mrb[0].mxu0 %v4444
        %v4512 = vpop.f32.mrb[0].mxu0
        %v4513 = vadd.f32 0.0, %v4512
        %v4514 = vpop.f32.mrb[0].mxu0
        %4515 = vdwg.mxu0
        %4516 = vrot.lane.b32.xlu0 %v1283, 72
        %v4517 = vpop.permute.xlu0 %4516
        %4518 = vrot.lane.b32.xlu0 %v1288, 72
        %v4519 = vpop.permute.xlu0 %4518
        %v4523 = vsel %vm1480, %v4436, 0
        %4525 = vmatprep.subr.mxu0 0.0
        %4526 = vmatpush1.msra.mxu0 %v4517
        %4527 = vmatprep.subr.mxu0 0.0
        %4528 = vmatpush1.msra.mxu0 %v4519
        %4529 = vmatprep.subr.mxu0 0.0
        %4530 = vmatpush1.msra.mxu0 0.0
        %4531 = vmatprep.subr.mxu0 0.0
        %4532 = vmatpush1.msra.mxu0 0.0
        %4533 = vmatprep.subr.mxu0 0.0
        %4534 = vmatpush1.msra.mxu0 0.0
        %4535 = vmatprep.subr.mxu0 0.0
        %4536 = vmatpush1.msra.mxu0 0.0
        %4537 = vmatprep.subr.mxu0 0.0
        %4538 = vmatpush1.msra.mxu0 0.0
        %4539 = vmatprep.subr.mxu0 0.0
        %4540 = vmatpush1.msra.mxu0 0.0
        %4541 = vmatprep.subr.mxu0 0.0
        %4542 = vmatpush1.msra.mxu0 0.0
        %4543 = vmatprep.subr.mxu0 0.0
        %4544 = vmatpush1.msra.mxu0 0.0
        %4545 = vmatprep.subr.mxu0 0.0
        %4546 = vmatpush1.msra.mxu0 0.0
        %4547 = vmatprep.subr.mxu0 0.0
        %4548 = vmatpush1.msra.mxu0 0.0
        %4549 = vmatprep.subr.mxu0 0.0
        %4550 = vmatpush1.msra.mxu0 0.0
        %4551 = vmatprep.subr.mxu0 0.0
        %4552 = vmatpush1.msra.mxu0 0.0
        %4553 = vmatprep.subr.mxu0 0.0
        %4554 = vmatpush1.msra.mxu0 0.0
        %4555 = vmatprep.subr.mxu0 0.0
        %4556 = vmatpush1.msra.mxu0 0.0
        %4557 = vmatprep.subr.mxu0 0.0
        %4558 = vmatpush1.msra.mxu0 0.0
        %4559 = vmatprep.subr.mxu0 0.0
        %4560 = vmatpush1.msra.mxu0 0.0
        %4561 = vmatprep.subr.mxu0 0.0
        %4562 = vmatpush1.msra.mxu0 0.0
        %4563 = vmatprep.subr.mxu0 0.0
        %4564 = vmatpush1.msra.mxu0 0.0
        %4565 = vmatprep.subr.mxu0 0.0
        %4566 = vmatpush1.msra.mxu0 0.0
        %4567 = vmatprep.subr.mxu0 0.0
        %4568 = vmatpush1.msra.mxu0 0.0
        %4569 = vmatprep.subr.mxu0 0.0
        %4570 = vmatpush1.msra.mxu0 0.0
        %4571 = vmatprep.subr.mxu0 0.0
        %4572 = vmatpush1.msra.mxu0 0.0
        %4573 = vmatprep.subr.mxu0 0.0
        %4574 = vmatpush1.msra.mxu0 0.0
        %4575 = vmatprep.subr.mxu0 0.0
        %4576 = vmatpush1.msra.mxu0 0.0
        %4577 = vmatprep.subr.mxu0 0.0
        %4578 = vmatpush1.msra.mxu0 0.0
        %4579 = vmatprep.subr.mxu0 0.0
        %4580 = vmatpush1.msra.mxu0 0.0
        %4581 = vmatprep.subr.mxu0 0.0
        %4582 = vmatpush1.msra.mxu0 0.0
        %4583 = vmatprep.subr.mxu0 0.0
        %4584 = vmatpush1.msra.mxu0 0.0
        %4585 = vmatprep.subr.mxu0 0.0
        %4586 = vmatpush1.msra.mxu0 0.0
        %4587 = vmatprep.subr.mxu0 0.0
        %4588 = vmatpush1.msra.mxu0 0.0
        %4589 = vmatprep.mubr.f32.mxu0 0.0
        %4590 = vmatmul.mubr.f32.gmra.mrb[0].mxu0 %v4523
        %v4591 = vpop.f32.mrb[0].mxu0
        %v4592 = vadd.f32 0.0, %v4591
        %v4593 = vpop.f32.mrb[0].mxu0
        %4594 = vdwg.mxu0
        %4597 = vrot.lane.b32.xlu0 %v2027, 8
        %v4598 = vpop.permute.xlu0 %4597
        %4599 = vrot.lane.b32.xlu0 %v2108, 8
        %v4600 = vpop.permute.xlu0 %4599
        %4605 = vrot.lane.b32.xlu0 %v2443, 16
        %v4606 = vpop.permute.xlu0 %4605
        %4607 = vrot.lane.b32.xlu0 %v2522, 16
        %v4608 = vpop.permute.xlu0 %4607
        %4613 = vrot.lane.b32.xlu0 %v2857, 24
        %v4614 = vpop.permute.xlu0 %4613
        %4615 = vrot.lane.b32.xlu0 %v2936, 24
        %v4616 = vpop.permute.xlu0 %4615
        %4621 = vrot.lane.b32.xlu0 %v3271, 32
        %v4622 = vpop.permute.xlu0 %4621
        %4623 = vrot.lane.b32.xlu0 %v3350, 32
        %v4624 = vpop.permute.xlu0 %4623
        %4629 = vrot.lane.b32.xlu0 %v3685, 40
        %v4630 = vpop.permute.xlu0 %4629
        %4631 = vrot.lane.b32.xlu0 %v3764, 40
        %v4632 = vpop.permute.xlu0 %4631
        %4637 = vrot.lane.b32.xlu0 %v4099, 48
        %v4638 = vpop.permute.xlu0 %4637
        %4639 = vrot.lane.b32.xlu0 %v4178, 48
        %v4640 = vpop.permute.xlu0 %4639
        %4645 = vrot.lane.b32.xlu0 %v4513, 56
        %v4646 = vpop.permute.xlu0 %4645
        %4647 = vrot.lane.b32.xlu0 %v4592, 56
        %v4648 = vpop.permute.xlu0 %4647
        %v4651 = vsel %vm1291, %v1617, %v4598
        %v4652 = vsel %vm1291, %v1690, %v4600
        %v4653 = vsel %vm1480, %v4651, %v4606
        %v4654 = vsel %vm1480, %v4652, %v4608
        %vm4655 = vcmask 195584
        %v4656 = vsel %vm4655, %v4653, %v4614
        %v4657 = vsel %vm4655, %v4654, %v4616
        %vm4658 = vcmask 261120
        %v4659 = vsel %vm4658, %v4656, %v4622
        %v4660 = vsel %vm4658, %v4657, %v4624
        %vm4661 = vcmask 326656
        %v4662 = vsel %vm4661, %v4659, %v4630
        %v4663 = vsel %vm4661, %v4660, %v4632
        %vm4664 = vcmask 392192
        %v4665 = vsel %vm4664, %v4662, %v4638
        %v4666 = vsel %vm4664, %v4663, %v4640
        %vm4667 = vcmask 457728
        %v4668 = vsel %vm4667, %v4665, %v4646
        %v4669 = vsel %vm4667, %v4666, %v4648
        %v4670 = vadd.f32 %v4668, 0.0
        %v4671 = vadd.f32 %v4669, 0.0
        %v4672 = vld [vmem:[%s800] sm:$0xff]
        %v4673 = vld [vmem:[%s800 + $0x8] sm:$0xff]
        %v4674 = vld [vmem:[%s800 + $0x10] sm:$0xff]
        %v4675 = vld [vmem:[%s800 + $0x18] sm:$0xff]
        %v4676 = vld [vmem:[%s800 + $0x20] sm:$0xff]
        %v4677 = vld [vmem:[%s800 + $0x28] sm:$0xff]
        %v4678 = vld [vmem:[%s800 + $0x30] sm:$0xff]
        %v4679 = vld [vmem:[%s800 + $0x38] sm:$0xff]
        %v4680 = vld [vmem:[%s808] sm:$0x1]
        %v4682 = vlaneseq
        %v4683 = vshrl.u32 %v4682, 7
        %v4684 = vsub.s32 0, %v4683
        %v4685 = vrot.slane %v4680, %v4684
        %v4689 = vrot.slane %v4671, 7
        %v4690 = vsel %vm962, %v4689, %v4670
        %v4691 = vsel %vm941, %v4690, 0
        %4693 = vmatprep.subr.mxu0 0.0
        %4694 = vmatpush1.msra.mxu0 %v4672
        %4695 = vmatprep.subr.mxu0 0.0
        %4696 = vmatpush1.msra.mxu0 %v4673
        %4697 = vmatprep.subr.mxu0 0.0
        %4698 = vmatpush1.msra.mxu0 %v4674
        %4699 = vmatprep.subr.mxu0 0.0
        %4700 = vmatpush1.msra.mxu0 %v4675
        %4701 = vmatprep.subr.mxu0 0.0
        %4702 = vmatpush1.msra.mxu0 %v4676
        %4703 = vmatprep.subr.mxu0 0.0
        %4704 = vmatpush1.msra.mxu0 %v4677
        %4705 = vmatprep.subr.mxu0 0.0
        %4706 = vmatpush1.msra.mxu0 %v4678
        %4707 = vmatprep.subr.mxu0 0.0
        %4708 = vmatpush1.msra.mxu0 %v4679
        %4709 = vmatprep.subr.mxu0 0.0
        %4710 = vmatpush1.msra.mxu0 0.0
        %4711 = vmatprep.subr.mxu0 0.0
        %4712 = vmatpush1.msra.mxu0 0.0
        %4713 = vmatprep.subr.mxu0 0.0
        %4714 = vmatpush1.msra.mxu0 0.0
        %4715 = vmatprep.subr.mxu0 0.0
        %4716 = vmatpush1.msra.mxu0 0.0
        %4717 = vmatprep.subr.mxu0 0.0
        %4718 = vmatpush1.msra.mxu0 0.0
        %4719 = vmatprep.subr.mxu0 0.0
        %4720 = vmatpush1.msra.mxu0 0.0
        %4721 = vmatprep.subr.mxu0 0.0
        %4722 = vmatpush1.msra.mxu0 0.0
        %4723 = vmatprep.subr.mxu0 0.0
        %4724 = vmatpush1.msra.mxu0 0.0
        %4725 = vmatprep.subr.mxu0 0.0
        %4726 = vmatpush1.msra.mxu0 0.0
        %4727 = vmatprep.subr.mxu0 0.0
        %4728 = vmatpush1.msra.mxu0 0.0
        %4729 = vmatprep.subr.mxu0 0.0
        %4730 = vmatpush1.msra.mxu0 0.0
        %4731 = vmatprep.subr.mxu0 0.0
        %4732 = vmatpush1.msra.mxu0 0.0
        %4733 = vmatprep.subr.mxu0 0.0
        %4734 = vmatpush1.msra.mxu0 0.0
        %4735 = vmatprep.subr.mxu0 0.0
        %4736 = vmatpush1.msra.mxu0 0.0
        %4737 = vmatprep.subr.mxu0 0.0
        %4738 = vmatpush1.msra.mxu0 0.0
        %4739 = vmatprep.subr.mxu0 0.0
        %4740 = vmatpush1.msra.mxu0 0.0
        %4741 = vmatprep.subr.mxu0 0.0
        %4742 = vmatpush1.msra.mxu0 0.0
        %4743 = vmatprep.subr.mxu0 0.0
        %4744 = vmatpush1.msra.mxu0 0.0
        %4745 = vmatprep.subr.mxu0 0.0
        %4746 = vmatpush1.msra.mxu0 0.0
        %4747 = vmatprep.subr.mxu0 0.0
        %4748 = vmatpush1.msra.mxu0 0.0
        %4749 = vmatprep.subr.mxu0 0.0
        %4750 = vmatpush1.msra.mxu0 0.0
        %4751 = vmatprep.subr.mxu0 0.0
        %4752 = vmatpush1.msra.mxu0 0.0
        %4753 = vmatprep.subr.mxu0 0.0
        %4754 = vmatpush1.msra.mxu0 0.0
        %4755 = vmatprep.subr.mxu0 0.0
        %4756 = vmatpush1.msra.mxu0 0.0
        %4757 = vmatprep.mubr.f32.mxu0 0.0
        %4758 = vmatmul.mubr.f32.gmra.mrb[0].mxu0 %v4691
        %v4759 = vpop.f32.mrb[0].mxu0
        %v4760 = vadd.f32 %v4685, %v4759
        %v4761 = vpop.f32.mrb[0].mxu0
        %4762 = vdwg.mxu0
        %4763 = vst.msk [vmem:[%s898] sm:$0x3] %vm965, %v4760
        %s4764 = sand.u32 %s403, 1
        %s4765 = scalar_lea.sflag [#allocation8], %s4764
        %s4766 = sand.u32 %s403, 1
        %s4767 = smul.addr %s4766, 2
        %s4768 = scalar_lea.vmem [#allocation26], %s4767
        %s4769 = sand.u32 %s429, 1
        %s4770 = scalar_lea.sflag [#allocation28], %s4769
        %s4771 = sand.u32 %s429, 1
        %s4772 = smul.addr %s4771, 2
        %s4773 = scalar_lea.vmem [#allocation27], %s4772
        // Predicated region
        $region117: #{forward_pallas.2} parent=67 // pred_check
          %p4774 = pneg %p413
        $region118: #{forward_pallas.2} parent=67 // pred_check_branch
          %4776 = sbr.rel (%p4774) target = $region120
        $region119: #{forward_pallas.2} parent=67 // pred_region
          %s4778 = ssub.s32 32, 32
          %4779 = vsyncadd %s4765, %s4778
          %s4780 = smul.addr %s63, 32
          %s4781 = scalar_lea.hbm %s15, %s4780
          %s4783 = sshll.u32 %s4768, 4
          %s4784 = int_to_ptr.vmem [resolvable:$true] %s4783
          %4786 = dma.vmem_to_hbm [thread:$0]  %s4784, 32, %s4781, %s4765
        $region120: #{forward_pallas.2} parent=67 // pred_fallthru
          _
        // Predicated region
        $region121: #{forward_pallas.2} parent=67 // pred_check
          %p4787 = pneg %p439
        $region122: #{forward_pallas.2} parent=67 // pred_check_branch
          %4789 = sbr.rel (%p4787) target = $region124
        $region123: #{forward_pallas.2} parent=67 // pred_region
          %s4791 = ssub.s32 32, 32
          %4792 = vsyncadd %s4770, %s4791
          %s4793 = smul.addr %s63, 32
          %s4794 = scalar_lea.hbm %s16, %s4793
          %s4796 = sshll.u32 %s4773, 4
          %s4797 = int_to_ptr.vmem [resolvable:$true] %s4796
          %4799 = dma.vmem_to_hbm [thread:$0]  %s4797, 32, %s4794, %s4770
        $region124: #{forward_pallas.2} parent=67 // pred_fallthru
          _
      $region68: #{forward_pallas.2} parent=5 // pred_fallthru
        _
      %p4800 = scmp.le.s32.totalorder 2, %s58
      // Predicated region
      $region125: #{forward_pallas.2} parent=5 // pred_check
        %p4801 = pneg %p4800
      $region126: #{forward_pallas.2} parent=5 // pred_check_branch
        %4803 = sbr.rel (%p4801) target = $region128
      $region127: #{forward_pallas.2} parent=5 // pred_region
        %s4804 = ssub.s32 %s58, 2
        // Predicated region
        $region129: #{forward_pallas.2} parent=127 // pred_check
          %p4805 = pneg %p419
        $region130: #{forward_pallas.2} parent=127 // pred_check_branch
          %4807 = sbr.rel (%p4805) target = $region132
        $region131: #{forward_pallas.2} parent=127 // pred_region
          %s4808 = sand.u32 %s404, 1
          %s4809 = scalar_lea.sflag [#allocation8], %s4808
          %s4810 = sand.u32 %s404, 1
          %s4811 = smul.addr %s4810, 2
          %s4812 = scalar_lea.vmem [#allocation26], %s4811
          %4813 = dma.done %s4809, 32
        $region132: #{forward_pallas.2} parent=127 // pred_fallthru
          _
        // Predicated region
        $region133: #{forward_pallas.2} parent=127 // pred_check
          %p4814 = pneg %p445
        $region134: #{forward_pallas.2} parent=127 // pred_check_branch
          %4816 = sbr.rel (%p4814) target = $region136
        $region135: #{forward_pallas.2} parent=127 // pred_region
          %s4817 = sand.u32 %s430, 1
          %s4818 = scalar_lea.sflag [#allocation28], %s4817
          %s4819 = sand.u32 %s430, 1
          %s4820 = smul.addr %s4819, 2
          %s4821 = scalar_lea.vmem [#allocation27], %s4820
          %4822 = dma.done %s4818, 32
        $region136: #{forward_pallas.2} parent=127 // pred_fallthru
          _
      $region128: #{forward_pallas.2} parent=5 // pred_fallthru
        _
    $region6: #{forward_pallas.2} parent=1 // loop_footer
      %s62 = sadd.s32 1, %s58
    $region7: #{forward_pallas.2} parent=1 // loop_footer_branch
      %57 = sbr.rel target = $region3
    $region8: #{forward_pallas.2} parent=1 // loop_exit
      _
    %4823 = vsyncpa [#allocation7], 1
    %s4824 = scalar_lea.sflag [#allocation7], 1
    %4825 = vsyncpa %s4824, 1
    %4826 = vsyncpa [#allocation10], 1
    %s4827 = scalar_lea.sflag [#allocation10], 1
    %4828 = vsyncpa %s4827, 1
    %4829 = vsyncpa [#allocation13], 1
    %s4830 = scalar_lea.sflag [#allocation13], 1
    %4831 = vsyncpa %s4830, 1
    %4832 = vsyncpa [#allocation16], 1
    %s4833 = scalar_lea.sflag [#allocation16], 1
    %4834 = vsyncpa %s4833, 1
    %4835 = vsyncpa [#allocation19], 1
    %s4836 = scalar_lea.sflag [#allocation19], 1
    %4837 = vsyncpa %s4836, 1
    %4838 = vsyncpa [#allocation22], 1
    %s4839 = scalar_lea.sflag [#allocation22], 1
    %4840 = vsyncpa %s4839, 1
    %4841 = vsyncpa [#allocation25], 1
    %s4842 = scalar_lea.sflag [#allocation25], 1
    %4843 = vsyncpa %s4842, 1
    %4844 = vsyncpa [#allocation8], 1
    %s4845 = scalar_lea.sflag [#allocation8], 1
    %4846 = vsyncpa %s4845, 1
    %4847 = vsyncpa [#allocation28], 1
    %s4848 = scalar_lea.sflag [#allocation28], 1
    %4849 = vsyncpa %s4848, 1

</llo_original>
